<compile_context>
chip_gen: v7x
topology: tpu7x:2x2x1
jax: 0.10.0
libtpu: 0.0.40
codegen_flags: <defaults>
</compile_context>

<pallas_src>
import functools

import numpy as np
import jax
import jax.numpy as jnp
from jax import lax
from jax.experimental import pallas as pl
from jax.experimental.pallas import tpu as pltpu


def _default_tm():
    """Match the query tile to the MXU height (128 on v5e, 256 on v6e/v7x)."""
    try:
        kind = jax.devices()[0].device_kind.lower()
        if "v6" in kind or "v7" in kind:
            return 256
    except Exception:
        pass
    return 128


def _knn_gather_kernel(q_ref, pt_ref, psq_ref, feats_ref, nbr_ref, *,
                       tm, n_pts, k, c, gather_precision):
    """For a tile of TM query points: k nearest neighbors (excluding self)
    over all n_pts database points, and their gathered features, emitted as a
    lane-dense (TM, k*C) slab."""
    q = q_ref[...]          # (TM, 3) f32 query points (tiny block)
    p_t = pt_ref[...]       # (3, N)  f32 database points, lane-dense
    p_sq = psq_ref[...]     # (1, N)  f32 precomputed ||p||^2
    f = feats_ref[...]      # (N, C)  features in their native dtype

    # Pairwise squared distances (same ordering as torch.cdist):
    #   d2[i, j] = ||q_i||^2 + ||p_j||^2 - 2 q_i . p_j
    # single MXU matmul; broadcast adds are free VPU filler underneath it.
    qp = lax.dot_general(q, p_t, (((1,), (0,)), ((), ())),
                         precision=lax.Precision.HIGHEST,
                         preferred_element_type=jnp.float32)      # (TM, N)
    q_sq = jnp.sum(q * q, axis=-1, keepdims=True)                 # (TM, 1)
    d2 = q_sq + p_sq - 2.0 * qp                                   # (TM, N)

    # torch.topk(..., largest=False) column 0 is the self index (distance 0),
    # which the torch code drops -> exclude self up-front via global row idx.
    row = lax.broadcasted_iota(jnp.int32, (tm, n_pts), 0) + pl.program_id(0) * tm
    col = lax.broadcasted_iota(jnp.int32, (tm, n_pts), 1)
    inf = jnp.float32(jnp.inf)
    d2 = jnp.where(row == col, inf, d2)

    # --- selection phase: k iterative min-reductions, indices only ---------
    # (every row has >= k finite entries by construction, so dmin is never
    #  inf and the `d2 <= dmin` tie-break cannot select masked entries)
    sels = []
    for _ in range(k):                                  # k static & small -> unrolled
        dmin = jnp.min(d2, axis=-1, keepdims=True)      # (TM, 1)
        cand = jnp.where(d2 <= dmin, col, n_pts)        # lowest index among ties
        sel = jnp.min(cand, axis=-1, keepdims=True)     # (TM, 1)
        sels.append(sel)
        d2 = jnp.where(col == sel, inf, d2)             # remove selected

    # --- gather phase: k back-to-back one-hot MXU matmuls ------------------
    gs = []
    for sel in sels:
        onehot = (col == sel).astype(f.dtype)           # (TM, N), exact 0/1
        gs.append(lax.dot_general(onehot, f, (((1,), (0,)), ((), ())),
                                  precision=gather_precision,
                                  preferred_element_type=jnp.float32))  # (TM, C)

    # One wide lane-dense store of the whole tile's neighbor features.
    nbr_ref[...] = jnp.concatenate(gs, axis=1).astype(nbr_ref.dtype)


def knn_gather(points, feats, k, tm=None):
    """k-NN (excluding self) + feature gather.  Returns (N, k, C) features."""
    if tm is None:
        tm = _default_tm()
    n, dim = points.shape
    c = feats.shape[1]
    points = points.astype(jnp.float32)

    n_pad = ((n + tm - 1) // tm) * tm
    if n_pad != n:
        # Pad with far-away, mutually distinct sentinel points; they are never
        # selected as neighbors of real points because k <= n - 1 real
        # neighbors always exist at much smaller distance.
        pad = n_pad - n
        far = 1e6 * (1.0 + jnp.arange(pad, dtype=jnp.float32))[:, None]
        points = jnp.concatenate(
            [points, jnp.broadcast_to(far, (pad, dim))], axis=0)
        feats = jnp.concatenate([feats, jnp.zeros((pad, c), feats.dtype)], axis=0)

    points_t = points.T                                        # (3, N) lane-dense
    p_sq = jnp.sum(points * points, axis=1)[None, :]           # (1, N), computed once

    # One-hot gather is exact in a single bf16 MXU pass for bf16 features;
    # f32 features need the multi-pass (HIGHEST) split to pass through exactly.
    if feats.dtype == jnp.float32:
        gather_prec = lax.Precision.HIGHEST
    else:
        gather_prec = lax.Precision.DEFAULT

    # Rough VMEM budget (double-buffered inputs/outputs + d2/onehot temps);
    # only raise the scoped limit when the defaults would be exceeded.
    f_item = np.dtype(feats.dtype).itemsize
    est = (2 * ((tm * dim + dim * n_pad + n_pad) * 4 + n_pad * c * f_item
                + tm * k * c * f_item)
           + 3 * tm * n_pad * 4)
    vmem_limit = None if est <= 12 * 2**20 else int(min(2 * est, 64 * 2**20))

    kernel = functools.partial(_knn_gather_kernel, tm=tm, n_pts=n_pad, k=k,
                               c=c, gather_precision=gather_prec)
    nbr = pl.pallas_call(
        kernel,
        out_shape=jax.ShapeDtypeStruct((n_pad, k * c), feats.dtype),
        grid=(n_pad // tm,),
        in_specs=[
            pl.BlockSpec((tm, dim), lambda i: (i, 0)),       # query tile (TM, 3)
            pl.BlockSpec((dim, n_pad), lambda i: (0, 0)),    # database points (3, N)
            pl.BlockSpec((1, n_pad), lambda i: (0, 0)),      # ||p||^2 (1, N)
            pl.BlockSpec((n_pad, c), lambda i: (0, 0)),      # features (N, C)
        ],
        out_specs=pl.BlockSpec((tm, k * c), lambda i: (i, 0)),
        compiler_params=pltpu.CompilerParams(
            dimension_semantics=("parallel",),
            vmem_limit_bytes=vmem_limit),
    )(points, points_t, p_sq, feats)

    return nbr[:n].reshape(n, k, c)


class MultiScaleLocalPatchesPallas:
    """JAX/Pallas re-implementation of MultiScaleLocalPatchesTorch.forward."""

    def __init__(self, scale_index, scale):
        self.scale_index = scale_index
        self.scale = scale

    def __call__(self, feats_c_norm, point_c_norm, f_masks):
        if f_masks is None:
            f_masks = np.ones((feats_c_norm.shape[0],), dtype=bool)
        # torch.nonzero / boolean row selection has a dynamic output shape ->
        # host-side glue (cannot be traced with a traced mask).
        f_indices = np.nonzero(np.asarray(f_masks))[0]
        feats = jnp.asarray(feats_c_norm)[f_indices]
        points = jnp.asarray(point_c_norm)[f_indices]

        n, c = feats.shape
        out = {0: feats}
        eff_scales = [min(int(s), n - 1) for s in self.scale]
        k = max(eff_scales) if eff_scales else 0

        if k > 0:
            nbr = knn_gather(points, feats, k)                 # (N, K, C)
        else:
            nbr = jnp.zeros((n, 0, c), feats.dtype)

        si = self.scale_index
        for s in eff_scales:
            out[si] = nbr[:, :s, :].reshape(n, s * c)
            si += 1
        return out


def reference_forward(feats, points, f_masks, scale_index, scale):
    """NumPy reference mirroring the torch forward (float64 distances)."""
    feats = np.asarray(feats)
    points = np.asarray(points, dtype=np.float64)
    if f_masks is None:
        f_masks = np.ones((feats.shape[0],), dtype=bool)
    sel = np.nonzero(np.asarray(f_masks))[0]
    feats = feats[sel]
    points = points[sel]
    n = feats.shape[0]
    out = {0: feats}
    d = np.sqrt(((points[:, None, :] - points[None, :, :]) ** 2).sum(-1))
    si = scale_index
    for s in scale:
        s = min(int(s), n - 1)
        order = np.argsort(d, axis=1, kind="stable")[:, 1:s + 1]
        out[si] = feats[order].reshape(n, -1)
        si += 1
    return out


if __name__ == "__main__":
    key = jax.random.PRNGKey(0)
    k1, k2 = jax.random.split(key)

    n_total, c = 24, 8
    scale_index, scale = 1, (2, 4)

    feats_c_norm = jax.random.normal(k1, (n_total, c), dtype=jnp.float32)
    point_c_norm = jax.random.normal(k2, (n_total, 3), dtype=jnp.float32)
    # mask drops every 3rd point -> 16 valid points survive
    f_masks = jnp.asarray(np.arange(n_total) % 3 != 2)

    module = MultiScaleLocalPatchesPallas(scale_index=scale_index, scale=scale)
    out = module(feats_c_norm, point_c_norm, f_masks)
    jax.block_until_ready(jax.tree_util.tree_leaves(out))

    ref = reference_forward(feats_c_norm, point_c_norm, f_masks, scale_index, scale)
    assert set(out.keys()) == set(ref.keys())
    for key_i in sorted(ref.keys()):
        np.testing.assert_allclose(np.asarray(out[key_i]), ref[key_i],
                                   rtol=1e-5, atol=1e-5)

    print("KERNEL_OK")
</pallas_src>

<mosaic_0001>
module attributes {stable_mosaic.version = 11 : i64} {
  func.func @_knn_gather_kernel(%arg0: i32, %arg1: memref<128x3xf32, #tpu.memory_space<vmem>>, %arg2: memref<3x128xf32, #tpu.memory_space<vmem>>, %arg3: memref<1x128xf32, #tpu.memory_space<vmem>>, %arg4: memref<128x8xf32, #tpu.memory_space<vmem>>, %arg5: memref<128x32xf32, #tpu.memory_space<vmem>>) attributes {dimension_semantics = [#tpu.dimension_semantics<parallel>], iteration_bounds = array<i64: 1>, scalar_prefetch = 0 : i64, scratch_operands = 0 : i64, tpu.core_type = #tpu.core_type<tc>, window_params = [{transform_indices = @transform_0, window_bounds = array<i64: 128, 3>}, {pipeline_mode = #tpu.pipeline_mode<synchronous>, transform_indices = @transform_1, window_bounds = array<i64: 3, 128>}, {pipeline_mode = #tpu.pipeline_mode<synchronous>, transform_indices = @transform_2, window_bounds = array<i64: 1, 128>}, {pipeline_mode = #tpu.pipeline_mode<synchronous>, transform_indices = @transform_3, window_bounds = array<i64: 128, 8>}, {transform_indices = @transform_4, window_bounds = array<i64: 128, 32>}]} {
    %c0 = arith.constant 0 : index
    %c0_0 = arith.constant 0 : index
    %0 = vector.load %arg1[%c0, %c0_0] : memref<128x3xf32, #tpu.memory_space<vmem>>, vector<128x3xf32>
    %c0_1 = arith.constant 0 : index
    %c0_2 = arith.constant 0 : index
    %1 = vector.load %arg2[%c0_1, %c0_2] : memref<3x128xf32, #tpu.memory_space<vmem>>, vector<3x128xf32>
    %c0_3 = arith.constant 0 : index
    %c0_4 = arith.constant 0 : index
    %2 = vector.load %arg3[%c0_3, %c0_4] : memref<1x128xf32, #tpu.memory_space<vmem>>, vector<1x128xf32>
    %c0_5 = arith.constant 0 : index
    %c0_6 = arith.constant 0 : index
    %3 = vector.load %arg4[%c0_5, %c0_6] : memref<128x8xf32, #tpu.memory_space<vmem>>, vector<128x8xf32>
    %cst = arith.constant dense<0.000000e+00> : vector<128x128xf32>
    %4 = tpu.matmul %0, %1, %cst {dimension_numbers = #tpu.dot_dimension_numbers<[1], [0], [0], [1], [0, 0, 1, 1], [], []>, precision = #tpu.contract_precision<fp32>} : vector<128x3xf32>, vector<3x128xf32>, vector<128x128xf32> -> vector<128x128xf32>
    %5 = arith.mulf %0, %0 : vector<128x3xf32>
    %cst_7 = arith.constant dense<0.000000e+00> : vector<128xf32>
    %6 = vector.multi_reduction <add>, %5, %cst_7 [1] : vector<128x3xf32> to vector<128xf32>
    %7 = vector.shape_cast %6 : vector<128xf32> to vector<128x1xf32>
    %8 = vector.broadcast %7 : vector<128x1xf32> to vector<128x128xf32>
    %9 = vector.broadcast %2 : vector<1x128xf32> to vector<128x128xf32>
    %10 = arith.addf %8, %9 : vector<128x128xf32>
    %cst_8 = arith.constant 2.000000e+00 : f32
    %11 = vector.broadcast %cst_8 : f32 to vector<128x128xf32>
    %12 = arith.mulf %11, %4 : vector<128x128xf32>
    %13 = arith.subf %10, %12 : vector<128x128xf32>
    %14 = tpu.iota {dimensions = array<i32: 0>} : vector<128x128xi32>
    %c128_i32 = arith.constant 128 : i32
    %15 = arith.muli %arg0, %c128_i32 : i32
    %16 = vector.broadcast %15 : i32 to vector<128x128xi32>
    %17 = arith.addi %14, %16 : vector<128x128xi32>
    %18 = tpu.iota {dimensions = array<i32: 1>} : vector<128x128xi32>
    %19 = arith.cmpi eq, %17, %18 : vector<128x128xi32>
    %cst_9 = arith.constant 0x7F800000 : f32
    %20 = vector.broadcast %cst_9 : f32 to vector<128x128xf32>
    %21 = arith.select %19, %20, %13 : vector<128x128xi1>, vector<128x128xf32>
    %cst_10 = arith.constant dense<0x7F800000> : vector<128xf32>
    %22 = vector.multi_reduction <minimumf>, %21, %cst_10 [1] : vector<128x128xf32> to vector<128xf32>
    %23 = vector.shape_cast %22 : vector<128xf32> to vector<128x1xf32>
    %24 = vector.broadcast %23 : vector<128x1xf32> to vector<128x128xf32>
    %25 = arith.cmpf ole, %21, %24 : vector<128x128xf32>
    %c128_i32_11 = arith.constant 128 : i32
    %26 = vector.broadcast %c128_i32_11 : i32 to vector<128x128xi32>
    %27 = arith.select %25, %18, %26 : vector<128x128xi1>, vector<128x128xi32>
    %cst_12 = arith.constant dense<2147483647> : vector<128xi32>
    %28 = vector.multi_reduction <minsi>, %27, %cst_12 [1] : vector<128x128xi32> to vector<128xi32>
    %29 = vector.shape_cast %28 : vector<128xi32> to vector<128x1xi32>
    %30 = vector.broadcast %29 : vector<128x1xi32> to vector<128x128xi32>
    %31 = arith.cmpi eq, %18, %30 : vector<128x128xi32>
    %cst_13 = arith.constant 0x7F800000 : f32
    %32 = vector.broadcast %cst_13 : f32 to vector<128x128xf32>
    %33 = arith.select %31, %32, %21 : vector<128x128xi1>, vector<128x128xf32>
    %cst_14 = arith.constant dense<0x7F800000> : vector<128xf32>
    %34 = vector.multi_reduction <minimumf>, %33, %cst_14 [1] : vector<128x128xf32> to vector<128xf32>
    %35 = vector.shape_cast %34 : vector<128xf32> to vector<128x1xf32>
    %36 = vector.broadcast %35 : vector<128x1xf32> to vector<128x128xf32>
    %37 = arith.cmpf ole, %33, %36 : vector<128x128xf32>
    %c128_i32_15 = arith.constant 128 : i32
    %38 = vector.broadcast %c128_i32_15 : i32 to vector<128x128xi32>
    %39 = arith.select %37, %18, %38 : vector<128x128xi1>, vector<128x128xi32>
    %cst_16 = arith.constant dense<2147483647> : vector<128xi32>
    %40 = vector.multi_reduction <minsi>, %39, %cst_16 [1] : vector<128x128xi32> to vector<128xi32>
    %41 = vector.shape_cast %40 : vector<128xi32> to vector<128x1xi32>
    %42 = vector.broadcast %41 : vector<128x1xi32> to vector<128x128xi32>
    %43 = arith.cmpi eq, %18, %42 : vector<128x128xi32>
    %cst_17 = arith.constant 0x7F800000 : f32
    %44 = vector.broadcast %cst_17 : f32 to vector<128x128xf32>
    %45 = arith.select %43, %44, %33 : vector<128x128xi1>, vector<128x128xf32>
    %cst_18 = arith.constant dense<0x7F800000> : vector<128xf32>
    %46 = vector.multi_reduction <minimumf>, %45, %cst_18 [1] : vector<128x128xf32> to vector<128xf32>
    %47 = vector.shape_cast %46 : vector<128xf32> to vector<128x1xf32>
    %48 = vector.broadcast %47 : vector<128x1xf32> to vector<128x128xf32>
    %49 = arith.cmpf ole, %45, %48 : vector<128x128xf32>
    %c128_i32_19 = arith.constant 128 : i32
    %50 = vector.broadcast %c128_i32_19 : i32 to vector<128x128xi32>
    %51 = arith.select %49, %18, %50 : vector<128x128xi1>, vector<128x128xi32>
    %cst_20 = arith.constant dense<2147483647> : vector<128xi32>
    %52 = vector.multi_reduction <minsi>, %51, %cst_20 [1] : vector<128x128xi32> to vector<128xi32>
    %53 = vector.shape_cast %52 : vector<128xi32> to vector<128x1xi32>
    %54 = vector.broadcast %53 : vector<128x1xi32> to vector<128x128xi32>
    %55 = arith.cmpi eq, %18, %54 : vector<128x128xi32>
    %cst_21 = arith.constant 0x7F800000 : f32
    %56 = vector.broadcast %cst_21 : f32 to vector<128x128xf32>
    %57 = arith.select %55, %56, %45 : vector<128x128xi1>, vector<128x128xf32>
    %cst_22 = arith.constant dense<0x7F800000> : vector<128xf32>
    %58 = vector.multi_reduction <minimumf>, %57, %cst_22 [1] : vector<128x128xf32> to vector<128xf32>
    %59 = vector.shape_cast %58 : vector<128xf32> to vector<128x1xf32>
    %60 = vector.broadcast %59 : vector<128x1xf32> to vector<128x128xf32>
    %61 = arith.cmpf ole, %57, %60 : vector<128x128xf32>
    %c128_i32_23 = arith.constant 128 : i32
    %62 = vector.broadcast %c128_i32_23 : i32 to vector<128x128xi32>
    %63 = arith.select %61, %18, %62 : vector<128x128xi1>, vector<128x128xi32>
    %cst_24 = arith.constant dense<2147483647> : vector<128xi32>
    %64 = vector.multi_reduction <minsi>, %63, %cst_24 [1] : vector<128x128xi32> to vector<128xi32>
    %65 = vector.shape_cast %64 : vector<128xi32> to vector<128x1xi32>
    %66 = vector.broadcast %29 : vector<128x1xi32> to vector<128x128xi32>
    %67 = arith.cmpi eq, %18, %66 : vector<128x128xi32>
    %68 = arith.extui %67 : vector<128x128xi1> to vector<128x128xi32>
    %69 = arith.sitofp %68 : vector<128x128xi32> to vector<128x128xf32>
    %cst_25 = arith.constant dense<0.000000e+00> : vector<128x8xf32>
    %70 = tpu.matmul %69, %3, %cst_25 {dimension_numbers = #tpu.dot_dimension_numbers<[1], [0], [0], [1], [0, 0, 1, 1], [], []>, precision = #tpu.contract_precision<fp32>} : vector<128x128xf32>, vector<128x8xf32>, vector<128x8xf32> -> vector<128x8xf32>
    %71 = vector.broadcast %41 : vector<128x1xi32> to vector<128x128xi32>
    %72 = arith.cmpi eq, %18, %71 : vector<128x128xi32>
    %73 = arith.extui %72 : vector<128x128xi1> to vector<128x128xi32>
    %74 = arith.sitofp %73 : vector<128x128xi32> to vector<128x128xf32>
    %cst_26 = arith.constant dense<0.000000e+00> : vector<128x8xf32>
    %75 = tpu.matmul %74, %3, %cst_26 {dimension_numbers = #tpu.dot_dimension_numbers<[1], [0], [0], [1], [0, 0, 1, 1], [], []>, precision = #tpu.contract_precision<fp32>} : vector<128x128xf32>, vector<128x8xf32>, vector<128x8xf32> -> vector<128x8xf32>
    %76 = vector.broadcast %53 : vector<128x1xi32> to vector<128x128xi32>
    %77 = arith.cmpi eq, %18, %76 : vector<128x128xi32>
    %78 = arith.extui %77 : vector<128x128xi1> to vector<128x128xi32>
    %79 = arith.sitofp %78 : vector<128x128xi32> to vector<128x128xf32>
    %cst_27 = arith.constant dense<0.000000e+00> : vector<128x8xf32>
    %80 = tpu.matmul %79, %3, %cst_27 {dimension_numbers = #tpu.dot_dimension_numbers<[1], [0], [0], [1], [0, 0, 1, 1], [], []>, precision = #tpu.contract_precision<fp32>} : vector<128x128xf32>, vector<128x8xf32>, vector<128x8xf32> -> vector<128x8xf32>
    %81 = vector.broadcast %65 : vector<128x1xi32> to vector<128x128xi32>
    %82 = arith.cmpi eq, %18, %81 : vector<128x128xi32>
    %83 = arith.extui %82 : vector<128x128xi1> to vector<128x128xi32>
    %84 = arith.sitofp %83 : vector<128x128xi32> to vector<128x128xf32>
    %cst_28 = arith.constant dense<0.000000e+00> : vector<128x8xf32>
    %85 = tpu.matmul %84, %3, %cst_28 {dimension_numbers = #tpu.dot_dimension_numbers<[1], [0], [0], [1], [0, 0, 1, 1], [], []>, precision = #tpu.contract_precision<fp32>} : vector<128x128xf32>, vector<128x8xf32>, vector<128x8xf32> -> vector<128x8xf32>
    %86 = tpu.concatenate %70, %75, %80, %85 in 1 : vector<128x8xf32>, vector<128x8xf32>, vector<128x8xf32>, vector<128x8xf32> -> vector<128x32xf32>
    %c0_29 = arith.constant 0 : index
    %c0_30 = arith.constant 0 : index
    %87 = vector.load %arg5[%c0_29, %c0_30] : memref<128x32xf32, #tpu.memory_space<vmem>>, vector<128x32xf32>
    tpu.vector_store %arg5[%c0_29, %c0_30], %86 {strides = array<i32>} : memref<128x32xf32, #tpu.memory_space<vmem>>, vector<128x32xf32>,
    return
  }
  func.func @transform_0(%arg0: i32) -> (i32, i32) {
    %c0_i32 = arith.constant 0 : i32
    %c0_i32_0 = arith.constant 0 : i32
    return %arg0, %c0_i32 : i32, i32
  }
  func.func @transform_1(%arg0: i32) -> (i32, i32) {
    %c0_i32 = arith.constant 0 : i32
    %c0_i32_0 = arith.constant 0 : i32
    %c0_i32_1 = arith.constant 0 : i32
    return %c0_i32, %c0_i32_0 : i32, i32
  }
  func.func @transform_2(%arg0: i32) -> (i32, i32) {
    %c0_i32 = arith.constant 0 : i32
    %c0_i32_0 = arith.constant 0 : i32
    %c0_i32_1 = arith.constant 0 : i32
    return %c0_i32, %c0_i32_0 : i32, i32
  }
  func.func @transform_3(%arg0: i32) -> (i32, i32) {
    %c0_i32 = arith.constant 0 : i32
    %c0_i32_0 = arith.constant 0 : i32
    %c0_i32_1 = arith.constant 0 : i32
    return %c0_i32, %c0_i32_0 : i32, i32
  }
  func.func @transform_4(%arg0: i32) -> (i32, i32) {
    %c0_i32 = arith.constant 0 : i32
    %c0_i32_0 = arith.constant 0 : i32
    return %arg0, %c0_i32 : i32, i32
  }
}

</mosaic_0001>

<llo_original>
// kernel: tpu_custom_call.1
$region0: #{tpu_custom_call.1}
  #allocation0 [shape = 'u32[]', space=smem, size = 0x4, offset = 0x4, fixed_abs, tag = 'smem constant byte address 0x4 - core index']
  #allocation1 [shape = 'u32[144,128]{1,0:T(1,128)}', space=vmem, size = 0x12000, scoped, tag = 'internal scratch']
  %s0 = inlined_call_operand.vmem [shape: f32[128,3], index: 0, kind: input, shape index: {}]
  %s1 = inlined_call_operand.vmem [shape: f32[3,128], index: 1, kind: input, shape index: {}]
  %s2 = inlined_call_operand.vmem [shape: f32[1,128], index: 2, kind: input, shape index: {}]
  %s3 = inlined_call_operand.vmem [shape: f32[128,8], index: 3, kind: input, shape index: {}]
  %s4 = inlined_call_operand.vmem [shape: f32[128,32], index: 4, kind: output, shape index: {}]
  %s5 = sld [smem:[#allocation0]]
  $region26: #{tpu_custom_call.1} parent=0
    _
  %s7 = ssub.s32 1, %s5
  %s8 = scalar_select 0, %s7, %s5
  // Predicated region
  $region2: #{tpu_custom_call.1} parent=0 // pred_check
    _
  $region3: #{tpu_custom_call.1} parent=0 // pred_check_branch
    %10 = sbr.rel (0) target = $region5
  $region4: #{tpu_custom_call.1} parent=0 // pred_region
    _
  $region5: #{tpu_custom_call.1} parent=0 // pred_fallthru
    _
  // Predicated region
  $region6: #{tpu_custom_call.1} parent=0 // pred_check
    _
  $region7: #{tpu_custom_call.1} parent=0 // pred_check_branch
    %12 = sbr.rel (0) target = $region9
  $region8: #{tpu_custom_call.1} parent=0 // pred_region
    _
  $region9: #{tpu_custom_call.1} parent=0 // pred_fallthru
    _
  // Predicated region
  $region10: #{tpu_custom_call.1} parent=0 // pred_check
    _
  $region11: #{tpu_custom_call.1} parent=0 // pred_check_branch
    %14 = sbr.rel (0) target = $region13
  $region12: #{tpu_custom_call.1} parent=0 // pred_region
    _
  $region13: #{tpu_custom_call.1} parent=0 // pred_fallthru
    _
  // Predicated region
  $region14: #{tpu_custom_call.1} parent=0 // pred_check
    _
  $region15: #{tpu_custom_call.1} parent=0 // pred_check_branch
    %16 = sbr.rel (0) target = $region17
  $region16: #{tpu_custom_call.1} parent=0 // pred_region
    _
  $region17: #{tpu_custom_call.1} parent=0 // pred_fallthru
    _
  %v17 = vld [vmem:[%s0] sm:$0xff]
  %v18 = vld [vmem:[%s0 + $0x8] sm:$0xff]
  %v19 = vld [vmem:[%s0 + $0x10] sm:$0xff]
  %v20 = vld [vmem:[%s0 + $0x18] sm:$0xff]
  %v21 = vld [vmem:[%s0 + $0x20] sm:$0xff]
  %v22 = vld [vmem:[%s0 + $0x28] sm:$0xff]
  %v23 = vld [vmem:[%s0 + $0x30] sm:$0xff]
  %v24 = vld [vmem:[%s0 + $0x38] sm:$0xff]
  %v25 = vld [vmem:[%s0 + $0x40] sm:$0xff]
  %v26 = vld [vmem:[%s0 + $0x48] sm:$0xff]
  %v27 = vld [vmem:[%s0 + $0x50] sm:$0xff]
  %v28 = vld [vmem:[%s0 + $0x58] sm:$0xff]
  %v29 = vld [vmem:[%s0 + $0x60] sm:$0xff]
  %v30 = vld [vmem:[%s0 + $0x68] sm:$0xff]
  %v31 = vld [vmem:[%s0 + $0x70] sm:$0xff]
  %v32 = vld [vmem:[%s0 + $0x78] sm:$0xff]
  %v33 = vld [vmem:[%s1] sm:$0x7]
  %v34 = vld [vmem:[%s2] sm:$0x1]
  %v35 = vld [vmem:[%s3] sm:$0xff]
  %v36 = vld [vmem:[%s3 + $0x8] sm:$0xff]
  %v37 = vld [vmem:[%s3 + $0x10] sm:$0xff]
  %v38 = vld [vmem:[%s3 + $0x18] sm:$0xff]
  %v39 = vld [vmem:[%s3 + $0x20] sm:$0xff]
  %v40 = vld [vmem:[%s3 + $0x28] sm:$0xff]
  %v41 = vld [vmem:[%s3 + $0x30] sm:$0xff]
  %v42 = vld [vmem:[%s3 + $0x38] sm:$0xff]
  %v43 = vld [vmem:[%s3 + $0x40] sm:$0xff]
  %v44 = vld [vmem:[%s3 + $0x48] sm:$0xff]
  %v45 = vld [vmem:[%s3 + $0x50] sm:$0xff]
  %v46 = vld [vmem:[%s3 + $0x58] sm:$0xff]
  %v47 = vld [vmem:[%s3 + $0x60] sm:$0xff]
  %v48 = vld [vmem:[%s3 + $0x68] sm:$0xff]
  %v49 = vld [vmem:[%s3 + $0x70] sm:$0xff]
  %v50 = vld [vmem:[%s3 + $0x78] sm:$0xff]
  %vm51 = vcmask 23552
  %v53 = vsel %vm51, %v17, 0
  %v56 = vsel %vm51, %v18, 0
  %v59 = vsel %vm51, %v19, 0
  %v62 = vsel %vm51, %v20, 0
  %v65 = vsel %vm51, %v21, 0
  %v68 = vsel %vm51, %v22, 0
  %v71 = vsel %vm51, %v23, 0
  %v74 = vsel %vm51, %v24, 0
  %v77 = vsel %vm51, %v25, 0
  %v80 = vsel %vm51, %v26, 0
  %v83 = vsel %vm51, %v27, 0
  %v86 = vsel %vm51, %v28, 0
  %v89 = vsel %vm51, %v29, 0
  %v92 = vsel %vm51, %v30, 0
  %v95 = vsel %vm51, %v31, 0
  %v98 = vsel %vm51, %v32, 0
  %vm100 = vcmask 1042432
  %v102 = vsel %vm100, %v33, 0
  %104 = vmatprep.subr.mxu0 0.0
  %v105 = vand.u32 %v102, 4294901760
  %106 = vmatpush1.msra.mxu0 %v105
  %107 = vmatprep.subr.mxu0 0.0
  %108 = vmatpush1.msra.mxu0 0.0
  %109 = vmatprep.subr.mxu0 0.0
  %110 = vmatpush1.msra.mxu0 0.0
  %111 = vmatprep.subr.mxu0 0.0
  %112 = vmatpush1.msra.mxu0 0.0
  %113 = vmatprep.subr.mxu0 0.0
  %114 = vmatpush1.msra.mxu0 0.0
  %115 = vmatprep.subr.mxu0 0.0
  %116 = vmatpush1.msra.mxu0 0.0
  %117 = vmatprep.subr.mxu0 0.0
  %118 = vmatpush1.msra.mxu0 0.0
  %119 = vmatprep.subr.mxu0 0.0
  %120 = vmatpush1.msra.mxu0 0.0
  %121 = vmatprep.subr.mxu0 0.0
  %122 = vmatpush1.msra.mxu0 0.0
  %123 = vmatprep.subr.mxu0 0.0
  %124 = vmatpush1.msra.mxu0 0.0
  %125 = vmatprep.subr.mxu0 0.0
  %126 = vmatpush1.msra.mxu0 0.0
  %127 = vmatprep.subr.mxu0 0.0
  %128 = vmatpush1.msra.mxu0 0.0
  %129 = vmatprep.subr.mxu0 0.0
  %130 = vmatpush1.msra.mxu0 0.0
  %131 = vmatprep.subr.mxu0 0.0
  %132 = vmatpush1.msra.mxu0 0.0
  %133 = vmatprep.subr.mxu0 0.0
  %134 = vmatpush1.msra.mxu0 0.0
  %135 = vmatprep.subr.mxu0 0.0
  %136 = vmatpush1.msra.mxu0 0.0
  %137 = vmatprep.subr.mxu0 0.0
  %138 = vmatpush1.msra.mxu0 0.0
  %139 = vmatprep.subr.mxu0 0.0
  %140 = vmatpush1.msra.mxu0 0.0
  %141 = vmatprep.subr.mxu0 0.0
  %142 = vmatpush1.msra.mxu0 0.0
  %143 = vmatprep.subr.mxu0 0.0
  %144 = vmatpush1.msra.mxu0 0.0
  %145 = vmatprep.subr.mxu0 0.0
  %146 = vmatpush1.msra.mxu0 0.0
  %147 = vmatprep.subr.mxu0 0.0
  %148 = vmatpush1.msra.mxu0 0.0
  %149 = vmatprep.subr.mxu0 0.0
  %150 = vmatpush1.msra.mxu0 0.0
  %151 = vmatprep.subr.mxu0 0.0
  %152 = vmatpush1.msra.mxu0 0.0
  %153 = vmatprep.subr.mxu0 0.0
  %154 = vmatpush1.msra.mxu0 0.0
  %155 = vmatprep.subr.mxu0 0.0
  %156 = vmatpush1.msra.mxu0 0.0
  %157 = vmatprep.subr.mxu0 0.0
  %158 = vmatpush1.msra.mxu0 0.0
  %159 = vmatprep.subr.mxu0 0.0
  %160 = vmatpush1.msra.mxu0 0.0
  %161 = vmatprep.subr.mxu0 0.0
  %162 = vmatpush1.msra.mxu0 0.0
  %163 = vmatprep.subr.mxu0 0.0
  %164 = vmatpush1.msra.mxu0 0.0
  %165 = vmatprep.subr.mxu0 0.0
  %166 = vmatpush1.msra.mxu0 0.0
  %167 = vmatprep.subr.mxu0 0.0
  %168 = vmatpush1.msra.mxu0 0.0
  %169 = vmatprep.mubr.f32.mxu0 0.0
  %v170 = vand.u32 %v53, 4294901760
  %v171 = vsub.f32 %v53, %v170
  %v172 = vand.u32 %v171, 4294901760
  %v173 = vsub.f32 %v171, %v172
  %v174 = vand.u32 %v173, 4294901760
  %175 = vmatmul.mubr.f32.gmra.mrb[0].mxu0 %v174
  %v176 = vpop.f32.mrb[0].mxu0
  %v177 = vadd.f32 0.0, %v176
  %v178 = vpop.f32.mrb[0].mxu0
  %179 = vmatprep.mubr.f32.mxu0 0.0
  %v180 = vand.u32 %v56, 4294901760
  %v181 = vsub.f32 %v56, %v180
  %v182 = vand.u32 %v181, 4294901760
  %v183 = vsub.f32 %v181, %v182
  %v184 = vand.u32 %v183, 4294901760
  %185 = vmatmul.mubr.f32.gmra.mrb[0].mxu0 %v184
  %v186 = vpop.f32.mrb[0].mxu0
  %v187 = vadd.f32 0.0, %v186
  %v188 = vpop.f32.mrb[0].mxu0
  %189 = vmatprep.mubr.f32.mxu0 0.0
  %v190 = vand.u32 %v59, 4294901760
  %v191 = vsub.f32 %v59, %v190
  %v192 = vand.u32 %v191, 4294901760
  %v193 = vsub.f32 %v191, %v192
  %v194 = vand.u32 %v193, 4294901760
  %195 = vmatmul.mubr.f32.gmra.mrb[0].mxu0 %v194
  %v196 = vpop.f32.mrb[0].mxu0
  %v197 = vadd.f32 0.0, %v196
  %v198 = vpop.f32.mrb[0].mxu0
  %199 = vmatprep.mubr.f32.mxu0 0.0
  %v200 = vand.u32 %v62, 4294901760
  %v201 = vsub.f32 %v62, %v200
  %v202 = vand.u32 %v201, 4294901760
  %v203 = vsub.f32 %v201, %v202
  %v204 = vand.u32 %v203, 4294901760
  %205 = vmatmul.mubr.f32.gmra.mrb[0].mxu0 %v204
  %v206 = vpop.f32.mrb[0].mxu0
  %v207 = vadd.f32 0.0, %v206
  %v208 = vpop.f32.mrb[0].mxu0
  %209 = vmatprep.mubr.f32.mxu0 0.0
  %v210 = vand.u32 %v65, 4294901760
  %v211 = vsub.f32 %v65, %v210
  %v212 = vand.u32 %v211, 4294901760
  %v213 = vsub.f32 %v211, %v212
  %v214 = vand.u32 %v213, 4294901760
  %215 = vmatmul.mubr.f32.gmra.mrb[0].mxu0 %v214
  %v216 = vpop.f32.mrb[0].mxu0
  %v217 = vadd.f32 0.0, %v216
  %v218 = vpop.f32.mrb[0].mxu0
  %219 = vmatprep.mubr.f32.mxu0 0.0
  %v220 = vand.u32 %v68, 4294901760
  %v221 = vsub.f32 %v68, %v220
  %v222 = vand.u32 %v221, 4294901760
  %v223 = vsub.f32 %v221, %v222
  %v224 = vand.u32 %v223, 4294901760
  %225 = vmatmul.mubr.f32.gmra.mrb[0].mxu0 %v224
  %v226 = vpop.f32.mrb[0].mxu0
  %v227 = vadd.f32 0.0, %v226
  %v228 = vpop.f32.mrb[0].mxu0
  %229 = vmatprep.mubr.f32.mxu0 0.0
  %v230 = vand.u32 %v71, 4294901760
  %v231 = vsub.f32 %v71, %v230
  %v232 = vand.u32 %v231, 4294901760
  %v233 = vsub.f32 %v231, %v232
  %v234 = vand.u32 %v233, 4294901760
  %235 = vmatmul.mubr.f32.gmra.mrb[0].mxu0 %v234
  %v236 = vpop.f32.mrb[0].mxu0
  %v237 = vadd.f32 0.0, %v236
  %v238 = vpop.f32.mrb[0].mxu0
  %239 = vmatprep.mubr.f32.mxu0 0.0
  %v240 = vand.u32 %v74, 4294901760
  %v241 = vsub.f32 %v74, %v240
  %v242 = vand.u32 %v241, 4294901760
  %v243 = vsub.f32 %v241, %v242
  %v244 = vand.u32 %v243, 4294901760
  %245 = vmatmul.mubr.f32.gmra.mrb[0].mxu0 %v244
  %v246 = vpop.f32.mrb[0].mxu0
  %v247 = vadd.f32 0.0, %v246
  %v248 = vpop.f32.mrb[0].mxu0
  %249 = vmatprep.mubr.f32.mxu0 0.0
  %v250 = vand.u32 %v77, 4294901760
  %v251 = vsub.f32 %v77, %v250
  %v252 = vand.u32 %v251, 4294901760
  %v253 = vsub.f32 %v251, %v252
  %v254 = vand.u32 %v253, 4294901760
  %255 = vmatmul.mubr.f32.gmra.mrb[0].mxu0 %v254
  %v256 = vpop.f32.mrb[0].mxu0
  %v257 = vadd.f32 0.0, %v256
  %v258 = vpop.f32.mrb[0].mxu0
  %259 = vmatprep.mubr.f32.mxu0 0.0
  %v260 = vand.u32 %v80, 4294901760
  %v261 = vsub.f32 %v80, %v260
  %v262 = vand.u32 %v261, 4294901760
  %v263 = vsub.f32 %v261, %v262
  %v264 = vand.u32 %v263, 4294901760
  %265 = vmatmul.mubr.f32.gmra.mrb[0].mxu0 %v264
  %v266 = vpop.f32.mrb[0].mxu0
  %v267 = vadd.f32 0.0, %v266
  %v268 = vpop.f32.mrb[0].mxu0
  %269 = vmatprep.mubr.f32.mxu0 0.0
  %v270 = vand.u32 %v83, 4294901760
  %v271 = vsub.f32 %v83, %v270
  %v272 = vand.u32 %v271, 4294901760
  %v273 = vsub.f32 %v271, %v272
  %v274 = vand.u32 %v273, 4294901760
  %275 = vmatmul.mubr.f32.gmra.mrb[0].mxu0 %v274
  %v276 = vpop.f32.mrb[0].mxu0
  %v277 = vadd.f32 0.0, %v276
  %v278 = vpop.f32.mrb[0].mxu0
  %279 = vmatprep.mubr.f32.mxu0 0.0
  %v280 = vand.u32 %v86, 4294901760
  %v281 = vsub.f32 %v86, %v280
  %v282 = vand.u32 %v281, 4294901760
  %v283 = vsub.f32 %v281, %v282
  %v284 = vand.u32 %v283, 4294901760
  %285 = vmatmul.mubr.f32.gmra.mrb[0].mxu0 %v284
  %v286 = vpop.f32.mrb[0].mxu0
  %v287 = vadd.f32 0.0, %v286
  %v288 = vpop.f32.mrb[0].mxu0
  %289 = vmatprep.mubr.f32.mxu0 0.0
  %v290 = vand.u32 %v89, 4294901760
  %v291 = vsub.f32 %v89, %v290
  %v292 = vand.u32 %v291, 4294901760
  %v293 = vsub.f32 %v291, %v292
  %v294 = vand.u32 %v293, 4294901760
  %295 = vmatmul.mubr.f32.gmra.mrb[0].mxu0 %v294
  %v296 = vpop.f32.mrb[0].mxu0
  %v297 = vadd.f32 0.0, %v296
  %v298 = vpop.f32.mrb[0].mxu0
  %299 = vmatprep.mubr.f32.mxu0 0.0
  %v300 = vand.u32 %v92, 4294901760
  %v301 = vsub.f32 %v92, %v300
  %v302 = vand.u32 %v301, 4294901760
  %v303 = vsub.f32 %v301, %v302
  %v304 = vand.u32 %v303, 4294901760
  %305 = vmatmul.mubr.f32.gmra.mrb[0].mxu0 %v304
  %v306 = vpop.f32.mrb[0].mxu0
  %v307 = vadd.f32 0.0, %v306
  %v308 = vpop.f32.mrb[0].mxu0
  %309 = vmatprep.mubr.f32.mxu0 0.0
  %v310 = vand.u32 %v95, 4294901760
  %v311 = vsub.f32 %v95, %v310
  %v312 = vand.u32 %v311, 4294901760
  %v313 = vsub.f32 %v311, %v312
  %v314 = vand.u32 %v313, 4294901760
  %315 = vmatmul.mubr.f32.gmra.mrb[0].mxu0 %v314
  %v316 = vpop.f32.mrb[0].mxu0
  %v317 = vadd.f32 0.0, %v316
  %v318 = vpop.f32.mrb[0].mxu0
  %319 = vmatprep.mubr.f32.mxu0 0.0
  %v320 = vand.u32 %v98, 4294901760
  %v321 = vsub.f32 %v98, %v320
  %v322 = vand.u32 %v321, 4294901760
  %v323 = vsub.f32 %v321, %v322
  %v324 = vand.u32 %v323, 4294901760
  %325 = vmatmul.mubr.f32.gmra.mrb[0].mxu0 %v324
  %v326 = vpop.f32.mrb[0].mxu0
  %v327 = vadd.f32 0.0, %v326
  %v328 = vpop.f32.mrb[0].mxu0
  %329 = vdwg.mxu0
  %330 = vmatprep.subr.mxu0 0.0
  %v331 = vand.u32 %v102, 4294901760
  %v332 = vsub.f32 %v102, %v331
  %v333 = vand.u32 %v332, 4294901760
  %v334 = vsub.f32 %v332, %v333
  %v335 = vand.u32 %v334, 4294901760
  %336 = vmatpush1.msra.mxu0 %v335
  %337 = vmatprep.subr.mxu0 0.0
  %338 = vmatpush1.msra.mxu0 0.0
  %339 = vmatprep.subr.mxu0 0.0
  %340 = vmatpush1.msra.mxu0 0.0
  %341 = vmatprep.subr.mxu0 0.0
  %342 = vmatpush1.msra.mxu0 0.0
  %343 = vmatprep.subr.mxu0 0.0
  %344 = vmatpush1.msra.mxu0 0.0
  %345 = vmatprep.subr.mxu0 0.0
  %346 = vmatpush1.msra.mxu0 0.0
  %347 = vmatprep.subr.mxu0 0.0
  %348 = vmatpush1.msra.mxu0 0.0
  %349 = vmatprep.subr.mxu0 0.0
  %350 = vmatpush1.msra.mxu0 0.0
  %351 = vmatprep.subr.mxu0 0.0
  %352 = vmatpush1.msra.mxu0 0.0
  %353 = vmatprep.subr.mxu0 0.0
  %354 = vmatpush1.msra.mxu0 0.0
  %355 = vmatprep.subr.mxu0 0.0
  %356 = vmatpush1.msra.mxu0 0.0
  %357 = vmatprep.subr.mxu0 0.0
  %358 = vmatpush1.msra.mxu0 0.0
  %359 = vmatprep.subr.mxu0 0.0
  %360 = vmatpush1.msra.mxu0 0.0
  %361 = vmatprep.subr.mxu0 0.0
  %362 = vmatpush1.msra.mxu0 0.0
  %363 = vmatprep.subr.mxu0 0.0
  %364 = vmatpush1.msra.mxu0 0.0
  %365 = vmatprep.subr.mxu0 0.0
  %366 = vmatpush1.msra.mxu0 0.0
  %367 = vmatprep.subr.mxu0 0.0
  %368 = vmatpush1.msra.mxu0 0.0
  %369 = vmatprep.subr.mxu0 0.0
  %370 = vmatpush1.msra.mxu0 0.0
  %371 = vmatprep.subr.mxu0 0.0
  %372 = vmatpush1.msra.mxu0 0.0
  %373 = vmatprep.subr.mxu0 0.0
  %374 = vmatpush1.msra.mxu0 0.0
  %375 = vmatprep.subr.mxu0 0.0
  %376 = vmatpush1.msra.mxu0 0.0
  %377 = vmatprep.subr.mxu0 0.0
  %378 = vmatpush1.msra.mxu0 0.0
  %379 = vmatprep.subr.mxu0 0.0
  %380 = vmatpush1.msra.mxu0 0.0
  %381 = vmatprep.subr.mxu0 0.0
  %382 = vmatpush1.msra.mxu0 0.0
  %383 = vmatprep.subr.mxu0 0.0
  %384 = vmatpush1.msra.mxu0 0.0
  %385 = vmatprep.subr.mxu0 0.0
  %386 = vmatpush1.msra.mxu0 0.0
  %387 = vmatprep.subr.mxu0 0.0
  %388 = vmatpush1.msra.mxu0 0.0
  %389 = vmatprep.subr.mxu0 0.0
  %390 = vmatpush1.msra.mxu0 0.0
  %391 = vmatprep.subr.mxu0 0.0
  %392 = vmatpush1.msra.mxu0 0.0
  %393 = vmatprep.subr.mxu0 0.0
  %394 = vmatpush1.msra.mxu0 0.0
  %395 = vmatprep.subr.mxu0 0.0
  %396 = vmatpush1.msra.mxu0 0.0
  %397 = vmatprep.subr.mxu0 0.0
  %398 = vmatpush1.msra.mxu0 0.0
  %399 = vmatprep.mubr.f32.mxu0 0.0
  %v400 = vand.u32 %v53, 4294901760
  %401 = vmatmul.mubr.f32.gmra.mrb[0].mxu0 %v400
  %v402 = vpop.f32.mrb[0].mxu0
  %v403 = vadd.f32 %v177, %v402
  %v404 = vpop.f32.mrb[0].mxu0
  %405 = vmatprep.mubr.f32.mxu0 0.0
  %v406 = vand.u32 %v56, 4294901760
  %407 = vmatmul.mubr.f32.gmra.mrb[0].mxu0 %v406
  %v408 = vpop.f32.mrb[0].mxu0
  %v409 = vadd.f32 %v187, %v408
  %v410 = vpop.f32.mrb[0].mxu0
  %411 = vmatprep.mubr.f32.mxu0 0.0
  %v412 = vand.u32 %v59, 4294901760
  %413 = vmatmul.mubr.f32.gmra.mrb[0].mxu0 %v412
  %v414 = vpop.f32.mrb[0].mxu0
  %v415 = vadd.f32 %v197, %v414
  %v416 = vpop.f32.mrb[0].mxu0
  %417 = vmatprep.mubr.f32.mxu0 0.0
  %v418 = vand.u32 %v62, 4294901760
  %419 = vmatmul.mubr.f32.gmra.mrb[0].mxu0 %v418
  %v420 = vpop.f32.mrb[0].mxu0
  %v421 = vadd.f32 %v207, %v420
  %v422 = vpop.f32.mrb[0].mxu0
  %423 = vmatprep.mubr.f32.mxu0 0.0
  %v424 = vand.u32 %v65, 4294901760
  %425 = vmatmul.mubr.f32.gmra.mrb[0].mxu0 %v424
  %v426 = vpop.f32.mrb[0].mxu0
  %v427 = vadd.f32 %v217, %v426
  %v428 = vpop.f32.mrb[0].mxu0
  %429 = vmatprep.mubr.f32.mxu0 0.0
  %v430 = vand.u32 %v68, 4294901760
  %431 = vmatmul.mubr.f32.gmra.mrb[0].mxu0 %v430
  %v432 = vpop.f32.mrb[0].mxu0
  %v433 = vadd.f32 %v227, %v432
  %v434 = vpop.f32.mrb[0].mxu0
  %435 = vmatprep.mubr.f32.mxu0 0.0
  %v436 = vand.u32 %v71, 4294901760
  %437 = vmatmul.mubr.f32.gmra.mrb[0].mxu0 %v436
  %v438 = vpop.f32.mrb[0].mxu0
  %v439 = vadd.f32 %v237, %v438
  %v440 = vpop.f32.mrb[0].mxu0
  %441 = vmatprep.mubr.f32.mxu0 0.0
  %v442 = vand.u32 %v74, 4294901760
  %443 = vmatmul.mubr.f32.gmra.mrb[0].mxu0 %v442
  %v444 = vpop.f32.mrb[0].mxu0
  %v445 = vadd.f32 %v247, %v444
  %v446 = vpop.f32.mrb[0].mxu0
  %447 = vmatprep.mubr.f32.mxu0 0.0
  %v448 = vand.u32 %v77, 4294901760
  %449 = vmatmul.mubr.f32.gmra.mrb[0].mxu0 %v448
  %v450 = vpop.f32.mrb[0].mxu0
  %v451 = vadd.f32 %v257, %v450
  %v452 = vpop.f32.mrb[0].mxu0
  %453 = vmatprep.mubr.f32.mxu0 0.0
  %v454 = vand.u32 %v80, 4294901760
  %455 = vmatmul.mubr.f32.gmra.mrb[0].mxu0 %v454
  %v456 = vpop.f32.mrb[0].mxu0
  %v457 = vadd.f32 %v267, %v456
  %v458 = vpop.f32.mrb[0].mxu0
  %459 = vmatprep.mubr.f32.mxu0 0.0
  %v460 = vand.u32 %v83, 4294901760
  %461 = vmatmul.mubr.f32.gmra.mrb[0].mxu0 %v460
  %v462 = vpop.f32.mrb[0].mxu0
  %v463 = vadd.f32 %v277, %v462
  %v464 = vpop.f32.mrb[0].mxu0
  %465 = vmatprep.mubr.f32.mxu0 0.0
  %v466 = vand.u32 %v86, 4294901760
  %467 = vmatmul.mubr.f32.gmra.mrb[0].mxu0 %v466
  %v468 = vpop.f32.mrb[0].mxu0
  %v469 = vadd.f32 %v287, %v468
  %v470 = vpop.f32.mrb[0].mxu0
  %471 = vmatprep.mubr.f32.mxu0 0.0
  %v472 = vand.u32 %v89, 4294901760
  %473 = vmatmul.mubr.f32.gmra.mrb[0].mxu0 %v472
  %v474 = vpop.f32.mrb[0].mxu0
  %v475 = vadd.f32 %v297, %v474
  %v476 = vpop.f32.mrb[0].mxu0
  %477 = vmatprep.mubr.f32.mxu0 0.0
  %v478 = vand.u32 %v92, 4294901760
  %479 = vmatmul.mubr.f32.gmra.mrb[0].mxu0 %v478
  %v480 = vpop.f32.mrb[0].mxu0
  %v481 = vadd.f32 %v307, %v480
  %v482 = vpop.f32.mrb[0].mxu0
  %483 = vmatprep.mubr.f32.mxu0 0.0
  %v484 = vand.u32 %v95, 4294901760
  %485 = vmatmul.mubr.f32.gmra.mrb[0].mxu0 %v484
  %v486 = vpop.f32.mrb[0].mxu0
  %v487 = vadd.f32 %v317, %v486
  %v488 = vpop.f32.mrb[0].mxu0
  %489 = vmatprep.mubr.f32.mxu0 0.0
  %v490 = vand.u32 %v98, 4294901760
  %491 = vmatmul.mubr.f32.gmra.mrb[0].mxu0 %v490
  %v492 = vpop.f32.mrb[0].mxu0
  %v493 = vadd.f32 %v327, %v492
  %v494 = vpop.f32.mrb[0].mxu0
  %495 = vdwg.mxu0
  %496 = vmatprep.subr.mxu0 0.0
  %v497 = vand.u32 %v102, 4294901760
  %v498 = vsub.f32 %v102, %v497
  %499 = vmatpush1.msra.mxu0 %v498
  %500 = vmatprep.subr.mxu0 0.0
  %501 = vmatpush1.msra.mxu0 0.0
  %502 = vmatprep.subr.mxu0 0.0
  %503 = vmatpush1.msra.mxu0 0.0
  %504 = vmatprep.subr.mxu0 0.0
  %505 = vmatpush1.msra.mxu0 0.0
  %506 = vmatprep.subr.mxu0 0.0
  %507 = vmatpush1.msra.mxu0 0.0
  %508 = vmatprep.subr.mxu0 0.0
  %509 = vmatpush1.msra.mxu0 0.0
  %510 = vmatprep.subr.mxu0 0.0
  %511 = vmatpush1.msra.mxu0 0.0
  %512 = vmatprep.subr.mxu0 0.0
  %513 = vmatpush1.msra.mxu0 0.0
  %514 = vmatprep.subr.mxu0 0.0
  %515 = vmatpush1.msra.mxu0 0.0
  %516 = vmatprep.subr.mxu0 0.0
  %517 = vmatpush1.msra.mxu0 0.0
  %518 = vmatprep.subr.mxu0 0.0
  %519 = vmatpush1.msra.mxu0 0.0
  %520 = vmatprep.subr.mxu0 0.0
  %521 = vmatpush1.msra.mxu0 0.0
  %522 = vmatprep.subr.mxu0 0.0
  %523 = vmatpush1.msra.mxu0 0.0
  %524 = vmatprep.subr.mxu0 0.0
  %525 = vmatpush1.msra.mxu0 0.0
  %526 = vmatprep.subr.mxu0 0.0
  %527 = vmatpush1.msra.mxu0 0.0
  %528 = vmatprep.subr.mxu0 0.0
  %529 = vmatpush1.msra.mxu0 0.0
  %530 = vmatprep.subr.mxu0 0.0
  %531 = vmatpush1.msra.mxu0 0.0
  %532 = vmatprep.subr.mxu0 0.0
  %533 = vmatpush1.msra.mxu0 0.0
  %534 = vmatprep.subr.mxu0 0.0
  %535 = vmatpush1.msra.mxu0 0.0
  %536 = vmatprep.subr.mxu0 0.0
  %537 = vmatpush1.msra.mxu0 0.0
  %538 = vmatprep.subr.mxu0 0.0
  %539 = vmatpush1.msra.mxu0 0.0
  %540 = vmatprep.subr.mxu0 0.0
  %541 = vmatpush1.msra.mxu0 0.0
  %542 = vmatprep.subr.mxu0 0.0
  %543 = vmatpush1.msra.mxu0 0.0
  %544 = vmatprep.subr.mxu0 0.0
  %545 = vmatpush1.msra.mxu0 0.0
  %546 = vmatprep.subr.mxu0 0.0
  %547 = vmatpush1.msra.mxu0 0.0
  %548 = vmatprep.subr.mxu0 0.0
  %549 = vmatpush1.msra.mxu0 0.0
  %550 = vmatprep.subr.mxu0 0.0
  %551 = vmatpush1.msra.mxu0 0.0
  %552 = vmatprep.subr.mxu0 0.0
  %553 = vmatpush1.msra.mxu0 0.0
  %554 = vmatprep.subr.mxu0 0.0
  %555 = vmatpush1.msra.mxu0 0.0
  %556 = vmatprep.subr.mxu0 0.0
  %557 = vmatpush1.msra.mxu0 0.0
  %558 = vmatprep.subr.mxu0 0.0
  %559 = vmatpush1.msra.mxu0 0.0
  %560 = vmatprep.subr.mxu0 0.0
  %561 = vmatpush1.msra.mxu0 0.0
  %562 = vmatprep.mubr.f32.mxu0 0.0
  %v563 = vand.u32 %v53, 4294901760
  %v564 = vsub.f32 %v53, %v563
  %565 = vmatmul.mubr.f32.gmra.mrb[0].mxu0 %v564
  %v566 = vpop.f32.mrb[0].mxu0
  %v567 = vadd.f32 %v403, %v566
  %v568 = vpop.f32.mrb[0].mxu0
  %569 = vmatprep.mubr.f32.mxu0 0.0
  %v570 = vand.u32 %v56, 4294901760
  %v571 = vsub.f32 %v56, %v570
  %572 = vmatmul.mubr.f32.gmra.mrb[0].mxu0 %v571
  %v573 = vpop.f32.mrb[0].mxu0
  %v574 = vadd.f32 %v409, %v573
  %v575 = vpop.f32.mrb[0].mxu0
  %576 = vmatprep.mubr.f32.mxu0 0.0
  %v577 = vand.u32 %v59, 4294901760
  %v578 = vsub.f32 %v59, %v577
  %579 = vmatmul.mubr.f32.gmra.mrb[0].mxu0 %v578
  %v580 = vpop.f32.mrb[0].mxu0
  %v581 = vadd.f32 %v415, %v580
  %v582 = vpop.f32.mrb[0].mxu0
  %583 = vmatprep.mubr.f32.mxu0 0.0
  %v584 = vand.u32 %v62, 4294901760
  %v585 = vsub.f32 %v62, %v584
  %586 = vmatmul.mubr.f32.gmra.mrb[0].mxu0 %v585
  %v587 = vpop.f32.mrb[0].mxu0
  %v588 = vadd.f32 %v421, %v587
  %v589 = vpop.f32.mrb[0].mxu0
  %590 = vmatprep.mubr.f32.mxu0 0.0
  %v591 = vand.u32 %v65, 4294901760
  %v592 = vsub.f32 %v65, %v591
  %593 = vmatmul.mubr.f32.gmra.mrb[0].mxu0 %v592
  %v594 = vpop.f32.mrb[0].mxu0
  %v595 = vadd.f32 %v427, %v594
  %v596 = vpop.f32.mrb[0].mxu0
  %597 = vmatprep.mubr.f32.mxu0 0.0
  %v598 = vand.u32 %v68, 4294901760
  %v599 = vsub.f32 %v68, %v598
  %600 = vmatmul.mubr.f32.gmra.mrb[0].mxu0 %v599
  %v601 = vpop.f32.mrb[0].mxu0
  %v602 = vadd.f32 %v433, %v601
  %v603 = vpop.f32.mrb[0].mxu0
  %604 = vmatprep.mubr.f32.mxu0 0.0
  %v605 = vand.u32 %v71, 4294901760
  %v606 = vsub.f32 %v71, %v605
  %607 = vmatmul.mubr.f32.gmra.mrb[0].mxu0 %v606
  %v608 = vpop.f32.mrb[0].mxu0
  %v609 = vadd.f32 %v439, %v608
  %v610 = vpop.f32.mrb[0].mxu0
  %611 = vmatprep.mubr.f32.mxu0 0.0
  %v612 = vand.u32 %v74, 4294901760
  %v613 = vsub.f32 %v74, %v612
  %614 = vmatmul.mubr.f32.gmra.mrb[0].mxu0 %v613
  %v615 = vpop.f32.mrb[0].mxu0
  %v616 = vadd.f32 %v445, %v615
  %v617 = vpop.f32.mrb[0].mxu0
  %618 = vmatprep.mubr.f32.mxu0 0.0
  %v619 = vand.u32 %v77, 4294901760
  %v620 = vsub.f32 %v77, %v619
  %621 = vmatmul.mubr.f32.gmra.mrb[0].mxu0 %v620
  %v622 = vpop.f32.mrb[0].mxu0
  %v623 = vadd.f32 %v451, %v622
  %v624 = vpop.f32.mrb[0].mxu0
  %625 = vmatprep.mubr.f32.mxu0 0.0
  %v626 = vand.u32 %v80, 4294901760
  %v627 = vsub.f32 %v80, %v626
  %628 = vmatmul.mubr.f32.gmra.mrb[0].mxu0 %v627
  %v629 = vpop.f32.mrb[0].mxu0
  %v630 = vadd.f32 %v457, %v629
  %v631 = vpop.f32.mrb[0].mxu0
  %632 = vmatprep.mubr.f32.mxu0 0.0
  %v633 = vand.u32 %v83, 4294901760
  %v634 = vsub.f32 %v83, %v633
  %635 = vmatmul.mubr.f32.gmra.mrb[0].mxu0 %v634
  %v636 = vpop.f32.mrb[0].mxu0
  %v637 = vadd.f32 %v463, %v636
  %v638 = vpop.f32.mrb[0].mxu0
  %639 = vmatprep.mubr.f32.mxu0 0.0
  %v640 = vand.u32 %v86, 4294901760
  %v641 = vsub.f32 %v86, %v640
  %642 = vmatmul.mubr.f32.gmra.mrb[0].mxu0 %v641
  %v643 = vpop.f32.mrb[0].mxu0
  %v644 = vadd.f32 %v469, %v643
  %v645 = vpop.f32.mrb[0].mxu0
  %646 = vmatprep.mubr.f32.mxu0 0.0
  %v647 = vand.u32 %v89, 4294901760
  %v648 = vsub.f32 %v89, %v647
  %649 = vmatmul.mubr.f32.gmra.mrb[0].mxu0 %v648
  %v650 = vpop.f32.mrb[0].mxu0
  %v651 = vadd.f32 %v475, %v650
  %v652 = vpop.f32.mrb[0].mxu0
  %653 = vmatprep.mubr.f32.mxu0 0.0
  %v654 = vand.u32 %v92, 4294901760
  %v655 = vsub.f32 %v92, %v654
  %656 = vmatmul.mubr.f32.gmra.mrb[0].mxu0 %v655
  %v657 = vpop.f32.mrb[0].mxu0
  %v658 = vadd.f32 %v481, %v657
  %v659 = vpop.f32.mrb[0].mxu0
  %660 = vmatprep.mubr.f32.mxu0 0.0
  %v661 = vand.u32 %v95, 4294901760
  %v662 = vsub.f32 %v95, %v661
  %663 = vmatmul.mubr.f32.gmra.mrb[0].mxu0 %v662
  %v664 = vpop.f32.mrb[0].mxu0
  %v665 = vadd.f32 %v487, %v664
  %v666 = vpop.f32.mrb[0].mxu0
  %667 = vmatprep.mubr.f32.mxu0 0.0
  %v668 = vand.u32 %v98, 4294901760
  %v669 = vsub.f32 %v98, %v668
  %670 = vmatmul.mubr.f32.gmra.mrb[0].mxu0 %v669
  %v671 = vpop.f32.mrb[0].mxu0
  %v672 = vadd.f32 %v493, %v671
  %v673 = vpop.f32.mrb[0].mxu0
  %674 = vdwg.mxu0
  %675 = vmatprep.subr.mxu0 0.0
  %v676 = vand.u32 %v102, 4294901760
  %677 = vmatpush1.msra.mxu0 %v676
  %678 = vmatprep.subr.mxu0 0.0
  %679 = vmatpush1.msra.mxu0 0.0
  %680 = vmatprep.subr.mxu0 0.0
  %681 = vmatpush1.msra.mxu0 0.0
  %682 = vmatprep.subr.mxu0 0.0
  %683 = vmatpush1.msra.mxu0 0.0
  %684 = vmatprep.subr.mxu0 0.0
  %685 = vmatpush1.msra.mxu0 0.0
  %686 = vmatprep.subr.mxu0 0.0
  %687 = vmatpush1.msra.mxu0 0.0
  %688 = vmatprep.subr.mxu0 0.0
  %689 = vmatpush1.msra.mxu0 0.0
  %690 = vmatprep.subr.mxu0 0.0
  %691 = vmatpush1.msra.mxu0 0.0
  %692 = vmatprep.subr.mxu0 0.0
  %693 = vmatpush1.msra.mxu0 0.0
  %694 = vmatprep.subr.mxu0 0.0
  %695 = vmatpush1.msra.mxu0 0.0
  %696 = vmatprep.subr.mxu0 0.0
  %697 = vmatpush1.msra.mxu0 0.0
  %698 = vmatprep.subr.mxu0 0.0
  %699 = vmatpush1.msra.mxu0 0.0
  %700 = vmatprep.subr.mxu0 0.0
  %701 = vmatpush1.msra.mxu0 0.0
  %702 = vmatprep.subr.mxu0 0.0
  %703 = vmatpush1.msra.mxu0 0.0
  %704 = vmatprep.subr.mxu0 0.0
  %705 = vmatpush1.msra.mxu0 0.0
  %706 = vmatprep.subr.mxu0 0.0
  %707 = vmatpush1.msra.mxu0 0.0
  %708 = vmatprep.subr.mxu0 0.0
  %709 = vmatpush1.msra.mxu0 0.0
  %710 = vmatprep.subr.mxu0 0.0
  %711 = vmatpush1.msra.mxu0 0.0
  %712 = vmatprep.subr.mxu0 0.0
  %713 = vmatpush1.msra.mxu0 0.0
  %714 = vmatprep.subr.mxu0 0.0
  %715 = vmatpush1.msra.mxu0 0.0
  %716 = vmatprep.subr.mxu0 0.0
  %717 = vmatpush1.msra.mxu0 0.0
  %718 = vmatprep.subr.mxu0 0.0
  %719 = vmatpush1.msra.mxu0 0.0
  %720 = vmatprep.subr.mxu0 0.0
  %721 = vmatpush1.msra.mxu0 0.0
  %722 = vmatprep.subr.mxu0 0.0
  %723 = vmatpush1.msra.mxu0 0.0
  %724 = vmatprep.subr.mxu0 0.0
  %725 = vmatpush1.msra.mxu0 0.0
  %726 = vmatprep.subr.mxu0 0.0
  %727 = vmatpush1.msra.mxu0 0.0
  %728 = vmatprep.subr.mxu0 0.0
  %729 = vmatpush1.msra.mxu0 0.0
  %730 = vmatprep.subr.mxu0 0.0
  %731 = vmatpush1.msra.mxu0 0.0
  %732 = vmatprep.subr.mxu0 0.0
  %733 = vmatpush1.msra.mxu0 0.0
  %734 = vmatprep.subr.mxu0 0.0
  %735 = vmatpush1.msra.mxu0 0.0
  %736 = vmatprep.subr.mxu0 0.0
  %737 = vmatpush1.msra.mxu0 0.0
  %738 = vmatprep.subr.mxu0 0.0
  %739 = vmatpush1.msra.mxu0 0.0
  %740 = vmatprep.mubr.f32.mxu0 0.0
  %v741 = vand.u32 %v53, 4294901760
  %v742 = vsub.f32 %v53, %v741
  %v743 = vand.u32 %v742, 4294901760
  %744 = vmatmul.mubr.f32.gmra.mrb[0].mxu0 %v743
  %v745 = vpop.f32.mrb[0].mxu0
  %v746 = vadd.f32 %v567, %v745
  %v747 = vpop.f32.mrb[0].mxu0
  %748 = vmatprep.mubr.f32.mxu0 0.0
  %v749 = vand.u32 %v56, 4294901760
  %v750 = vsub.f32 %v56, %v749
  %v751 = vand.u32 %v750, 4294901760
  %752 = vmatmul.mubr.f32.gmra.mrb[0].mxu0 %v751
  %v753 = vpop.f32.mrb[0].mxu0
  %v754 = vadd.f32 %v574, %v753
  %v755 = vpop.f32.mrb[0].mxu0
  %756 = vmatprep.mubr.f32.mxu0 0.0
  %v757 = vand.u32 %v59, 4294901760
  %v758 = vsub.f32 %v59, %v757
  %v759 = vand.u32 %v758, 4294901760
  %760 = vmatmul.mubr.f32.gmra.mrb[0].mxu0 %v759
  %v761 = vpop.f32.mrb[0].mxu0
  %v762 = vadd.f32 %v581, %v761
  %v763 = vpop.f32.mrb[0].mxu0
  %764 = vmatprep.mubr.f32.mxu0 0.0
  %v765 = vand.u32 %v62, 4294901760
  %v766 = vsub.f32 %v62, %v765
  %v767 = vand.u32 %v766, 4294901760
  %768 = vmatmul.mubr.f32.gmra.mrb[0].mxu0 %v767
  %v769 = vpop.f32.mrb[0].mxu0
  %v770 = vadd.f32 %v588, %v769
  %v771 = vpop.f32.mrb[0].mxu0
  %772 = vmatprep.mubr.f32.mxu0 0.0
  %v773 = vand.u32 %v65, 4294901760
  %v774 = vsub.f32 %v65, %v773
  %v775 = vand.u32 %v774, 4294901760
  %776 = vmatmul.mubr.f32.gmra.mrb[0].mxu0 %v775
  %v777 = vpop.f32.mrb[0].mxu0
  %v778 = vadd.f32 %v595, %v777
  %v779 = vpop.f32.mrb[0].mxu0
  %780 = vmatprep.mubr.f32.mxu0 0.0
  %v781 = vand.u32 %v68, 4294901760
  %v782 = vsub.f32 %v68, %v781
  %v783 = vand.u32 %v782, 4294901760
  %784 = vmatmul.mubr.f32.gmra.mrb[0].mxu0 %v783
  %v785 = vpop.f32.mrb[0].mxu0
  %v786 = vadd.f32 %v602, %v785
  %v787 = vpop.f32.mrb[0].mxu0
  %788 = vmatprep.mubr.f32.mxu0 0.0
  %v789 = vand.u32 %v71, 4294901760
  %v790 = vsub.f32 %v71, %v789
  %v791 = vand.u32 %v790, 4294901760
  %792 = vmatmul.mubr.f32.gmra.mrb[0].mxu0 %v791
  %v793 = vpop.f32.mrb[0].mxu0
  %v794 = vadd.f32 %v609, %v793
  %v795 = vpop.f32.mrb[0].mxu0
  %796 = vmatprep.mubr.f32.mxu0 0.0
  %v797 = vand.u32 %v74, 4294901760
  %v798 = vsub.f32 %v74, %v797
  %v799 = vand.u32 %v798, 4294901760
  %800 = vmatmul.mubr.f32.gmra.mrb[0].mxu0 %v799
  %v801 = vpop.f32.mrb[0].mxu0
  %v802 = vadd.f32 %v616, %v801
  %v803 = vpop.f32.mrb[0].mxu0
  %804 = vmatprep.mubr.f32.mxu0 0.0
  %v805 = vand.u32 %v77, 4294901760
  %v806 = vsub.f32 %v77, %v805
  %v807 = vand.u32 %v806, 4294901760
  %808 = vmatmul.mubr.f32.gmra.mrb[0].mxu0 %v807
  %v809 = vpop.f32.mrb[0].mxu0
  %v810 = vadd.f32 %v623, %v809
  %v811 = vpop.f32.mrb[0].mxu0
  %812 = vmatprep.mubr.f32.mxu0 0.0
  %v813 = vand.u32 %v80, 4294901760
  %v814 = vsub.f32 %v80, %v813
  %v815 = vand.u32 %v814, 4294901760
  %816 = vmatmul.mubr.f32.gmra.mrb[0].mxu0 %v815
  %v817 = vpop.f32.mrb[0].mxu0
  %v818 = vadd.f32 %v630, %v817
  %v819 = vpop.f32.mrb[0].mxu0
  %820 = vmatprep.mubr.f32.mxu0 0.0
  %v821 = vand.u32 %v83, 4294901760
  %v822 = vsub.f32 %v83, %v821
  %v823 = vand.u32 %v822, 4294901760
  %824 = vmatmul.mubr.f32.gmra.mrb[0].mxu0 %v823
  %v825 = vpop.f32.mrb[0].mxu0
  %v826 = vadd.f32 %v637, %v825
  %v827 = vpop.f32.mrb[0].mxu0
  %828 = vmatprep.mubr.f32.mxu0 0.0
  %v829 = vand.u32 %v86, 4294901760
  %v830 = vsub.f32 %v86, %v829
  %v831 = vand.u32 %v830, 4294901760
  %832 = vmatmul.mubr.f32.gmra.mrb[0].mxu0 %v831
  %v833 = vpop.f32.mrb[0].mxu0
  %v834 = vadd.f32 %v644, %v833
  %v835 = vpop.f32.mrb[0].mxu0
  %836 = vmatprep.mubr.f32.mxu0 0.0
  %v837 = vand.u32 %v89, 4294901760
  %v838 = vsub.f32 %v89, %v837
  %v839 = vand.u32 %v838, 4294901760
  %840 = vmatmul.mubr.f32.gmra.mrb[0].mxu0 %v839
  %v841 = vpop.f32.mrb[0].mxu0
  %v842 = vadd.f32 %v651, %v841
  %v843 = vpop.f32.mrb[0].mxu0
  %844 = vmatprep.mubr.f32.mxu0 0.0
  %v845 = vand.u32 %v92, 4294901760
  %v846 = vsub.f32 %v92, %v845
  %v847 = vand.u32 %v846, 4294901760
  %848 = vmatmul.mubr.f32.gmra.mrb[0].mxu0 %v847
  %v849 = vpop.f32.mrb[0].mxu0
  %v850 = vadd.f32 %v658, %v849
  %v851 = vpop.f32.mrb[0].mxu0
  %852 = vmatprep.mubr.f32.mxu0 0.0
  %v853 = vand.u32 %v95, 4294901760
  %v854 = vsub.f32 %v95, %v853
  %v855 = vand.u32 %v854, 4294901760
  %856 = vmatmul.mubr.f32.gmra.mrb[0].mxu0 %v855
  %v857 = vpop.f32.mrb[0].mxu0
  %v858 = vadd.f32 %v665, %v857
  %v859 = vpop.f32.mrb[0].mxu0
  %860 = vmatprep.mubr.f32.mxu0 0.0
  %v861 = vand.u32 %v98, 4294901760
  %v862 = vsub.f32 %v98, %v861
  %v863 = vand.u32 %v862, 4294901760
  %864 = vmatmul.mubr.f32.gmra.mrb[0].mxu0 %v863
  %v865 = vpop.f32.mrb[0].mxu0
  %v866 = vadd.f32 %v672, %v865
  %v867 = vpop.f32.mrb[0].mxu0
  %868 = vdwg.mxu0
  %869 = vmatprep.subr.mxu0 0.0
  %v870 = vand.u32 %v102, 4294901760
  %v871 = vsub.f32 %v102, %v870
  %v872 = vand.u32 %v871, 4294901760
  %873 = vmatpush1.msra.mxu0 %v872
  %874 = vmatprep.subr.mxu0 0.0
  %875 = vmatpush1.msra.mxu0 0.0
  %876 = vmatprep.subr.mxu0 0.0
  %877 = vmatpush1.msra.mxu0 0.0
  %878 = vmatprep.subr.mxu0 0.0
  %879 = vmatpush1.msra.mxu0 0.0
  %880 = vmatprep.subr.mxu0 0.0
  %881 = vmatpush1.msra.mxu0 0.0
  %882 = vmatprep.subr.mxu0 0.0
  %883 = vmatpush1.msra.mxu0 0.0
  %884 = vmatprep.subr.mxu0 0.0
  %885 = vmatpush1.msra.mxu0 0.0
  %886 = vmatprep.subr.mxu0 0.0
  %887 = vmatpush1.msra.mxu0 0.0
  %888 = vmatprep.subr.mxu0 0.0
  %889 = vmatpush1.msra.mxu0 0.0
  %890 = vmatprep.subr.mxu0 0.0
  %891 = vmatpush1.msra.mxu0 0.0
  %892 = vmatprep.subr.mxu0 0.0
  %893 = vmatpush1.msra.mxu0 0.0
  %894 = vmatprep.subr.mxu0 0.0
  %895 = vmatpush1.msra.mxu0 0.0
  %896 = vmatprep.subr.mxu0 0.0
  %897 = vmatpush1.msra.mxu0 0.0
  %898 = vmatprep.subr.mxu0 0.0
  %899 = vmatpush1.msra.mxu0 0.0
  %900 = vmatprep.subr.mxu0 0.0
  %901 = vmatpush1.msra.mxu0 0.0
  %902 = vmatprep.subr.mxu0 0.0
  %903 = vmatpush1.msra.mxu0 0.0
  %904 = vmatprep.subr.mxu0 0.0
  %905 = vmatpush1.msra.mxu0 0.0
  %906 = vmatprep.subr.mxu0 0.0
  %907 = vmatpush1.msra.mxu0 0.0
  %908 = vmatprep.subr.mxu0 0.0
  %909 = vmatpush1.msra.mxu0 0.0
  %910 = vmatprep.subr.mxu0 0.0
  %911 = vmatpush1.msra.mxu0 0.0
  %912 = vmatprep.subr.mxu0 0.0
  %913 = vmatpush1.msra.mxu0 0.0
  %914 = vmatprep.subr.mxu0 0.0
  %915 = vmatpush1.msra.mxu0 0.0
  %916 = vmatprep.subr.mxu0 0.0
  %917 = vmatpush1.msra.mxu0 0.0
  %918 = vmatprep.subr.mxu0 0.0
  %919 = vmatpush1.msra.mxu0 0.0
  %920 = vmatprep.subr.mxu0 0.0
  %921 = vmatpush1.msra.mxu0 0.0
  %922 = vmatprep.subr.mxu0 0.0
  %923 = vmatpush1.msra.mxu0 0.0
  %924 = vmatprep.subr.mxu0 0.0
  %925 = vmatpush1.msra.mxu0 0.0
  %926 = vmatprep.subr.mxu0 0.0
  %927 = vmatpush1.msra.mxu0 0.0
  %928 = vmatprep.subr.mxu0 0.0
  %929 = vmatpush1.msra.mxu0 0.0
  %930 = vmatprep.subr.mxu0 0.0
  %931 = vmatpush1.msra.mxu0 0.0
  %932 = vmatprep.subr.mxu0 0.0
  %933 = vmatpush1.msra.mxu0 0.0
  %934 = vmatprep.subr.mxu0 0.0
  %935 = vmatpush1.msra.mxu0 0.0
  %936 = vmatprep.mubr.f32.mxu0 0.0
  %v937 = vand.u32 %v53, 4294901760
  %938 = vmatmul.mubr.f32.gmra.mrb[0].mxu0 %v937
  %v939 = vpop.f32.mrb[0].mxu0
  %v940 = vadd.f32 %v746, %v939
  %v941 = vpop.f32.mrb[0].mxu0
  %942 = vmatprep.mubr.f32.mxu0 0.0
  %v943 = vand.u32 %v56, 4294901760
  %944 = vmatmul.mubr.f32.gmra.mrb[0].mxu0 %v943
  %v945 = vpop.f32.mrb[0].mxu0
  %v946 = vadd.f32 %v754, %v945
  %v947 = vpop.f32.mrb[0].mxu0
  %948 = vmatprep.mubr.f32.mxu0 0.0
  %v949 = vand.u32 %v59, 4294901760
  %950 = vmatmul.mubr.f32.gmra.mrb[0].mxu0 %v949
  %v951 = vpop.f32.mrb[0].mxu0
  %v952 = vadd.f32 %v762, %v951
  %v953 = vpop.f32.mrb[0].mxu0
  %954 = vmatprep.mubr.f32.mxu0 0.0
  %v955 = vand.u32 %v62, 4294901760
  %956 = vmatmul.mubr.f32.gmra.mrb[0].mxu0 %v955
  %v957 = vpop.f32.mrb[0].mxu0
  %v958 = vadd.f32 %v770, %v957
  %v959 = vpop.f32.mrb[0].mxu0
  %960 = vmatprep.mubr.f32.mxu0 0.0
  %v961 = vand.u32 %v65, 4294901760
  %962 = vmatmul.mubr.f32.gmra.mrb[0].mxu0 %v961
  %v963 = vpop.f32.mrb[0].mxu0
  %v964 = vadd.f32 %v778, %v963
  %v965 = vpop.f32.mrb[0].mxu0
  %966 = vmatprep.mubr.f32.mxu0 0.0
  %v967 = vand.u32 %v68, 4294901760
  %968 = vmatmul.mubr.f32.gmra.mrb[0].mxu0 %v967
  %v969 = vpop.f32.mrb[0].mxu0
  %v970 = vadd.f32 %v786, %v969
  %v971 = vpop.f32.mrb[0].mxu0
  %972 = vmatprep.mubr.f32.mxu0 0.0
  %v973 = vand.u32 %v71, 4294901760
  %974 = vmatmul.mubr.f32.gmra.mrb[0].mxu0 %v973
  %v975 = vpop.f32.mrb[0].mxu0
  %v976 = vadd.f32 %v794, %v975
  %v977 = vpop.f32.mrb[0].mxu0
  %978 = vmatprep.mubr.f32.mxu0 0.0
  %v979 = vand.u32 %v74, 4294901760
  %980 = vmatmul.mubr.f32.gmra.mrb[0].mxu0 %v979
  %v981 = vpop.f32.mrb[0].mxu0
  %v982 = vadd.f32 %v802, %v981
  %v983 = vpop.f32.mrb[0].mxu0
  %984 = vmatprep.mubr.f32.mxu0 0.0
  %v985 = vand.u32 %v77, 4294901760
  %986 = vmatmul.mubr.f32.gmra.mrb[0].mxu0 %v985
  %v987 = vpop.f32.mrb[0].mxu0
  %v988 = vadd.f32 %v810, %v987
  %v989 = vpop.f32.mrb[0].mxu0
  %990 = vmatprep.mubr.f32.mxu0 0.0
  %v991 = vand.u32 %v80, 4294901760
  %992 = vmatmul.mubr.f32.gmra.mrb[0].mxu0 %v991
  %v993 = vpop.f32.mrb[0].mxu0
  %v994 = vadd.f32 %v818, %v993
  %v995 = vpop.f32.mrb[0].mxu0
  %996 = vmatprep.mubr.f32.mxu0 0.0
  %v997 = vand.u32 %v83, 4294901760
  %998 = vmatmul.mubr.f32.gmra.mrb[0].mxu0 %v997
  %v999 = vpop.f32.mrb[0].mxu0
  %v1000 = vadd.f32 %v826, %v999
  %v1001 = vpop.f32.mrb[0].mxu0
  %1002 = vmatprep.mubr.f32.mxu0 0.0
  %v1003 = vand.u32 %v86, 4294901760
  %1004 = vmatmul.mubr.f32.gmra.mrb[0].mxu0 %v1003
  %v1005 = vpop.f32.mrb[0].mxu0
  %v1006 = vadd.f32 %v834, %v1005
  %v1007 = vpop.f32.mrb[0].mxu0
  %1008 = vmatprep.mubr.f32.mxu0 0.0
  %v1009 = vand.u32 %v89, 4294901760
  %1010 = vmatmul.mubr.f32.gmra.mrb[0].mxu0 %v1009
  %v1011 = vpop.f32.mrb[0].mxu0
  %v1012 = vadd.f32 %v842, %v1011
  %v1013 = vpop.f32.mrb[0].mxu0
  %1014 = vmatprep.mubr.f32.mxu0 0.0
  %v1015 = vand.u32 %v92, 4294901760
  %1016 = vmatmul.mubr.f32.gmra.mrb[0].mxu0 %v1015
  %v1017 = vpop.f32.mrb[0].mxu0
  %v1018 = vadd.f32 %v850, %v1017
  %v1019 = vpop.f32.mrb[0].mxu0
  %1020 = vmatprep.mubr.f32.mxu0 0.0
  %v1021 = vand.u32 %v95, 4294901760
  %1022 = vmatmul.mubr.f32.gmra.mrb[0].mxu0 %v1021
  %v1023 = vpop.f32.mrb[0].mxu0
  %v1024 = vadd.f32 %v858, %v1023
  %v1025 = vpop.f32.mrb[0].mxu0
  %1026 = vmatprep.mubr.f32.mxu0 0.0
  %v1027 = vand.u32 %v98, 4294901760
  %1028 = vmatmul.mubr.f32.gmra.mrb[0].mxu0 %v1027
  %v1029 = vpop.f32.mrb[0].mxu0
  %v1030 = vadd.f32 %v866, %v1029
  %v1031 = vpop.f32.mrb[0].mxu0
  %1032 = vdwg.mxu0
  %1033 = vmatprep.subr.mxu0 0.0
  %v1034 = vand.u32 %v102, 4294901760
  %1035 = vmatpush1.msra.mxu0 %v1034
  %1036 = vmatprep.subr.mxu0 0.0
  %1037 = vmatpush1.msra.mxu0 0.0
  %1038 = vmatprep.subr.mxu0 0.0
  %1039 = vmatpush1.msra.mxu0 0.0
  %1040 = vmatprep.subr.mxu0 0.0
  %1041 = vmatpush1.msra.mxu0 0.0
  %1042 = vmatprep.subr.mxu0 0.0
  %1043 = vmatpush1.msra.mxu0 0.0
  %1044 = vmatprep.subr.mxu0 0.0
  %1045 = vmatpush1.msra.mxu0 0.0
  %1046 = vmatprep.subr.mxu0 0.0
  %1047 = vmatpush1.msra.mxu0 0.0
  %1048 = vmatprep.subr.mxu0 0.0
  %1049 = vmatpush1.msra.mxu0 0.0
  %1050 = vmatprep.subr.mxu0 0.0
  %1051 = vmatpush1.msra.mxu0 0.0
  %1052 = vmatprep.subr.mxu0 0.0
  %1053 = vmatpush1.msra.mxu0 0.0
  %1054 = vmatprep.subr.mxu0 0.0
  %1055 = vmatpush1.msra.mxu0 0.0
  %1056 = vmatprep.subr.mxu0 0.0
  %1057 = vmatpush1.msra.mxu0 0.0
  %1058 = vmatprep.subr.mxu0 0.0
  %1059 = vmatpush1.msra.mxu0 0.0
  %1060 = vmatprep.subr.mxu0 0.0
  %1061 = vmatpush1.msra.mxu0 0.0
  %1062 = vmatprep.subr.mxu0 0.0
  %1063 = vmatpush1.msra.mxu0 0.0
  %1064 = vmatprep.subr.mxu0 0.0
  %1065 = vmatpush1.msra.mxu0 0.0
  %1066 = vmatprep.subr.mxu0 0.0
  %1067 = vmatpush1.msra.mxu0 0.0
  %1068 = vmatprep.subr.mxu0 0.0
  %1069 = vmatpush1.msra.mxu0 0.0
  %1070 = vmatprep.subr.mxu0 0.0
  %1071 = vmatpush1.msra.mxu0 0.0
  %1072 = vmatprep.subr.mxu0 0.0
  %1073 = vmatpush1.msra.mxu0 0.0
  %1074 = vmatprep.subr.mxu0 0.0
  %1075 = vmatpush1.msra.mxu0 0.0
  %1076 = vmatprep.subr.mxu0 0.0
  %1077 = vmatpush1.msra.mxu0 0.0
  %1078 = vmatprep.subr.mxu0 0.0
  %1079 = vmatpush1.msra.mxu0 0.0
  %1080 = vmatprep.subr.mxu0 0.0
  %1081 = vmatpush1.msra.mxu0 0.0
  %1082 = vmatprep.subr.mxu0 0.0
  %1083 = vmatpush1.msra.mxu0 0.0
  %1084 = vmatprep.subr.mxu0 0.0
  %1085 = vmatpush1.msra.mxu0 0.0
  %1086 = vmatprep.subr.mxu0 0.0
  %1087 = vmatpush1.msra.mxu0 0.0
  %1088 = vmatprep.subr.mxu0 0.0
  %1089 = vmatpush1.msra.mxu0 0.0
  %1090 = vmatprep.subr.mxu0 0.0
  %1091 = vmatpush1.msra.mxu0 0.0
  %1092 = vmatprep.subr.mxu0 0.0
  %1093 = vmatpush1.msra.mxu0 0.0
  %1094 = vmatprep.subr.mxu0 0.0
  %1095 = vmatpush1.msra.mxu0 0.0
  %1096 = vmatprep.subr.mxu0 0.0
  %1097 = vmatpush1.msra.mxu0 0.0
  %1098 = vmatprep.mubr.f32.mxu0 0.0
  %v1099 = vand.u32 %v53, 4294901760
  %1100 = vmatmul.mubr.f32.gmra.mrb[0].mxu0 %v1099
  %v1101 = vpop.f32.mrb[0].mxu0
  %v1102 = vadd.f32 %v940, %v1101
  %v1103 = vpop.f32.mrb[0].mxu0
  %1104 = vmatprep.mubr.f32.mxu0 0.0
  %v1105 = vand.u32 %v56, 4294901760
  %1106 = vmatmul.mubr.f32.gmra.mrb[0].mxu0 %v1105
  %v1107 = vpop.f32.mrb[0].mxu0
  %v1108 = vadd.f32 %v946, %v1107
  %v1109 = vpop.f32.mrb[0].mxu0
  %1110 = vmatprep.mubr.f32.mxu0 0.0
  %v1111 = vand.u32 %v59, 4294901760
  %1112 = vmatmul.mubr.f32.gmra.mrb[0].mxu0 %v1111
  %v1113 = vpop.f32.mrb[0].mxu0
  %v1114 = vadd.f32 %v952, %v1113
  %v1115 = vpop.f32.mrb[0].mxu0
  %1116 = vmatprep.mubr.f32.mxu0 0.0
  %v1117 = vand.u32 %v62, 4294901760
  %1118 = vmatmul.mubr.f32.gmra.mrb[0].mxu0 %v1117
  %v1119 = vpop.f32.mrb[0].mxu0
  %v1120 = vadd.f32 %v958, %v1119
  %v1121 = vpop.f32.mrb[0].mxu0
  %1122 = vmatprep.mubr.f32.mxu0 0.0
  %v1123 = vand.u32 %v65, 4294901760
  %1124 = vmatmul.mubr.f32.gmra.mrb[0].mxu0 %v1123
  %v1125 = vpop.f32.mrb[0].mxu0
  %v1126 = vadd.f32 %v964, %v1125
  %v1127 = vpop.f32.mrb[0].mxu0
  %1128 = vmatprep.mubr.f32.mxu0 0.0
  %v1129 = vand.u32 %v68, 4294901760
  %1130 = vmatmul.mubr.f32.gmra.mrb[0].mxu0 %v1129
  %v1131 = vpop.f32.mrb[0].mxu0
  %v1132 = vadd.f32 %v970, %v1131
  %v1133 = vpop.f32.mrb[0].mxu0
  %1134 = vmatprep.mubr.f32.mxu0 0.0
  %v1135 = vand.u32 %v71, 4294901760
  %1136 = vmatmul.mubr.f32.gmra.mrb[0].mxu0 %v1135
  %v1137 = vpop.f32.mrb[0].mxu0
  %v1138 = vadd.f32 %v976, %v1137
  %v1139 = vpop.f32.mrb[0].mxu0
  %1140 = vmatprep.mubr.f32.mxu0 0.0
  %v1141 = vand.u32 %v74, 4294901760
  %1142 = vmatmul.mubr.f32.gmra.mrb[0].mxu0 %v1141
  %v1143 = vpop.f32.mrb[0].mxu0
  %v1144 = vadd.f32 %v982, %v1143
  %v1145 = vpop.f32.mrb[0].mxu0
  %1146 = vmatprep.mubr.f32.mxu0 0.0
  %v1147 = vand.u32 %v77, 4294901760
  %1148 = vmatmul.mubr.f32.gmra.mrb[0].mxu0 %v1147
  %v1149 = vpop.f32.mrb[0].mxu0
  %v1150 = vadd.f32 %v988, %v1149
  %v1151 = vpop.f32.mrb[0].mxu0
  %1152 = vmatprep.mubr.f32.mxu0 0.0
  %v1153 = vand.u32 %v80, 4294901760
  %1154 = vmatmul.mubr.f32.gmra.mrb[0].mxu0 %v1153
  %v1155 = vpop.f32.mrb[0].mxu0
  %v1156 = vadd.f32 %v994, %v1155
  %v1157 = vpop.f32.mrb[0].mxu0
  %1158 = vmatprep.mubr.f32.mxu0 0.0
  %v1159 = vand.u32 %v83, 4294901760
  %1160 = vmatmul.mubr.f32.gmra.mrb[0].mxu0 %v1159
  %v1161 = vpop.f32.mrb[0].mxu0
  %v1162 = vadd.f32 %v1000, %v1161
  %v1163 = vpop.f32.mrb[0].mxu0
  %1164 = vmatprep.mubr.f32.mxu0 0.0
  %v1165 = vand.u32 %v86, 4294901760
  %1166 = vmatmul.mubr.f32.gmra.mrb[0].mxu0 %v1165
  %v1167 = vpop.f32.mrb[0].mxu0
  %v1168 = vadd.f32 %v1006, %v1167
  %v1169 = vpop.f32.mrb[0].mxu0
  %1170 = vmatprep.mubr.f32.mxu0 0.0
  %v1171 = vand.u32 %v89, 4294901760
  %1172 = vmatmul.mubr.f32.gmra.mrb[0].mxu0 %v1171
  %v1173 = vpop.f32.mrb[0].mxu0
  %v1174 = vadd.f32 %v1012, %v1173
  %v1175 = vpop.f32.mrb[0].mxu0
  %1176 = vmatprep.mubr.f32.mxu0 0.0
  %v1177 = vand.u32 %v92, 4294901760
  %1178 = vmatmul.mubr.f32.gmra.mrb[0].mxu0 %v1177
  %v1179 = vpop.f32.mrb[0].mxu0
  %v1180 = vadd.f32 %v1018, %v1179
  %v1181 = vpop.f32.mrb[0].mxu0
  %1182 = vmatprep.mubr.f32.mxu0 0.0
  %v1183 = vand.u32 %v95, 4294901760
  %1184 = vmatmul.mubr.f32.gmra.mrb[0].mxu0 %v1183
  %v1185 = vpop.f32.mrb[0].mxu0
  %v1186 = vadd.f32 %v1024, %v1185
  %v1187 = vpop.f32.mrb[0].mxu0
  %1188 = vmatprep.mubr.f32.mxu0 0.0
  %v1189 = vand.u32 %v98, 4294901760
  %1190 = vmatmul.mubr.f32.gmra.mrb[0].mxu0 %v1189
  %v1191 = vpop.f32.mrb[0].mxu0
  %v1192 = vadd.f32 %v1030, %v1191
  %v1193 = vpop.f32.mrb[0].mxu0
  %1194 = vdwg.mxu0
  %v1195 = vmul.f32 %v17, %v17
  %v1196 = vmul.f32 %v18, %v18
  %v1197 = vmul.f32 %v19, %v19
  %v1198 = vmul.f32 %v20, %v20
  %v1199 = vmul.f32 %v21, %v21
  %v1200 = vmul.f32 %v22, %v22
  %v1201 = vmul.f32 %v23, %v23
  %v1202 = vmul.f32 %v24, %v24
  %v1203 = vmul.f32 %v25, %v25
  %v1204 = vmul.f32 %v26, %v26
  %v1205 = vmul.f32 %v27, %v27
  %v1206 = vmul.f32 %v28, %v28
  %v1207 = vmul.f32 %v29, %v29
  %v1208 = vmul.f32 %v30, %v30
  %v1209 = vmul.f32 %v31, %v31
  %v1210 = vmul.f32 %v32, %v32
  %v1211 = vsel %vm51, %v1195, 0.0
  %1212 = vadd.xlane.f32.xlu0 %v1211
  %v1213 = vpop.xlane.xlu0 %1212
  %v1214 = vsel %vm51, %v1196, 0.0
  %1215 = vadd.xlane.f32.xlu0 %v1214
  %v1216 = vpop.xlane.xlu0 %1215
  %v1217 = vsel %vm51, %v1197, 0.0
  %1218 = vadd.xlane.f32.xlu0 %v1217
  %v1219 = vpop.xlane.xlu0 %1218
  %v1220 = vsel %vm51, %v1198, 0.0
  %1221 = vadd.xlane.f32.xlu0 %v1220
  %v1222 = vpop.xlane.xlu0 %1221
  %v1223 = vsel %vm51, %v1199, 0.0
  %1224 = vadd.xlane.f32.xlu0 %v1223
  %v1225 = vpop.xlane.xlu0 %1224
  %v1226 = vsel %vm51, %v1200, 0.0
  %1227 = vadd.xlane.f32.xlu0 %v1226
  %v1228 = vpop.xlane.xlu0 %1227
  %v1229 = vsel %vm51, %v1201, 0.0
  %1230 = vadd.xlane.f32.xlu0 %v1229
  %v1231 = vpop.xlane.xlu0 %1230
  %v1232 = vsel %vm51, %v1202, 0.0
  %1233 = vadd.xlane.f32.xlu0 %v1232
  %v1234 = vpop.xlane.xlu0 %1233
  %v1235 = vsel %vm51, %v1203, 0.0
  %1236 = vadd.xlane.f32.xlu0 %v1235
  %v1237 = vpop.xlane.xlu0 %1236
  %v1238 = vsel %vm51, %v1204, 0.0
  %1239 = vadd.xlane.f32.xlu0 %v1238
  %v1240 = vpop.xlane.xlu0 %1239
  %v1241 = vsel %vm51, %v1205, 0.0
  %1242 = vadd.xlane.f32.xlu0 %v1241
  %v1243 = vpop.xlane.xlu0 %1242
  %v1244 = vsel %vm51, %v1206, 0.0
  %1245 = vadd.xlane.f32.xlu0 %v1244
  %v1246 = vpop.xlane.xlu0 %1245
  %v1247 = vsel %vm51, %v1207, 0.0
  %1248 = vadd.xlane.f32.xlu0 %v1247
  %v1249 = vpop.xlane.xlu0 %1248
  %v1250 = vsel %vm51, %v1208, 0.0
  %1251 = vadd.xlane.f32.xlu0 %v1250
  %v1252 = vpop.xlane.xlu0 %1251
  %v1253 = vsel %vm51, %v1209, 0.0
  %1254 = vadd.xlane.f32.xlu0 %v1253
  %v1255 = vpop.xlane.xlu0 %1254
  %v1256 = vsel %vm51, %v1210, 0.0
  %1257 = vadd.xlane.f32.xlu0 %v1256
  %v1258 = vpop.xlane.xlu0 %1257
  %v1260 = vlaneseq
  %v1261 = vshrl.u32 %v1260, 7
  %v1262 = vsub.s32 0, %v1261
  %v1263 = vrot.slane %v34, %v1262
  %v1265 = vadd.f32 %v1213, %v1263
  %v1266 = vadd.f32 %v1216, %v1263
  %v1267 = vadd.f32 %v1219, %v1263
  %v1268 = vadd.f32 %v1222, %v1263
  %v1269 = vadd.f32 %v1225, %v1263
  %v1270 = vadd.f32 %v1228, %v1263
  %v1271 = vadd.f32 %v1231, %v1263
  %v1272 = vadd.f32 %v1234, %v1263
  %v1273 = vadd.f32 %v1237, %v1263
  %v1274 = vadd.f32 %v1240, %v1263
  %v1275 = vadd.f32 %v1243, %v1263
  %v1276 = vadd.f32 %v1246, %v1263
  %v1277 = vadd.f32 %v1249, %v1263
  %v1278 = vadd.f32 %v1252, %v1263
  %v1279 = vadd.f32 %v1255, %v1263
  %v1280 = vadd.f32 %v1258, %v1263
  %v1281 = vmul.f32 %v1102, 2.0
  %v1282 = vmul.f32 %v1108, 2.0
  %v1283 = vmul.f32 %v1114, 2.0
  %v1284 = vmul.f32 %v1120, 2.0
  %v1285 = vmul.f32 %v1126, 2.0
  %v1286 = vmul.f32 %v1132, 2.0
  %v1287 = vmul.f32 %v1138, 2.0
  %v1288 = vmul.f32 %v1144, 2.0
  %v1289 = vmul.f32 %v1150, 2.0
  %v1290 = vmul.f32 %v1156, 2.0
  %v1291 = vmul.f32 %v1162, 2.0
  %v1292 = vmul.f32 %v1168, 2.0
  %v1293 = vmul.f32 %v1174, 2.0
  %v1294 = vmul.f32 %v1180, 2.0
  %v1295 = vmul.f32 %v1186, 2.0
  %v1296 = vmul.f32 %v1192, 2.0
  %v1297 = vsub.f32 %v1265, %v1281
  %v1298 = vsub.f32 %v1266, %v1282
  %v1299 = vsub.f32 %v1267, %v1283
  %v1300 = vsub.f32 %v1268, %v1284
  %v1301 = vsub.f32 %v1269, %v1285
  %v1302 = vsub.f32 %v1270, %v1286
  %v1303 = vsub.f32 %v1271, %v1287
  %v1304 = vsub.f32 %v1272, %v1288
  %v1305 = vsub.f32 %v1273, %v1289
  %v1306 = vsub.f32 %v1274, %v1290
  %v1307 = vsub.f32 %v1275, %v1291
  %v1308 = vsub.f32 %v1276, %v1292
  %v1309 = vsub.f32 %v1277, %v1293
  %v1310 = vsub.f32 %v1278, %v1294
  %v1311 = vsub.f32 %v1279, %v1295
  %v1312 = vsub.f32 %v1280, %v1296
  %v1313 = vlaneseq
  %v1314 = vshrl.u32 %v1313, 7
  %v1315 = vadd.s32 %v1314, 8
  %v1316 = vadd.s32 %v1314, 16
  %v1317 = vadd.s32 %v1314, 24
  %v1318 = vadd.s32 %v1314, 32
  %v1319 = vadd.s32 %v1314, 40
  %v1320 = vadd.s32 %v1314, 48
  %v1321 = vadd.s32 %v1314, 56
  %v1322 = vadd.s32 %v1314, 64
  %v1323 = vadd.s32 %v1314, 72
  %v1324 = vadd.s32 %v1314, 80
  %v1325 = vadd.s32 %v1314, 88
  %v1326 = vadd.s32 %v1314, 96
  %v1327 = vadd.s32 %v1314, 104
  %v1328 = vadd.s32 %v1314, 112
  %v1329 = vadd.s32 %v1314, 120
  %s1330 = smul.u32 0, 128
  %v1331 = vstv %s1330
  %v1332 = vadd.s32 %v1314, %v1331
  %v1333 = vadd.s32 %v1315, %v1331
  %v1334 = vadd.s32 %v1316, %v1331
  %v1335 = vadd.s32 %v1317, %v1331
  %v1336 = vadd.s32 %v1318, %v1331
  %v1337 = vadd.s32 %v1319, %v1331
  %v1338 = vadd.s32 %v1320, %v1331
  %v1339 = vadd.s32 %v1321, %v1331
  %v1340 = vadd.s32 %v1322, %v1331
  %v1341 = vadd.s32 %v1323, %v1331
  %v1342 = vadd.s32 %v1324, %v1331
  %v1343 = vadd.s32 %v1325, %v1331
  %v1344 = vadd.s32 %v1326, %v1331
  %v1345 = vadd.s32 %v1327, %v1331
  %v1346 = vadd.s32 %v1328, %v1331
  %v1347 = vadd.s32 %v1329, %v1331
  %v1348 = vlaneseq
  %v1349 = vand.u32 %v1348, 127
  %vm1350 = vcmp.eq.s32.totalorder %v1332, %v1349
  %vm1351 = vcmp.eq.s32.totalorder %v1333, %v1349
  %vm1352 = vcmp.eq.s32.totalorder %v1334, %v1349
  %vm1353 = vcmp.eq.s32.totalorder %v1335, %v1349
  %vm1354 = vcmp.eq.s32.totalorder %v1336, %v1349
  %vm1355 = vcmp.eq.s32.totalorder %v1337, %v1349
  %vm1356 = vcmp.eq.s32.totalorder %v1338, %v1349
  %vm1357 = vcmp.eq.s32.totalorder %v1339, %v1349
  %vm1358 = vcmp.eq.s32.totalorder %v1340, %v1349
  %vm1359 = vcmp.eq.s32.totalorder %v1341, %v1349
  %vm1360 = vcmp.eq.s32.totalorder %v1342, %v1349
  %vm1361 = vcmp.eq.s32.totalorder %v1343, %v1349
  %vm1362 = vcmp.eq.s32.totalorder %v1344, %v1349
  %vm1363 = vcmp.eq.s32.totalorder %v1345, %v1349
  %vm1364 = vcmp.eq.s32.totalorder %v1346, %v1349
  %vm1365 = vcmp.eq.s32.totalorder %v1347, %v1349
  %v1366 = vsel %vm1350, inf, %v1297
  %v1367 = vsel %vm1351, inf, %v1298
  %v1368 = vsel %vm1352, inf, %v1299
  %v1369 = vsel %vm1353, inf, %v1300
  %v1370 = vsel %vm1354, inf, %v1301
  %v1371 = vsel %vm1355, inf, %v1302
  %v1372 = vsel %vm1356, inf, %v1303
  %v1373 = vsel %vm1357, inf, %v1304
  %v1374 = vsel %vm1358, inf, %v1305
  %v1375 = vsel %vm1359, inf, %v1306
  %v1376 = vsel %vm1360, inf, %v1307
  %v1377 = vsel %vm1361, inf, %v1308
  %v1378 = vsel %vm1362, inf, %v1309
  %v1379 = vsel %vm1363, inf, %v1310
  %v1380 = vsel %vm1364, inf, %v1311
  %v1381 = vsel %vm1365, inf, %v1312
  %1382 = vmin.xlane.f32.xlu0 %v1366
  %v1383 = vpop.xlane.xlu0 %1382
  %1384 = vmin.xlane.f32.xlu0 %v1367
  %v1385 = vpop.xlane.xlu0 %1384
  %1386 = vmin.xlane.f32.xlu0 %v1368
  %v1387 = vpop.xlane.xlu0 %1386
  %1388 = vmin.xlane.f32.xlu0 %v1369
  %v1389 = vpop.xlane.xlu0 %1388
  %1390 = vmin.xlane.f32.xlu0 %v1370
  %v1391 = vpop.xlane.xlu0 %1390
  %1392 = vmin.xlane.f32.xlu0 %v1371
  %v1393 = vpop.xlane.xlu0 %1392
  %1394 = vmin.xlane.f32.xlu0 %v1372
  %v1395 = vpop.xlane.xlu0 %1394
  %1396 = vmin.xlane.f32.xlu0 %v1373
  %v1397 = vpop.xlane.xlu0 %1396
  %1398 = vmin.xlane.f32.xlu0 %v1374
  %v1399 = vpop.xlane.xlu0 %1398
  %1400 = vmin.xlane.f32.xlu0 %v1375
  %v1401 = vpop.xlane.xlu0 %1400
  %1402 = vmin.xlane.f32.xlu0 %v1376
  %v1403 = vpop.xlane.xlu0 %1402
  %1404 = vmin.xlane.f32.xlu0 %v1377
  %v1405 = vpop.xlane.xlu0 %1404
  %1406 = vmin.xlane.f32.xlu0 %v1378
  %v1407 = vpop.xlane.xlu0 %1406
  %1408 = vmin.xlane.f32.xlu0 %v1379
  %v1409 = vpop.xlane.xlu0 %1408
  %1410 = vmin.xlane.f32.xlu0 %v1380
  %v1411 = vpop.xlane.xlu0 %1410
  %1412 = vmin.xlane.f32.xlu0 %v1381
  %v1413 = vpop.xlane.xlu0 %1412
  %vm1414 = vcmp.le.f32.partialorder %v1366, %v1383
  %vm1415 = vcmp.le.f32.partialorder %v1367, %v1385
  %vm1416 = vcmp.le.f32.partialorder %v1368, %v1387
  %vm1417 = vcmp.le.f32.partialorder %v1369, %v1389
  %vm1418 = vcmp.le.f32.partialorder %v1370, %v1391
  %vm1419 = vcmp.le.f32.partialorder %v1371, %v1393
  %vm1420 = vcmp.le.f32.partialorder %v1372, %v1395
  %vm1421 = vcmp.le.f32.partialorder %v1373, %v1397
  %vm1422 = vcmp.le.f32.partialorder %v1374, %v1399
  %vm1423 = vcmp.le.f32.partialorder %v1375, %v1401
  %vm1424 = vcmp.le.f32.partialorder %v1376, %v1403
  %vm1425 = vcmp.le.f32.partialorder %v1377, %v1405
  %vm1426 = vcmp.le.f32.partialorder %v1378, %v1407
  %vm1427 = vcmp.le.f32.partialorder %v1379, %v1409
  %vm1428 = vcmp.le.f32.partialorder %v1380, %v1411
  %vm1429 = vcmp.le.f32.partialorder %v1381, %v1413
  %v1430 = vsel %vm1414, %v1349, 128
  %v1431 = vsel %vm1415, %v1349, 128
  %v1432 = vsel %vm1416, %v1349, 128
  %v1433 = vsel %vm1417, %v1349, 128
  %v1434 = vsel %vm1418, %v1349, 128
  %v1435 = vsel %vm1419, %v1349, 128
  %v1436 = vsel %vm1420, %v1349, 128
  %v1437 = vsel %vm1421, %v1349, 128
  %v1438 = vsel %vm1422, %v1349, 128
  %v1439 = vsel %vm1423, %v1349, 128
  %v1440 = vsel %vm1424, %v1349, 128
  %v1441 = vsel %vm1425, %v1349, 128
  %v1442 = vsel %vm1426, %v1349, 128
  %v1443 = vsel %vm1427, %v1349, 128
  %v1444 = vsel %vm1428, %v1349, 128
  %v1445 = vsel %vm1429, %v1349, 128
  %v1446 = vand.u32 %v1430, 65535
  %v1447 = vshra.s32 %v1430, 16
  %v1448 = vcvt.s32.f32 %v1446
  %v1449 = vcvt.s32.f32 %v1447
  %1450 = vmin.xlane.f32.xlu0 %v1449
  %v1451 = vpop.xlane.xlu0 %1450
  %vm1452 = vcmp.eq.f32.partialorder %v1449, %v1451
  %v1453 = vsel %vm1452, %v1448, inf
  %1454 = vmin.xlane.f32.xlu0 %v1453
  %v1455 = vpop.xlane.xlu0 %1454
  %v1456 = vcvt.f32.s32 %v1455
  %v1457 = vcvt.f32.s32 %v1451
  %v1458 = vshll.u32 %v1457, 16
  %v1459 = vadd.s32 %v1458, %v1456
  %v1460 = vand.u32 %v1431, 65535
  %v1461 = vshra.s32 %v1431, 16
  %v1462 = vcvt.s32.f32 %v1460
  %v1463 = vcvt.s32.f32 %v1461
  %1464 = vmin.xlane.f32.xlu0 %v1463
  %v1465 = vpop.xlane.xlu0 %1464
  %vm1466 = vcmp.eq.f32.partialorder %v1463, %v1465
  %v1467 = vsel %vm1466, %v1462, inf
  %1468 = vmin.xlane.f32.xlu0 %v1467
  %v1469 = vpop.xlane.xlu0 %1468
  %v1470 = vcvt.f32.s32 %v1469
  %v1471 = vcvt.f32.s32 %v1465
  %v1472 = vshll.u32 %v1471, 16
  %v1473 = vadd.s32 %v1472, %v1470
  %v1474 = vand.u32 %v1432, 65535
  %v1475 = vshra.s32 %v1432, 16
  %v1476 = vcvt.s32.f32 %v1474
  %v1477 = vcvt.s32.f32 %v1475
  %1478 = vmin.xlane.f32.xlu0 %v1477
  %v1479 = vpop.xlane.xlu0 %1478
  %vm1480 = vcmp.eq.f32.partialorder %v1477, %v1479
  %v1481 = vsel %vm1480, %v1476, inf
  %1482 = vmin.xlane.f32.xlu0 %v1481
  %v1483 = vpop.xlane.xlu0 %1482
  %v1484 = vcvt.f32.s32 %v1483
  %v1485 = vcvt.f32.s32 %v1479
  %v1486 = vshll.u32 %v1485, 16
  %v1487 = vadd.s32 %v1486, %v1484
  %v1488 = vand.u32 %v1433, 65535
  %v1489 = vshra.s32 %v1433, 16
  %v1490 = vcvt.s32.f32 %v1488
  %v1491 = vcvt.s32.f32 %v1489
  %1492 = vmin.xlane.f32.xlu0 %v1491
  %v1493 = vpop.xlane.xlu0 %1492
  %vm1494 = vcmp.eq.f32.partialorder %v1491, %v1493
  %v1495 = vsel %vm1494, %v1490, inf
  %1496 = vmin.xlane.f32.xlu0 %v1495
  %v1497 = vpop.xlane.xlu0 %1496
  %v1498 = vcvt.f32.s32 %v1497
  %v1499 = vcvt.f32.s32 %v1493
  %v1500 = vshll.u32 %v1499, 16
  %v1501 = vadd.s32 %v1500, %v1498
  %v1502 = vand.u32 %v1434, 65535
  %v1503 = vshra.s32 %v1434, 16
  %v1504 = vcvt.s32.f32 %v1502
  %v1505 = vcvt.s32.f32 %v1503
  %1506 = vmin.xlane.f32.xlu0 %v1505
  %v1507 = vpop.xlane.xlu0 %1506
  %vm1508 = vcmp.eq.f32.partialorder %v1505, %v1507
  %v1509 = vsel %vm1508, %v1504, inf
  %1510 = vmin.xlane.f32.xlu0 %v1509
  %v1511 = vpop.xlane.xlu0 %1510
  %v1512 = vcvt.f32.s32 %v1511
  %v1513 = vcvt.f32.s32 %v1507
  %v1514 = vshll.u32 %v1513, 16
  %v1515 = vadd.s32 %v1514, %v1512
  %v1516 = vand.u32 %v1435, 65535
  %v1517 = vshra.s32 %v1435, 16
  %v1518 = vcvt.s32.f32 %v1516
  %v1519 = vcvt.s32.f32 %v1517
  %1520 = vmin.xlane.f32.xlu0 %v1519
  %v1521 = vpop.xlane.xlu0 %1520
  %vm1522 = vcmp.eq.f32.partialorder %v1519, %v1521
  %v1523 = vsel %vm1522, %v1518, inf
  %1524 = vmin.xlane.f32.xlu0 %v1523
  %v1525 = vpop.xlane.xlu0 %1524
  %v1526 = vcvt.f32.s32 %v1525
  %v1527 = vcvt.f32.s32 %v1521
  %v1528 = vshll.u32 %v1527, 16
  %v1529 = vadd.s32 %v1528, %v1526
  %v1530 = vand.u32 %v1436, 65535
  %v1531 = vshra.s32 %v1436, 16
  %v1532 = vcvt.s32.f32 %v1530
  %v1533 = vcvt.s32.f32 %v1531
  %1534 = vmin.xlane.f32.xlu0 %v1533
  %v1535 = vpop.xlane.xlu0 %1534
  %vm1536 = vcmp.eq.f32.partialorder %v1533, %v1535
  %v1537 = vsel %vm1536, %v1532, inf
  %1538 = vmin.xlane.f32.xlu0 %v1537
  %v1539 = vpop.xlane.xlu0 %1538
  %v1540 = vcvt.f32.s32 %v1539
  %v1541 = vcvt.f32.s32 %v1535
  %v1542 = vshll.u32 %v1541, 16
  %v1543 = vadd.s32 %v1542, %v1540
  %v1544 = vand.u32 %v1437, 65535
  %v1545 = vshra.s32 %v1437, 16
  %v1546 = vcvt.s32.f32 %v1544
  %v1547 = vcvt.s32.f32 %v1545
  %1548 = vmin.xlane.f32.xlu0 %v1547
  %v1549 = vpop.xlane.xlu0 %1548
  %vm1550 = vcmp.eq.f32.partialorder %v1547, %v1549
  %v1551 = vsel %vm1550, %v1546, inf
  %1552 = vmin.xlane.f32.xlu0 %v1551
  %v1553 = vpop.xlane.xlu0 %1552
  %v1554 = vcvt.f32.s32 %v1553
  %v1555 = vcvt.f32.s32 %v1549
  %v1556 = vshll.u32 %v1555, 16
  %v1557 = vadd.s32 %v1556, %v1554
  %v1558 = vand.u32 %v1438, 65535
  %v1559 = vshra.s32 %v1438, 16
  %v1560 = vcvt.s32.f32 %v1558
  %v1561 = vcvt.s32.f32 %v1559
  %1562 = vmin.xlane.f32.xlu0 %v1561
  %v1563 = vpop.xlane.xlu0 %1562
  %vm1564 = vcmp.eq.f32.partialorder %v1561, %v1563
  %v1565 = vsel %vm1564, %v1560, inf
  %1566 = vmin.xlane.f32.xlu0 %v1565
  %v1567 = vpop.xlane.xlu0 %1566
  %v1568 = vcvt.f32.s32 %v1567
  %v1569 = vcvt.f32.s32 %v1563
  %v1570 = vshll.u32 %v1569, 16
  %v1571 = vadd.s32 %v1570, %v1568
  %v1572 = vand.u32 %v1439, 65535
  %v1573 = vshra.s32 %v1439, 16
  %v1574 = vcvt.s32.f32 %v1572
  %v1575 = vcvt.s32.f32 %v1573
  %1576 = vmin.xlane.f32.xlu0 %v1575
  %v1577 = vpop.xlane.xlu0 %1576
  %vm1578 = vcmp.eq.f32.partialorder %v1575, %v1577
  %v1579 = vsel %vm1578, %v1574, inf
  %1580 = vmin.xlane.f32.xlu0 %v1579
  %v1581 = vpop.xlane.xlu0 %1580
  %v1582 = vcvt.f32.s32 %v1581
  %v1583 = vcvt.f32.s32 %v1577
  %v1584 = vshll.u32 %v1583, 16
  %v1585 = vadd.s32 %v1584, %v1582
  %v1586 = vand.u32 %v1440, 65535
  %v1587 = vshra.s32 %v1440, 16
  %v1588 = vcvt.s32.f32 %v1586
  %v1589 = vcvt.s32.f32 %v1587
  %1590 = vmin.xlane.f32.xlu0 %v1589
  %v1591 = vpop.xlane.xlu0 %1590
  %vm1592 = vcmp.eq.f32.partialorder %v1589, %v1591
  %v1593 = vsel %vm1592, %v1588, inf
  %1594 = vmin.xlane.f32.xlu0 %v1593
  %v1595 = vpop.xlane.xlu0 %1594
  %v1596 = vcvt.f32.s32 %v1595
  %v1597 = vcvt.f32.s32 %v1591
  %v1598 = vshll.u32 %v1597, 16
  %v1599 = vadd.s32 %v1598, %v1596
  %v1600 = vand.u32 %v1441, 65535
  %v1601 = vshra.s32 %v1441, 16
  %v1602 = vcvt.s32.f32 %v1600
  %v1603 = vcvt.s32.f32 %v1601
  %1604 = vmin.xlane.f32.xlu0 %v1603
  %v1605 = vpop.xlane.xlu0 %1604
  %vm1606 = vcmp.eq.f32.partialorder %v1603, %v1605
  %v1607 = vsel %vm1606, %v1602, inf
  %1608 = vmin.xlane.f32.xlu0 %v1607
  %v1609 = vpop.xlane.xlu0 %1608
  %v1610 = vcvt.f32.s32 %v1609
  %v1611 = vcvt.f32.s32 %v1605
  %v1612 = vshll.u32 %v1611, 16
  %v1613 = vadd.s32 %v1612, %v1610
  %v1614 = vand.u32 %v1442, 65535
  %v1615 = vshra.s32 %v1442, 16
  %v1616 = vcvt.s32.f32 %v1614
  %v1617 = vcvt.s32.f32 %v1615
  %1618 = vmin.xlane.f32.xlu0 %v1617
  %v1619 = vpop.xlane.xlu0 %1618
  %vm1620 = vcmp.eq.f32.partialorder %v1617, %v1619
  %v1621 = vsel %vm1620, %v1616, inf
  %1622 = vmin.xlane.f32.xlu0 %v1621
  %v1623 = vpop.xlane.xlu0 %1622
  %v1624 = vcvt.f32.s32 %v1623
  %v1625 = vcvt.f32.s32 %v1619
  %v1626 = vshll.u32 %v1625, 16
  %v1627 = vadd.s32 %v1626, %v1624
  %v1628 = vand.u32 %v1443, 65535
  %v1629 = vshra.s32 %v1443, 16
  %v1630 = vcvt.s32.f32 %v1628
  %v1631 = vcvt.s32.f32 %v1629
  %1632 = vmin.xlane.f32.xlu0 %v1631
  %v1633 = vpop.xlane.xlu0 %1632
  %vm1634 = vcmp.eq.f32.partialorder %v1631, %v1633
  %v1635 = vsel %vm1634, %v1630, inf
  %1636 = vmin.xlane.f32.xlu0 %v1635
  %v1637 = vpop.xlane.xlu0 %1636
  %v1638 = vcvt.f32.s32 %v1637
  %v1639 = vcvt.f32.s32 %v1633
  %v1640 = vshll.u32 %v1639, 16
  %v1641 = vadd.s32 %v1640, %v1638
  %v1642 = vand.u32 %v1444, 65535
  %v1643 = vshra.s32 %v1444, 16
  %v1644 = vcvt.s32.f32 %v1642
  %v1645 = vcvt.s32.f32 %v1643
  %1646 = vmin.xlane.f32.xlu0 %v1645
  %v1647 = vpop.xlane.xlu0 %1646
  %vm1648 = vcmp.eq.f32.partialorder %v1645, %v1647
  %v1649 = vsel %vm1648, %v1644, inf
  %1650 = vmin.xlane.f32.xlu0 %v1649
  %v1651 = vpop.xlane.xlu0 %1650
  %v1652 = vcvt.f32.s32 %v1651
  %v1653 = vcvt.f32.s32 %v1647
  %v1654 = vshll.u32 %v1653, 16
  %v1655 = vadd.s32 %v1654, %v1652
  %v1656 = vand.u32 %v1445, 65535
  %v1657 = vshra.s32 %v1445, 16
  %v1658 = vcvt.s32.f32 %v1656
  %v1659 = vcvt.s32.f32 %v1657
  %1660 = vmin.xlane.f32.xlu0 %v1659
  %v1661 = vpop.xlane.xlu0 %1660
  %vm1662 = vcmp.eq.f32.partialorder %v1659, %v1661
  %v1663 = vsel %vm1662, %v1658, inf
  %1664 = vmin.xlane.f32.xlu0 %v1663
  %v1665 = vpop.xlane.xlu0 %1664
  %v1666 = vcvt.f32.s32 %v1665
  %v1667 = vcvt.f32.s32 %v1661
  %v1668 = vshll.u32 %v1667, 16
  %v1669 = vadd.s32 %v1668, %v1666
  %vm1670 = vcmp.eq.s32.totalorder %v1349, %v1459
  %vm1671 = vcmp.eq.s32.totalorder %v1349, %v1473
  %vm1672 = vcmp.eq.s32.totalorder %v1349, %v1487
  %vm1673 = vcmp.eq.s32.totalorder %v1349, %v1501
  %vm1674 = vcmp.eq.s32.totalorder %v1349, %v1515
  %vm1675 = vcmp.eq.s32.totalorder %v1349, %v1529
  %vm1676 = vcmp.eq.s32.totalorder %v1349, %v1543
  %vm1677 = vcmp.eq.s32.totalorder %v1349, %v1557
  %vm1678 = vcmp.eq.s32.totalorder %v1349, %v1571
  %vm1679 = vcmp.eq.s32.totalorder %v1349, %v1585
  %vm1680 = vcmp.eq.s32.totalorder %v1349, %v1599
  %vm1681 = vcmp.eq.s32.totalorder %v1349, %v1613
  %vm1682 = vcmp.eq.s32.totalorder %v1349, %v1627
  %vm1683 = vcmp.eq.s32.totalorder %v1349, %v1641
  %vm1684 = vcmp.eq.s32.totalorder %v1349, %v1655
  %vm1685 = vcmp.eq.s32.totalorder %v1349, %v1669
  %v1686 = vsel %vm1670, inf, %v1366
  %v1687 = vsel %vm1671, inf, %v1367
  %v1688 = vsel %vm1672, inf, %v1368
  %v1689 = vsel %vm1673, inf, %v1369
  %v1690 = vsel %vm1674, inf, %v1370
  %v1691 = vsel %vm1675, inf, %v1371
  %v1692 = vsel %vm1676, inf, %v1372
  %v1693 = vsel %vm1677, inf, %v1373
  %v1694 = vsel %vm1678, inf, %v1374
  %v1695 = vsel %vm1679, inf, %v1375
  %v1696 = vsel %vm1680, inf, %v1376
  %v1697 = vsel %vm1681, inf, %v1377
  %v1698 = vsel %vm1682, inf, %v1378
  %v1699 = vsel %vm1683, inf, %v1379
  %v1700 = vsel %vm1684, inf, %v1380
  %v1701 = vsel %vm1685, inf, %v1381
  %1702 = vmin.xlane.f32.xlu0 %v1686
  %v1703 = vpop.xlane.xlu0 %1702
  %1704 = vmin.xlane.f32.xlu0 %v1687
  %v1705 = vpop.xlane.xlu0 %1704
  %1706 = vmin.xlane.f32.xlu0 %v1688
  %v1707 = vpop.xlane.xlu0 %1706
  %1708 = vmin.xlane.f32.xlu0 %v1689
  %v1709 = vpop.xlane.xlu0 %1708
  %1710 = vmin.xlane.f32.xlu0 %v1690
  %v1711 = vpop.xlane.xlu0 %1710
  %1712 = vmin.xlane.f32.xlu0 %v1691
  %v1713 = vpop.xlane.xlu0 %1712
  %1714 = vmin.xlane.f32.xlu0 %v1692
  %v1715 = vpop.xlane.xlu0 %1714
  %1716 = vmin.xlane.f32.xlu0 %v1693
  %v1717 = vpop.xlane.xlu0 %1716
  %1718 = vmin.xlane.f32.xlu0 %v1694
  %v1719 = vpop.xlane.xlu0 %1718
  %1720 = vmin.xlane.f32.xlu0 %v1695
  %v1721 = vpop.xlane.xlu0 %1720
  %1722 = vmin.xlane.f32.xlu0 %v1696
  %v1723 = vpop.xlane.xlu0 %1722
  %1724 = vmin.xlane.f32.xlu0 %v1697
  %v1725 = vpop.xlane.xlu0 %1724
  %1726 = vmin.xlane.f32.xlu0 %v1698
  %v1727 = vpop.xlane.xlu0 %1726
  %1728 = vmin.xlane.f32.xlu0 %v1699
  %v1729 = vpop.xlane.xlu0 %1728
  %1730 = vmin.xlane.f32.xlu0 %v1700
  %v1731 = vpop.xlane.xlu0 %1730
  %1732 = vmin.xlane.f32.xlu0 %v1701
  %v1733 = vpop.xlane.xlu0 %1732
  %vm1734 = vcmp.le.f32.partialorder %v1686, %v1703
  %vm1735 = vcmp.le.f32.partialorder %v1687, %v1705
  %vm1736 = vcmp.le.f32.partialorder %v1688, %v1707
  %vm1737 = vcmp.le.f32.partialorder %v1689, %v1709
  %vm1738 = vcmp.le.f32.partialorder %v1690, %v1711
  %vm1739 = vcmp.le.f32.partialorder %v1691, %v1713
  %vm1740 = vcmp.le.f32.partialorder %v1692, %v1715
  %vm1741 = vcmp.le.f32.partialorder %v1693, %v1717
  %vm1742 = vcmp.le.f32.partialorder %v1694, %v1719
  %vm1743 = vcmp.le.f32.partialorder %v1695, %v1721
  %vm1744 = vcmp.le.f32.partialorder %v1696, %v1723
  %vm1745 = vcmp.le.f32.partialorder %v1697, %v1725
  %vm1746 = vcmp.le.f32.partialorder %v1698, %v1727
  %vm1747 = vcmp.le.f32.partialorder %v1699, %v1729
  %vm1748 = vcmp.le.f32.partialorder %v1700, %v1731
  %vm1749 = vcmp.le.f32.partialorder %v1701, %v1733
  %v1750 = vsel %vm1734, %v1349, 128
  %v1751 = vsel %vm1735, %v1349, 128
  %v1752 = vsel %vm1736, %v1349, 128
  %v1753 = vsel %vm1737, %v1349, 128
  %v1754 = vsel %vm1738, %v1349, 128
  %v1755 = vsel %vm1739, %v1349, 128
  %v1756 = vsel %vm1740, %v1349, 128
  %v1757 = vsel %vm1741, %v1349, 128
  %v1758 = vsel %vm1742, %v1349, 128
  %v1759 = vsel %vm1743, %v1349, 128
  %v1760 = vsel %vm1744, %v1349, 128
  %v1761 = vsel %vm1745, %v1349, 128
  %v1762 = vsel %vm1746, %v1349, 128
  %v1763 = vsel %vm1747, %v1349, 128
  %v1764 = vsel %vm1748, %v1349, 128
  %v1765 = vsel %vm1749, %v1349, 128
  %v1766 = vand.u32 %v1750, 65535
  %v1767 = vshra.s32 %v1750, 16
  %v1768 = vcvt.s32.f32 %v1766
  %v1769 = vcvt.s32.f32 %v1767
  %1770 = vmin.xlane.f32.xlu0 %v1769
  %v1771 = vpop.xlane.xlu0 %1770
  %vm1772 = vcmp.eq.f32.partialorder %v1769, %v1771
  %v1773 = vsel %vm1772, %v1768, inf
  %1774 = vmin.xlane.f32.xlu0 %v1773
  %v1775 = vpop.xlane.xlu0 %1774
  %v1776 = vcvt.f32.s32 %v1775
  %v1777 = vcvt.f32.s32 %v1771
  %v1778 = vshll.u32 %v1777, 16
  %v1779 = vadd.s32 %v1778, %v1776
  %v1780 = vand.u32 %v1751, 65535
  %v1781 = vshra.s32 %v1751, 16
  %v1782 = vcvt.s32.f32 %v1780
  %v1783 = vcvt.s32.f32 %v1781
  %1784 = vmin.xlane.f32.xlu0 %v1783
  %v1785 = vpop.xlane.xlu0 %1784
  %vm1786 = vcmp.eq.f32.partialorder %v1783, %v1785
  %v1787 = vsel %vm1786, %v1782, inf
  %1788 = vmin.xlane.f32.xlu0 %v1787
  %v1789 = vpop.xlane.xlu0 %1788
  %v1790 = vcvt.f32.s32 %v1789
  %v1791 = vcvt.f32.s32 %v1785
  %v1792 = vshll.u32 %v1791, 16
  %v1793 = vadd.s32 %v1792, %v1790
  %v1794 = vand.u32 %v1752, 65535
  %v1795 = vshra.s32 %v1752, 16
  %v1796 = vcvt.s32.f32 %v1794
  %v1797 = vcvt.s32.f32 %v1795
  %1798 = vmin.xlane.f32.xlu0 %v1797
  %v1799 = vpop.xlane.xlu0 %1798
  %vm1800 = vcmp.eq.f32.partialorder %v1797, %v1799
  %v1801 = vsel %vm1800, %v1796, inf
  %1802 = vmin.xlane.f32.xlu0 %v1801
  %v1803 = vpop.xlane.xlu0 %1802
  %v1804 = vcvt.f32.s32 %v1803
  %v1805 = vcvt.f32.s32 %v1799
  %v1806 = vshll.u32 %v1805, 16
  %v1807 = vadd.s32 %v1806, %v1804
  %v1808 = vand.u32 %v1753, 65535
  %v1809 = vshra.s32 %v1753, 16
  %v1810 = vcvt.s32.f32 %v1808
  %v1811 = vcvt.s32.f32 %v1809
  %1812 = vmin.xlane.f32.xlu0 %v1811
  %v1813 = vpop.xlane.xlu0 %1812
  %vm1814 = vcmp.eq.f32.partialorder %v1811, %v1813
  %v1815 = vsel %vm1814, %v1810, inf
  %1816 = vmin.xlane.f32.xlu0 %v1815
  %v1817 = vpop.xlane.xlu0 %1816
  %v1818 = vcvt.f32.s32 %v1817
  %v1819 = vcvt.f32.s32 %v1813
  %v1820 = vshll.u32 %v1819, 16
  %v1821 = vadd.s32 %v1820, %v1818
  %v1822 = vand.u32 %v1754, 65535
  %v1823 = vshra.s32 %v1754, 16
  %v1824 = vcvt.s32.f32 %v1822
  %v1825 = vcvt.s32.f32 %v1823
  %1826 = vmin.xlane.f32.xlu0 %v1825
  %v1827 = vpop.xlane.xlu0 %1826
  %vm1828 = vcmp.eq.f32.partialorder %v1825, %v1827
  %v1829 = vsel %vm1828, %v1824, inf
  %1830 = vmin.xlane.f32.xlu0 %v1829
  %v1831 = vpop.xlane.xlu0 %1830
  %v1832 = vcvt.f32.s32 %v1831
  %v1833 = vcvt.f32.s32 %v1827
  %v1834 = vshll.u32 %v1833, 16
  %v1835 = vadd.s32 %v1834, %v1832
  %v1836 = vand.u32 %v1755, 65535
  %v1837 = vshra.s32 %v1755, 16
  %v1838 = vcvt.s32.f32 %v1836
  %v1839 = vcvt.s32.f32 %v1837
  %1840 = vmin.xlane.f32.xlu0 %v1839
  %v1841 = vpop.xlane.xlu0 %1840
  %vm1842 = vcmp.eq.f32.partialorder %v1839, %v1841
  %v1843 = vsel %vm1842, %v1838, inf
  %1844 = vmin.xlane.f32.xlu0 %v1843
  %v1845 = vpop.xlane.xlu0 %1844
  %v1846 = vcvt.f32.s32 %v1845
  %v1847 = vcvt.f32.s32 %v1841
  %v1848 = vshll.u32 %v1847, 16
  %v1849 = vadd.s32 %v1848, %v1846
  %v1850 = vand.u32 %v1756, 65535
  %v1851 = vshra.s32 %v1756, 16
  %v1852 = vcvt.s32.f32 %v1850
  %v1853 = vcvt.s32.f32 %v1851
  %1854 = vmin.xlane.f32.xlu0 %v1853
  %v1855 = vpop.xlane.xlu0 %1854
  %vm1856 = vcmp.eq.f32.partialorder %v1853, %v1855
  %v1857 = vsel %vm1856, %v1852, inf
  %1858 = vmin.xlane.f32.xlu0 %v1857
  %v1859 = vpop.xlane.xlu0 %1858
  %v1860 = vcvt.f32.s32 %v1859
  %v1861 = vcvt.f32.s32 %v1855
  %v1862 = vshll.u32 %v1861, 16
  %v1863 = vadd.s32 %v1862, %v1860
  %v1864 = vand.u32 %v1757, 65535
  %v1865 = vshra.s32 %v1757, 16
  %v1866 = vcvt.s32.f32 %v1864
  %v1867 = vcvt.s32.f32 %v1865
  %1868 = vmin.xlane.f32.xlu0 %v1867
  %v1869 = vpop.xlane.xlu0 %1868
  %vm1870 = vcmp.eq.f32.partialorder %v1867, %v1869
  %v1871 = vsel %vm1870, %v1866, inf
  %1872 = vmin.xlane.f32.xlu0 %v1871
  %v1873 = vpop.xlane.xlu0 %1872
  %v1874 = vcvt.f32.s32 %v1873
  %v1875 = vcvt.f32.s32 %v1869
  %v1876 = vshll.u32 %v1875, 16
  %v1877 = vadd.s32 %v1876, %v1874
  %v1878 = vand.u32 %v1758, 65535
  %v1879 = vshra.s32 %v1758, 16
  %v1880 = vcvt.s32.f32 %v1878
  %v1881 = vcvt.s32.f32 %v1879
  %1882 = vmin.xlane.f32.xlu0 %v1881
  %v1883 = vpop.xlane.xlu0 %1882
  %vm1884 = vcmp.eq.f32.partialorder %v1881, %v1883
  %v1885 = vsel %vm1884, %v1880, inf
  %1886 = vmin.xlane.f32.xlu0 %v1885
  %v1887 = vpop.xlane.xlu0 %1886
  %v1888 = vcvt.f32.s32 %v1887
  %v1889 = vcvt.f32.s32 %v1883
  %v1890 = vshll.u32 %v1889, 16
  %v1891 = vadd.s32 %v1890, %v1888
  %v1892 = vand.u32 %v1759, 65535
  %v1893 = vshra.s32 %v1759, 16
  %v1894 = vcvt.s32.f32 %v1892
  %v1895 = vcvt.s32.f32 %v1893
  %1896 = vmin.xlane.f32.xlu0 %v1895
  %v1897 = vpop.xlane.xlu0 %1896
  %vm1898 = vcmp.eq.f32.partialorder %v1895, %v1897
  %v1899 = vsel %vm1898, %v1894, inf
  %1900 = vmin.xlane.f32.xlu0 %v1899
  %v1901 = vpop.xlane.xlu0 %1900
  %v1902 = vcvt.f32.s32 %v1901
  %v1903 = vcvt.f32.s32 %v1897
  %v1904 = vshll.u32 %v1903, 16
  %v1905 = vadd.s32 %v1904, %v1902
  %v1906 = vand.u32 %v1760, 65535
  %v1907 = vshra.s32 %v1760, 16
  %v1908 = vcvt.s32.f32 %v1906
  %v1909 = vcvt.s32.f32 %v1907
  %1910 = vmin.xlane.f32.xlu0 %v1909
  %v1911 = vpop.xlane.xlu0 %1910
  %vm1912 = vcmp.eq.f32.partialorder %v1909, %v1911
  %v1913 = vsel %vm1912, %v1908, inf
  %1914 = vmin.xlane.f32.xlu0 %v1913
  %v1915 = vpop.xlane.xlu0 %1914
  %v1916 = vcvt.f32.s32 %v1915
  %v1917 = vcvt.f32.s32 %v1911
  %v1918 = vshll.u32 %v1917, 16
  %v1919 = vadd.s32 %v1918, %v1916
  %v1920 = vand.u32 %v1761, 65535
  %v1921 = vshra.s32 %v1761, 16
  %v1922 = vcvt.s32.f32 %v1920
  %v1923 = vcvt.s32.f32 %v1921
  %1924 = vmin.xlane.f32.xlu0 %v1923
  %v1925 = vpop.xlane.xlu0 %1924
  %vm1926 = vcmp.eq.f32.partialorder %v1923, %v1925
  %v1927 = vsel %vm1926, %v1922, inf
  %1928 = vmin.xlane.f32.xlu0 %v1927
  %v1929 = vpop.xlane.xlu0 %1928
  %v1930 = vcvt.f32.s32 %v1929
  %v1931 = vcvt.f32.s32 %v1925
  %v1932 = vshll.u32 %v1931, 16
  %v1933 = vadd.s32 %v1932, %v1930
  %v1934 = vand.u32 %v1762, 65535
  %v1935 = vshra.s32 %v1762, 16
  %v1936 = vcvt.s32.f32 %v1934
  %v1937 = vcvt.s32.f32 %v1935
  %1938 = vmin.xlane.f32.xlu0 %v1937
  %v1939 = vpop.xlane.xlu0 %1938
  %vm1940 = vcmp.eq.f32.partialorder %v1937, %v1939
  %v1941 = vsel %vm1940, %v1936, inf
  %1942 = vmin.xlane.f32.xlu0 %v1941
  %v1943 = vpop.xlane.xlu0 %1942
  %v1944 = vcvt.f32.s32 %v1943
  %v1945 = vcvt.f32.s32 %v1939
  %v1946 = vshll.u32 %v1945, 16
  %v1947 = vadd.s32 %v1946, %v1944
  %v1948 = vand.u32 %v1763, 65535
  %v1949 = vshra.s32 %v1763, 16
  %v1950 = vcvt.s32.f32 %v1948
  %v1951 = vcvt.s32.f32 %v1949
  %1952 = vmin.xlane.f32.xlu0 %v1951
  %v1953 = vpop.xlane.xlu0 %1952
  %vm1954 = vcmp.eq.f32.partialorder %v1951, %v1953
  %v1955 = vsel %vm1954, %v1950, inf
  %1956 = vmin.xlane.f32.xlu0 %v1955
  %v1957 = vpop.xlane.xlu0 %1956
  %v1958 = vcvt.f32.s32 %v1957
  %v1959 = vcvt.f32.s32 %v1953
  %v1960 = vshll.u32 %v1959, 16
  %v1961 = vadd.s32 %v1960, %v1958
  %v1962 = vand.u32 %v1764, 65535
  %v1963 = vshra.s32 %v1764, 16
  %v1964 = vcvt.s32.f32 %v1962
  %v1965 = vcvt.s32.f32 %v1963
  %1966 = vmin.xlane.f32.xlu0 %v1965
  %v1967 = vpop.xlane.xlu0 %1966
  %vm1968 = vcmp.eq.f32.partialorder %v1965, %v1967
  %v1969 = vsel %vm1968, %v1964, inf
  %1970 = vmin.xlane.f32.xlu0 %v1969
  %v1971 = vpop.xlane.xlu0 %1970
  %v1972 = vcvt.f32.s32 %v1971
  %v1973 = vcvt.f32.s32 %v1967
  %v1974 = vshll.u32 %v1973, 16
  %v1975 = vadd.s32 %v1974, %v1972
  %v1976 = vand.u32 %v1765, 65535
  %v1977 = vshra.s32 %v1765, 16
  %v1978 = vcvt.s32.f32 %v1976
  %v1979 = vcvt.s32.f32 %v1977
  %1980 = vmin.xlane.f32.xlu0 %v1979
  %v1981 = vpop.xlane.xlu0 %1980
  %vm1982 = vcmp.eq.f32.partialorder %v1979, %v1981
  %v1983 = vsel %vm1982, %v1978, inf
  %1984 = vmin.xlane.f32.xlu0 %v1983
  %v1985 = vpop.xlane.xlu0 %1984
  %v1986 = vcvt.f32.s32 %v1985
  %v1987 = vcvt.f32.s32 %v1981
  %v1988 = vshll.u32 %v1987, 16
  %v1989 = vadd.s32 %v1988, %v1986
  %vm1990 = vcmp.eq.s32.totalorder %v1349, %v1779
  %vm1991 = vcmp.eq.s32.totalorder %v1349, %v1793
  %vm1992 = vcmp.eq.s32.totalorder %v1349, %v1807
  %vm1993 = vcmp.eq.s32.totalorder %v1349, %v1821
  %vm1994 = vcmp.eq.s32.totalorder %v1349, %v1835
  %vm1995 = vcmp.eq.s32.totalorder %v1349, %v1849
  %vm1996 = vcmp.eq.s32.totalorder %v1349, %v1863
  %vm1997 = vcmp.eq.s32.totalorder %v1349, %v1877
  %vm1998 = vcmp.eq.s32.totalorder %v1349, %v1891
  %vm1999 = vcmp.eq.s32.totalorder %v1349, %v1905
  %vm2000 = vcmp.eq.s32.totalorder %v1349, %v1919
  %vm2001 = vcmp.eq.s32.totalorder %v1349, %v1933
  %vm2002 = vcmp.eq.s32.totalorder %v1349, %v1947
  %vm2003 = vcmp.eq.s32.totalorder %v1349, %v1961
  %vm2004 = vcmp.eq.s32.totalorder %v1349, %v1975
  %vm2005 = vcmp.eq.s32.totalorder %v1349, %v1989
  %v2006 = vsel %vm1990, inf, %v1686
  %v2007 = vsel %vm1991, inf, %v1687
  %v2008 = vsel %vm1992, inf, %v1688
  %v2009 = vsel %vm1993, inf, %v1689
  %v2010 = vsel %vm1994, inf, %v1690
  %v2011 = vsel %vm1995, inf, %v1691
  %v2012 = vsel %vm1996, inf, %v1692
  %v2013 = vsel %vm1997, inf, %v1693
  %v2014 = vsel %vm1998, inf, %v1694
  %v2015 = vsel %vm1999, inf, %v1695
  %v2016 = vsel %vm2000, inf, %v1696
  %v2017 = vsel %vm2001, inf, %v1697
  %v2018 = vsel %vm2002, inf, %v1698
  %v2019 = vsel %vm2003, inf, %v1699
  %v2020 = vsel %vm2004, inf, %v1700
  %v2021 = vsel %vm2005, inf, %v1701
  %2022 = vmin.xlane.f32.xlu0 %v2006
  %v2023 = vpop.xlane.xlu0 %2022
  %2024 = vmin.xlane.f32.xlu0 %v2007
  %v2025 = vpop.xlane.xlu0 %2024
  %2026 = vmin.xlane.f32.xlu0 %v2008
  %v2027 = vpop.xlane.xlu0 %2026
  %2028 = vmin.xlane.f32.xlu0 %v2009
  %v2029 = vpop.xlane.xlu0 %2028
  %2030 = vmin.xlane.f32.xlu0 %v2010
  %v2031 = vpop.xlane.xlu0 %2030
  %2032 = vmin.xlane.f32.xlu0 %v2011
  %v2033 = vpop.xlane.xlu0 %2032
  %2034 = vmin.xlane.f32.xlu0 %v2012
  %v2035 = vpop.xlane.xlu0 %2034
  %2036 = vmin.xlane.f32.xlu0 %v2013
  %v2037 = vpop.xlane.xlu0 %2036
  %2038 = vmin.xlane.f32.xlu0 %v2014
  %v2039 = vpop.xlane.xlu0 %2038
  %2040 = vmin.xlane.f32.xlu0 %v2015
  %v2041 = vpop.xlane.xlu0 %2040
  %2042 = vmin.xlane.f32.xlu0 %v2016
  %v2043 = vpop.xlane.xlu0 %2042
  %2044 = vmin.xlane.f32.xlu0 %v2017
  %v2045 = vpop.xlane.xlu0 %2044
  %2046 = vmin.xlane.f32.xlu0 %v2018
  %v2047 = vpop.xlane.xlu0 %2046
  %2048 = vmin.xlane.f32.xlu0 %v2019
  %v2049 = vpop.xlane.xlu0 %2048
  %2050 = vmin.xlane.f32.xlu0 %v2020
  %v2051 = vpop.xlane.xlu0 %2050
  %2052 = vmin.xlane.f32.xlu0 %v2021
  %v2053 = vpop.xlane.xlu0 %2052
  %vm2054 = vcmp.le.f32.partialorder %v2006, %v2023
  %vm2055 = vcmp.le.f32.partialorder %v2007, %v2025
  %vm2056 = vcmp.le.f32.partialorder %v2008, %v2027
  %vm2057 = vcmp.le.f32.partialorder %v2009, %v2029
  %vm2058 = vcmp.le.f32.partialorder %v2010, %v2031
  %vm2059 = vcmp.le.f32.partialorder %v2011, %v2033
  %vm2060 = vcmp.le.f32.partialorder %v2012, %v2035
  %vm2061 = vcmp.le.f32.partialorder %v2013, %v2037
  %vm2062 = vcmp.le.f32.partialorder %v2014, %v2039
  %vm2063 = vcmp.le.f32.partialorder %v2015, %v2041
  %vm2064 = vcmp.le.f32.partialorder %v2016, %v2043
  %vm2065 = vcmp.le.f32.partialorder %v2017, %v2045
  %vm2066 = vcmp.le.f32.partialorder %v2018, %v2047
  %vm2067 = vcmp.le.f32.partialorder %v2019, %v2049
  %vm2068 = vcmp.le.f32.partialorder %v2020, %v2051
  %vm2069 = vcmp.le.f32.partialorder %v2021, %v2053
  %v2070 = vsel %vm2054, %v1349, 128
  %v2071 = vsel %vm2055, %v1349, 128
  %v2072 = vsel %vm2056, %v1349, 128
  %v2073 = vsel %vm2057, %v1349, 128
  %v2074 = vsel %vm2058, %v1349, 128
  %v2075 = vsel %vm2059, %v1349, 128
  %v2076 = vsel %vm2060, %v1349, 128
  %v2077 = vsel %vm2061, %v1349, 128
  %v2078 = vsel %vm2062, %v1349, 128
  %v2079 = vsel %vm2063, %v1349, 128
  %v2080 = vsel %vm2064, %v1349, 128
  %v2081 = vsel %vm2065, %v1349, 128
  %v2082 = vsel %vm2066, %v1349, 128
  %v2083 = vsel %vm2067, %v1349, 128
  %v2084 = vsel %vm2068, %v1349, 128
  %v2085 = vsel %vm2069, %v1349, 128
  %v2086 = vand.u32 %v2070, 65535
  %v2087 = vshra.s32 %v2070, 16
  %v2088 = vcvt.s32.f32 %v2086
  %v2089 = vcvt.s32.f32 %v2087
  %2090 = vmin.xlane.f32.xlu0 %v2089
  %v2091 = vpop.xlane.xlu0 %2090
  %vm2092 = vcmp.eq.f32.partialorder %v2089, %v2091
  %v2093 = vsel %vm2092, %v2088, inf
  %2094 = vmin.xlane.f32.xlu0 %v2093
  %v2095 = vpop.xlane.xlu0 %2094
  %v2096 = vcvt.f32.s32 %v2095
  %v2097 = vcvt.f32.s32 %v2091
  %v2098 = vshll.u32 %v2097, 16
  %v2099 = vadd.s32 %v2098, %v2096
  %v2100 = vand.u32 %v2071, 65535
  %v2101 = vshra.s32 %v2071, 16
  %v2102 = vcvt.s32.f32 %v2100
  %v2103 = vcvt.s32.f32 %v2101
  %2104 = vmin.xlane.f32.xlu0 %v2103
  %v2105 = vpop.xlane.xlu0 %2104
  %vm2106 = vcmp.eq.f32.partialorder %v2103, %v2105
  %v2107 = vsel %vm2106, %v2102, inf
  %2108 = vmin.xlane.f32.xlu0 %v2107
  %v2109 = vpop.xlane.xlu0 %2108
  %v2110 = vcvt.f32.s32 %v2109
  %v2111 = vcvt.f32.s32 %v2105
  %v2112 = vshll.u32 %v2111, 16
  %v2113 = vadd.s32 %v2112, %v2110
  %v2114 = vand.u32 %v2072, 65535
  %v2115 = vshra.s32 %v2072, 16
  %v2116 = vcvt.s32.f32 %v2114
  %v2117 = vcvt.s32.f32 %v2115
  %2118 = vmin.xlane.f32.xlu0 %v2117
  %v2119 = vpop.xlane.xlu0 %2118
  %vm2120 = vcmp.eq.f32.partialorder %v2117, %v2119
  %v2121 = vsel %vm2120, %v2116, inf
  %2122 = vmin.xlane.f32.xlu0 %v2121
  %v2123 = vpop.xlane.xlu0 %2122
  %v2124 = vcvt.f32.s32 %v2123
  %v2125 = vcvt.f32.s32 %v2119
  %v2126 = vshll.u32 %v2125, 16
  %v2127 = vadd.s32 %v2126, %v2124
  %v2128 = vand.u32 %v2073, 65535
  %v2129 = vshra.s32 %v2073, 16
  %v2130 = vcvt.s32.f32 %v2128
  %v2131 = vcvt.s32.f32 %v2129
  %2132 = vmin.xlane.f32.xlu0 %v2131
  %v2133 = vpop.xlane.xlu0 %2132
  %vm2134 = vcmp.eq.f32.partialorder %v2131, %v2133
  %v2135 = vsel %vm2134, %v2130, inf
  %2136 = vmin.xlane.f32.xlu0 %v2135
  %v2137 = vpop.xlane.xlu0 %2136
  %v2138 = vcvt.f32.s32 %v2137
  %v2139 = vcvt.f32.s32 %v2133
  %v2140 = vshll.u32 %v2139, 16
  %v2141 = vadd.s32 %v2140, %v2138
  %v2142 = vand.u32 %v2074, 65535
  %v2143 = vshra.s32 %v2074, 16
  %v2144 = vcvt.s32.f32 %v2142
  %v2145 = vcvt.s32.f32 %v2143
  %2146 = vmin.xlane.f32.xlu0 %v2145
  %v2147 = vpop.xlane.xlu0 %2146
  %vm2148 = vcmp.eq.f32.partialorder %v2145, %v2147
  %v2149 = vsel %vm2148, %v2144, inf
  %2150 = vmin.xlane.f32.xlu0 %v2149
  %v2151 = vpop.xlane.xlu0 %2150
  %v2152 = vcvt.f32.s32 %v2151
  %v2153 = vcvt.f32.s32 %v2147
  %v2154 = vshll.u32 %v2153, 16
  %v2155 = vadd.s32 %v2154, %v2152
  %v2156 = vand.u32 %v2075, 65535
  %v2157 = vshra.s32 %v2075, 16
  %v2158 = vcvt.s32.f32 %v2156
  %v2159 = vcvt.s32.f32 %v2157
  %2160 = vmin.xlane.f32.xlu0 %v2159
  %v2161 = vpop.xlane.xlu0 %2160
  %vm2162 = vcmp.eq.f32.partialorder %v2159, %v2161
  %v2163 = vsel %vm2162, %v2158, inf
  %2164 = vmin.xlane.f32.xlu0 %v2163
  %v2165 = vpop.xlane.xlu0 %2164
  %v2166 = vcvt.f32.s32 %v2165
  %v2167 = vcvt.f32.s32 %v2161
  %v2168 = vshll.u32 %v2167, 16
  %v2169 = vadd.s32 %v2168, %v2166
  %v2170 = vand.u32 %v2076, 65535
  %v2171 = vshra.s32 %v2076, 16
  %v2172 = vcvt.s32.f32 %v2170
  %v2173 = vcvt.s32.f32 %v2171
  %2174 = vmin.xlane.f32.xlu0 %v2173
  %v2175 = vpop.xlane.xlu0 %2174
  %vm2176 = vcmp.eq.f32.partialorder %v2173, %v2175
  %v2177 = vsel %vm2176, %v2172, inf
  %2178 = vmin.xlane.f32.xlu0 %v2177
  %v2179 = vpop.xlane.xlu0 %2178
  %v2180 = vcvt.f32.s32 %v2179
  %v2181 = vcvt.f32.s32 %v2175
  %v2182 = vshll.u32 %v2181, 16
  %v2183 = vadd.s32 %v2182, %v2180
  %v2184 = vand.u32 %v2077, 65535
  %v2185 = vshra.s32 %v2077, 16
  %v2186 = vcvt.s32.f32 %v2184
  %v2187 = vcvt.s32.f32 %v2185
  %2188 = vmin.xlane.f32.xlu0 %v2187
  %v2189 = vpop.xlane.xlu0 %2188
  %vm2190 = vcmp.eq.f32.partialorder %v2187, %v2189
  %v2191 = vsel %vm2190, %v2186, inf
  %2192 = vmin.xlane.f32.xlu0 %v2191
  %v2193 = vpop.xlane.xlu0 %2192
  %v2194 = vcvt.f32.s32 %v2193
  %v2195 = vcvt.f32.s32 %v2189
  %v2196 = vshll.u32 %v2195, 16
  %v2197 = vadd.s32 %v2196, %v2194
  %v2198 = vand.u32 %v2078, 65535
  %v2199 = vshra.s32 %v2078, 16
  %v2200 = vcvt.s32.f32 %v2198
  %v2201 = vcvt.s32.f32 %v2199
  %2202 = vmin.xlane.f32.xlu0 %v2201
  %v2203 = vpop.xlane.xlu0 %2202
  %vm2204 = vcmp.eq.f32.partialorder %v2201, %v2203
  %v2205 = vsel %vm2204, %v2200, inf
  %2206 = vmin.xlane.f32.xlu0 %v2205
  %v2207 = vpop.xlane.xlu0 %2206
  %v2208 = vcvt.f32.s32 %v2207
  %v2209 = vcvt.f32.s32 %v2203
  %v2210 = vshll.u32 %v2209, 16
  %v2211 = vadd.s32 %v2210, %v2208
  %v2212 = vand.u32 %v2079, 65535
  %v2213 = vshra.s32 %v2079, 16
  %v2214 = vcvt.s32.f32 %v2212
  %v2215 = vcvt.s32.f32 %v2213
  %2216 = vmin.xlane.f32.xlu0 %v2215
  %v2217 = vpop.xlane.xlu0 %2216
  %vm2218 = vcmp.eq.f32.partialorder %v2215, %v2217
  %v2219 = vsel %vm2218, %v2214, inf
  %2220 = vmin.xlane.f32.xlu0 %v2219
  %v2221 = vpop.xlane.xlu0 %2220
  %v2222 = vcvt.f32.s32 %v2221
  %v2223 = vcvt.f32.s32 %v2217
  %v2224 = vshll.u32 %v2223, 16
  %v2225 = vadd.s32 %v2224, %v2222
  %v2226 = vand.u32 %v2080, 65535
  %v2227 = vshra.s32 %v2080, 16
  %v2228 = vcvt.s32.f32 %v2226
  %v2229 = vcvt.s32.f32 %v2227
  %2230 = vmin.xlane.f32.xlu0 %v2229
  %v2231 = vpop.xlane.xlu0 %2230
  %vm2232 = vcmp.eq.f32.partialorder %v2229, %v2231
  %v2233 = vsel %vm2232, %v2228, inf
  %2234 = vmin.xlane.f32.xlu0 %v2233
  %v2235 = vpop.xlane.xlu0 %2234
  %v2236 = vcvt.f32.s32 %v2235
  %v2237 = vcvt.f32.s32 %v2231
  %v2238 = vshll.u32 %v2237, 16
  %v2239 = vadd.s32 %v2238, %v2236
  %v2240 = vand.u32 %v2081, 65535
  %v2241 = vshra.s32 %v2081, 16
  %v2242 = vcvt.s32.f32 %v2240
  %v2243 = vcvt.s32.f32 %v2241
  %2244 = vmin.xlane.f32.xlu0 %v2243
  %v2245 = vpop.xlane.xlu0 %2244
  %vm2246 = vcmp.eq.f32.partialorder %v2243, %v2245
  %v2247 = vsel %vm2246, %v2242, inf
  %2248 = vmin.xlane.f32.xlu0 %v2247
  %v2249 = vpop.xlane.xlu0 %2248
  %v2250 = vcvt.f32.s32 %v2249
  %v2251 = vcvt.f32.s32 %v2245
  %v2252 = vshll.u32 %v2251, 16
  %v2253 = vadd.s32 %v2252, %v2250
  %v2254 = vand.u32 %v2082, 65535
  %v2255 = vshra.s32 %v2082, 16
  %v2256 = vcvt.s32.f32 %v2254
  %v2257 = vcvt.s32.f32 %v2255
  %2258 = vmin.xlane.f32.xlu0 %v2257
  %v2259 = vpop.xlane.xlu0 %2258
  %vm2260 = vcmp.eq.f32.partialorder %v2257, %v2259
  %v2261 = vsel %vm2260, %v2256, inf
  %2262 = vmin.xlane.f32.xlu0 %v2261
  %v2263 = vpop.xlane.xlu0 %2262
  %v2264 = vcvt.f32.s32 %v2263
  %v2265 = vcvt.f32.s32 %v2259
  %v2266 = vshll.u32 %v2265, 16
  %v2267 = vadd.s32 %v2266, %v2264
  %v2268 = vand.u32 %v2083, 65535
  %v2269 = vshra.s32 %v2083, 16
  %v2270 = vcvt.s32.f32 %v2268
  %v2271 = vcvt.s32.f32 %v2269
  %2272 = vmin.xlane.f32.xlu0 %v2271
  %v2273 = vpop.xlane.xlu0 %2272
  %vm2274 = vcmp.eq.f32.partialorder %v2271, %v2273
  %v2275 = vsel %vm2274, %v2270, inf
  %2276 = vmin.xlane.f32.xlu0 %v2275
  %v2277 = vpop.xlane.xlu0 %2276
  %v2278 = vcvt.f32.s32 %v2277
  %v2279 = vcvt.f32.s32 %v2273
  %v2280 = vshll.u32 %v2279, 16
  %v2281 = vadd.s32 %v2280, %v2278
  %v2282 = vand.u32 %v2084, 65535
  %v2283 = vshra.s32 %v2084, 16
  %v2284 = vcvt.s32.f32 %v2282
  %v2285 = vcvt.s32.f32 %v2283
  %2286 = vmin.xlane.f32.xlu0 %v2285
  %v2287 = vpop.xlane.xlu0 %2286
  %vm2288 = vcmp.eq.f32.partialorder %v2285, %v2287
  %v2289 = vsel %vm2288, %v2284, inf
  %2290 = vmin.xlane.f32.xlu0 %v2289
  %v2291 = vpop.xlane.xlu0 %2290
  %v2292 = vcvt.f32.s32 %v2291
  %v2293 = vcvt.f32.s32 %v2287
  %v2294 = vshll.u32 %v2293, 16
  %v2295 = vadd.s32 %v2294, %v2292
  %v2296 = vand.u32 %v2085, 65535
  %v2297 = vshra.s32 %v2085, 16
  %v2298 = vcvt.s32.f32 %v2296
  %v2299 = vcvt.s32.f32 %v2297
  %2300 = vmin.xlane.f32.xlu0 %v2299
  %v2301 = vpop.xlane.xlu0 %2300
  %vm2302 = vcmp.eq.f32.partialorder %v2299, %v2301
  %v2303 = vsel %vm2302, %v2298, inf
  %2304 = vmin.xlane.f32.xlu0 %v2303
  %v2305 = vpop.xlane.xlu0 %2304
  %v2306 = vcvt.f32.s32 %v2305
  %v2307 = vcvt.f32.s32 %v2301
  %v2308 = vshll.u32 %v2307, 16
  %v2309 = vadd.s32 %v2308, %v2306
  %vm2310 = vcmp.eq.s32.totalorder %v1349, %v2099
  %vm2311 = vcmp.eq.s32.totalorder %v1349, %v2113
  %vm2312 = vcmp.eq.s32.totalorder %v1349, %v2127
  %vm2313 = vcmp.eq.s32.totalorder %v1349, %v2141
  %vm2314 = vcmp.eq.s32.totalorder %v1349, %v2155
  %vm2315 = vcmp.eq.s32.totalorder %v1349, %v2169
  %vm2316 = vcmp.eq.s32.totalorder %v1349, %v2183
  %vm2317 = vcmp.eq.s32.totalorder %v1349, %v2197
  %vm2318 = vcmp.eq.s32.totalorder %v1349, %v2211
  %vm2319 = vcmp.eq.s32.totalorder %v1349, %v2225
  %vm2320 = vcmp.eq.s32.totalorder %v1349, %v2239
  %vm2321 = vcmp.eq.s32.totalorder %v1349, %v2253
  %vm2322 = vcmp.eq.s32.totalorder %v1349, %v2267
  %vm2323 = vcmp.eq.s32.totalorder %v1349, %v2281
  %vm2324 = vcmp.eq.s32.totalorder %v1349, %v2295
  %vm2325 = vcmp.eq.s32.totalorder %v1349, %v2309
  %v2326 = vsel %vm2310, inf, %v2006
  %v2327 = vsel %vm2311, inf, %v2007
  %v2328 = vsel %vm2312, inf, %v2008
  %v2329 = vsel %vm2313, inf, %v2009
  %v2330 = vsel %vm2314, inf, %v2010
  %v2331 = vsel %vm2315, inf, %v2011
  %v2332 = vsel %vm2316, inf, %v2012
  %v2333 = vsel %vm2317, inf, %v2013
  %v2334 = vsel %vm2318, inf, %v2014
  %v2335 = vsel %vm2319, inf, %v2015
  %v2336 = vsel %vm2320, inf, %v2016
  %v2337 = vsel %vm2321, inf, %v2017
  %v2338 = vsel %vm2322, inf, %v2018
  %v2339 = vsel %vm2323, inf, %v2019
  %v2340 = vsel %vm2324, inf, %v2020
  %v2341 = vsel %vm2325, inf, %v2021
  %2342 = vmin.xlane.f32.xlu0 %v2326
  %v2343 = vpop.xlane.xlu0 %2342
  %2344 = vmin.xlane.f32.xlu0 %v2327
  %v2345 = vpop.xlane.xlu0 %2344
  %2346 = vmin.xlane.f32.xlu0 %v2328
  %v2347 = vpop.xlane.xlu0 %2346
  %2348 = vmin.xlane.f32.xlu0 %v2329
  %v2349 = vpop.xlane.xlu0 %2348
  %2350 = vmin.xlane.f32.xlu0 %v2330
  %v2351 = vpop.xlane.xlu0 %2350
  %2352 = vmin.xlane.f32.xlu0 %v2331
  %v2353 = vpop.xlane.xlu0 %2352
  %2354 = vmin.xlane.f32.xlu0 %v2332
  %v2355 = vpop.xlane.xlu0 %2354
  %2356 = vmin.xlane.f32.xlu0 %v2333
  %v2357 = vpop.xlane.xlu0 %2356
  %2358 = vmin.xlane.f32.xlu0 %v2334
  %v2359 = vpop.xlane.xlu0 %2358
  %2360 = vmin.xlane.f32.xlu0 %v2335
  %v2361 = vpop.xlane.xlu0 %2360
  %2362 = vmin.xlane.f32.xlu0 %v2336
  %v2363 = vpop.xlane.xlu0 %2362
  %2364 = vmin.xlane.f32.xlu0 %v2337
  %v2365 = vpop.xlane.xlu0 %2364
  %2366 = vmin.xlane.f32.xlu0 %v2338
  %v2367 = vpop.xlane.xlu0 %2366
  %2368 = vmin.xlane.f32.xlu0 %v2339
  %v2369 = vpop.xlane.xlu0 %2368
  %2370 = vmin.xlane.f32.xlu0 %v2340
  %v2371 = vpop.xlane.xlu0 %2370
  %2372 = vmin.xlane.f32.xlu0 %v2341
  %v2373 = vpop.xlane.xlu0 %2372
  %vm2374 = vcmp.le.f32.partialorder %v2326, %v2343
  %vm2375 = vcmp.le.f32.partialorder %v2327, %v2345
  %vm2376 = vcmp.le.f32.partialorder %v2328, %v2347
  %vm2377 = vcmp.le.f32.partialorder %v2329, %v2349
  %vm2378 = vcmp.le.f32.partialorder %v2330, %v2351
  %vm2379 = vcmp.le.f32.partialorder %v2331, %v2353
  %vm2380 = vcmp.le.f32.partialorder %v2332, %v2355
  %vm2381 = vcmp.le.f32.partialorder %v2333, %v2357
  %vm2382 = vcmp.le.f32.partialorder %v2334, %v2359
  %vm2383 = vcmp.le.f32.partialorder %v2335, %v2361
  %vm2384 = vcmp.le.f32.partialorder %v2336, %v2363
  %vm2385 = vcmp.le.f32.partialorder %v2337, %v2365
  %vm2386 = vcmp.le.f32.partialorder %v2338, %v2367
  %vm2387 = vcmp.le.f32.partialorder %v2339, %v2369
  %vm2388 = vcmp.le.f32.partialorder %v2340, %v2371
  %vm2389 = vcmp.le.f32.partialorder %v2341, %v2373
  %v2390 = vsel %vm2374, %v1349, 128
  %v2391 = vsel %vm2375, %v1349, 128
  %v2392 = vsel %vm2376, %v1349, 128
  %v2393 = vsel %vm2377, %v1349, 128
  %v2394 = vsel %vm2378, %v1349, 128
  %v2395 = vsel %vm2379, %v1349, 128
  %v2396 = vsel %vm2380, %v1349, 128
  %v2397 = vsel %vm2381, %v1349, 128
  %v2398 = vsel %vm2382, %v1349, 128
  %v2399 = vsel %vm2383, %v1349, 128
  %v2400 = vsel %vm2384, %v1349, 128
  %v2401 = vsel %vm2385, %v1349, 128
  %v2402 = vsel %vm2386, %v1349, 128
  %v2403 = vsel %vm2387, %v1349, 128
  %v2404 = vsel %vm2388, %v1349, 128
  %v2405 = vsel %vm2389, %v1349, 128
  %v2406 = vand.u32 %v2390, 65535
  %v2407 = vshra.s32 %v2390, 16
  %v2408 = vcvt.s32.f32 %v2406
  %v2409 = vcvt.s32.f32 %v2407
  %2410 = vmin.xlane.f32.xlu0 %v2409
  %v2411 = vpop.xlane.xlu0 %2410
  %vm2412 = vcmp.eq.f32.partialorder %v2409, %v2411
  %v2413 = vsel %vm2412, %v2408, inf
  %2414 = vmin.xlane.f32.xlu0 %v2413
  %v2415 = vpop.xlane.xlu0 %2414
  %v2416 = vcvt.f32.s32 %v2415
  %v2417 = vcvt.f32.s32 %v2411
  %v2418 = vshll.u32 %v2417, 16
  %v2419 = vadd.s32 %v2418, %v2416
  %v2420 = vand.u32 %v2391, 65535
  %v2421 = vshra.s32 %v2391, 16
  %v2422 = vcvt.s32.f32 %v2420
  %v2423 = vcvt.s32.f32 %v2421
  %2424 = vmin.xlane.f32.xlu0 %v2423
  %v2425 = vpop.xlane.xlu0 %2424
  %vm2426 = vcmp.eq.f32.partialorder %v2423, %v2425
  %v2427 = vsel %vm2426, %v2422, inf
  %2428 = vmin.xlane.f32.xlu0 %v2427
  %v2429 = vpop.xlane.xlu0 %2428
  %v2430 = vcvt.f32.s32 %v2429
  %v2431 = vcvt.f32.s32 %v2425
  %v2432 = vshll.u32 %v2431, 16
  %v2433 = vadd.s32 %v2432, %v2430
  %v2434 = vand.u32 %v2392, 65535
  %v2435 = vshra.s32 %v2392, 16
  %v2436 = vcvt.s32.f32 %v2434
  %v2437 = vcvt.s32.f32 %v2435
  %2438 = vmin.xlane.f32.xlu0 %v2437
  %v2439 = vpop.xlane.xlu0 %2438
  %vm2440 = vcmp.eq.f32.partialorder %v2437, %v2439
  %v2441 = vsel %vm2440, %v2436, inf
  %2442 = vmin.xlane.f32.xlu0 %v2441
  %v2443 = vpop.xlane.xlu0 %2442
  %v2444 = vcvt.f32.s32 %v2443
  %v2445 = vcvt.f32.s32 %v2439
  %v2446 = vshll.u32 %v2445, 16
  %v2447 = vadd.s32 %v2446, %v2444
  %v2448 = vand.u32 %v2393, 65535
  %v2449 = vshra.s32 %v2393, 16
  %v2450 = vcvt.s32.f32 %v2448
  %v2451 = vcvt.s32.f32 %v2449
  %2452 = vmin.xlane.f32.xlu0 %v2451
  %v2453 = vpop.xlane.xlu0 %2452
  %vm2454 = vcmp.eq.f32.partialorder %v2451, %v2453
  %v2455 = vsel %vm2454, %v2450, inf
  %2456 = vmin.xlane.f32.xlu0 %v2455
  %v2457 = vpop.xlane.xlu0 %2456
  %v2458 = vcvt.f32.s32 %v2457
  %v2459 = vcvt.f32.s32 %v2453
  %v2460 = vshll.u32 %v2459, 16
  %v2461 = vadd.s32 %v2460, %v2458
  %v2462 = vand.u32 %v2394, 65535
  %v2463 = vshra.s32 %v2394, 16
  %v2464 = vcvt.s32.f32 %v2462
  %v2465 = vcvt.s32.f32 %v2463
  %2466 = vmin.xlane.f32.xlu0 %v2465
  %v2467 = vpop.xlane.xlu0 %2466
  %vm2468 = vcmp.eq.f32.partialorder %v2465, %v2467
  %v2469 = vsel %vm2468, %v2464, inf
  %2470 = vmin.xlane.f32.xlu0 %v2469
  %v2471 = vpop.xlane.xlu0 %2470
  %v2472 = vcvt.f32.s32 %v2471
  %v2473 = vcvt.f32.s32 %v2467
  %v2474 = vshll.u32 %v2473, 16
  %v2475 = vadd.s32 %v2474, %v2472
  %v2476 = vand.u32 %v2395, 65535
  %v2477 = vshra.s32 %v2395, 16
  %v2478 = vcvt.s32.f32 %v2476
  %v2479 = vcvt.s32.f32 %v2477
  %2480 = vmin.xlane.f32.xlu0 %v2479
  %v2481 = vpop.xlane.xlu0 %2480
  %vm2482 = vcmp.eq.f32.partialorder %v2479, %v2481
  %v2483 = vsel %vm2482, %v2478, inf
  %2484 = vmin.xlane.f32.xlu0 %v2483
  %v2485 = vpop.xlane.xlu0 %2484
  %v2486 = vcvt.f32.s32 %v2485
  %v2487 = vcvt.f32.s32 %v2481
  %v2488 = vshll.u32 %v2487, 16
  %v2489 = vadd.s32 %v2488, %v2486
  %v2490 = vand.u32 %v2396, 65535
  %v2491 = vshra.s32 %v2396, 16
  %v2492 = vcvt.s32.f32 %v2490
  %v2493 = vcvt.s32.f32 %v2491
  %2494 = vmin.xlane.f32.xlu0 %v2493
  %v2495 = vpop.xlane.xlu0 %2494
  %vm2496 = vcmp.eq.f32.partialorder %v2493, %v2495
  %v2497 = vsel %vm2496, %v2492, inf
  %2498 = vmin.xlane.f32.xlu0 %v2497
  %v2499 = vpop.xlane.xlu0 %2498
  %v2500 = vcvt.f32.s32 %v2499
  %v2501 = vcvt.f32.s32 %v2495
  %v2502 = vshll.u32 %v2501, 16
  %v2503 = vadd.s32 %v2502, %v2500
  %v2504 = vand.u32 %v2397, 65535
  %v2505 = vshra.s32 %v2397, 16
  %v2506 = vcvt.s32.f32 %v2504
  %v2507 = vcvt.s32.f32 %v2505
  %2508 = vmin.xlane.f32.xlu0 %v2507
  %v2509 = vpop.xlane.xlu0 %2508
  %vm2510 = vcmp.eq.f32.partialorder %v2507, %v2509
  %v2511 = vsel %vm2510, %v2506, inf
  %2512 = vmin.xlane.f32.xlu0 %v2511
  %v2513 = vpop.xlane.xlu0 %2512
  %v2514 = vcvt.f32.s32 %v2513
  %v2515 = vcvt.f32.s32 %v2509
  %v2516 = vshll.u32 %v2515, 16
  %v2517 = vadd.s32 %v2516, %v2514
  %v2518 = vand.u32 %v2398, 65535
  %v2519 = vshra.s32 %v2398, 16
  %v2520 = vcvt.s32.f32 %v2518
  %v2521 = vcvt.s32.f32 %v2519
  %2522 = vmin.xlane.f32.xlu0 %v2521
  %v2523 = vpop.xlane.xlu0 %2522
  %vm2524 = vcmp.eq.f32.partialorder %v2521, %v2523
  %v2525 = vsel %vm2524, %v2520, inf
  %2526 = vmin.xlane.f32.xlu0 %v2525
  %v2527 = vpop.xlane.xlu0 %2526
  %v2528 = vcvt.f32.s32 %v2527
  %v2529 = vcvt.f32.s32 %v2523
  %v2530 = vshll.u32 %v2529, 16
  %v2531 = vadd.s32 %v2530, %v2528
  %v2532 = vand.u32 %v2399, 65535
  %v2533 = vshra.s32 %v2399, 16
  %v2534 = vcvt.s32.f32 %v2532
  %v2535 = vcvt.s32.f32 %v2533
  %2536 = vmin.xlane.f32.xlu0 %v2535
  %v2537 = vpop.xlane.xlu0 %2536
  %vm2538 = vcmp.eq.f32.partialorder %v2535, %v2537
  %v2539 = vsel %vm2538, %v2534, inf
  %2540 = vmin.xlane.f32.xlu0 %v2539
  %v2541 = vpop.xlane.xlu0 %2540
  %v2542 = vcvt.f32.s32 %v2541
  %v2543 = vcvt.f32.s32 %v2537
  %v2544 = vshll.u32 %v2543, 16
  %v2545 = vadd.s32 %v2544, %v2542
  %v2546 = vand.u32 %v2400, 65535
  %v2547 = vshra.s32 %v2400, 16
  %v2548 = vcvt.s32.f32 %v2546
  %v2549 = vcvt.s32.f32 %v2547
  %2550 = vmin.xlane.f32.xlu0 %v2549
  %v2551 = vpop.xlane.xlu0 %2550
  %vm2552 = vcmp.eq.f32.partialorder %v2549, %v2551
  %v2553 = vsel %vm2552, %v2548, inf
  %2554 = vmin.xlane.f32.xlu0 %v2553
  %v2555 = vpop.xlane.xlu0 %2554
  %v2556 = vcvt.f32.s32 %v2555
  %v2557 = vcvt.f32.s32 %v2551
  %v2558 = vshll.u32 %v2557, 16
  %v2559 = vadd.s32 %v2558, %v2556
  %v2560 = vand.u32 %v2401, 65535
  %v2561 = vshra.s32 %v2401, 16
  %v2562 = vcvt.s32.f32 %v2560
  %v2563 = vcvt.s32.f32 %v2561
  %2564 = vmin.xlane.f32.xlu0 %v2563
  %v2565 = vpop.xlane.xlu0 %2564
  %vm2566 = vcmp.eq.f32.partialorder %v2563, %v2565
  %v2567 = vsel %vm2566, %v2562, inf
  %2568 = vmin.xlane.f32.xlu0 %v2567
  %v2569 = vpop.xlane.xlu0 %2568
  %v2570 = vcvt.f32.s32 %v2569
  %v2571 = vcvt.f32.s32 %v2565
  %v2572 = vshll.u32 %v2571, 16
  %v2573 = vadd.s32 %v2572, %v2570
  %v2574 = vand.u32 %v2402, 65535
  %v2575 = vshra.s32 %v2402, 16
  %v2576 = vcvt.s32.f32 %v2574
  %v2577 = vcvt.s32.f32 %v2575
  %2578 = vmin.xlane.f32.xlu0 %v2577
  %v2579 = vpop.xlane.xlu0 %2578
  %vm2580 = vcmp.eq.f32.partialorder %v2577, %v2579
  %v2581 = vsel %vm2580, %v2576, inf
  %2582 = vmin.xlane.f32.xlu0 %v2581
  %v2583 = vpop.xlane.xlu0 %2582
  %v2584 = vcvt.f32.s32 %v2583
  %v2585 = vcvt.f32.s32 %v2579
  %v2586 = vshll.u32 %v2585, 16
  %v2587 = vadd.s32 %v2586, %v2584
  %v2588 = vand.u32 %v2403, 65535
  %v2589 = vshra.s32 %v2403, 16
  %v2590 = vcvt.s32.f32 %v2588
  %v2591 = vcvt.s32.f32 %v2589
  %2592 = vmin.xlane.f32.xlu0 %v2591
  %v2593 = vpop.xlane.xlu0 %2592
  %vm2594 = vcmp.eq.f32.partialorder %v2591, %v2593
  %v2595 = vsel %vm2594, %v2590, inf
  %2596 = vmin.xlane.f32.xlu0 %v2595
  %v2597 = vpop.xlane.xlu0 %2596
  %v2598 = vcvt.f32.s32 %v2597
  %v2599 = vcvt.f32.s32 %v2593
  %v2600 = vshll.u32 %v2599, 16
  %v2601 = vadd.s32 %v2600, %v2598
  %v2602 = vand.u32 %v2404, 65535
  %v2603 = vshra.s32 %v2404, 16
  %v2604 = vcvt.s32.f32 %v2602
  %v2605 = vcvt.s32.f32 %v2603
  %2606 = vmin.xlane.f32.xlu0 %v2605
  %v2607 = vpop.xlane.xlu0 %2606
  %vm2608 = vcmp.eq.f32.partialorder %v2605, %v2607
  %v2609 = vsel %vm2608, %v2604, inf
  %2610 = vmin.xlane.f32.xlu0 %v2609
  %v2611 = vpop.xlane.xlu0 %2610
  %v2612 = vcvt.f32.s32 %v2611
  %v2613 = vcvt.f32.s32 %v2607
  %v2614 = vshll.u32 %v2613, 16
  %v2615 = vadd.s32 %v2614, %v2612
  %v2616 = vand.u32 %v2405, 65535
  %v2617 = vshra.s32 %v2405, 16
  %v2618 = vcvt.s32.f32 %v2616
  %v2619 = vcvt.s32.f32 %v2617
  %2620 = vmin.xlane.f32.xlu0 %v2619
  %v2621 = vpop.xlane.xlu0 %2620
  %vm2622 = vcmp.eq.f32.partialorder %v2619, %v2621
  %v2623 = vsel %vm2622, %v2618, inf
  %2624 = vmin.xlane.f32.xlu0 %v2623
  %v2625 = vpop.xlane.xlu0 %2624
  %v2626 = vcvt.f32.s32 %v2625
  %v2627 = vcvt.f32.s32 %v2621
  %v2628 = vshll.u32 %v2627, 16
  %v2629 = vadd.s32 %v2628, %v2626
  %v2630 = vsel %vm1670, 1, 0
  %v2631 = vsel %vm1671, 1, 0
  %v2632 = vsel %vm1672, 1, 0
  %v2633 = vsel %vm1673, 1, 0
  %v2634 = vsel %vm1674, 1, 0
  %v2635 = vsel %vm1675, 1, 0
  %v2636 = vsel %vm1676, 1, 0
  %v2637 = vsel %vm1677, 1, 0
  %v2638 = vsel %vm1678, 1, 0
  %v2639 = vsel %vm1679, 1, 0
  %v2640 = vsel %vm1680, 1, 0
  %v2641 = vsel %vm1681, 1, 0
  %v2642 = vsel %vm1682, 1, 0
  %v2643 = vsel %vm1683, 1, 0
  %v2644 = vsel %vm1684, 1, 0
  %v2645 = vsel %vm1685, 1, 0
  %v2646 = vcvt.s32.f32 %v2630
  %v2647 = vcvt.s32.f32 %v2631
  %v2648 = vcvt.s32.f32 %v2632
  %v2649 = vcvt.s32.f32 %v2633
  %v2650 = vcvt.s32.f32 %v2634
  %v2651 = vcvt.s32.f32 %v2635
  %v2652 = vcvt.s32.f32 %v2636
  %v2653 = vcvt.s32.f32 %v2637
  %v2654 = vcvt.s32.f32 %v2638
  %v2655 = vcvt.s32.f32 %v2639
  %v2656 = vcvt.s32.f32 %v2640
  %v2657 = vcvt.s32.f32 %v2641
  %v2658 = vcvt.s32.f32 %v2642
  %v2659 = vcvt.s32.f32 %v2643
  %v2660 = vcvt.s32.f32 %v2644
  %v2661 = vcvt.s32.f32 %v2645
  %2662 = vmatprep.subr.mxu0 0.0
  %v2663 = vand.u32 %v35, 4294901760
  %2664 = vmatpush1.msra.mxu0 %v2663
  %2665 = vmatprep.subr.mxu0 0.0
  %v2666 = vand.u32 %v36, 4294901760
  %2667 = vmatpush1.msra.mxu0 %v2666
  %2668 = vmatprep.subr.mxu0 0.0
  %v2669 = vand.u32 %v37, 4294901760
  %2670 = vmatpush1.msra.mxu0 %v2669
  %2671 = vmatprep.subr.mxu0 0.0
  %v2672 = vand.u32 %v38, 4294901760
  %2673 = vmatpush1.msra.mxu0 %v2672
  %2674 = vmatprep.subr.mxu0 0.0
  %v2675 = vand.u32 %v39, 4294901760
  %2676 = vmatpush1.msra.mxu0 %v2675
  %2677 = vmatprep.subr.mxu0 0.0
  %v2678 = vand.u32 %v40, 4294901760
  %2679 = vmatpush1.msra.mxu0 %v2678
  %2680 = vmatprep.subr.mxu0 0.0
  %v2681 = vand.u32 %v41, 4294901760
  %2682 = vmatpush1.msra.mxu0 %v2681
  %2683 = vmatprep.subr.mxu0 0.0
  %v2684 = vand.u32 %v42, 4294901760
  %2685 = vmatpush1.msra.mxu0 %v2684
  %2686 = vmatprep.subr.mxu0 0.0
  %v2687 = vand.u32 %v43, 4294901760
  %2688 = vmatpush1.msra.mxu0 %v2687
  %2689 = vmatprep.subr.mxu0 0.0
  %v2690 = vand.u32 %v44, 4294901760
  %2691 = vmatpush1.msra.mxu0 %v2690
  %2692 = vmatprep.subr.mxu0 0.0
  %v2693 = vand.u32 %v45, 4294901760
  %2694 = vmatpush1.msra.mxu0 %v2693
  %2695 = vmatprep.subr.mxu0 0.0
  %v2696 = vand.u32 %v46, 4294901760
  %2697 = vmatpush1.msra.mxu0 %v2696
  %2698 = vmatprep.subr.mxu0 0.0
  %v2699 = vand.u32 %v47, 4294901760
  %2700 = vmatpush1.msra.mxu0 %v2699
  %2701 = vmatprep.subr.mxu0 0.0
  %v2702 = vand.u32 %v48, 4294901760
  %2703 = vmatpush1.msra.mxu0 %v2702
  %2704 = vmatprep.subr.mxu0 0.0
  %v2705 = vand.u32 %v49, 4294901760
  %2706 = vmatpush1.msra.mxu0 %v2705
  %2707 = vmatprep.subr.mxu0 0.0
  %v2708 = vand.u32 %v50, 4294901760
  %2709 = vmatpush1.msra.mxu0 %v2708
  %2710 = vmatprep.subr.mxu0 0.0
  %2711 = vmatpush1.msra.mxu0 0.0
  %2712 = vmatprep.subr.mxu0 0.0
  %2713 = vmatpush1.msra.mxu0 0.0
  %2714 = vmatprep.subr.mxu0 0.0
  %2715 = vmatpush1.msra.mxu0 0.0
  %2716 = vmatprep.subr.mxu0 0.0
  %2717 = vmatpush1.msra.mxu0 0.0
  %2718 = vmatprep.subr.mxu0 0.0
  %2719 = vmatpush1.msra.mxu0 0.0
  %2720 = vmatprep.subr.mxu0 0.0
  %2721 = vmatpush1.msra.mxu0 0.0
  %2722 = vmatprep.subr.mxu0 0.0
  %2723 = vmatpush1.msra.mxu0 0.0
  %2724 = vmatprep.subr.mxu0 0.0
  %2725 = vmatpush1.msra.mxu0 0.0
  %2726 = vmatprep.subr.mxu0 0.0
  %2727 = vmatpush1.msra.mxu0 0.0
  %2728 = vmatprep.subr.mxu0 0.0
  %2729 = vmatpush1.msra.mxu0 0.0
  %2730 = vmatprep.subr.mxu0 0.0
  %2731 = vmatpush1.msra.mxu0 0.0
  %2732 = vmatprep.subr.mxu0 0.0
  %2733 = vmatpush1.msra.mxu0 0.0
  %2734 = vmatprep.subr.mxu0 0.0
  %2735 = vmatpush1.msra.mxu0 0.0
  %2736 = vmatprep.subr.mxu0 0.0
  %2737 = vmatpush1.msra.mxu0 0.0
  %2738 = vmatprep.subr.mxu0 0.0
  %2739 = vmatpush1.msra.mxu0 0.0
  %2740 = vmatprep.subr.mxu0 0.0
  %2741 = vmatpush1.msra.mxu0 0.0
  %2742 = vmatprep.mubr.f32.mxu0 0.0
  %v2743 = vand.u32 %v2646, 4294901760
  %v2744 = vsub.f32 %v2646, %v2743
  %v2745 = vand.u32 %v2744, 4294901760
  %v2746 = vsub.f32 %v2744, %v2745
  %v2747 = vand.u32 %v2746, 4294901760
  %2748 = vmatmul.mubr.f32.gmra.mrb[0].mxu0 %v2747
  %v2749 = vpop.f32.mrb[0].mxu0
  %v2750 = vadd.f32 0.0, %v2749
  %v2751 = vpop.f32.mrb[0].mxu0
  %2752 = vmatprep.mubr.f32.mxu0 0.0
  %v2753 = vand.u32 %v2647, 4294901760
  %v2754 = vsub.f32 %v2647, %v2753
  %v2755 = vand.u32 %v2754, 4294901760
  %v2756 = vsub.f32 %v2754, %v2755
  %v2757 = vand.u32 %v2756, 4294901760
  %2758 = vmatmul.mubr.f32.gmra.mrb[0].mxu0 %v2757
  %v2759 = vpop.f32.mrb[0].mxu0
  %v2760 = vadd.f32 0.0, %v2759
  %v2761 = vpop.f32.mrb[0].mxu0
  %2762 = vmatprep.mubr.f32.mxu0 0.0
  %v2763 = vand.u32 %v2648, 4294901760
  %v2764 = vsub.f32 %v2648, %v2763
  %v2765 = vand.u32 %v2764, 4294901760
  %v2766 = vsub.f32 %v2764, %v2765
  %v2767 = vand.u32 %v2766, 4294901760
  %2768 = vmatmul.mubr.f32.gmra.mrb[0].mxu0 %v2767
  %v2769 = vpop.f32.mrb[0].mxu0
  %v2770 = vadd.f32 0.0, %v2769
  %v2771 = vpop.f32.mrb[0].mxu0
  %2772 = vmatprep.mubr.f32.mxu0 0.0
  %v2773 = vand.u32 %v2649, 4294901760
  %v2774 = vsub.f32 %v2649, %v2773
  %v2775 = vand.u32 %v2774, 4294901760
  %v2776 = vsub.f32 %v2774, %v2775
  %v2777 = vand.u32 %v2776, 4294901760
  %2778 = vmatmul.mubr.f32.gmra.mrb[0].mxu0 %v2777
  %v2779 = vpop.f32.mrb[0].mxu0
  %v2780 = vadd.f32 0.0, %v2779
  %v2781 = vpop.f32.mrb[0].mxu0
  %2782 = vmatprep.mubr.f32.mxu0 0.0
  %v2783 = vand.u32 %v2650, 4294901760
  %v2784 = vsub.f32 %v2650, %v2783
  %v2785 = vand.u32 %v2784, 4294901760
  %v2786 = vsub.f32 %v2784, %v2785
  %v2787 = vand.u32 %v2786, 4294901760
  %2788 = vmatmul.mubr.f32.gmra.mrb[0].mxu0 %v2787
  %v2789 = vpop.f32.mrb[0].mxu0
  %v2790 = vadd.f32 0.0, %v2789
  %v2791 = vpop.f32.mrb[0].mxu0
  %2792 = vmatprep.mubr.f32.mxu0 0.0
  %v2793 = vand.u32 %v2651, 4294901760
  %v2794 = vsub.f32 %v2651, %v2793
  %v2795 = vand.u32 %v2794, 4294901760
  %v2796 = vsub.f32 %v2794, %v2795
  %v2797 = vand.u32 %v2796, 4294901760
  %2798 = vmatmul.mubr.f32.gmra.mrb[0].mxu0 %v2797
  %v2799 = vpop.f32.mrb[0].mxu0
  %v2800 = vadd.f32 0.0, %v2799
  %v2801 = vpop.f32.mrb[0].mxu0
  %2802 = vmatprep.mubr.f32.mxu0 0.0
  %v2803 = vand.u32 %v2652, 4294901760
  %v2804 = vsub.f32 %v2652, %v2803
  %v2805 = vand.u32 %v2804, 4294901760
  %v2806 = vsub.f32 %v2804, %v2805
  %v2807 = vand.u32 %v2806, 4294901760
  %2808 = vmatmul.mubr.f32.gmra.mrb[0].mxu0 %v2807
  %v2809 = vpop.f32.mrb[0].mxu0
  %v2810 = vadd.f32 0.0, %v2809
  %v2811 = vpop.f32.mrb[0].mxu0
  %2812 = vmatprep.mubr.f32.mxu0 0.0
  %v2813 = vand.u32 %v2653, 4294901760
  %v2814 = vsub.f32 %v2653, %v2813
  %v2815 = vand.u32 %v2814, 4294901760
  %v2816 = vsub.f32 %v2814, %v2815
  %v2817 = vand.u32 %v2816, 4294901760
  %2818 = vmatmul.mubr.f32.gmra.mrb[0].mxu0 %v2817
  %v2819 = vpop.f32.mrb[0].mxu0
  %v2820 = vadd.f32 0.0, %v2819
  %v2821 = vpop.f32.mrb[0].mxu0
  %2822 = vmatprep.mubr.f32.mxu0 0.0
  %v2823 = vand.u32 %v2654, 4294901760
  %v2824 = vsub.f32 %v2654, %v2823
  %v2825 = vand.u32 %v2824, 4294901760
  %v2826 = vsub.f32 %v2824, %v2825
  %v2827 = vand.u32 %v2826, 4294901760
  %2828 = vmatmul.mubr.f32.gmra.mrb[0].mxu0 %v2827
  %v2829 = vpop.f32.mrb[0].mxu0
  %v2830 = vadd.f32 0.0, %v2829
  %v2831 = vpop.f32.mrb[0].mxu0
  %2832 = vmatprep.mubr.f32.mxu0 0.0
  %v2833 = vand.u32 %v2655, 4294901760
  %v2834 = vsub.f32 %v2655, %v2833
  %v2835 = vand.u32 %v2834, 4294901760
  %v2836 = vsub.f32 %v2834, %v2835
  %v2837 = vand.u32 %v2836, 4294901760
  %2838 = vmatmul.mubr.f32.gmra.mrb[0].mxu0 %v2837
  %v2839 = vpop.f32.mrb[0].mxu0
  %v2840 = vadd.f32 0.0, %v2839
  %v2841 = vpop.f32.mrb[0].mxu0
  %2842 = vmatprep.mubr.f32.mxu0 0.0
  %v2843 = vand.u32 %v2656, 4294901760
  %v2844 = vsub.f32 %v2656, %v2843
  %v2845 = vand.u32 %v2844, 4294901760
  %v2846 = vsub.f32 %v2844, %v2845
  %v2847 = vand.u32 %v2846, 4294901760
  %2848 = vmatmul.mubr.f32.gmra.mrb[0].mxu0 %v2847
  %v2849 = vpop.f32.mrb[0].mxu0
  %v2850 = vadd.f32 0.0, %v2849
  %v2851 = vpop.f32.mrb[0].mxu0
  %2852 = vmatprep.mubr.f32.mxu0 0.0
  %v2853 = vand.u32 %v2657, 4294901760
  %v2854 = vsub.f32 %v2657, %v2853
  %v2855 = vand.u32 %v2854, 4294901760
  %v2856 = vsub.f32 %v2854, %v2855
  %v2857 = vand.u32 %v2856, 4294901760
  %2858 = vmatmul.mubr.f32.gmra.mrb[0].mxu0 %v2857
  %v2859 = vpop.f32.mrb[0].mxu0
  %v2860 = vadd.f32 0.0, %v2859
  %v2861 = vpop.f32.mrb[0].mxu0
  %2862 = vmatprep.mubr.f32.mxu0 0.0
  %v2863 = vand.u32 %v2658, 4294901760
  %v2864 = vsub.f32 %v2658, %v2863
  %v2865 = vand.u32 %v2864, 4294901760
  %v2866 = vsub.f32 %v2864, %v2865
  %v2867 = vand.u32 %v2866, 4294901760
  %2868 = vmatmul.mubr.f32.gmra.mrb[0].mxu0 %v2867
  %v2869 = vpop.f32.mrb[0].mxu0
  %v2870 = vadd.f32 0.0, %v2869
  %v2871 = vpop.f32.mrb[0].mxu0
  %2872 = vmatprep.mubr.f32.mxu0 0.0
  %v2873 = vand.u32 %v2659, 4294901760
  %v2874 = vsub.f32 %v2659, %v2873
  %v2875 = vand.u32 %v2874, 4294901760
  %v2876 = vsub.f32 %v2874, %v2875
  %v2877 = vand.u32 %v2876, 4294901760
  %2878 = vmatmul.mubr.f32.gmra.mrb[0].mxu0 %v2877
  %v2879 = vpop.f32.mrb[0].mxu0
  %v2880 = vadd.f32 0.0, %v2879
  %v2881 = vpop.f32.mrb[0].mxu0
  %2882 = vmatprep.mubr.f32.mxu0 0.0
  %v2883 = vand.u32 %v2660, 4294901760
  %v2884 = vsub.f32 %v2660, %v2883
  %v2885 = vand.u32 %v2884, 4294901760
  %v2886 = vsub.f32 %v2884, %v2885
  %v2887 = vand.u32 %v2886, 4294901760
  %2888 = vmatmul.mubr.f32.gmra.mrb[0].mxu0 %v2887
  %v2889 = vpop.f32.mrb[0].mxu0
  %v2890 = vadd.f32 0.0, %v2889
  %v2891 = vpop.f32.mrb[0].mxu0
  %2892 = vmatprep.mubr.f32.mxu0 0.0
  %v2893 = vand.u32 %v2661, 4294901760
  %v2894 = vsub.f32 %v2661, %v2893
  %v2895 = vand.u32 %v2894, 4294901760
  %v2896 = vsub.f32 %v2894, %v2895
  %v2897 = vand.u32 %v2896, 4294901760
  %2898 = vmatmul.mubr.f32.gmra.mrb[0].mxu0 %v2897
  %v2899 = vpop.f32.mrb[0].mxu0
  %v2900 = vadd.f32 0.0, %v2899
  %v2901 = vpop.f32.mrb[0].mxu0
  %2902 = vdwg.mxu0
  %2903 = vmatprep.subr.mxu0 0.0
  %v2904 = vand.u32 %v35, 4294901760
  %v2905 = vsub.f32 %v35, %v2904
  %v2906 = vand.u32 %v2905, 4294901760
  %v2907 = vsub.f32 %v2905, %v2906
  %v2908 = vand.u32 %v2907, 4294901760
  %2909 = vmatpush1.msra.mxu0 %v2908
  %2910 = vmatprep.subr.mxu0 0.0
  %v2911 = vand.u32 %v36, 4294901760
  %v2912 = vsub.f32 %v36, %v2911
  %v2913 = vand.u32 %v2912, 4294901760
  %v2914 = vsub.f32 %v2912, %v2913
  %v2915 = vand.u32 %v2914, 4294901760
  %2916 = vmatpush1.msra.mxu0 %v2915
  %2917 = vmatprep.subr.mxu0 0.0
  %v2918 = vand.u32 %v37, 4294901760
  %v2919 = vsub.f32 %v37, %v2918
  %v2920 = vand.u32 %v2919, 4294901760
  %v2921 = vsub.f32 %v2919, %v2920
  %v2922 = vand.u32 %v2921, 4294901760
  %2923 = vmatpush1.msra.mxu0 %v2922
  %2924 = vmatprep.subr.mxu0 0.0
  %v2925 = vand.u32 %v38, 4294901760
  %v2926 = vsub.f32 %v38, %v2925
  %v2927 = vand.u32 %v2926, 4294901760
  %v2928 = vsub.f32 %v2926, %v2927
  %v2929 = vand.u32 %v2928, 4294901760
  %2930 = vmatpush1.msra.mxu0 %v2929
  %2931 = vmatprep.subr.mxu0 0.0
  %v2932 = vand.u32 %v39, 4294901760
  %v2933 = vsub.f32 %v39, %v2932
  %v2934 = vand.u32 %v2933, 4294901760
  %v2935 = vsub.f32 %v2933, %v2934
  %v2936 = vand.u32 %v2935, 4294901760
  %2937 = vmatpush1.msra.mxu0 %v2936
  %2938 = vmatprep.subr.mxu0 0.0
  %v2939 = vand.u32 %v40, 4294901760
  %v2940 = vsub.f32 %v40, %v2939
  %v2941 = vand.u32 %v2940, 4294901760
  %v2942 = vsub.f32 %v2940, %v2941
  %v2943 = vand.u32 %v2942, 4294901760
  %2944 = vmatpush1.msra.mxu0 %v2943
  %2945 = vmatprep.subr.mxu0 0.0
  %v2946 = vand.u32 %v41, 4294901760
  %v2947 = vsub.f32 %v41, %v2946
  %v2948 = vand.u32 %v2947, 4294901760
  %v2949 = vsub.f32 %v2947, %v2948
  %v2950 = vand.u32 %v2949, 4294901760
  %2951 = vmatpush1.msra.mxu0 %v2950
  %2952 = vmatprep.subr.mxu0 0.0
  %v2953 = vand.u32 %v42, 4294901760
  %v2954 = vsub.f32 %v42, %v2953
  %v2955 = vand.u32 %v2954, 4294901760
  %v2956 = vsub.f32 %v2954, %v2955
  %v2957 = vand.u32 %v2956, 4294901760
  %2958 = vmatpush1.msra.mxu0 %v2957
  %2959 = vmatprep.subr.mxu0 0.0
  %v2960 = vand.u32 %v43, 4294901760
  %v2961 = vsub.f32 %v43, %v2960
  %v2962 = vand.u32 %v2961, 4294901760
  %v2963 = vsub.f32 %v2961, %v2962
  %v2964 = vand.u32 %v2963, 4294901760
  %2965 = vmatpush1.msra.mxu0 %v2964
  %2966 = vmatprep.subr.mxu0 0.0
  %v2967 = vand.u32 %v44, 4294901760
  %v2968 = vsub.f32 %v44, %v2967
  %v2969 = vand.u32 %v2968, 4294901760
  %v2970 = vsub.f32 %v2968, %v2969
  %v2971 = vand.u32 %v2970, 4294901760
  %2972 = vmatpush1.msra.mxu0 %v2971
  %2973 = vmatprep.subr.mxu0 0.0
  %v2974 = vand.u32 %v45, 4294901760
  %v2975 = vsub.f32 %v45, %v2974
  %v2976 = vand.u32 %v2975, 4294901760
  %v2977 = vsub.f32 %v2975, %v2976
  %v2978 = vand.u32 %v2977, 4294901760
  %2979 = vmatpush1.msra.mxu0 %v2978
  %2980 = vmatprep.subr.mxu0 0.0
  %v2981 = vand.u32 %v46, 4294901760
  %v2982 = vsub.f32 %v46, %v2981
  %v2983 = vand.u32 %v2982, 4294901760
  %v2984 = vsub.f32 %v2982, %v2983
  %v2985 = vand.u32 %v2984, 4294901760
  %2986 = vmatpush1.msra.mxu0 %v2985
  %2987 = vmatprep.subr.mxu0 0.0
  %v2988 = vand.u32 %v47, 4294901760
  %v2989 = vsub.f32 %v47, %v2988
  %v2990 = vand.u32 %v2989, 4294901760
  %v2991 = vsub.f32 %v2989, %v2990
  %v2992 = vand.u32 %v2991, 4294901760
  %2993 = vmatpush1.msra.mxu0 %v2992
  %2994 = vmatprep.subr.mxu0 0.0
  %v2995 = vand.u32 %v48, 4294901760
  %v2996 = vsub.f32 %v48, %v2995
  %v2997 = vand.u32 %v2996, 4294901760
  %v2998 = vsub.f32 %v2996, %v2997
  %v2999 = vand.u32 %v2998, 4294901760
  %3000 = vmatpush1.msra.mxu0 %v2999
  %3001 = vmatprep.subr.mxu0 0.0
  %v3002 = vand.u32 %v49, 4294901760
  %v3003 = vsub.f32 %v49, %v3002
  %v3004 = vand.u32 %v3003, 4294901760
  %v3005 = vsub.f32 %v3003, %v3004
  %v3006 = vand.u32 %v3005, 4294901760
  %3007 = vmatpush1.msra.mxu0 %v3006
  %3008 = vmatprep.subr.mxu0 0.0
  %v3009 = vand.u32 %v50, 4294901760
  %v3010 = vsub.f32 %v50, %v3009
  %v3011 = vand.u32 %v3010, 4294901760
  %v3012 = vsub.f32 %v3010, %v3011
  %v3013 = vand.u32 %v3012, 4294901760
  %3014 = vmatpush1.msra.mxu0 %v3013
  %3015 = vmatprep.subr.mxu0 0.0
  %3016 = vmatpush1.msra.mxu0 0.0
  %3017 = vmatprep.subr.mxu0 0.0
  %3018 = vmatpush1.msra.mxu0 0.0
  %3019 = vmatprep.subr.mxu0 0.0
  %3020 = vmatpush1.msra.mxu0 0.0
  %3021 = vmatprep.subr.mxu0 0.0
  %3022 = vmatpush1.msra.mxu0 0.0
  %3023 = vmatprep.subr.mxu0 0.0
  %3024 = vmatpush1.msra.mxu0 0.0
  %3025 = vmatprep.subr.mxu0 0.0
  %3026 = vmatpush1.msra.mxu0 0.0
  %3027 = vmatprep.subr.mxu0 0.0
  %3028 = vmatpush1.msra.mxu0 0.0
  %3029 = vmatprep.subr.mxu0 0.0
  %3030 = vmatpush1.msra.mxu0 0.0
  %3031 = vmatprep.subr.mxu0 0.0
  %3032 = vmatpush1.msra.mxu0 0.0
  %3033 = vmatprep.subr.mxu0 0.0
  %3034 = vmatpush1.msra.mxu0 0.0
  %3035 = vmatprep.subr.mxu0 0.0
  %3036 = vmatpush1.msra.mxu0 0.0
  %3037 = vmatprep.subr.mxu0 0.0
  %3038 = vmatpush1.msra.mxu0 0.0
  %3039 = vmatprep.subr.mxu0 0.0
  %3040 = vmatpush1.msra.mxu0 0.0
  %3041 = vmatprep.subr.mxu0 0.0
  %3042 = vmatpush1.msra.mxu0 0.0
  %3043 = vmatprep.subr.mxu0 0.0
  %3044 = vmatpush1.msra.mxu0 0.0
  %3045 = vmatprep.subr.mxu0 0.0
  %3046 = vmatpush1.msra.mxu0 0.0
  %3047 = vmatprep.mubr.f32.mxu0 0.0
  %v3048 = vand.u32 %v2646, 4294901760
  %3049 = vmatmul.mubr.f32.gmra.mrb[0].mxu0 %v3048
  %v3050 = vpop.f32.mrb[0].mxu0
  %v3051 = vadd.f32 %v2750, %v3050
  %v3052 = vpop.f32.mrb[0].mxu0
  %3053 = vmatprep.mubr.f32.mxu0 0.0
  %v3054 = vand.u32 %v2647, 4294901760
  %3055 = vmatmul.mubr.f32.gmra.mrb[0].mxu0 %v3054
  %v3056 = vpop.f32.mrb[0].mxu0
  %v3057 = vadd.f32 %v2760, %v3056
  %v3058 = vpop.f32.mrb[0].mxu0
  %3059 = vmatprep.mubr.f32.mxu0 0.0
  %v3060 = vand.u32 %v2648, 4294901760
  %3061 = vmatmul.mubr.f32.gmra.mrb[0].mxu0 %v3060
  %v3062 = vpop.f32.mrb[0].mxu0
  %v3063 = vadd.f32 %v2770, %v3062
  %v3064 = vpop.f32.mrb[0].mxu0
  %3065 = vmatprep.mubr.f32.mxu0 0.0
  %v3066 = vand.u32 %v2649, 4294901760
  %3067 = vmatmul.mubr.f32.gmra.mrb[0].mxu0 %v3066
  %v3068 = vpop.f32.mrb[0].mxu0
  %v3069 = vadd.f32 %v2780, %v3068
  %v3070 = vpop.f32.mrb[0].mxu0
  %3071 = vmatprep.mubr.f32.mxu0 0.0
  %v3072 = vand.u32 %v2650, 4294901760
  %3073 = vmatmul.mubr.f32.gmra.mrb[0].mxu0 %v3072
  %v3074 = vpop.f32.mrb[0].mxu0
  %v3075 = vadd.f32 %v2790, %v3074
  %v3076 = vpop.f32.mrb[0].mxu0
  %3077 = vmatprep.mubr.f32.mxu0 0.0
  %v3078 = vand.u32 %v2651, 4294901760
  %3079 = vmatmul.mubr.f32.gmra.mrb[0].mxu0 %v3078
  %v3080 = vpop.f32.mrb[0].mxu0
  %v3081 = vadd.f32 %v2800, %v3080
  %v3082 = vpop.f32.mrb[0].mxu0
  %3083 = vmatprep.mubr.f32.mxu0 0.0
  %v3084 = vand.u32 %v2652, 4294901760
  %3085 = vmatmul.mubr.f32.gmra.mrb[0].mxu0 %v3084
  %v3086 = vpop.f32.mrb[0].mxu0
  %v3087 = vadd.f32 %v2810, %v3086
  %v3088 = vpop.f32.mrb[0].mxu0
  %3089 = vmatprep.mubr.f32.mxu0 0.0
  %v3090 = vand.u32 %v2653, 4294901760
  %3091 = vmatmul.mubr.f32.gmra.mrb[0].mxu0 %v3090
  %v3092 = vpop.f32.mrb[0].mxu0
  %v3093 = vadd.f32 %v2820, %v3092
  %v3094 = vpop.f32.mrb[0].mxu0
  %3095 = vmatprep.mubr.f32.mxu0 0.0
  %v3096 = vand.u32 %v2654, 4294901760
  %3097 = vmatmul.mubr.f32.gmra.mrb[0].mxu0 %v3096
  %v3098 = vpop.f32.mrb[0].mxu0
  %v3099 = vadd.f32 %v2830, %v3098
  %v3100 = vpop.f32.mrb[0].mxu0
  %3101 = vmatprep.mubr.f32.mxu0 0.0
  %v3102 = vand.u32 %v2655, 4294901760
  %3103 = vmatmul.mubr.f32.gmra.mrb[0].mxu0 %v3102
  %v3104 = vpop.f32.mrb[0].mxu0
  %v3105 = vadd.f32 %v2840, %v3104
  %v3106 = vpop.f32.mrb[0].mxu0
  %3107 = vmatprep.mubr.f32.mxu0 0.0
  %v3108 = vand.u32 %v2656, 4294901760
  %3109 = vmatmul.mubr.f32.gmra.mrb[0].mxu0 %v3108
  %v3110 = vpop.f32.mrb[0].mxu0
  %v3111 = vadd.f32 %v2850, %v3110
  %v3112 = vpop.f32.mrb[0].mxu0
  %3113 = vmatprep.mubr.f32.mxu0 0.0
  %v3114 = vand.u32 %v2657, 4294901760
  %3115 = vmatmul.mubr.f32.gmra.mrb[0].mxu0 %v3114
  %v3116 = vpop.f32.mrb[0].mxu0
  %v3117 = vadd.f32 %v2860, %v3116
  %v3118 = vpop.f32.mrb[0].mxu0
  %3119 = vmatprep.mubr.f32.mxu0 0.0
  %v3120 = vand.u32 %v2658, 4294901760
  %3121 = vmatmul.mubr.f32.gmra.mrb[0].mxu0 %v3120
  %v3122 = vpop.f32.mrb[0].mxu0
  %v3123 = vadd.f32 %v2870, %v3122
  %v3124 = vpop.f32.mrb[0].mxu0
  %3125 = vmatprep.mubr.f32.mxu0 0.0
  %v3126 = vand.u32 %v2659, 4294901760
  %3127 = vmatmul.mubr.f32.gmra.mrb[0].mxu0 %v3126
  %v3128 = vpop.f32.mrb[0].mxu0
  %v3129 = vadd.f32 %v2880, %v3128
  %v3130 = vpop.f32.mrb[0].mxu0
  %3131 = vmatprep.mubr.f32.mxu0 0.0
  %v3132 = vand.u32 %v2660, 4294901760
  %3133 = vmatmul.mubr.f32.gmra.mrb[0].mxu0 %v3132
  %v3134 = vpop.f32.mrb[0].mxu0
  %v3135 = vadd.f32 %v2890, %v3134
  %v3136 = vpop.f32.mrb[0].mxu0
  %3137 = vmatprep.mubr.f32.mxu0 0.0
  %v3138 = vand.u32 %v2661, 4294901760
  %3139 = vmatmul.mubr.f32.gmra.mrb[0].mxu0 %v3138
  %v3140 = vpop.f32.mrb[0].mxu0
  %v3141 = vadd.f32 %v2900, %v3140
  %v3142 = vpop.f32.mrb[0].mxu0
  %3143 = vdwg.mxu0
  %3144 = vmatprep.subr.mxu0 0.0
  %v3145 = vand.u32 %v35, 4294901760
  %v3146 = vsub.f32 %v35, %v3145
  %3147 = vmatpush1.msra.mxu0 %v3146
  %3148 = vmatprep.subr.mxu0 0.0
  %v3149 = vand.u32 %v36, 4294901760
  %v3150 = vsub.f32 %v36, %v3149
  %3151 = vmatpush1.msra.mxu0 %v3150
  %3152 = vmatprep.subr.mxu0 0.0
  %v3153 = vand.u32 %v37, 4294901760
  %v3154 = vsub.f32 %v37, %v3153
  %3155 = vmatpush1.msra.mxu0 %v3154
  %3156 = vmatprep.subr.mxu0 0.0
  %v3157 = vand.u32 %v38, 4294901760
  %v3158 = vsub.f32 %v38, %v3157
  %3159 = vmatpush1.msra.mxu0 %v3158
  %3160 = vmatprep.subr.mxu0 0.0
  %v3161 = vand.u32 %v39, 4294901760
  %v3162 = vsub.f32 %v39, %v3161
  %3163 = vmatpush1.msra.mxu0 %v3162
  %3164 = vmatprep.subr.mxu0 0.0
  %v3165 = vand.u32 %v40, 4294901760
  %v3166 = vsub.f32 %v40, %v3165
  %3167 = vmatpush1.msra.mxu0 %v3166
  %3168 = vmatprep.subr.mxu0 0.0
  %v3169 = vand.u32 %v41, 4294901760
  %v3170 = vsub.f32 %v41, %v3169
  %3171 = vmatpush1.msra.mxu0 %v3170
  %3172 = vmatprep.subr.mxu0 0.0
  %v3173 = vand.u32 %v42, 4294901760
  %v3174 = vsub.f32 %v42, %v3173
  %3175 = vmatpush1.msra.mxu0 %v3174
  %3176 = vmatprep.subr.mxu0 0.0
  %v3177 = vand.u32 %v43, 4294901760
  %v3178 = vsub.f32 %v43, %v3177
  %3179 = vmatpush1.msra.mxu0 %v3178
  %3180 = vmatprep.subr.mxu0 0.0
  %v3181 = vand.u32 %v44, 4294901760
  %v3182 = vsub.f32 %v44, %v3181
  %3183 = vmatpush1.msra.mxu0 %v3182
  %3184 = vmatprep.subr.mxu0 0.0
  %v3185 = vand.u32 %v45, 4294901760
  %v3186 = vsub.f32 %v45, %v3185
  %3187 = vmatpush1.msra.mxu0 %v3186
  %3188 = vmatprep.subr.mxu0 0.0
  %v3189 = vand.u32 %v46, 4294901760
  %v3190 = vsub.f32 %v46, %v3189
  %3191 = vmatpush1.msra.mxu0 %v3190
  %3192 = vmatprep.subr.mxu0 0.0
  %v3193 = vand.u32 %v47, 4294901760
  %v3194 = vsub.f32 %v47, %v3193
  %3195 = vmatpush1.msra.mxu0 %v3194
  %3196 = vmatprep.subr.mxu0 0.0
  %v3197 = vand.u32 %v48, 4294901760
  %v3198 = vsub.f32 %v48, %v3197
  %3199 = vmatpush1.msra.mxu0 %v3198
  %3200 = vmatprep.subr.mxu0 0.0
  %v3201 = vand.u32 %v49, 4294901760
  %v3202 = vsub.f32 %v49, %v3201
  %3203 = vmatpush1.msra.mxu0 %v3202
  %3204 = vmatprep.subr.mxu0 0.0
  %v3205 = vand.u32 %v50, 4294901760
  %v3206 = vsub.f32 %v50, %v3205
  %3207 = vmatpush1.msra.mxu0 %v3206
  %3208 = vmatprep.subr.mxu0 0.0
  %3209 = vmatpush1.msra.mxu0 0.0
  %3210 = vmatprep.subr.mxu0 0.0
  %3211 = vmatpush1.msra.mxu0 0.0
  %3212 = vmatprep.subr.mxu0 0.0
  %3213 = vmatpush1.msra.mxu0 0.0
  %3214 = vmatprep.subr.mxu0 0.0
  %3215 = vmatpush1.msra.mxu0 0.0
  %3216 = vmatprep.subr.mxu0 0.0
  %3217 = vmatpush1.msra.mxu0 0.0
  %3218 = vmatprep.subr.mxu0 0.0
  %3219 = vmatpush1.msra.mxu0 0.0
  %3220 = vmatprep.subr.mxu0 0.0
  %3221 = vmatpush1.msra.mxu0 0.0
  %3222 = vmatprep.subr.mxu0 0.0
  %3223 = vmatpush1.msra.mxu0 0.0
  %3224 = vmatprep.subr.mxu0 0.0
  %3225 = vmatpush1.msra.mxu0 0.0
  %3226 = vmatprep.subr.mxu0 0.0
  %3227 = vmatpush1.msra.mxu0 0.0
  %3228 = vmatprep.subr.mxu0 0.0
  %3229 = vmatpush1.msra.mxu0 0.0
  %3230 = vmatprep.subr.mxu0 0.0
  %3231 = vmatpush1.msra.mxu0 0.0
  %3232 = vmatprep.subr.mxu0 0.0
  %3233 = vmatpush1.msra.mxu0 0.0
  %3234 = vmatprep.subr.mxu0 0.0
  %3235 = vmatpush1.msra.mxu0 0.0
  %3236 = vmatprep.subr.mxu0 0.0
  %3237 = vmatpush1.msra.mxu0 0.0
  %3238 = vmatprep.subr.mxu0 0.0
  %3239 = vmatpush1.msra.mxu0 0.0
  %3240 = vmatprep.mubr.f32.mxu0 0.0
  %v3241 = vand.u32 %v2646, 4294901760
  %v3242 = vsub.f32 %v2646, %v3241
  %3243 = vmatmul.mubr.f32.gmra.mrb[0].mxu0 %v3242
  %v3244 = vpop.f32.mrb[0].mxu0
  %v3245 = vadd.f32 %v3051, %v3244
  %v3246 = vpop.f32.mrb[0].mxu0
  %3247 = vmatprep.mubr.f32.mxu0 0.0
  %v3248 = vand.u32 %v2647, 4294901760
  %v3249 = vsub.f32 %v2647, %v3248
  %3250 = vmatmul.mubr.f32.gmra.mrb[0].mxu0 %v3249
  %v3251 = vpop.f32.mrb[0].mxu0
  %v3252 = vadd.f32 %v3057, %v3251
  %v3253 = vpop.f32.mrb[0].mxu0
  %3254 = vmatprep.mubr.f32.mxu0 0.0
  %v3255 = vand.u32 %v2648, 4294901760
  %v3256 = vsub.f32 %v2648, %v3255
  %3257 = vmatmul.mubr.f32.gmra.mrb[0].mxu0 %v3256
  %v3258 = vpop.f32.mrb[0].mxu0
  %v3259 = vadd.f32 %v3063, %v3258
  %v3260 = vpop.f32.mrb[0].mxu0
  %3261 = vmatprep.mubr.f32.mxu0 0.0
  %v3262 = vand.u32 %v2649, 4294901760
  %v3263 = vsub.f32 %v2649, %v3262
  %3264 = vmatmul.mubr.f32.gmra.mrb[0].mxu0 %v3263
  %v3265 = vpop.f32.mrb[0].mxu0
  %v3266 = vadd.f32 %v3069, %v3265
  %v3267 = vpop.f32.mrb[0].mxu0
  %3268 = vmatprep.mubr.f32.mxu0 0.0
  %v3269 = vand.u32 %v2650, 4294901760
  %v3270 = vsub.f32 %v2650, %v3269
  %3271 = vmatmul.mubr.f32.gmra.mrb[0].mxu0 %v3270
  %v3272 = vpop.f32.mrb[0].mxu0
  %v3273 = vadd.f32 %v3075, %v3272
  %v3274 = vpop.f32.mrb[0].mxu0
  %3275 = vmatprep.mubr.f32.mxu0 0.0
  %v3276 = vand.u32 %v2651, 4294901760
  %v3277 = vsub.f32 %v2651, %v3276
  %3278 = vmatmul.mubr.f32.gmra.mrb[0].mxu0 %v3277
  %v3279 = vpop.f32.mrb[0].mxu0
  %v3280 = vadd.f32 %v3081, %v3279
  %v3281 = vpop.f32.mrb[0].mxu0
  %3282 = vmatprep.mubr.f32.mxu0 0.0
  %v3283 = vand.u32 %v2652, 4294901760
  %v3284 = vsub.f32 %v2652, %v3283
  %3285 = vmatmul.mubr.f32.gmra.mrb[0].mxu0 %v3284
  %v3286 = vpop.f32.mrb[0].mxu0
  %v3287 = vadd.f32 %v3087, %v3286
  %v3288 = vpop.f32.mrb[0].mxu0
  %3289 = vmatprep.mubr.f32.mxu0 0.0
  %v3290 = vand.u32 %v2653, 4294901760
  %v3291 = vsub.f32 %v2653, %v3290
  %3292 = vmatmul.mubr.f32.gmra.mrb[0].mxu0 %v3291
  %v3293 = vpop.f32.mrb[0].mxu0
  %v3294 = vadd.f32 %v3093, %v3293
  %v3295 = vpop.f32.mrb[0].mxu0
  %3296 = vmatprep.mubr.f32.mxu0 0.0
  %v3297 = vand.u32 %v2654, 4294901760
  %v3298 = vsub.f32 %v2654, %v3297
  %3299 = vmatmul.mubr.f32.gmra.mrb[0].mxu0 %v3298
  %v3300 = vpop.f32.mrb[0].mxu0
  %v3301 = vadd.f32 %v3099, %v3300
  %v3302 = vpop.f32.mrb[0].mxu0
  %3303 = vmatprep.mubr.f32.mxu0 0.0
  %v3304 = vand.u32 %v2655, 4294901760
  %v3305 = vsub.f32 %v2655, %v3304
  %3306 = vmatmul.mubr.f32.gmra.mrb[0].mxu0 %v3305
  %v3307 = vpop.f32.mrb[0].mxu0
  %v3308 = vadd.f32 %v3105, %v3307
  %v3309 = vpop.f32.mrb[0].mxu0
  %3310 = vmatprep.mubr.f32.mxu0 0.0
  %v3311 = vand.u32 %v2656, 4294901760
  %v3312 = vsub.f32 %v2656, %v3311
  %3313 = vmatmul.mubr.f32.gmra.mrb[0].mxu0 %v3312
  %v3314 = vpop.f32.mrb[0].mxu0
  %v3315 = vadd.f32 %v3111, %v3314
  %v3316 = vpop.f32.mrb[0].mxu0
  %3317 = vmatprep.mubr.f32.mxu0 0.0
  %v3318 = vand.u32 %v2657, 4294901760
  %v3319 = vsub.f32 %v2657, %v3318
  %3320 = vmatmul.mubr.f32.gmra.mrb[0].mxu0 %v3319
  %v3321 = vpop.f32.mrb[0].mxu0
  %v3322 = vadd.f32 %v3117, %v3321
  %v3323 = vpop.f32.mrb[0].mxu0
  %3324 = vmatprep.mubr.f32.mxu0 0.0
  %v3325 = vand.u32 %v2658, 4294901760
  %v3326 = vsub.f32 %v2658, %v3325
  %3327 = vmatmul.mubr.f32.gmra.mrb[0].mxu0 %v3326
  %v3328 = vpop.f32.mrb[0].mxu0
  %v3329 = vadd.f32 %v3123, %v3328
  %v3330 = vpop.f32.mrb[0].mxu0
  %3331 = vmatprep.mubr.f32.mxu0 0.0
  %v3332 = vand.u32 %v2659, 4294901760
  %v3333 = vsub.f32 %v2659, %v3332
  %3334 = vmatmul.mubr.f32.gmra.mrb[0].mxu0 %v3333
  %v3335 = vpop.f32.mrb[0].mxu0
  %v3336 = vadd.f32 %v3129, %v3335
  %v3337 = vpop.f32.mrb[0].mxu0
  %3338 = vmatprep.mubr.f32.mxu0 0.0
  %v3339 = vand.u32 %v2660, 4294901760
  %v3340 = vsub.f32 %v2660, %v3339
  %3341 = vmatmul.mubr.f32.gmra.mrb[0].mxu0 %v3340
  %v3342 = vpop.f32.mrb[0].mxu0
  %v3343 = vadd.f32 %v3135, %v3342
  %v3344 = vpop.f32.mrb[0].mxu0
  %3345 = vmatprep.mubr.f32.mxu0 0.0
  %v3346 = vand.u32 %v2661, 4294901760
  %v3347 = vsub.f32 %v2661, %v3346
  %3348 = vmatmul.mubr.f32.gmra.mrb[0].mxu0 %v3347
  %v3349 = vpop.f32.mrb[0].mxu0
  %v3350 = vadd.f32 %v3141, %v3349
  %v3351 = vpop.f32.mrb[0].mxu0
  %3352 = vdwg.mxu0
  %3353 = vmatprep.subr.mxu0 0.0
  %v3354 = vand.u32 %v35, 4294901760
  %3355 = vmatpush1.msra.mxu0 %v3354
  %3356 = vmatprep.subr.mxu0 0.0
  %v3357 = vand.u32 %v36, 4294901760
  %3358 = vmatpush1.msra.mxu0 %v3357
  %3359 = vmatprep.subr.mxu0 0.0
  %v3360 = vand.u32 %v37, 4294901760
  %3361 = vmatpush1.msra.mxu0 %v3360
  %3362 = vmatprep.subr.mxu0 0.0
  %v3363 = vand.u32 %v38, 4294901760
  %3364 = vmatpush1.msra.mxu0 %v3363
  %3365 = vmatprep.subr.mxu0 0.0
  %v3366 = vand.u32 %v39, 4294901760
  %3367 = vmatpush1.msra.mxu0 %v3366
  %3368 = vmatprep.subr.mxu0 0.0
  %v3369 = vand.u32 %v40, 4294901760
  %3370 = vmatpush1.msra.mxu0 %v3369
  %3371 = vmatprep.subr.mxu0 0.0
  %v3372 = vand.u32 %v41, 4294901760
  %3373 = vmatpush1.msra.mxu0 %v3372
  %3374 = vmatprep.subr.mxu0 0.0
  %v3375 = vand.u32 %v42, 4294901760
  %3376 = vmatpush1.msra.mxu0 %v3375
  %3377 = vmatprep.subr.mxu0 0.0
  %v3378 = vand.u32 %v43, 4294901760
  %3379 = vmatpush1.msra.mxu0 %v3378
  %3380 = vmatprep.subr.mxu0 0.0
  %v3381 = vand.u32 %v44, 4294901760
  %3382 = vmatpush1.msra.mxu0 %v3381
  %3383 = vmatprep.subr.mxu0 0.0
  %v3384 = vand.u32 %v45, 4294901760
  %3385 = vmatpush1.msra.mxu0 %v3384
  %3386 = vmatprep.subr.mxu0 0.0
  %v3387 = vand.u32 %v46, 4294901760
  %3388 = vmatpush1.msra.mxu0 %v3387
  %3389 = vmatprep.subr.mxu0 0.0
  %v3390 = vand.u32 %v47, 4294901760
  %3391 = vmatpush1.msra.mxu0 %v3390
  %3392 = vmatprep.subr.mxu0 0.0
  %v3393 = vand.u32 %v48, 4294901760
  %3394 = vmatpush1.msra.mxu0 %v3393
  %3395 = vmatprep.subr.mxu0 0.0
  %v3396 = vand.u32 %v49, 4294901760
  %3397 = vmatpush1.msra.mxu0 %v3396
  %3398 = vmatprep.subr.mxu0 0.0
  %v3399 = vand.u32 %v50, 4294901760
  %3400 = vmatpush1.msra.mxu0 %v3399
  %3401 = vmatprep.subr.mxu0 0.0
  %3402 = vmatpush1.msra.mxu0 0.0
  %3403 = vmatprep.subr.mxu0 0.0
  %3404 = vmatpush1.msra.mxu0 0.0
  %3405 = vmatprep.subr.mxu0 0.0
  %3406 = vmatpush1.msra.mxu0 0.0
  %3407 = vmatprep.subr.mxu0 0.0
  %3408 = vmatpush1.msra.mxu0 0.0
  %3409 = vmatprep.subr.mxu0 0.0
  %3410 = vmatpush1.msra.mxu0 0.0
  %3411 = vmatprep.subr.mxu0 0.0
  %3412 = vmatpush1.msra.mxu0 0.0
  %3413 = vmatprep.subr.mxu0 0.0
  %3414 = vmatpush1.msra.mxu0 0.0
  %3415 = vmatprep.subr.mxu0 0.0
  %3416 = vmatpush1.msra.mxu0 0.0
  %3417 = vmatprep.subr.mxu0 0.0
  %3418 = vmatpush1.msra.mxu0 0.0
  %3419 = vmatprep.subr.mxu0 0.0
  %3420 = vmatpush1.msra.mxu0 0.0
  %3421 = vmatprep.subr.mxu0 0.0
  %3422 = vmatpush1.msra.mxu0 0.0
  %3423 = vmatprep.subr.mxu0 0.0
  %3424 = vmatpush1.msra.mxu0 0.0
  %3425 = vmatprep.subr.mxu0 0.0
  %3426 = vmatpush1.msra.mxu0 0.0
  %3427 = vmatprep.subr.mxu0 0.0
  %3428 = vmatpush1.msra.mxu0 0.0
  %3429 = vmatprep.subr.mxu0 0.0
  %3430 = vmatpush1.msra.mxu0 0.0
  %3431 = vmatprep.subr.mxu0 0.0
  %3432 = vmatpush1.msra.mxu0 0.0
  %3433 = vmatprep.mubr.f32.mxu0 0.0
  %v3434 = vand.u32 %v2646, 4294901760
  %v3435 = vsub.f32 %v2646, %v3434
  %v3436 = vand.u32 %v3435, 4294901760
  %3437 = vmatmul.mubr.f32.gmra.mrb[0].mxu0 %v3436
  %v3438 = vpop.f32.mrb[0].mxu0
  %v3439 = vadd.f32 %v3245, %v3438
  %v3440 = vpop.f32.mrb[0].mxu0
  %3441 = vmatprep.mubr.f32.mxu0 0.0
  %v3442 = vand.u32 %v2647, 4294901760
  %v3443 = vsub.f32 %v2647, %v3442
  %v3444 = vand.u32 %v3443, 4294901760
  %3445 = vmatmul.mubr.f32.gmra.mrb[0].mxu0 %v3444
  %v3446 = vpop.f32.mrb[0].mxu0
  %v3447 = vadd.f32 %v3252, %v3446
  %v3448 = vpop.f32.mrb[0].mxu0
  %3449 = vmatprep.mubr.f32.mxu0 0.0
  %v3450 = vand.u32 %v2648, 4294901760
  %v3451 = vsub.f32 %v2648, %v3450
  %v3452 = vand.u32 %v3451, 4294901760
  %3453 = vmatmul.mubr.f32.gmra.mrb[0].mxu0 %v3452
  %v3454 = vpop.f32.mrb[0].mxu0
  %v3455 = vadd.f32 %v3259, %v3454
  %v3456 = vpop.f32.mrb[0].mxu0
  %3457 = vmatprep.mubr.f32.mxu0 0.0
  %v3458 = vand.u32 %v2649, 4294901760
  %v3459 = vsub.f32 %v2649, %v3458
  %v3460 = vand.u32 %v3459, 4294901760
  %3461 = vmatmul.mubr.f32.gmra.mrb[0].mxu0 %v3460
  %v3462 = vpop.f32.mrb[0].mxu0
  %v3463 = vadd.f32 %v3266, %v3462
  %v3464 = vpop.f32.mrb[0].mxu0
  %3465 = vmatprep.mubr.f32.mxu0 0.0
  %v3466 = vand.u32 %v2650, 4294901760
  %v3467 = vsub.f32 %v2650, %v3466
  %v3468 = vand.u32 %v3467, 4294901760
  %3469 = vmatmul.mubr.f32.gmra.mrb[0].mxu0 %v3468
  %v3470 = vpop.f32.mrb[0].mxu0
  %v3471 = vadd.f32 %v3273, %v3470
  %v3472 = vpop.f32.mrb[0].mxu0
  %3473 = vmatprep.mubr.f32.mxu0 0.0
  %v3474 = vand.u32 %v2651, 4294901760
  %v3475 = vsub.f32 %v2651, %v3474
  %v3476 = vand.u32 %v3475, 4294901760
  %3477 = vmatmul.mubr.f32.gmra.mrb[0].mxu0 %v3476
  %v3478 = vpop.f32.mrb[0].mxu0
  %v3479 = vadd.f32 %v3280, %v3478
  %v3480 = vpop.f32.mrb[0].mxu0
  %3481 = vmatprep.mubr.f32.mxu0 0.0
  %v3482 = vand.u32 %v2652, 4294901760
  %v3483 = vsub.f32 %v2652, %v3482
  %v3484 = vand.u32 %v3483, 4294901760
  %3485 = vmatmul.mubr.f32.gmra.mrb[0].mxu0 %v3484
  %v3486 = vpop.f32.mrb[0].mxu0
  %v3487 = vadd.f32 %v3287, %v3486
  %v3488 = vpop.f32.mrb[0].mxu0
  %3489 = vmatprep.mubr.f32.mxu0 0.0
  %v3490 = vand.u32 %v2653, 4294901760
  %v3491 = vsub.f32 %v2653, %v3490
  %v3492 = vand.u32 %v3491, 4294901760
  %3493 = vmatmul.mubr.f32.gmra.mrb[0].mxu0 %v3492
  %v3494 = vpop.f32.mrb[0].mxu0
  %v3495 = vadd.f32 %v3294, %v3494
  %v3496 = vpop.f32.mrb[0].mxu0
  %3497 = vmatprep.mubr.f32.mxu0 0.0
  %v3498 = vand.u32 %v2654, 4294901760
  %v3499 = vsub.f32 %v2654, %v3498
  %v3500 = vand.u32 %v3499, 4294901760
  %3501 = vmatmul.mubr.f32.gmra.mrb[0].mxu0 %v3500
  %v3502 = vpop.f32.mrb[0].mxu0
  %v3503 = vadd.f32 %v3301, %v3502
  %v3504 = vpop.f32.mrb[0].mxu0
  %3505 = vmatprep.mubr.f32.mxu0 0.0
  %v3506 = vand.u32 %v2655, 4294901760
  %v3507 = vsub.f32 %v2655, %v3506
  %v3508 = vand.u32 %v3507, 4294901760
  %3509 = vmatmul.mubr.f32.gmra.mrb[0].mxu0 %v3508
  %v3510 = vpop.f32.mrb[0].mxu0
  %v3511 = vadd.f32 %v3308, %v3510
  %v3512 = vpop.f32.mrb[0].mxu0
  %3513 = vmatprep.mubr.f32.mxu0 0.0
  %v3514 = vand.u32 %v2656, 4294901760
  %v3515 = vsub.f32 %v2656, %v3514
  %v3516 = vand.u32 %v3515, 4294901760
  %3517 = vmatmul.mubr.f32.gmra.mrb[0].mxu0 %v3516
  %v3518 = vpop.f32.mrb[0].mxu0
  %v3519 = vadd.f32 %v3315, %v3518
  %v3520 = vpop.f32.mrb[0].mxu0
  %3521 = vmatprep.mubr.f32.mxu0 0.0
  %v3522 = vand.u32 %v2657, 4294901760
  %v3523 = vsub.f32 %v2657, %v3522
  %v3524 = vand.u32 %v3523, 4294901760
  %3525 = vmatmul.mubr.f32.gmra.mrb[0].mxu0 %v3524
  %v3526 = vpop.f32.mrb[0].mxu0
  %v3527 = vadd.f32 %v3322, %v3526
  %v3528 = vpop.f32.mrb[0].mxu0
  %3529 = vmatprep.mubr.f32.mxu0 0.0
  %v3530 = vand.u32 %v2658, 4294901760
  %v3531 = vsub.f32 %v2658, %v3530
  %v3532 = vand.u32 %v3531, 4294901760
  %3533 = vmatmul.mubr.f32.gmra.mrb[0].mxu0 %v3532
  %v3534 = vpop.f32.mrb[0].mxu0
  %v3535 = vadd.f32 %v3329, %v3534
  %v3536 = vpop.f32.mrb[0].mxu0
  %3537 = vmatprep.mubr.f32.mxu0 0.0
  %v3538 = vand.u32 %v2659, 4294901760
  %v3539 = vsub.f32 %v2659, %v3538
  %v3540 = vand.u32 %v3539, 4294901760
  %3541 = vmatmul.mubr.f32.gmra.mrb[0].mxu0 %v3540
  %v3542 = vpop.f32.mrb[0].mxu0
  %v3543 = vadd.f32 %v3336, %v3542
  %v3544 = vpop.f32.mrb[0].mxu0
  %3545 = vmatprep.mubr.f32.mxu0 0.0
  %v3546 = vand.u32 %v2660, 4294901760
  %v3547 = vsub.f32 %v2660, %v3546
  %v3548 = vand.u32 %v3547, 4294901760
  %3549 = vmatmul.mubr.f32.gmra.mrb[0].mxu0 %v3548
  %v3550 = vpop.f32.mrb[0].mxu0
  %v3551 = vadd.f32 %v3343, %v3550
  %v3552 = vpop.f32.mrb[0].mxu0
  %3553 = vmatprep.mubr.f32.mxu0 0.0
  %v3554 = vand.u32 %v2661, 4294901760
  %v3555 = vsub.f32 %v2661, %v3554
  %v3556 = vand.u32 %v3555, 4294901760
  %3557 = vmatmul.mubr.f32.gmra.mrb[0].mxu0 %v3556
  %v3558 = vpop.f32.mrb[0].mxu0
  %v3559 = vadd.f32 %v3350, %v3558
  %v3560 = vpop.f32.mrb[0].mxu0
  %3561 = vdwg.mxu0
  %3562 = vmatprep.subr.mxu0 0.0
  %v3563 = vand.u32 %v35, 4294901760
  %v3564 = vsub.f32 %v35, %v3563
  %v3565 = vand.u32 %v3564, 4294901760
  %3566 = vmatpush1.msra.mxu0 %v3565
  %3567 = vmatprep.subr.mxu0 0.0
  %v3568 = vand.u32 %v36, 4294901760
  %v3569 = vsub.f32 %v36, %v3568
  %v3570 = vand.u32 %v3569, 4294901760
  %3571 = vmatpush1.msra.mxu0 %v3570
  %3572 = vmatprep.subr.mxu0 0.0
  %v3573 = vand.u32 %v37, 4294901760
  %v3574 = vsub.f32 %v37, %v3573
  %v3575 = vand.u32 %v3574, 4294901760
  %3576 = vmatpush1.msra.mxu0 %v3575
  %3577 = vmatprep.subr.mxu0 0.0
  %v3578 = vand.u32 %v38, 4294901760
  %v3579 = vsub.f32 %v38, %v3578
  %v3580 = vand.u32 %v3579, 4294901760
  %3581 = vmatpush1.msra.mxu0 %v3580
  %3582 = vmatprep.subr.mxu0 0.0
  %v3583 = vand.u32 %v39, 4294901760
  %v3584 = vsub.f32 %v39, %v3583
  %v3585 = vand.u32 %v3584, 4294901760
  %3586 = vmatpush1.msra.mxu0 %v3585
  %3587 = vmatprep.subr.mxu0 0.0
  %v3588 = vand.u32 %v40, 4294901760
  %v3589 = vsub.f32 %v40, %v3588
  %v3590 = vand.u32 %v3589, 4294901760
  %3591 = vmatpush1.msra.mxu0 %v3590
  %3592 = vmatprep.subr.mxu0 0.0
  %v3593 = vand.u32 %v41, 4294901760
  %v3594 = vsub.f32 %v41, %v3593
  %v3595 = vand.u32 %v3594, 4294901760
  %3596 = vmatpush1.msra.mxu0 %v3595
  %3597 = vmatprep.subr.mxu0 0.0
  %v3598 = vand.u32 %v42, 4294901760
  %v3599 = vsub.f32 %v42, %v3598
  %v3600 = vand.u32 %v3599, 4294901760
  %3601 = vmatpush1.msra.mxu0 %v3600
  %3602 = vmatprep.subr.mxu0 0.0
  %v3603 = vand.u32 %v43, 4294901760
  %v3604 = vsub.f32 %v43, %v3603
  %v3605 = vand.u32 %v3604, 4294901760
  %3606 = vmatpush1.msra.mxu0 %v3605
  %3607 = vmatprep.subr.mxu0 0.0
  %v3608 = vand.u32 %v44, 4294901760
  %v3609 = vsub.f32 %v44, %v3608
  %v3610 = vand.u32 %v3609, 4294901760
  %3611 = vmatpush1.msra.mxu0 %v3610
  %3612 = vmatprep.subr.mxu0 0.0
  %v3613 = vand.u32 %v45, 4294901760
  %v3614 = vsub.f32 %v45, %v3613
  %v3615 = vand.u32 %v3614, 4294901760
  %3616 = vmatpush1.msra.mxu0 %v3615
  %3617 = vmatprep.subr.mxu0 0.0
  %v3618 = vand.u32 %v46, 4294901760
  %v3619 = vsub.f32 %v46, %v3618
  %v3620 = vand.u32 %v3619, 4294901760
  %3621 = vmatpush1.msra.mxu0 %v3620
  %3622 = vmatprep.subr.mxu0 0.0
  %v3623 = vand.u32 %v47, 4294901760
  %v3624 = vsub.f32 %v47, %v3623
  %v3625 = vand.u32 %v3624, 4294901760
  %3626 = vmatpush1.msra.mxu0 %v3625
  %3627 = vmatprep.subr.mxu0 0.0
  %v3628 = vand.u32 %v48, 4294901760
  %v3629 = vsub.f32 %v48, %v3628
  %v3630 = vand.u32 %v3629, 4294901760
  %3631 = vmatpush1.msra.mxu0 %v3630
  %3632 = vmatprep.subr.mxu0 0.0
  %v3633 = vand.u32 %v49, 4294901760
  %v3634 = vsub.f32 %v49, %v3633
  %v3635 = vand.u32 %v3634, 4294901760
  %3636 = vmatpush1.msra.mxu0 %v3635
  %3637 = vmatprep.subr.mxu0 0.0
  %v3638 = vand.u32 %v50, 4294901760
  %v3639 = vsub.f32 %v50, %v3638
  %v3640 = vand.u32 %v3639, 4294901760
  %3641 = vmatpush1.msra.mxu0 %v3640
  %3642 = vmatprep.subr.mxu0 0.0
  %3643 = vmatpush1.msra.mxu0 0.0
  %3644 = vmatprep.subr.mxu0 0.0
  %3645 = vmatpush1.msra.mxu0 0.0
  %3646 = vmatprep.subr.mxu0 0.0
  %3647 = vmatpush1.msra.mxu0 0.0
  %3648 = vmatprep.subr.mxu0 0.0
  %3649 = vmatpush1.msra.mxu0 0.0
  %3650 = vmatprep.subr.mxu0 0.0
  %3651 = vmatpush1.msra.mxu0 0.0
  %3652 = vmatprep.subr.mxu0 0.0
  %3653 = vmatpush1.msra.mxu0 0.0
  %3654 = vmatprep.subr.mxu0 0.0
  %3655 = vmatpush1.msra.mxu0 0.0
  %3656 = vmatprep.subr.mxu0 0.0
  %3657 = vmatpush1.msra.mxu0 0.0
  %3658 = vmatprep.subr.mxu0 0.0
  %3659 = vmatpush1.msra.mxu0 0.0
  %3660 = vmatprep.subr.mxu0 0.0
  %3661 = vmatpush1.msra.mxu0 0.0
  %3662 = vmatprep.subr.mxu0 0.0
  %3663 = vmatpush1.msra.mxu0 0.0
  %3664 = vmatprep.subr.mxu0 0.0
  %3665 = vmatpush1.msra.mxu0 0.0
  %3666 = vmatprep.subr.mxu0 0.0
  %3667 = vmatpush1.msra.mxu0 0.0
  %3668 = vmatprep.subr.mxu0 0.0
  %3669 = vmatpush1.msra.mxu0 0.0
  %3670 = vmatprep.subr.mxu0 0.0
  %3671 = vmatpush1.msra.mxu0 0.0
  %3672 = vmatprep.subr.mxu0 0.0
  %3673 = vmatpush1.msra.mxu0 0.0
  %3674 = vmatprep.mubr.f32.mxu0 0.0
  %v3675 = vand.u32 %v2646, 4294901760
  %3676 = vmatmul.mubr.f32.gmra.mrb[0].mxu0 %v3675
  %v3677 = vpop.f32.mrb[0].mxu0
  %v3678 = vadd.f32 %v3439, %v3677
  %v3679 = vpop.f32.mrb[0].mxu0
  %3680 = vmatprep.mubr.f32.mxu0 0.0
  %v3681 = vand.u32 %v2647, 4294901760
  %3682 = vmatmul.mubr.f32.gmra.mrb[0].mxu0 %v3681
  %v3683 = vpop.f32.mrb[0].mxu0
  %v3684 = vadd.f32 %v3447, %v3683
  %v3685 = vpop.f32.mrb[0].mxu0
  %3686 = vmatprep.mubr.f32.mxu0 0.0
  %v3687 = vand.u32 %v2648, 4294901760
  %3688 = vmatmul.mubr.f32.gmra.mrb[0].mxu0 %v3687
  %v3689 = vpop.f32.mrb[0].mxu0
  %v3690 = vadd.f32 %v3455, %v3689
  %v3691 = vpop.f32.mrb[0].mxu0
  %3692 = vmatprep.mubr.f32.mxu0 0.0
  %v3693 = vand.u32 %v2649, 4294901760
  %3694 = vmatmul.mubr.f32.gmra.mrb[0].mxu0 %v3693
  %v3695 = vpop.f32.mrb[0].mxu0
  %v3696 = vadd.f32 %v3463, %v3695
  %v3697 = vpop.f32.mrb[0].mxu0
  %3698 = vmatprep.mubr.f32.mxu0 0.0
  %v3699 = vand.u32 %v2650, 4294901760
  %3700 = vmatmul.mubr.f32.gmra.mrb[0].mxu0 %v3699
  %v3701 = vpop.f32.mrb[0].mxu0
  %v3702 = vadd.f32 %v3471, %v3701
  %v3703 = vpop.f32.mrb[0].mxu0
  %3704 = vmatprep.mubr.f32.mxu0 0.0
  %v3705 = vand.u32 %v2651, 4294901760
  %3706 = vmatmul.mubr.f32.gmra.mrb[0].mxu0 %v3705
  %v3707 = vpop.f32.mrb[0].mxu0
  %v3708 = vadd.f32 %v3479, %v3707
  %v3709 = vpop.f32.mrb[0].mxu0
  %3710 = vmatprep.mubr.f32.mxu0 0.0
  %v3711 = vand.u32 %v2652, 4294901760
  %3712 = vmatmul.mubr.f32.gmra.mrb[0].mxu0 %v3711
  %v3713 = vpop.f32.mrb[0].mxu0
  %v3714 = vadd.f32 %v3487, %v3713
  %v3715 = vpop.f32.mrb[0].mxu0
  %3716 = vmatprep.mubr.f32.mxu0 0.0
  %v3717 = vand.u32 %v2653, 4294901760
  %3718 = vmatmul.mubr.f32.gmra.mrb[0].mxu0 %v3717
  %v3719 = vpop.f32.mrb[0].mxu0
  %v3720 = vadd.f32 %v3495, %v3719
  %v3721 = vpop.f32.mrb[0].mxu0
  %3722 = vmatprep.mubr.f32.mxu0 0.0
  %v3723 = vand.u32 %v2654, 4294901760
  %3724 = vmatmul.mubr.f32.gmra.mrb[0].mxu0 %v3723
  %v3725 = vpop.f32.mrb[0].mxu0
  %v3726 = vadd.f32 %v3503, %v3725
  %v3727 = vpop.f32.mrb[0].mxu0
  %3728 = vmatprep.mubr.f32.mxu0 0.0
  %v3729 = vand.u32 %v2655, 4294901760
  %3730 = vmatmul.mubr.f32.gmra.mrb[0].mxu0 %v3729
  %v3731 = vpop.f32.mrb[0].mxu0
  %v3732 = vadd.f32 %v3511, %v3731
  %v3733 = vpop.f32.mrb[0].mxu0
  %3734 = vmatprep.mubr.f32.mxu0 0.0
  %v3735 = vand.u32 %v2656, 4294901760
  %3736 = vmatmul.mubr.f32.gmra.mrb[0].mxu0 %v3735
  %v3737 = vpop.f32.mrb[0].mxu0
  %v3738 = vadd.f32 %v3519, %v3737
  %v3739 = vpop.f32.mrb[0].mxu0
  %3740 = vmatprep.mubr.f32.mxu0 0.0
  %v3741 = vand.u32 %v2657, 4294901760
  %3742 = vmatmul.mubr.f32.gmra.mrb[0].mxu0 %v3741
  %v3743 = vpop.f32.mrb[0].mxu0
  %v3744 = vadd.f32 %v3527, %v3743
  %v3745 = vpop.f32.mrb[0].mxu0
  %3746 = vmatprep.mubr.f32.mxu0 0.0
  %v3747 = vand.u32 %v2658, 4294901760
  %3748 = vmatmul.mubr.f32.gmra.mrb[0].mxu0 %v3747
  %v3749 = vpop.f32.mrb[0].mxu0
  %v3750 = vadd.f32 %v3535, %v3749
  %v3751 = vpop.f32.mrb[0].mxu0
  %3752 = vmatprep.mubr.f32.mxu0 0.0
  %v3753 = vand.u32 %v2659, 4294901760
  %3754 = vmatmul.mubr.f32.gmra.mrb[0].mxu0 %v3753
  %v3755 = vpop.f32.mrb[0].mxu0
  %v3756 = vadd.f32 %v3543, %v3755
  %v3757 = vpop.f32.mrb[0].mxu0
  %3758 = vmatprep.mubr.f32.mxu0 0.0
  %v3759 = vand.u32 %v2660, 4294901760
  %3760 = vmatmul.mubr.f32.gmra.mrb[0].mxu0 %v3759
  %v3761 = vpop.f32.mrb[0].mxu0
  %v3762 = vadd.f32 %v3551, %v3761
  %v3763 = vpop.f32.mrb[0].mxu0
  %3764 = vmatprep.mubr.f32.mxu0 0.0
  %v3765 = vand.u32 %v2661, 4294901760
  %3766 = vmatmul.mubr.f32.gmra.mrb[0].mxu0 %v3765
  %v3767 = vpop.f32.mrb[0].mxu0
  %v3768 = vadd.f32 %v3559, %v3767
  %v3769 = vpop.f32.mrb[0].mxu0
  %3770 = vdwg.mxu0
  %3771 = vmatprep.subr.mxu0 0.0
  %v3772 = vand.u32 %v35, 4294901760
  %3773 = vmatpush1.msra.mxu0 %v3772
  %3774 = vmatprep.subr.mxu0 0.0
  %v3775 = vand.u32 %v36, 4294901760
  %3776 = vmatpush1.msra.mxu0 %v3775
  %3777 = vmatprep.subr.mxu0 0.0
  %v3778 = vand.u32 %v37, 4294901760
  %3779 = vmatpush1.msra.mxu0 %v3778
  %3780 = vmatprep.subr.mxu0 0.0
  %v3781 = vand.u32 %v38, 4294901760
  %3782 = vmatpush1.msra.mxu0 %v3781
  %3783 = vmatprep.subr.mxu0 0.0
  %v3784 = vand.u32 %v39, 4294901760
  %3785 = vmatpush1.msra.mxu0 %v3784
  %3786 = vmatprep.subr.mxu0 0.0
  %v3787 = vand.u32 %v40, 4294901760
  %3788 = vmatpush1.msra.mxu0 %v3787
  %3789 = vmatprep.subr.mxu0 0.0
  %v3790 = vand.u32 %v41, 4294901760
  %3791 = vmatpush1.msra.mxu0 %v3790
  %3792 = vmatprep.subr.mxu0 0.0
  %v3793 = vand.u32 %v42, 4294901760
  %3794 = vmatpush1.msra.mxu0 %v3793
  %3795 = vmatprep.subr.mxu0 0.0
  %v3796 = vand.u32 %v43, 4294901760
  %3797 = vmatpush1.msra.mxu0 %v3796
  %3798 = vmatprep.subr.mxu0 0.0
  %v3799 = vand.u32 %v44, 4294901760
  %3800 = vmatpush1.msra.mxu0 %v3799
  %3801 = vmatprep.subr.mxu0 0.0
  %v3802 = vand.u32 %v45, 4294901760
  %3803 = vmatpush1.msra.mxu0 %v3802
  %3804 = vmatprep.subr.mxu0 0.0
  %v3805 = vand.u32 %v46, 4294901760
  %3806 = vmatpush1.msra.mxu0 %v3805
  %3807 = vmatprep.subr.mxu0 0.0
  %v3808 = vand.u32 %v47, 4294901760
  %3809 = vmatpush1.msra.mxu0 %v3808
  %3810 = vmatprep.subr.mxu0 0.0
  %v3811 = vand.u32 %v48, 4294901760
  %3812 = vmatpush1.msra.mxu0 %v3811
  %3813 = vmatprep.subr.mxu0 0.0
  %v3814 = vand.u32 %v49, 4294901760
  %3815 = vmatpush1.msra.mxu0 %v3814
  %3816 = vmatprep.subr.mxu0 0.0
  %v3817 = vand.u32 %v50, 4294901760
  %3818 = vmatpush1.msra.mxu0 %v3817
  %3819 = vmatprep.subr.mxu0 0.0
  %3820 = vmatpush1.msra.mxu0 0.0
  %3821 = vmatprep.subr.mxu0 0.0
  %3822 = vmatpush1.msra.mxu0 0.0
  %3823 = vmatprep.subr.mxu0 0.0
  %3824 = vmatpush1.msra.mxu0 0.0
  %3825 = vmatprep.subr.mxu0 0.0
  %3826 = vmatpush1.msra.mxu0 0.0
  %3827 = vmatprep.subr.mxu0 0.0
  %3828 = vmatpush1.msra.mxu0 0.0
  %3829 = vmatprep.subr.mxu0 0.0
  %3830 = vmatpush1.msra.mxu0 0.0
  %3831 = vmatprep.subr.mxu0 0.0
  %3832 = vmatpush1.msra.mxu0 0.0
  %3833 = vmatprep.subr.mxu0 0.0
  %3834 = vmatpush1.msra.mxu0 0.0
  %3835 = vmatprep.subr.mxu0 0.0
  %3836 = vmatpush1.msra.mxu0 0.0
  %3837 = vmatprep.subr.mxu0 0.0
  %3838 = vmatpush1.msra.mxu0 0.0
  %3839 = vmatprep.subr.mxu0 0.0
  %3840 = vmatpush1.msra.mxu0 0.0
  %3841 = vmatprep.subr.mxu0 0.0
  %3842 = vmatpush1.msra.mxu0 0.0
  %3843 = vmatprep.subr.mxu0 0.0
  %3844 = vmatpush1.msra.mxu0 0.0
  %3845 = vmatprep.subr.mxu0 0.0
  %3846 = vmatpush1.msra.mxu0 0.0
  %3847 = vmatprep.subr.mxu0 0.0
  %3848 = vmatpush1.msra.mxu0 0.0
  %3849 = vmatprep.subr.mxu0 0.0
  %3850 = vmatpush1.msra.mxu0 0.0
  %3851 = vmatprep.mubr.f32.mxu0 0.0
  %v3852 = vand.u32 %v2646, 4294901760
  %3853 = vmatmul.mubr.f32.gmra.mrb[0].mxu0 %v3852
  %v3854 = vpop.f32.mrb[0].mxu0
  %v3855 = vadd.f32 %v3678, %v3854
  %v3856 = vpop.f32.mrb[0].mxu0
  %3857 = vmatprep.mubr.f32.mxu0 0.0
  %v3858 = vand.u32 %v2647, 4294901760
  %3859 = vmatmul.mubr.f32.gmra.mrb[0].mxu0 %v3858
  %v3860 = vpop.f32.mrb[0].mxu0
  %v3861 = vadd.f32 %v3684, %v3860
  %v3862 = vpop.f32.mrb[0].mxu0
  %3863 = vmatprep.mubr.f32.mxu0 0.0
  %v3864 = vand.u32 %v2648, 4294901760
  %3865 = vmatmul.mubr.f32.gmra.mrb[0].mxu0 %v3864
  %v3866 = vpop.f32.mrb[0].mxu0
  %v3867 = vadd.f32 %v3690, %v3866
  %v3868 = vpop.f32.mrb[0].mxu0
  %3869 = vmatprep.mubr.f32.mxu0 0.0
  %v3870 = vand.u32 %v2649, 4294901760
  %3871 = vmatmul.mubr.f32.gmra.mrb[0].mxu0 %v3870
  %v3872 = vpop.f32.mrb[0].mxu0
  %v3873 = vadd.f32 %v3696, %v3872
  %v3874 = vpop.f32.mrb[0].mxu0
  %3875 = vmatprep.mubr.f32.mxu0 0.0
  %v3876 = vand.u32 %v2650, 4294901760
  %3877 = vmatmul.mubr.f32.gmra.mrb[0].mxu0 %v3876
  %v3878 = vpop.f32.mrb[0].mxu0
  %v3879 = vadd.f32 %v3702, %v3878
  %v3880 = vpop.f32.mrb[0].mxu0
  %3881 = vmatprep.mubr.f32.mxu0 0.0
  %v3882 = vand.u32 %v2651, 4294901760
  %3883 = vmatmul.mubr.f32.gmra.mrb[0].mxu0 %v3882
  %v3884 = vpop.f32.mrb[0].mxu0
  %v3885 = vadd.f32 %v3708, %v3884
  %v3886 = vpop.f32.mrb[0].mxu0
  %3887 = vmatprep.mubr.f32.mxu0 0.0
  %v3888 = vand.u32 %v2652, 4294901760
  %3889 = vmatmul.mubr.f32.gmra.mrb[0].mxu0 %v3888
  %v3890 = vpop.f32.mrb[0].mxu0
  %v3891 = vadd.f32 %v3714, %v3890
  %v3892 = vpop.f32.mrb[0].mxu0
  %3893 = vmatprep.mubr.f32.mxu0 0.0
  %v3894 = vand.u32 %v2653, 4294901760
  %3895 = vmatmul.mubr.f32.gmra.mrb[0].mxu0 %v3894
  %v3896 = vpop.f32.mrb[0].mxu0
  %v3897 = vadd.f32 %v3720, %v3896
  %v3898 = vpop.f32.mrb[0].mxu0
  %3899 = vmatprep.mubr.f32.mxu0 0.0
  %v3900 = vand.u32 %v2654, 4294901760
  %3901 = vmatmul.mubr.f32.gmra.mrb[0].mxu0 %v3900
  %v3902 = vpop.f32.mrb[0].mxu0
  %v3903 = vadd.f32 %v3726, %v3902
  %v3904 = vpop.f32.mrb[0].mxu0
  %3905 = vmatprep.mubr.f32.mxu0 0.0
  %v3906 = vand.u32 %v2655, 4294901760
  %3907 = vmatmul.mubr.f32.gmra.mrb[0].mxu0 %v3906
  %v3908 = vpop.f32.mrb[0].mxu0
  %v3909 = vadd.f32 %v3732, %v3908
  %v3910 = vpop.f32.mrb[0].mxu0
  %3911 = vmatprep.mubr.f32.mxu0 0.0
  %v3912 = vand.u32 %v2656, 4294901760
  %3913 = vmatmul.mubr.f32.gmra.mrb[0].mxu0 %v3912
  %v3914 = vpop.f32.mrb[0].mxu0
  %v3915 = vadd.f32 %v3738, %v3914
  %v3916 = vpop.f32.mrb[0].mxu0
  %3917 = vmatprep.mubr.f32.mxu0 0.0
  %v3918 = vand.u32 %v2657, 4294901760
  %3919 = vmatmul.mubr.f32.gmra.mrb[0].mxu0 %v3918
  %v3920 = vpop.f32.mrb[0].mxu0
  %v3921 = vadd.f32 %v3744, %v3920
  %v3922 = vpop.f32.mrb[0].mxu0
  %3923 = vmatprep.mubr.f32.mxu0 0.0
  %v3924 = vand.u32 %v2658, 4294901760
  %3925 = vmatmul.mubr.f32.gmra.mrb[0].mxu0 %v3924
  %v3926 = vpop.f32.mrb[0].mxu0
  %v3927 = vadd.f32 %v3750, %v3926
  %v3928 = vpop.f32.mrb[0].mxu0
  %3929 = vmatprep.mubr.f32.mxu0 0.0
  %v3930 = vand.u32 %v2659, 4294901760
  %3931 = vmatmul.mubr.f32.gmra.mrb[0].mxu0 %v3930
  %v3932 = vpop.f32.mrb[0].mxu0
  %v3933 = vadd.f32 %v3756, %v3932
  %v3934 = vpop.f32.mrb[0].mxu0
  %3935 = vmatprep.mubr.f32.mxu0 0.0
  %v3936 = vand.u32 %v2660, 4294901760
  %3937 = vmatmul.mubr.f32.gmra.mrb[0].mxu0 %v3936
  %v3938 = vpop.f32.mrb[0].mxu0
  %v3939 = vadd.f32 %v3762, %v3938
  %v3940 = vpop.f32.mrb[0].mxu0
  %3941 = vmatprep.mubr.f32.mxu0 0.0
  %v3942 = vand.u32 %v2661, 4294901760
  %3943 = vmatmul.mubr.f32.gmra.mrb[0].mxu0 %v3942
  %v3944 = vpop.f32.mrb[0].mxu0
  %v3945 = vadd.f32 %v3768, %v3944
  %v3946 = vpop.f32.mrb[0].mxu0
  %3947 = vdwg.mxu0
  %v3948 = vsel %vm1990, 1, 0
  %v3949 = vsel %vm1991, 1, 0
  %v3950 = vsel %vm1992, 1, 0
  %v3951 = vsel %vm1993, 1, 0
  %v3952 = vsel %vm1994, 1, 0
  %v3953 = vsel %vm1995, 1, 0
  %v3954 = vsel %vm1996, 1, 0
  %v3955 = vsel %vm1997, 1, 0
  %v3956 = vsel %vm1998, 1, 0
  %v3957 = vsel %vm1999, 1, 0
  %v3958 = vsel %vm2000, 1, 0
  %v3959 = vsel %vm2001, 1, 0
  %v3960 = vsel %vm2002, 1, 0
  %v3961 = vsel %vm2003, 1, 0
  %v3962 = vsel %vm2004, 1, 0
  %v3963 = vsel %vm2005, 1, 0
  %v3964 = vcvt.s32.f32 %v3948
  %v3965 = vcvt.s32.f32 %v3949
  %v3966 = vcvt.s32.f32 %v3950
  %v3967 = vcvt.s32.f32 %v3951
  %v3968 = vcvt.s32.f32 %v3952
  %v3969 = vcvt.s32.f32 %v3953
  %v3970 = vcvt.s32.f32 %v3954
  %v3971 = vcvt.s32.f32 %v3955
  %v3972 = vcvt.s32.f32 %v3956
  %v3973 = vcvt.s32.f32 %v3957
  %v3974 = vcvt.s32.f32 %v3958
  %v3975 = vcvt.s32.f32 %v3959
  %v3976 = vcvt.s32.f32 %v3960
  %v3977 = vcvt.s32.f32 %v3961
  %v3978 = vcvt.s32.f32 %v3962
  %v3979 = vcvt.s32.f32 %v3963
  %3980 = vmatprep.subr.mxu0 0.0
  %v3981 = vand.u32 %v35, 4294901760
  %3982 = vmatpush1.msra.mxu0 %v3981
  %3983 = vmatprep.subr.mxu0 0.0
  %v3984 = vand.u32 %v36, 4294901760
  %3985 = vmatpush1.msra.mxu0 %v3984
  %3986 = vmatprep.subr.mxu0 0.0
  %v3987 = vand.u32 %v37, 4294901760
  %3988 = vmatpush1.msra.mxu0 %v3987
  %3989 = vmatprep.subr.mxu0 0.0
  %v3990 = vand.u32 %v38, 4294901760
  %3991 = vmatpush1.msra.mxu0 %v3990
  %3992 = vmatprep.subr.mxu0 0.0
  %v3993 = vand.u32 %v39, 4294901760
  %3994 = vmatpush1.msra.mxu0 %v3993
  %3995 = vmatprep.subr.mxu0 0.0
  %v3996 = vand.u32 %v40, 4294901760
  %3997 = vmatpush1.msra.mxu0 %v3996
  %3998 = vmatprep.subr.mxu0 0.0
  %v3999 = vand.u32 %v41, 4294901760
  %4000 = vmatpush1.msra.mxu0 %v3999
  %4001 = vmatprep.subr.mxu0 0.0
  %v4002 = vand.u32 %v42, 4294901760
  %4003 = vmatpush1.msra.mxu0 %v4002
  %4004 = vmatprep.subr.mxu0 0.0
  %v4005 = vand.u32 %v43, 4294901760
  %4006 = vmatpush1.msra.mxu0 %v4005
  %4007 = vmatprep.subr.mxu0 0.0
  %v4008 = vand.u32 %v44, 4294901760
  %4009 = vmatpush1.msra.mxu0 %v4008
  %4010 = vmatprep.subr.mxu0 0.0
  %v4011 = vand.u32 %v45, 4294901760
  %4012 = vmatpush1.msra.mxu0 %v4011
  %4013 = vmatprep.subr.mxu0 0.0
  %v4014 = vand.u32 %v46, 4294901760
  %4015 = vmatpush1.msra.mxu0 %v4014
  %4016 = vmatprep.subr.mxu0 0.0
  %v4017 = vand.u32 %v47, 4294901760
  %4018 = vmatpush1.msra.mxu0 %v4017
  %4019 = vmatprep.subr.mxu0 0.0
  %v4020 = vand.u32 %v48, 4294901760
  %4021 = vmatpush1.msra.mxu0 %v4020
  %4022 = vmatprep.subr.mxu0 0.0
  %v4023 = vand.u32 %v49, 4294901760
  %4024 = vmatpush1.msra.mxu0 %v4023
  %4025 = vmatprep.subr.mxu0 0.0
  %v4026 = vand.u32 %v50, 4294901760
  %4027 = vmatpush1.msra.mxu0 %v4026
  %4028 = vmatprep.subr.mxu0 0.0
  %4029 = vmatpush1.msra.mxu0 0.0
  %4030 = vmatprep.subr.mxu0 0.0
  %4031 = vmatpush1.msra.mxu0 0.0
  %4032 = vmatprep.subr.mxu0 0.0
  %4033 = vmatpush1.msra.mxu0 0.0
  %4034 = vmatprep.subr.mxu0 0.0
  %4035 = vmatpush1.msra.mxu0 0.0
  %4036 = vmatprep.subr.mxu0 0.0
  %4037 = vmatpush1.msra.mxu0 0.0
  %4038 = vmatprep.subr.mxu0 0.0
  %4039 = vmatpush1.msra.mxu0 0.0
  %4040 = vmatprep.subr.mxu0 0.0
  %4041 = vmatpush1.msra.mxu0 0.0
  %4042 = vmatprep.subr.mxu0 0.0
  %4043 = vmatpush1.msra.mxu0 0.0
  %4044 = vmatprep.subr.mxu0 0.0
  %4045 = vmatpush1.msra.mxu0 0.0
  %4046 = vmatprep.subr.mxu0 0.0
  %4047 = vmatpush1.msra.mxu0 0.0
  %4048 = vmatprep.subr.mxu0 0.0
  %4049 = vmatpush1.msra.mxu0 0.0
  %4050 = vmatprep.subr.mxu0 0.0
  %4051 = vmatpush1.msra.mxu0 0.0
  %4052 = vmatprep.subr.mxu0 0.0
  %4053 = vmatpush1.msra.mxu0 0.0
  %4054 = vmatprep.subr.mxu0 0.0
  %4055 = vmatpush1.msra.mxu0 0.0
  %4056 = vmatprep.subr.mxu0 0.0
  %4057 = vmatpush1.msra.mxu0 0.0
  %4058 = vmatprep.subr.mxu0 0.0
  %4059 = vmatpush1.msra.mxu0 0.0
  %4060 = vmatprep.mubr.f32.mxu0 0.0
  %v4061 = vand.u32 %v3964, 4294901760
  %v4062 = vsub.f32 %v3964, %v4061
  %v4063 = vand.u32 %v4062, 4294901760
  %v4064 = vsub.f32 %v4062, %v4063
  %v4065 = vand.u32 %v4064, 4294901760
  %4066 = vmatmul.mubr.f32.gmra.mrb[0].mxu0 %v4065
  %v4067 = vpop.f32.mrb[0].mxu0
  %v4068 = vadd.f32 0.0, %v4067
  %v4069 = vpop.f32.mrb[0].mxu0
  %4070 = vmatprep.mubr.f32.mxu0 0.0
  %v4071 = vand.u32 %v3965, 4294901760
  %v4072 = vsub.f32 %v3965, %v4071
  %v4073 = vand.u32 %v4072, 4294901760
  %v4074 = vsub.f32 %v4072, %v4073
  %v4075 = vand.u32 %v4074, 4294901760
  %4076 = vmatmul.mubr.f32.gmra.mrb[0].mxu0 %v4075
  %v4077 = vpop.f32.mrb[0].mxu0
  %v4078 = vadd.f32 0.0, %v4077
  %v4079 = vpop.f32.mrb[0].mxu0
  %4080 = vmatprep.mubr.f32.mxu0 0.0
  %v4081 = vand.u32 %v3966, 4294901760
  %v4082 = vsub.f32 %v3966, %v4081
  %v4083 = vand.u32 %v4082, 4294901760
  %v4084 = vsub.f32 %v4082, %v4083
  %v4085 = vand.u32 %v4084, 4294901760
  %4086 = vmatmul.mubr.f32.gmra.mrb[0].mxu0 %v4085
  %v4087 = vpop.f32.mrb[0].mxu0
  %v4088 = vadd.f32 0.0, %v4087
  %v4089 = vpop.f32.mrb[0].mxu0
  %4090 = vmatprep.mubr.f32.mxu0 0.0
  %v4091 = vand.u32 %v3967, 4294901760
  %v4092 = vsub.f32 %v3967, %v4091
  %v4093 = vand.u32 %v4092, 4294901760
  %v4094 = vsub.f32 %v4092, %v4093
  %v4095 = vand.u32 %v4094, 4294901760
  %4096 = vmatmul.mubr.f32.gmra.mrb[0].mxu0 %v4095
  %v4097 = vpop.f32.mrb[0].mxu0
  %v4098 = vadd.f32 0.0, %v4097
  %v4099 = vpop.f32.mrb[0].mxu0
  %4100 = vmatprep.mubr.f32.mxu0 0.0
  %v4101 = vand.u32 %v3968, 4294901760
  %v4102 = vsub.f32 %v3968, %v4101
  %v4103 = vand.u32 %v4102, 4294901760
  %v4104 = vsub.f32 %v4102, %v4103
  %v4105 = vand.u32 %v4104, 4294901760
  %4106 = vmatmul.mubr.f32.gmra.mrb[0].mxu0 %v4105
  %v4107 = vpop.f32.mrb[0].mxu0
  %v4108 = vadd.f32 0.0, %v4107
  %v4109 = vpop.f32.mrb[0].mxu0
  %4110 = vmatprep.mubr.f32.mxu0 0.0
  %v4111 = vand.u32 %v3969, 4294901760
  %v4112 = vsub.f32 %v3969, %v4111
  %v4113 = vand.u32 %v4112, 4294901760
  %v4114 = vsub.f32 %v4112, %v4113
  %v4115 = vand.u32 %v4114, 4294901760
  %4116 = vmatmul.mubr.f32.gmra.mrb[0].mxu0 %v4115
  %v4117 = vpop.f32.mrb[0].mxu0
  %v4118 = vadd.f32 0.0, %v4117
  %v4119 = vpop.f32.mrb[0].mxu0
  %4120 = vmatprep.mubr.f32.mxu0 0.0
  %v4121 = vand.u32 %v3970, 4294901760
  %v4122 = vsub.f32 %v3970, %v4121
  %v4123 = vand.u32 %v4122, 4294901760
  %v4124 = vsub.f32 %v4122, %v4123
  %v4125 = vand.u32 %v4124, 4294901760
  %4126 = vmatmul.mubr.f32.gmra.mrb[0].mxu0 %v4125
  %v4127 = vpop.f32.mrb[0].mxu0
  %v4128 = vadd.f32 0.0, %v4127
  %v4129 = vpop.f32.mrb[0].mxu0
  %4130 = vmatprep.mubr.f32.mxu0 0.0
  %v4131 = vand.u32 %v3971, 4294901760
  %v4132 = vsub.f32 %v3971, %v4131
  %v4133 = vand.u32 %v4132, 4294901760
  %v4134 = vsub.f32 %v4132, %v4133
  %v4135 = vand.u32 %v4134, 4294901760
  %4136 = vmatmul.mubr.f32.gmra.mrb[0].mxu0 %v4135
  %v4137 = vpop.f32.mrb[0].mxu0
  %v4138 = vadd.f32 0.0, %v4137
  %v4139 = vpop.f32.mrb[0].mxu0
  %4140 = vmatprep.mubr.f32.mxu0 0.0
  %v4141 = vand.u32 %v3972, 4294901760
  %v4142 = vsub.f32 %v3972, %v4141
  %v4143 = vand.u32 %v4142, 4294901760
  %v4144 = vsub.f32 %v4142, %v4143
  %v4145 = vand.u32 %v4144, 4294901760
  %4146 = vmatmul.mubr.f32.gmra.mrb[0].mxu0 %v4145
  %v4147 = vpop.f32.mrb[0].mxu0
  %v4148 = vadd.f32 0.0, %v4147
  %v4149 = vpop.f32.mrb[0].mxu0
  %4150 = vmatprep.mubr.f32.mxu0 0.0
  %v4151 = vand.u32 %v3973, 4294901760
  %v4152 = vsub.f32 %v3973, %v4151
  %v4153 = vand.u32 %v4152, 4294901760
  %v4154 = vsub.f32 %v4152, %v4153
  %v4155 = vand.u32 %v4154, 4294901760
  %4156 = vmatmul.mubr.f32.gmra.mrb[0].mxu0 %v4155
  %v4157 = vpop.f32.mrb[0].mxu0
  %v4158 = vadd.f32 0.0, %v4157
  %v4159 = vpop.f32.mrb[0].mxu0
  %4160 = vmatprep.mubr.f32.mxu0 0.0
  %v4161 = vand.u32 %v3974, 4294901760
  %v4162 = vsub.f32 %v3974, %v4161
  %v4163 = vand.u32 %v4162, 4294901760
  %v4164 = vsub.f32 %v4162, %v4163
  %v4165 = vand.u32 %v4164, 4294901760
  %4166 = vmatmul.mubr.f32.gmra.mrb[0].mxu0 %v4165
  %v4167 = vpop.f32.mrb[0].mxu0
  %v4168 = vadd.f32 0.0, %v4167
  %v4169 = vpop.f32.mrb[0].mxu0
  %4170 = vmatprep.mubr.f32.mxu0 0.0
  %v4171 = vand.u32 %v3975, 4294901760
  %v4172 = vsub.f32 %v3975, %v4171
  %v4173 = vand.u32 %v4172, 4294901760
  %v4174 = vsub.f32 %v4172, %v4173
  %v4175 = vand.u32 %v4174, 4294901760
  %4176 = vmatmul.mubr.f32.gmra.mrb[0].mxu0 %v4175
  %v4177 = vpop.f32.mrb[0].mxu0
  %v4178 = vadd.f32 0.0, %v4177
  %v4179 = vpop.f32.mrb[0].mxu0
  %4180 = vmatprep.mubr.f32.mxu0 0.0
  %v4181 = vand.u32 %v3976, 4294901760
  %v4182 = vsub.f32 %v3976, %v4181
  %v4183 = vand.u32 %v4182, 4294901760
  %v4184 = vsub.f32 %v4182, %v4183
  %v4185 = vand.u32 %v4184, 4294901760
  %4186 = vmatmul.mubr.f32.gmra.mrb[0].mxu0 %v4185
  %v4187 = vpop.f32.mrb[0].mxu0
  %v4188 = vadd.f32 0.0, %v4187
  %v4189 = vpop.f32.mrb[0].mxu0
  %4190 = vmatprep.mubr.f32.mxu0 0.0
  %v4191 = vand.u32 %v3977, 4294901760
  %v4192 = vsub.f32 %v3977, %v4191
  %v4193 = vand.u32 %v4192, 4294901760
  %v4194 = vsub.f32 %v4192, %v4193
  %v4195 = vand.u32 %v4194, 4294901760
  %4196 = vmatmul.mubr.f32.gmra.mrb[0].mxu0 %v4195
  %v4197 = vpop.f32.mrb[0].mxu0
  %v4198 = vadd.f32 0.0, %v4197
  %v4199 = vpop.f32.mrb[0].mxu0
  %4200 = vmatprep.mubr.f32.mxu0 0.0
  %v4201 = vand.u32 %v3978, 4294901760
  %v4202 = vsub.f32 %v3978, %v4201
  %v4203 = vand.u32 %v4202, 4294901760
  %v4204 = vsub.f32 %v4202, %v4203
  %v4205 = vand.u32 %v4204, 4294901760
  %4206 = vmatmul.mubr.f32.gmra.mrb[0].mxu0 %v4205
  %v4207 = vpop.f32.mrb[0].mxu0
  %v4208 = vadd.f32 0.0, %v4207
  %v4209 = vpop.f32.mrb[0].mxu0
  %4210 = vmatprep.mubr.f32.mxu0 0.0
  %v4211 = vand.u32 %v3979, 4294901760
  %v4212 = vsub.f32 %v3979, %v4211
  %v4213 = vand.u32 %v4212, 4294901760
  %v4214 = vsub.f32 %v4212, %v4213
  %v4215 = vand.u32 %v4214, 4294901760
  %4216 = vmatmul.mubr.f32.gmra.mrb[0].mxu0 %v4215
  %v4217 = vpop.f32.mrb[0].mxu0
  %v4218 = vadd.f32 0.0, %v4217
  %v4219 = vpop.f32.mrb[0].mxu0
  %4220 = vdwg.mxu0
  %4221 = vmatprep.subr.mxu0 0.0
  %v4222 = vand.u32 %v35, 4294901760
  %v4223 = vsub.f32 %v35, %v4222
  %v4224 = vand.u32 %v4223, 4294901760
  %v4225 = vsub.f32 %v4223, %v4224
  %v4226 = vand.u32 %v4225, 4294901760
  %4227 = vmatpush1.msra.mxu0 %v4226
  %4228 = vmatprep.subr.mxu0 0.0
  %v4229 = vand.u32 %v36, 4294901760
  %v4230 = vsub.f32 %v36, %v4229
  %v4231 = vand.u32 %v4230, 4294901760
  %v4232 = vsub.f32 %v4230, %v4231
  %v4233 = vand.u32 %v4232, 4294901760
  %4234 = vmatpush1.msra.mxu0 %v4233
  %4235 = vmatprep.subr.mxu0 0.0
  %v4236 = vand.u32 %v37, 4294901760
  %v4237 = vsub.f32 %v37, %v4236
  %v4238 = vand.u32 %v4237, 4294901760
  %v4239 = vsub.f32 %v4237, %v4238
  %v4240 = vand.u32 %v4239, 4294901760
  %4241 = vmatpush1.msra.mxu0 %v4240
  %4242 = vmatprep.subr.mxu0 0.0
  %v4243 = vand.u32 %v38, 4294901760
  %v4244 = vsub.f32 %v38, %v4243
  %v4245 = vand.u32 %v4244, 4294901760
  %v4246 = vsub.f32 %v4244, %v4245
  %v4247 = vand.u32 %v4246, 4294901760
  %4248 = vmatpush1.msra.mxu0 %v4247
  %4249 = vmatprep.subr.mxu0 0.0
  %v4250 = vand.u32 %v39, 4294901760
  %v4251 = vsub.f32 %v39, %v4250
  %v4252 = vand.u32 %v4251, 4294901760
  %v4253 = vsub.f32 %v4251, %v4252
  %v4254 = vand.u32 %v4253, 4294901760
  %4255 = vmatpush1.msra.mxu0 %v4254
  %4256 = vmatprep.subr.mxu0 0.0
  %v4257 = vand.u32 %v40, 4294901760
  %v4258 = vsub.f32 %v40, %v4257
  %v4259 = vand.u32 %v4258, 4294901760
  %v4260 = vsub.f32 %v4258, %v4259
  %v4261 = vand.u32 %v4260, 4294901760
  %4262 = vmatpush1.msra.mxu0 %v4261
  %4263 = vmatprep.subr.mxu0 0.0
  %v4264 = vand.u32 %v41, 4294901760
  %v4265 = vsub.f32 %v41, %v4264
  %v4266 = vand.u32 %v4265, 4294901760
  %v4267 = vsub.f32 %v4265, %v4266
  %v4268 = vand.u32 %v4267, 4294901760
  %4269 = vmatpush1.msra.mxu0 %v4268
  %4270 = vmatprep.subr.mxu0 0.0
  %v4271 = vand.u32 %v42, 4294901760
  %v4272 = vsub.f32 %v42, %v4271
  %v4273 = vand.u32 %v4272, 4294901760
  %v4274 = vsub.f32 %v4272, %v4273
  %v4275 = vand.u32 %v4274, 4294901760
  %4276 = vmatpush1.msra.mxu0 %v4275
  %4277 = vmatprep.subr.mxu0 0.0
  %v4278 = vand.u32 %v43, 4294901760
  %v4279 = vsub.f32 %v43, %v4278
  %v4280 = vand.u32 %v4279, 4294901760
  %v4281 = vsub.f32 %v4279, %v4280
  %v4282 = vand.u32 %v4281, 4294901760
  %4283 = vmatpush1.msra.mxu0 %v4282
  %4284 = vmatprep.subr.mxu0 0.0
  %v4285 = vand.u32 %v44, 4294901760
  %v4286 = vsub.f32 %v44, %v4285
  %v4287 = vand.u32 %v4286, 4294901760
  %v4288 = vsub.f32 %v4286, %v4287
  %v4289 = vand.u32 %v4288, 4294901760
  %4290 = vmatpush1.msra.mxu0 %v4289
  %4291 = vmatprep.subr.mxu0 0.0
  %v4292 = vand.u32 %v45, 4294901760
  %v4293 = vsub.f32 %v45, %v4292
  %v4294 = vand.u32 %v4293, 4294901760
  %v4295 = vsub.f32 %v4293, %v4294
  %v4296 = vand.u32 %v4295, 4294901760
  %4297 = vmatpush1.msra.mxu0 %v4296
  %4298 = vmatprep.subr.mxu0 0.0
  %v4299 = vand.u32 %v46, 4294901760
  %v4300 = vsub.f32 %v46, %v4299
  %v4301 = vand.u32 %v4300, 4294901760
  %v4302 = vsub.f32 %v4300, %v4301
  %v4303 = vand.u32 %v4302, 4294901760
  %4304 = vmatpush1.msra.mxu0 %v4303
  %4305 = vmatprep.subr.mxu0 0.0
  %v4306 = vand.u32 %v47, 4294901760
  %v4307 = vsub.f32 %v47, %v4306
  %v4308 = vand.u32 %v4307, 4294901760
  %v4309 = vsub.f32 %v4307, %v4308
  %v4310 = vand.u32 %v4309, 4294901760
  %4311 = vmatpush1.msra.mxu0 %v4310
  %4312 = vmatprep.subr.mxu0 0.0
  %v4313 = vand.u32 %v48, 4294901760
  %v4314 = vsub.f32 %v48, %v4313
  %v4315 = vand.u32 %v4314, 4294901760
  %v4316 = vsub.f32 %v4314, %v4315
  %v4317 = vand.u32 %v4316, 4294901760
  %4318 = vmatpush1.msra.mxu0 %v4317
  %4319 = vmatprep.subr.mxu0 0.0
  %v4320 = vand.u32 %v49, 4294901760
  %v4321 = vsub.f32 %v49, %v4320
  %v4322 = vand.u32 %v4321, 4294901760
  %v4323 = vsub.f32 %v4321, %v4322
  %v4324 = vand.u32 %v4323, 4294901760
  %4325 = vmatpush1.msra.mxu0 %v4324
  %4326 = vmatprep.subr.mxu0 0.0
  %v4327 = vand.u32 %v50, 4294901760
  %v4328 = vsub.f32 %v50, %v4327
  %v4329 = vand.u32 %v4328, 4294901760
  %v4330 = vsub.f32 %v4328, %v4329
  %v4331 = vand.u32 %v4330, 4294901760
  %4332 = vmatpush1.msra.mxu0 %v4331
  %4333 = vmatprep.subr.mxu0 0.0
  %4334 = vmatpush1.msra.mxu0 0.0
  %4335 = vmatprep.subr.mxu0 0.0
  %4336 = vmatpush1.msra.mxu0 0.0
  %4337 = vmatprep.subr.mxu0 0.0
  %4338 = vmatpush1.msra.mxu0 0.0
  %4339 = vmatprep.subr.mxu0 0.0
  %4340 = vmatpush1.msra.mxu0 0.0
  %4341 = vmatprep.subr.mxu0 0.0
  %4342 = vmatpush1.msra.mxu0 0.0
  %4343 = vmatprep.subr.mxu0 0.0
  %4344 = vmatpush1.msra.mxu0 0.0
  %4345 = vmatprep.subr.mxu0 0.0
  %4346 = vmatpush1.msra.mxu0 0.0
  %4347 = vmatprep.subr.mxu0 0.0
  %4348 = vmatpush1.msra.mxu0 0.0
  %4349 = vmatprep.subr.mxu0 0.0
  %4350 = vmatpush1.msra.mxu0 0.0
  %4351 = vmatprep.subr.mxu0 0.0
  %4352 = vmatpush1.msra.mxu0 0.0
  %4353 = vmatprep.subr.mxu0 0.0
  %4354 = vmatpush1.msra.mxu0 0.0
  %4355 = vmatprep.subr.mxu0 0.0
  %4356 = vmatpush1.msra.mxu0 0.0
  %4357 = vmatprep.subr.mxu0 0.0
  %4358 = vmatpush1.msra.mxu0 0.0
  %4359 = vmatprep.subr.mxu0 0.0
  %4360 = vmatpush1.msra.mxu0 0.0
  %4361 = vmatprep.subr.mxu0 0.0
  %4362 = vmatpush1.msra.mxu0 0.0
  %4363 = vmatprep.subr.mxu0 0.0
  %4364 = vmatpush1.msra.mxu0 0.0
  %4365 = vmatprep.mubr.f32.mxu0 0.0
  %v4366 = vand.u32 %v3964, 4294901760
  %4367 = vmatmul.mubr.f32.gmra.mrb[0].mxu0 %v4366
  %v4368 = vpop.f32.mrb[0].mxu0
  %v4369 = vadd.f32 %v4068, %v4368
  %v4370 = vpop.f32.mrb[0].mxu0
  %4371 = vmatprep.mubr.f32.mxu0 0.0
  %v4372 = vand.u32 %v3965, 4294901760
  %4373 = vmatmul.mubr.f32.gmra.mrb[0].mxu0 %v4372
  %v4374 = vpop.f32.mrb[0].mxu0
  %v4375 = vadd.f32 %v4078, %v4374
  %v4376 = vpop.f32.mrb[0].mxu0
  %4377 = vmatprep.mubr.f32.mxu0 0.0
  %v4378 = vand.u32 %v3966, 4294901760
  %4379 = vmatmul.mubr.f32.gmra.mrb[0].mxu0 %v4378
  %v4380 = vpop.f32.mrb[0].mxu0
  %v4381 = vadd.f32 %v4088, %v4380
  %v4382 = vpop.f32.mrb[0].mxu0
  %4383 = vmatprep.mubr.f32.mxu0 0.0
  %v4384 = vand.u32 %v3967, 4294901760
  %4385 = vmatmul.mubr.f32.gmra.mrb[0].mxu0 %v4384
  %v4386 = vpop.f32.mrb[0].mxu0
  %v4387 = vadd.f32 %v4098, %v4386
  %v4388 = vpop.f32.mrb[0].mxu0
  %4389 = vmatprep.mubr.f32.mxu0 0.0
  %v4390 = vand.u32 %v3968, 4294901760
  %4391 = vmatmul.mubr.f32.gmra.mrb[0].mxu0 %v4390
  %v4392 = vpop.f32.mrb[0].mxu0
  %v4393 = vadd.f32 %v4108, %v4392
  %v4394 = vpop.f32.mrb[0].mxu0
  %4395 = vmatprep.mubr.f32.mxu0 0.0
  %v4396 = vand.u32 %v3969, 4294901760
  %4397 = vmatmul.mubr.f32.gmra.mrb[0].mxu0 %v4396
  %v4398 = vpop.f32.mrb[0].mxu0
  %v4399 = vadd.f32 %v4118, %v4398
  %v4400 = vpop.f32.mrb[0].mxu0
  %4401 = vmatprep.mubr.f32.mxu0 0.0
  %v4402 = vand.u32 %v3970, 4294901760
  %4403 = vmatmul.mubr.f32.gmra.mrb[0].mxu0 %v4402
  %v4404 = vpop.f32.mrb[0].mxu0
  %v4405 = vadd.f32 %v4128, %v4404
  %v4406 = vpop.f32.mrb[0].mxu0
  %4407 = vmatprep.mubr.f32.mxu0 0.0
  %v4408 = vand.u32 %v3971, 4294901760
  %4409 = vmatmul.mubr.f32.gmra.mrb[0].mxu0 %v4408
  %v4410 = vpop.f32.mrb[0].mxu0
  %v4411 = vadd.f32 %v4138, %v4410
  %v4412 = vpop.f32.mrb[0].mxu0
  %4413 = vmatprep.mubr.f32.mxu0 0.0
  %v4414 = vand.u32 %v3972, 4294901760
  %4415 = vmatmul.mubr.f32.gmra.mrb[0].mxu0 %v4414
  %v4416 = vpop.f32.mrb[0].mxu0
  %v4417 = vadd.f32 %v4148, %v4416
  %v4418 = vpop.f32.mrb[0].mxu0
  %4419 = vmatprep.mubr.f32.mxu0 0.0
  %v4420 = vand.u32 %v3973, 4294901760
  %4421 = vmatmul.mubr.f32.gmra.mrb[0].mxu0 %v4420
  %v4422 = vpop.f32.mrb[0].mxu0
  %v4423 = vadd.f32 %v4158, %v4422
  %v4424 = vpop.f32.mrb[0].mxu0
  %4425 = vmatprep.mubr.f32.mxu0 0.0
  %v4426 = vand.u32 %v3974, 4294901760
  %4427 = vmatmul.mubr.f32.gmra.mrb[0].mxu0 %v4426
  %v4428 = vpop.f32.mrb[0].mxu0
  %v4429 = vadd.f32 %v4168, %v4428
  %v4430 = vpop.f32.mrb[0].mxu0
  %4431 = vmatprep.mubr.f32.mxu0 0.0
  %v4432 = vand.u32 %v3975, 4294901760
  %4433 = vmatmul.mubr.f32.gmra.mrb[0].mxu0 %v4432
  %v4434 = vpop.f32.mrb[0].mxu0
  %v4435 = vadd.f32 %v4178, %v4434
  %v4436 = vpop.f32.mrb[0].mxu0
  %4437 = vmatprep.mubr.f32.mxu0 0.0
  %v4438 = vand.u32 %v3976, 4294901760
  %4439 = vmatmul.mubr.f32.gmra.mrb[0].mxu0 %v4438
  %v4440 = vpop.f32.mrb[0].mxu0
  %v4441 = vadd.f32 %v4188, %v4440
  %v4442 = vpop.f32.mrb[0].mxu0
  %4443 = vmatprep.mubr.f32.mxu0 0.0
  %v4444 = vand.u32 %v3977, 4294901760
  %4445 = vmatmul.mubr.f32.gmra.mrb[0].mxu0 %v4444
  %v4446 = vpop.f32.mrb[0].mxu0
  %v4447 = vadd.f32 %v4198, %v4446
  %v4448 = vpop.f32.mrb[0].mxu0
  %4449 = vmatprep.mubr.f32.mxu0 0.0
  %v4450 = vand.u32 %v3978, 4294901760
  %4451 = vmatmul.mubr.f32.gmra.mrb[0].mxu0 %v4450
  %v4452 = vpop.f32.mrb[0].mxu0
  %v4453 = vadd.f32 %v4208, %v4452
  %v4454 = vpop.f32.mrb[0].mxu0
  %4455 = vmatprep.mubr.f32.mxu0 0.0
  %v4456 = vand.u32 %v3979, 4294901760
  %4457 = vmatmul.mubr.f32.gmra.mrb[0].mxu0 %v4456
  %v4458 = vpop.f32.mrb[0].mxu0
  %v4459 = vadd.f32 %v4218, %v4458
  %v4460 = vpop.f32.mrb[0].mxu0
  %4461 = vdwg.mxu0
  %4462 = vmatprep.subr.mxu0 0.0
  %v4463 = vand.u32 %v35, 4294901760
  %v4464 = vsub.f32 %v35, %v4463
  %4465 = vmatpush1.msra.mxu0 %v4464
  %4466 = vmatprep.subr.mxu0 0.0
  %v4467 = vand.u32 %v36, 4294901760
  %v4468 = vsub.f32 %v36, %v4467
  %4469 = vmatpush1.msra.mxu0 %v4468
  %4470 = vmatprep.subr.mxu0 0.0
  %v4471 = vand.u32 %v37, 4294901760
  %v4472 = vsub.f32 %v37, %v4471
  %4473 = vmatpush1.msra.mxu0 %v4472
  %4474 = vmatprep.subr.mxu0 0.0
  %v4475 = vand.u32 %v38, 4294901760
  %v4476 = vsub.f32 %v38, %v4475
  %4477 = vmatpush1.msra.mxu0 %v4476
  %4478 = vmatprep.subr.mxu0 0.0
  %v4479 = vand.u32 %v39, 4294901760
  %v4480 = vsub.f32 %v39, %v4479
  %4481 = vmatpush1.msra.mxu0 %v4480
  %4482 = vmatprep.subr.mxu0 0.0
  %v4483 = vand.u32 %v40, 4294901760
  %v4484 = vsub.f32 %v40, %v4483
  %4485 = vmatpush1.msra.mxu0 %v4484
  %4486 = vmatprep.subr.mxu0 0.0
  %v4487 = vand.u32 %v41, 4294901760
  %v4488 = vsub.f32 %v41, %v4487
  %4489 = vmatpush1.msra.mxu0 %v4488
  %4490 = vmatprep.subr.mxu0 0.0
  %v4491 = vand.u32 %v42, 4294901760
  %v4492 = vsub.f32 %v42, %v4491
  %4493 = vmatpush1.msra.mxu0 %v4492
  %4494 = vmatprep.subr.mxu0 0.0
  %v4495 = vand.u32 %v43, 4294901760
  %v4496 = vsub.f32 %v43, %v4495
  %4497 = vmatpush1.msra.mxu0 %v4496
  %4498 = vmatprep.subr.mxu0 0.0
  %v4499 = vand.u32 %v44, 4294901760
  %v4500 = vsub.f32 %v44, %v4499
  %4501 = vmatpush1.msra.mxu0 %v4500
  %4502 = vmatprep.subr.mxu0 0.0
  %v4503 = vand.u32 %v45, 4294901760
  %v4504 = vsub.f32 %v45, %v4503
  %4505 = vmatpush1.msra.mxu0 %v4504
  %4506 = vmatprep.subr.mxu0 0.0
  %v4507 = vand.u32 %v46, 4294901760
  %v4508 = vsub.f32 %v46, %v4507
  %4509 = vmatpush1.msra.mxu0 %v4508
  %4510 = vmatprep.subr.mxu0 0.0
  %v4511 = vand.u32 %v47, 4294901760
  %v4512 = vsub.f32 %v47, %v4511
  %4513 = vmatpush1.msra.mxu0 %v4512
  %4514 = vmatprep.subr.mxu0 0.0
  %v4515 = vand.u32 %v48, 4294901760
  %v4516 = vsub.f32 %v48, %v4515
  %4517 = vmatpush1.msra.mxu0 %v4516
  %4518 = vmatprep.subr.mxu0 0.0
  %v4519 = vand.u32 %v49, 4294901760
  %v4520 = vsub.f32 %v49, %v4519
  %4521 = vmatpush1.msra.mxu0 %v4520
  %4522 = vmatprep.subr.mxu0 0.0
  %v4523 = vand.u32 %v50, 4294901760
  %v4524 = vsub.f32 %v50, %v4523
  %4525 = vmatpush1.msra.mxu0 %v4524
  %4526 = vmatprep.subr.mxu0 0.0
  %4527 = vmatpush1.msra.mxu0 0.0
  %4528 = vmatprep.subr.mxu0 0.0
  %4529 = vmatpush1.msra.mxu0 0.0
  %4530 = vmatprep.subr.mxu0 0.0
  %4531 = vmatpush1.msra.mxu0 0.0
  %4532 = vmatprep.subr.mxu0 0.0
  %4533 = vmatpush1.msra.mxu0 0.0
  %4534 = vmatprep.subr.mxu0 0.0
  %4535 = vmatpush1.msra.mxu0 0.0
  %4536 = vmatprep.subr.mxu0 0.0
  %4537 = vmatpush1.msra.mxu0 0.0
  %4538 = vmatprep.subr.mxu0 0.0
  %4539 = vmatpush1.msra.mxu0 0.0
  %4540 = vmatprep.subr.mxu0 0.0
  %4541 = vmatpush1.msra.mxu0 0.0
  %4542 = vmatprep.subr.mxu0 0.0
  %4543 = vmatpush1.msra.mxu0 0.0
  %4544 = vmatprep.subr.mxu0 0.0
  %4545 = vmatpush1.msra.mxu0 0.0
  %4546 = vmatprep.subr.mxu0 0.0
  %4547 = vmatpush1.msra.mxu0 0.0
  %4548 = vmatprep.subr.mxu0 0.0
  %4549 = vmatpush1.msra.mxu0 0.0
  %4550 = vmatprep.subr.mxu0 0.0
  %4551 = vmatpush1.msra.mxu0 0.0
  %4552 = vmatprep.subr.mxu0 0.0
  %4553 = vmatpush1.msra.mxu0 0.0
  %4554 = vmatprep.subr.mxu0 0.0
  %4555 = vmatpush1.msra.mxu0 0.0
  %4556 = vmatprep.subr.mxu0 0.0
  %4557 = vmatpush1.msra.mxu0 0.0
  %4558 = vmatprep.mubr.f32.mxu0 0.0
  %v4559 = vand.u32 %v3964, 4294901760
  %v4560 = vsub.f32 %v3964, %v4559
  %4561 = vmatmul.mubr.f32.gmra.mrb[0].mxu0 %v4560
  %v4562 = vpop.f32.mrb[0].mxu0
  %v4563 = vadd.f32 %v4369, %v4562
  %v4564 = vpop.f32.mrb[0].mxu0
  %4565 = vmatprep.mubr.f32.mxu0 0.0
  %v4566 = vand.u32 %v3965, 4294901760
  %v4567 = vsub.f32 %v3965, %v4566
  %4568 = vmatmul.mubr.f32.gmra.mrb[0].mxu0 %v4567
  %v4569 = vpop.f32.mrb[0].mxu0
  %v4570 = vadd.f32 %v4375, %v4569
  %v4571 = vpop.f32.mrb[0].mxu0
  %4572 = vmatprep.mubr.f32.mxu0 0.0
  %v4573 = vand.u32 %v3966, 4294901760
  %v4574 = vsub.f32 %v3966, %v4573
  %4575 = vmatmul.mubr.f32.gmra.mrb[0].mxu0 %v4574
  %v4576 = vpop.f32.mrb[0].mxu0
  %v4577 = vadd.f32 %v4381, %v4576
  %v4578 = vpop.f32.mrb[0].mxu0
  %4579 = vmatprep.mubr.f32.mxu0 0.0
  %v4580 = vand.u32 %v3967, 4294901760
  %v4581 = vsub.f32 %v3967, %v4580
  %4582 = vmatmul.mubr.f32.gmra.mrb[0].mxu0 %v4581
  %v4583 = vpop.f32.mrb[0].mxu0
  %v4584 = vadd.f32 %v4387, %v4583
  %v4585 = vpop.f32.mrb[0].mxu0
  %4586 = vmatprep.mubr.f32.mxu0 0.0
  %v4587 = vand.u32 %v3968, 4294901760
  %v4588 = vsub.f32 %v3968, %v4587
  %4589 = vmatmul.mubr.f32.gmra.mrb[0].mxu0 %v4588
  %v4590 = vpop.f32.mrb[0].mxu0
  %v4591 = vadd.f32 %v4393, %v4590
  %v4592 = vpop.f32.mrb[0].mxu0
  %4593 = vmatprep.mubr.f32.mxu0 0.0
  %v4594 = vand.u32 %v3969, 4294901760
  %v4595 = vsub.f32 %v3969, %v4594
  %4596 = vmatmul.mubr.f32.gmra.mrb[0].mxu0 %v4595
  %v4597 = vpop.f32.mrb[0].mxu0
  %v4598 = vadd.f32 %v4399, %v4597
  %v4599 = vpop.f32.mrb[0].mxu0
  %4600 = vmatprep.mubr.f32.mxu0 0.0
  %v4601 = vand.u32 %v3970, 4294901760
  %v4602 = vsub.f32 %v3970, %v4601
  %4603 = vmatmul.mubr.f32.gmra.mrb[0].mxu0 %v4602
  %v4604 = vpop.f32.mrb[0].mxu0
  %v4605 = vadd.f32 %v4405, %v4604
  %v4606 = vpop.f32.mrb[0].mxu0
  %4607 = vmatprep.mubr.f32.mxu0 0.0
  %v4608 = vand.u32 %v3971, 4294901760
  %v4609 = vsub.f32 %v3971, %v4608
  %4610 = vmatmul.mubr.f32.gmra.mrb[0].mxu0 %v4609
  %v4611 = vpop.f32.mrb[0].mxu0
  %v4612 = vadd.f32 %v4411, %v4611
  %v4613 = vpop.f32.mrb[0].mxu0
  %4614 = vmatprep.mubr.f32.mxu0 0.0
  %v4615 = vand.u32 %v3972, 4294901760
  %v4616 = vsub.f32 %v3972, %v4615
  %4617 = vmatmul.mubr.f32.gmra.mrb[0].mxu0 %v4616
  %v4618 = vpop.f32.mrb[0].mxu0
  %v4619 = vadd.f32 %v4417, %v4618
  %v4620 = vpop.f32.mrb[0].mxu0
  %4621 = vmatprep.mubr.f32.mxu0 0.0
  %v4622 = vand.u32 %v3973, 4294901760
  %v4623 = vsub.f32 %v3973, %v4622
  %4624 = vmatmul.mubr.f32.gmra.mrb[0].mxu0 %v4623
  %v4625 = vpop.f32.mrb[0].mxu0
  %v4626 = vadd.f32 %v4423, %v4625
  %v4627 = vpop.f32.mrb[0].mxu0
  %4628 = vmatprep.mubr.f32.mxu0 0.0
  %v4629 = vand.u32 %v3974, 4294901760
  %v4630 = vsub.f32 %v3974, %v4629
  %4631 = vmatmul.mubr.f32.gmra.mrb[0].mxu0 %v4630
  %v4632 = vpop.f32.mrb[0].mxu0
  %v4633 = vadd.f32 %v4429, %v4632
  %v4634 = vpop.f32.mrb[0].mxu0
  %4635 = vmatprep.mubr.f32.mxu0 0.0
  %v4636 = vand.u32 %v3975, 4294901760
  %v4637 = vsub.f32 %v3975, %v4636
  %4638 = vmatmul.mubr.f32.gmra.mrb[0].mxu0 %v4637
  %v4639 = vpop.f32.mrb[0].mxu0
  %v4640 = vadd.f32 %v4435, %v4639
  %v4641 = vpop.f32.mrb[0].mxu0
  %4642 = vmatprep.mubr.f32.mxu0 0.0
  %v4643 = vand.u32 %v3976, 4294901760
  %v4644 = vsub.f32 %v3976, %v4643
  %4645 = vmatmul.mubr.f32.gmra.mrb[0].mxu0 %v4644
  %v4646 = vpop.f32.mrb[0].mxu0
  %v4647 = vadd.f32 %v4441, %v4646
  %v4648 = vpop.f32.mrb[0].mxu0
  %4649 = vmatprep.mubr.f32.mxu0 0.0
  %v4650 = vand.u32 %v3977, 4294901760
  %v4651 = vsub.f32 %v3977, %v4650
  %4652 = vmatmul.mubr.f32.gmra.mrb[0].mxu0 %v4651
  %v4653 = vpop.f32.mrb[0].mxu0
  %v4654 = vadd.f32 %v4447, %v4653
  %v4655 = vpop.f32.mrb[0].mxu0
  %4656 = vmatprep.mubr.f32.mxu0 0.0
  %v4657 = vand.u32 %v3978, 4294901760
  %v4658 = vsub.f32 %v3978, %v4657
  %4659 = vmatmul.mubr.f32.gmra.mrb[0].mxu0 %v4658
  %v4660 = vpop.f32.mrb[0].mxu0
  %v4661 = vadd.f32 %v4453, %v4660
  %v4662 = vpop.f32.mrb[0].mxu0
  %4663 = vmatprep.mubr.f32.mxu0 0.0
  %v4664 = vand.u32 %v3979, 4294901760
  %v4665 = vsub.f32 %v3979, %v4664
  %4666 = vmatmul.mubr.f32.gmra.mrb[0].mxu0 %v4665
  %v4667 = vpop.f32.mrb[0].mxu0
  %v4668 = vadd.f32 %v4459, %v4667
  %v4669 = vpop.f32.mrb[0].mxu0
  %4670 = vdwg.mxu0
  %4671 = vmatprep.subr.mxu0 0.0
  %v4672 = vand.u32 %v35, 4294901760
  %4673 = vmatpush1.msra.mxu0 %v4672
  %4674 = vmatprep.subr.mxu0 0.0
  %v4675 = vand.u32 %v36, 4294901760
  %4676 = vmatpush1.msra.mxu0 %v4675
  %4677 = vmatprep.subr.mxu0 0.0
  %v4678 = vand.u32 %v37, 4294901760
  %4679 = vmatpush1.msra.mxu0 %v4678
  %4680 = vmatprep.subr.mxu0 0.0
  %v4681 = vand.u32 %v38, 4294901760
  %4682 = vmatpush1.msra.mxu0 %v4681
  %4683 = vmatprep.subr.mxu0 0.0
  %v4684 = vand.u32 %v39, 4294901760
  %4685 = vmatpush1.msra.mxu0 %v4684
  %4686 = vmatprep.subr.mxu0 0.0
  %v4687 = vand.u32 %v40, 4294901760
  %4688 = vmatpush1.msra.mxu0 %v4687
  %4689 = vmatprep.subr.mxu0 0.0
  %v4690 = vand.u32 %v41, 4294901760
  %4691 = vmatpush1.msra.mxu0 %v4690
  %4692 = vmatprep.subr.mxu0 0.0
  %v4693 = vand.u32 %v42, 4294901760
  %4694 = vmatpush1.msra.mxu0 %v4693
  %4695 = vmatprep.subr.mxu0 0.0
  %v4696 = vand.u32 %v43, 4294901760
  %4697 = vmatpush1.msra.mxu0 %v4696
  %4698 = vmatprep.subr.mxu0 0.0
  %v4699 = vand.u32 %v44, 4294901760
  %4700 = vmatpush1.msra.mxu0 %v4699
  %4701 = vmatprep.subr.mxu0 0.0
  %v4702 = vand.u32 %v45, 4294901760
  %4703 = vmatpush1.msra.mxu0 %v4702
  %4704 = vmatprep.subr.mxu0 0.0
  %v4705 = vand.u32 %v46, 4294901760
  %4706 = vmatpush1.msra.mxu0 %v4705
  %4707 = vmatprep.subr.mxu0 0.0
  %v4708 = vand.u32 %v47, 4294901760
  %4709 = vmatpush1.msra.mxu0 %v4708
  %4710 = vmatprep.subr.mxu0 0.0
  %v4711 = vand.u32 %v48, 4294901760
  %4712 = vmatpush1.msra.mxu0 %v4711
  %4713 = vmatprep.subr.mxu0 0.0
  %v4714 = vand.u32 %v49, 4294901760
  %4715 = vmatpush1.msra.mxu0 %v4714
  %4716 = vmatprep.subr.mxu0 0.0
  %v4717 = vand.u32 %v50, 4294901760
  %4718 = vmatpush1.msra.mxu0 %v4717
  %4719 = vmatprep.subr.mxu0 0.0
  %4720 = vmatpush1.msra.mxu0 0.0
  %4721 = vmatprep.subr.mxu0 0.0
  %4722 = vmatpush1.msra.mxu0 0.0
  %4723 = vmatprep.subr.mxu0 0.0
  %4724 = vmatpush1.msra.mxu0 0.0
  %4725 = vmatprep.subr.mxu0 0.0
  %4726 = vmatpush1.msra.mxu0 0.0
  %4727 = vmatprep.subr.mxu0 0.0
  %4728 = vmatpush1.msra.mxu0 0.0
  %4729 = vmatprep.subr.mxu0 0.0
  %4730 = vmatpush1.msra.mxu0 0.0
  %4731 = vmatprep.subr.mxu0 0.0
  %4732 = vmatpush1.msra.mxu0 0.0
  %4733 = vmatprep.subr.mxu0 0.0
  %4734 = vmatpush1.msra.mxu0 0.0
  %4735 = vmatprep.subr.mxu0 0.0
  %4736 = vmatpush1.msra.mxu0 0.0
  %4737 = vmatprep.subr.mxu0 0.0
  %4738 = vmatpush1.msra.mxu0 0.0
  %4739 = vmatprep.subr.mxu0 0.0
  %4740 = vmatpush1.msra.mxu0 0.0
  %4741 = vmatprep.subr.mxu0 0.0
  %4742 = vmatpush1.msra.mxu0 0.0
  %4743 = vmatprep.subr.mxu0 0.0
  %4744 = vmatpush1.msra.mxu0 0.0
  %4745 = vmatprep.subr.mxu0 0.0
  %4746 = vmatpush1.msra.mxu0 0.0
  %4747 = vmatprep.subr.mxu0 0.0
  %4748 = vmatpush1.msra.mxu0 0.0
  %4749 = vmatprep.subr.mxu0 0.0
  %4750 = vmatpush1.msra.mxu0 0.0
  %4751 = vmatprep.mubr.f32.mxu0 0.0
  %v4752 = vand.u32 %v3964, 4294901760
  %v4753 = vsub.f32 %v3964, %v4752
  %v4754 = vand.u32 %v4753, 4294901760
  %4755 = vmatmul.mubr.f32.gmra.mrb[0].mxu0 %v4754
  %v4756 = vpop.f32.mrb[0].mxu0
  %v4757 = vadd.f32 %v4563, %v4756
  %v4758 = vpop.f32.mrb[0].mxu0
  %4759 = vmatprep.mubr.f32.mxu0 0.0
  %v4760 = vand.u32 %v3965, 4294901760
  %v4761 = vsub.f32 %v3965, %v4760
  %v4762 = vand.u32 %v4761, 4294901760
  %4763 = vmatmul.mubr.f32.gmra.mrb[0].mxu0 %v4762
  %v4764 = vpop.f32.mrb[0].mxu0
  %v4765 = vadd.f32 %v4570, %v4764
  %v4766 = vpop.f32.mrb[0].mxu0
  %4767 = vmatprep.mubr.f32.mxu0 0.0
  %v4768 = vand.u32 %v3966, 4294901760
  %v4769 = vsub.f32 %v3966, %v4768
  %v4770 = vand.u32 %v4769, 4294901760
  %4771 = vmatmul.mubr.f32.gmra.mrb[0].mxu0 %v4770
  %v4772 = vpop.f32.mrb[0].mxu0
  %v4773 = vadd.f32 %v4577, %v4772
  %v4774 = vpop.f32.mrb[0].mxu0
  %4775 = vmatprep.mubr.f32.mxu0 0.0
  %v4776 = vand.u32 %v3967, 4294901760
  %v4777 = vsub.f32 %v3967, %v4776
  %v4778 = vand.u32 %v4777, 4294901760
  %4779 = vmatmul.mubr.f32.gmra.mrb[0].mxu0 %v4778
  %v4780 = vpop.f32.mrb[0].mxu0
  %v4781 = vadd.f32 %v4584, %v4780
  %v4782 = vpop.f32.mrb[0].mxu0
  %4783 = vmatprep.mubr.f32.mxu0 0.0
  %v4784 = vand.u32 %v3968, 4294901760
  %v4785 = vsub.f32 %v3968, %v4784
  %v4786 = vand.u32 %v4785, 4294901760
  %4787 = vmatmul.mubr.f32.gmra.mrb[0].mxu0 %v4786
  %v4788 = vpop.f32.mrb[0].mxu0
  %v4789 = vadd.f32 %v4591, %v4788
  %v4790 = vpop.f32.mrb[0].mxu0
  %4791 = vmatprep.mubr.f32.mxu0 0.0
  %v4792 = vand.u32 %v3969, 4294901760
  %v4793 = vsub.f32 %v3969, %v4792
  %v4794 = vand.u32 %v4793, 4294901760
  %4795 = vmatmul.mubr.f32.gmra.mrb[0].mxu0 %v4794
  %v4796 = vpop.f32.mrb[0].mxu0
  %v4797 = vadd.f32 %v4598, %v4796
  %v4798 = vpop.f32.mrb[0].mxu0
  %4799 = vmatprep.mubr.f32.mxu0 0.0
  %v4800 = vand.u32 %v3970, 4294901760
  %v4801 = vsub.f32 %v3970, %v4800
  %v4802 = vand.u32 %v4801, 4294901760
  %4803 = vmatmul.mubr.f32.gmra.mrb[0].mxu0 %v4802
  %v4804 = vpop.f32.mrb[0].mxu0
  %v4805 = vadd.f32 %v4605, %v4804
  %v4806 = vpop.f32.mrb[0].mxu0
  %4807 = vmatprep.mubr.f32.mxu0 0.0
  %v4808 = vand.u32 %v3971, 4294901760
  %v4809 = vsub.f32 %v3971, %v4808
  %v4810 = vand.u32 %v4809, 4294901760
  %4811 = vmatmul.mubr.f32.gmra.mrb[0].mxu0 %v4810
  %v4812 = vpop.f32.mrb[0].mxu0
  %v4813 = vadd.f32 %v4612, %v4812
  %v4814 = vpop.f32.mrb[0].mxu0
  %4815 = vmatprep.mubr.f32.mxu0 0.0
  %v4816 = vand.u32 %v3972, 4294901760
  %v4817 = vsub.f32 %v3972, %v4816
  %v4818 = vand.u32 %v4817, 4294901760
  %4819 = vmatmul.mubr.f32.gmra.mrb[0].mxu0 %v4818
  %v4820 = vpop.f32.mrb[0].mxu0
  %v4821 = vadd.f32 %v4619, %v4820
  %v4822 = vpop.f32.mrb[0].mxu0
  %4823 = vmatprep.mubr.f32.mxu0 0.0
  %v4824 = vand.u32 %v3973, 4294901760
  %v4825 = vsub.f32 %v3973, %v4824
  %v4826 = vand.u32 %v4825, 4294901760
  %4827 = vmatmul.mubr.f32.gmra.mrb[0].mxu0 %v4826
  %v4828 = vpop.f32.mrb[0].mxu0
  %v4829 = vadd.f32 %v4626, %v4828
  %v4830 = vpop.f32.mrb[0].mxu0
  %4831 = vmatprep.mubr.f32.mxu0 0.0
  %v4832 = vand.u32 %v3974, 4294901760
  %v4833 = vsub.f32 %v3974, %v4832
  %v4834 = vand.u32 %v4833, 4294901760
  %4835 = vmatmul.mubr.f32.gmra.mrb[0].mxu0 %v4834
  %v4836 = vpop.f32.mrb[0].mxu0
  %v4837 = vadd.f32 %v4633, %v4836
  %v4838 = vpop.f32.mrb[0].mxu0
  %4839 = vmatprep.mubr.f32.mxu0 0.0
  %v4840 = vand.u32 %v3975, 4294901760
  %v4841 = vsub.f32 %v3975, %v4840
  %v4842 = vand.u32 %v4841, 4294901760
  %4843 = vmatmul.mubr.f32.gmra.mrb[0].mxu0 %v4842
  %v4844 = vpop.f32.mrb[0].mxu0
  %v4845 = vadd.f32 %v4640, %v4844
  %v4846 = vpop.f32.mrb[0].mxu0
  %4847 = vmatprep.mubr.f32.mxu0 0.0
  %v4848 = vand.u32 %v3976, 4294901760
  %v4849 = vsub.f32 %v3976, %v4848
  %v4850 = vand.u32 %v4849, 4294901760
  %4851 = vmatmul.mubr.f32.gmra.mrb[0].mxu0 %v4850
  %v4852 = vpop.f32.mrb[0].mxu0
  %v4853 = vadd.f32 %v4647, %v4852
  %v4854 = vpop.f32.mrb[0].mxu0
  %4855 = vmatprep.mubr.f32.mxu0 0.0
  %v4856 = vand.u32 %v3977, 4294901760
  %v4857 = vsub.f32 %v3977, %v4856
  %v4858 = vand.u32 %v4857, 4294901760
  %4859 = vmatmul.mubr.f32.gmra.mrb[0].mxu0 %v4858
  %v4860 = vpop.f32.mrb[0].mxu0
  %v4861 = vadd.f32 %v4654, %v4860
  %v4862 = vpop.f32.mrb[0].mxu0
  %4863 = vmatprep.mubr.f32.mxu0 0.0
  %v4864 = vand.u32 %v3978, 4294901760
  %v4865 = vsub.f32 %v3978, %v4864
  %v4866 = vand.u32 %v4865, 4294901760
  %4867 = vmatmul.mubr.f32.gmra.mrb[0].mxu0 %v4866
  %v4868 = vpop.f32.mrb[0].mxu0
  %v4869 = vadd.f32 %v4661, %v4868
  %v4870 = vpop.f32.mrb[0].mxu0
  %4871 = vmatprep.mubr.f32.mxu0 0.0
  %v4872 = vand.u32 %v3979, 4294901760
  %v4873 = vsub.f32 %v3979, %v4872
  %v4874 = vand.u32 %v4873, 4294901760
  %4875 = vmatmul.mubr.f32.gmra.mrb[0].mxu0 %v4874
  %v4876 = vpop.f32.mrb[0].mxu0
  %v4877 = vadd.f32 %v4668, %v4876
  %v4878 = vpop.f32.mrb[0].mxu0
  %4879 = vdwg.mxu0
  %4880 = vmatprep.subr.mxu0 0.0
  %v4881 = vand.u32 %v35, 4294901760
  %v4882 = vsub.f32 %v35, %v4881
  %v4883 = vand.u32 %v4882, 4294901760
  %4884 = vmatpush1.msra.mxu0 %v4883
  %4885 = vmatprep.subr.mxu0 0.0
  %v4886 = vand.u32 %v36, 4294901760
  %v4887 = vsub.f32 %v36, %v4886
  %v4888 = vand.u32 %v4887, 4294901760
  %4889 = vmatpush1.msra.mxu0 %v4888
  %4890 = vmatprep.subr.mxu0 0.0
  %v4891 = vand.u32 %v37, 4294901760
  %v4892 = vsub.f32 %v37, %v4891
  %v4893 = vand.u32 %v4892, 4294901760
  %4894 = vmatpush1.msra.mxu0 %v4893
  %4895 = vmatprep.subr.mxu0 0.0
  %v4896 = vand.u32 %v38, 4294901760
  %v4897 = vsub.f32 %v38, %v4896
  %v4898 = vand.u32 %v4897, 4294901760
  %4899 = vmatpush1.msra.mxu0 %v4898
  %4900 = vmatprep.subr.mxu0 0.0
  %v4901 = vand.u32 %v39, 4294901760
  %v4902 = vsub.f32 %v39, %v4901
  %v4903 = vand.u32 %v4902, 4294901760
  %4904 = vmatpush1.msra.mxu0 %v4903
  %4905 = vmatprep.subr.mxu0 0.0
  %v4906 = vand.u32 %v40, 4294901760
  %v4907 = vsub.f32 %v40, %v4906
  %v4908 = vand.u32 %v4907, 4294901760
  %4909 = vmatpush1.msra.mxu0 %v4908
  %4910 = vmatprep.subr.mxu0 0.0
  %v4911 = vand.u32 %v41, 4294901760
  %v4912 = vsub.f32 %v41, %v4911
  %v4913 = vand.u32 %v4912, 4294901760
  %4914 = vmatpush1.msra.mxu0 %v4913
  %4915 = vmatprep.subr.mxu0 0.0
  %v4916 = vand.u32 %v42, 4294901760
  %v4917 = vsub.f32 %v42, %v4916
  %v4918 = vand.u32 %v4917, 4294901760
  %4919 = vmatpush1.msra.mxu0 %v4918
  %4920 = vmatprep.subr.mxu0 0.0
  %v4921 = vand.u32 %v43, 4294901760
  %v4922 = vsub.f32 %v43, %v4921
  %v4923 = vand.u32 %v4922, 4294901760
  %4924 = vmatpush1.msra.mxu0 %v4923
  %4925 = vmatprep.subr.mxu0 0.0
  %v4926 = vand.u32 %v44, 4294901760
  %v4927 = vsub.f32 %v44, %v4926
  %v4928 = vand.u32 %v4927, 4294901760
  %4929 = vmatpush1.msra.mxu0 %v4928
  %4930 = vmatprep.subr.mxu0 0.0
  %v4931 = vand.u32 %v45, 4294901760
  %v4932 = vsub.f32 %v45, %v4931
  %v4933 = vand.u32 %v4932, 4294901760
  %4934 = vmatpush1.msra.mxu0 %v4933
  %4935 = vmatprep.subr.mxu0 0.0
  %v4936 = vand.u32 %v46, 4294901760
  %v4937 = vsub.f32 %v46, %v4936
  %v4938 = vand.u32 %v4937, 4294901760
  %4939 = vmatpush1.msra.mxu0 %v4938
  %4940 = vmatprep.subr.mxu0 0.0
  %v4941 = vand.u32 %v47, 4294901760
  %v4942 = vsub.f32 %v47, %v4941
  %v4943 = vand.u32 %v4942, 4294901760
  %4944 = vmatpush1.msra.mxu0 %v4943
  %4945 = vmatprep.subr.mxu0 0.0
  %v4946 = vand.u32 %v48, 4294901760
  %v4947 = vsub.f32 %v48, %v4946
  %v4948 = vand.u32 %v4947, 4294901760
  %4949 = vmatpush1.msra.mxu0 %v4948
  %4950 = vmatprep.subr.mxu0 0.0
  %v4951 = vand.u32 %v49, 4294901760
  %v4952 = vsub.f32 %v49, %v4951
  %v4953 = vand.u32 %v4952, 4294901760
  %4954 = vmatpush1.msra.mxu0 %v4953
  %4955 = vmatprep.subr.mxu0 0.0
  %v4956 = vand.u32 %v50, 4294901760
  %v4957 = vsub.f32 %v50, %v4956
  %v4958 = vand.u32 %v4957, 4294901760
  %4959 = vmatpush1.msra.mxu0 %v4958
  %4960 = vmatprep.subr.mxu0 0.0
  %4961 = vmatpush1.msra.mxu0 0.0
  %4962 = vmatprep.subr.mxu0 0.0
  %4963 = vmatpush1.msra.mxu0 0.0
  %4964 = vmatprep.subr.mxu0 0.0
  %4965 = vmatpush1.msra.mxu0 0.0
  %4966 = vmatprep.subr.mxu0 0.0
  %4967 = vmatpush1.msra.mxu0 0.0
  %4968 = vmatprep.subr.mxu0 0.0
  %4969 = vmatpush1.msra.mxu0 0.0
  %4970 = vmatprep.subr.mxu0 0.0
  %4971 = vmatpush1.msra.mxu0 0.0
  %4972 = vmatprep.subr.mxu0 0.0
  %4973 = vmatpush1.msra.mxu0 0.0
  %4974 = vmatprep.subr.mxu0 0.0
  %4975 = vmatpush1.msra.mxu0 0.0
  %4976 = vmatprep.subr.mxu0 0.0
  %4977 = vmatpush1.msra.mxu0 0.0
  %4978 = vmatprep.subr.mxu0 0.0
  %4979 = vmatpush1.msra.mxu0 0.0
  %4980 = vmatprep.subr.mxu0 0.0
  %4981 = vmatpush1.msra.mxu0 0.0
  %4982 = vmatprep.subr.mxu0 0.0
  %4983 = vmatpush1.msra.mxu0 0.0
  %4984 = vmatprep.subr.mxu0 0.0
  %4985 = vmatpush1.msra.mxu0 0.0
  %4986 = vmatprep.subr.mxu0 0.0
  %4987 = vmatpush1.msra.mxu0 0.0
  %4988 = vmatprep.subr.mxu0 0.0
  %4989 = vmatpush1.msra.mxu0 0.0
  %4990 = vmatprep.subr.mxu0 0.0
  %4991 = vmatpush1.msra.mxu0 0.0
  %4992 = vmatprep.mubr.f32.mxu0 0.0
  %v4993 = vand.u32 %v3964, 4294901760
  %4994 = vmatmul.mubr.f32.gmra.mrb[0].mxu0 %v4993
  %v4995 = vpop.f32.mrb[0].mxu0
  %v4996 = vadd.f32 %v4757, %v4995
  %v4997 = vpop.f32.mrb[0].mxu0
  %4998 = vmatprep.mubr.f32.mxu0 0.0
  %v4999 = vand.u32 %v3965, 4294901760
  %5000 = vmatmul.mubr.f32.gmra.mrb[0].mxu0 %v4999
  %v5001 = vpop.f32.mrb[0].mxu0
  %v5002 = vadd.f32 %v4765, %v5001
  %v5003 = vpop.f32.mrb[0].mxu0
  %5004 = vmatprep.mubr.f32.mxu0 0.0
  %v5005 = vand.u32 %v3966, 4294901760
  %5006 = vmatmul.mubr.f32.gmra.mrb[0].mxu0 %v5005
  %v5007 = vpop.f32.mrb[0].mxu0
  %v5008 = vadd.f32 %v4773, %v5007
  %v5009 = vpop.f32.mrb[0].mxu0
  %5010 = vmatprep.mubr.f32.mxu0 0.0
  %v5011 = vand.u32 %v3967, 4294901760
  %5012 = vmatmul.mubr.f32.gmra.mrb[0].mxu0 %v5011
  %v5013 = vpop.f32.mrb[0].mxu0
  %v5014 = vadd.f32 %v4781, %v5013
  %v5015 = vpop.f32.mrb[0].mxu0
  %5016 = vmatprep.mubr.f32.mxu0 0.0
  %v5017 = vand.u32 %v3968, 4294901760
  %5018 = vmatmul.mubr.f32.gmra.mrb[0].mxu0 %v5017
  %v5019 = vpop.f32.mrb[0].mxu0
  %v5020 = vadd.f32 %v4789, %v5019
  %v5021 = vpop.f32.mrb[0].mxu0
  %5022 = vmatprep.mubr.f32.mxu0 0.0
  %v5023 = vand.u32 %v3969, 4294901760
  %5024 = vmatmul.mubr.f32.gmra.mrb[0].mxu0 %v5023
  %v5025 = vpop.f32.mrb[0].mxu0
  %v5026 = vadd.f32 %v4797, %v5025
  %v5027 = vpop.f32.mrb[0].mxu0
  %5028 = vmatprep.mubr.f32.mxu0 0.0
  %v5029 = vand.u32 %v3970, 4294901760
  %5030 = vmatmul.mubr.f32.gmra.mrb[0].mxu0 %v5029
  %v5031 = vpop.f32.mrb[0].mxu0
  %v5032 = vadd.f32 %v4805, %v5031
  %v5033 = vpop.f32.mrb[0].mxu0
  %5034 = vmatprep.mubr.f32.mxu0 0.0
  %v5035 = vand.u32 %v3971, 4294901760
  %5036 = vmatmul.mubr.f32.gmra.mrb[0].mxu0 %v5035
  %v5037 = vpop.f32.mrb[0].mxu0
  %v5038 = vadd.f32 %v4813, %v5037
  %v5039 = vpop.f32.mrb[0].mxu0
  %5040 = vmatprep.mubr.f32.mxu0 0.0
  %v5041 = vand.u32 %v3972, 4294901760
  %5042 = vmatmul.mubr.f32.gmra.mrb[0].mxu0 %v5041
  %v5043 = vpop.f32.mrb[0].mxu0
  %v5044 = vadd.f32 %v4821, %v5043
  %v5045 = vpop.f32.mrb[0].mxu0
  %5046 = vmatprep.mubr.f32.mxu0 0.0
  %v5047 = vand.u32 %v3973, 4294901760
  %5048 = vmatmul.mubr.f32.gmra.mrb[0].mxu0 %v5047
  %v5049 = vpop.f32.mrb[0].mxu0
  %v5050 = vadd.f32 %v4829, %v5049
  %v5051 = vpop.f32.mrb[0].mxu0
  %5052 = vmatprep.mubr.f32.mxu0 0.0
  %v5053 = vand.u32 %v3974, 4294901760
  %5054 = vmatmul.mubr.f32.gmra.mrb[0].mxu0 %v5053
  %v5055 = vpop.f32.mrb[0].mxu0
  %v5056 = vadd.f32 %v4837, %v5055
  %v5057 = vpop.f32.mrb[0].mxu0
  %5058 = vmatprep.mubr.f32.mxu0 0.0
  %v5059 = vand.u32 %v3975, 4294901760
  %5060 = vmatmul.mubr.f32.gmra.mrb[0].mxu0 %v5059
  %v5061 = vpop.f32.mrb[0].mxu0
  %v5062 = vadd.f32 %v4845, %v5061
  %v5063 = vpop.f32.mrb[0].mxu0
  %5064 = vmatprep.mubr.f32.mxu0 0.0
  %v5065 = vand.u32 %v3976, 4294901760
  %5066 = vmatmul.mubr.f32.gmra.mrb[0].mxu0 %v5065
  %v5067 = vpop.f32.mrb[0].mxu0
  %v5068 = vadd.f32 %v4853, %v5067
  %v5069 = vpop.f32.mrb[0].mxu0
  %5070 = vmatprep.mubr.f32.mxu0 0.0
  %v5071 = vand.u32 %v3977, 4294901760
  %5072 = vmatmul.mubr.f32.gmra.mrb[0].mxu0 %v5071
  %v5073 = vpop.f32.mrb[0].mxu0
  %v5074 = vadd.f32 %v4861, %v5073
  %v5075 = vpop.f32.mrb[0].mxu0
  %5076 = vmatprep.mubr.f32.mxu0 0.0
  %v5077 = vand.u32 %v3978, 4294901760
  %5078 = vmatmul.mubr.f32.gmra.mrb[0].mxu0 %v5077
  %v5079 = vpop.f32.mrb[0].mxu0
  %v5080 = vadd.f32 %v4869, %v5079
  %v5081 = vpop.f32.mrb[0].mxu0
  %5082 = vmatprep.mubr.f32.mxu0 0.0
  %v5083 = vand.u32 %v3979, 4294901760
  %5084 = vmatmul.mubr.f32.gmra.mrb[0].mxu0 %v5083
  %v5085 = vpop.f32.mrb[0].mxu0
  %v5086 = vadd.f32 %v4877, %v5085
  %v5087 = vpop.f32.mrb[0].mxu0
  %5088 = vdwg.mxu0
  %5089 = vmatprep.subr.mxu0 0.0
  %v5090 = vand.u32 %v35, 4294901760
  %5091 = vmatpush1.msra.mxu0 %v5090
  %5092 = vmatprep.subr.mxu0 0.0
  %v5093 = vand.u32 %v36, 4294901760
  %5094 = vmatpush1.msra.mxu0 %v5093
  %5095 = vmatprep.subr.mxu0 0.0
  %v5096 = vand.u32 %v37, 4294901760
  %5097 = vmatpush1.msra.mxu0 %v5096
  %5098 = vmatprep.subr.mxu0 0.0
  %v5099 = vand.u32 %v38, 4294901760
  %5100 = vmatpush1.msra.mxu0 %v5099
  %5101 = vmatprep.subr.mxu0 0.0
  %v5102 = vand.u32 %v39, 4294901760
  %5103 = vmatpush1.msra.mxu0 %v5102
  %5104 = vmatprep.subr.mxu0 0.0
  %v5105 = vand.u32 %v40, 4294901760
  %5106 = vmatpush1.msra.mxu0 %v5105
  %5107 = vmatprep.subr.mxu0 0.0
  %v5108 = vand.u32 %v41, 4294901760
  %5109 = vmatpush1.msra.mxu0 %v5108
  %5110 = vmatprep.subr.mxu0 0.0
  %v5111 = vand.u32 %v42, 4294901760
  %5112 = vmatpush1.msra.mxu0 %v5111
  %5113 = vmatprep.subr.mxu0 0.0
  %v5114 = vand.u32 %v43, 4294901760
  %5115 = vmatpush1.msra.mxu0 %v5114
  %5116 = vmatprep.subr.mxu0 0.0
  %v5117 = vand.u32 %v44, 4294901760
  %5118 = vmatpush1.msra.mxu0 %v5117
  %5119 = vmatprep.subr.mxu0 0.0
  %v5120 = vand.u32 %v45, 4294901760
  %5121 = vmatpush1.msra.mxu0 %v5120
  %5122 = vmatprep.subr.mxu0 0.0
  %v5123 = vand.u32 %v46, 4294901760
  %5124 = vmatpush1.msra.mxu0 %v5123
  %5125 = vmatprep.subr.mxu0 0.0
  %v5126 = vand.u32 %v47, 4294901760
  %5127 = vmatpush1.msra.mxu0 %v5126
  %5128 = vmatprep.subr.mxu0 0.0
  %v5129 = vand.u32 %v48, 4294901760
  %5130 = vmatpush1.msra.mxu0 %v5129
  %5131 = vmatprep.subr.mxu0 0.0
  %v5132 = vand.u32 %v49, 4294901760
  %5133 = vmatpush1.msra.mxu0 %v5132
  %5134 = vmatprep.subr.mxu0 0.0
  %v5135 = vand.u32 %v50, 4294901760
  %5136 = vmatpush1.msra.mxu0 %v5135
  %5137 = vmatprep.subr.mxu0 0.0
  %5138 = vmatpush1.msra.mxu0 0.0
  %5139 = vmatprep.subr.mxu0 0.0
  %5140 = vmatpush1.msra.mxu0 0.0
  %5141 = vmatprep.subr.mxu0 0.0
  %5142 = vmatpush1.msra.mxu0 0.0
  %5143 = vmatprep.subr.mxu0 0.0
  %5144 = vmatpush1.msra.mxu0 0.0
  %5145 = vmatprep.subr.mxu0 0.0
  %5146 = vmatpush1.msra.mxu0 0.0
  %5147 = vmatprep.subr.mxu0 0.0
  %5148 = vmatpush1.msra.mxu0 0.0
  %5149 = vmatprep.subr.mxu0 0.0
  %5150 = vmatpush1.msra.mxu0 0.0
  %5151 = vmatprep.subr.mxu0 0.0
  %5152 = vmatpush1.msra.mxu0 0.0
  %5153 = vmatprep.subr.mxu0 0.0
  %5154 = vmatpush1.msra.mxu0 0.0
  %5155 = vmatprep.subr.mxu0 0.0
  %5156 = vmatpush1.msra.mxu0 0.0
  %5157 = vmatprep.subr.mxu0 0.0
  %5158 = vmatpush1.msra.mxu0 0.0
  %5159 = vmatprep.subr.mxu0 0.0
  %5160 = vmatpush1.msra.mxu0 0.0
  %5161 = vmatprep.subr.mxu0 0.0
  %5162 = vmatpush1.msra.mxu0 0.0
  %5163 = vmatprep.subr.mxu0 0.0
  %5164 = vmatpush1.msra.mxu0 0.0
  %5165 = vmatprep.subr.mxu0 0.0
  %5166 = vmatpush1.msra.mxu0 0.0
  %5167 = vmatprep.subr.mxu0 0.0
  %5168 = vmatpush1.msra.mxu0 0.0
  %5169 = vmatprep.mubr.f32.mxu0 0.0
  %v5170 = vand.u32 %v3964, 4294901760
  %5171 = vmatmul.mubr.f32.gmra.mrb[0].mxu0 %v5170
  %v5172 = vpop.f32.mrb[0].mxu0
  %v5173 = vadd.f32 %v4996, %v5172
  %v5174 = vpop.f32.mrb[0].mxu0
  %5175 = vmatprep.mubr.f32.mxu0 0.0
  %v5176 = vand.u32 %v3965, 4294901760
  %5177 = vmatmul.mubr.f32.gmra.mrb[0].mxu0 %v5176
  %v5178 = vpop.f32.mrb[0].mxu0
  %v5179 = vadd.f32 %v5002, %v5178
  %v5180 = vpop.f32.mrb[0].mxu0
  %5181 = vmatprep.mubr.f32.mxu0 0.0
  %v5182 = vand.u32 %v3966, 4294901760
  %5183 = vmatmul.mubr.f32.gmra.mrb[0].mxu0 %v5182
  %v5184 = vpop.f32.mrb[0].mxu0
  %v5185 = vadd.f32 %v5008, %v5184
  %v5186 = vpop.f32.mrb[0].mxu0
  %5187 = vmatprep.mubr.f32.mxu0 0.0
  %v5188 = vand.u32 %v3967, 4294901760
  %5189 = vmatmul.mubr.f32.gmra.mrb[0].mxu0 %v5188
  %v5190 = vpop.f32.mrb[0].mxu0
  %v5191 = vadd.f32 %v5014, %v5190
  %v5192 = vpop.f32.mrb[0].mxu0
  %5193 = vmatprep.mubr.f32.mxu0 0.0
  %v5194 = vand.u32 %v3968, 4294901760
  %5195 = vmatmul.mubr.f32.gmra.mrb[0].mxu0 %v5194
  %v5196 = vpop.f32.mrb[0].mxu0
  %v5197 = vadd.f32 %v5020, %v5196
  %v5198 = vpop.f32.mrb[0].mxu0
  %5199 = vmatprep.mubr.f32.mxu0 0.0
  %v5200 = vand.u32 %v3969, 4294901760
  %5201 = vmatmul.mubr.f32.gmra.mrb[0].mxu0 %v5200
  %v5202 = vpop.f32.mrb[0].mxu0
  %v5203 = vadd.f32 %v5026, %v5202
  %v5204 = vpop.f32.mrb[0].mxu0
  %5205 = vmatprep.mubr.f32.mxu0 0.0
  %v5206 = vand.u32 %v3970, 4294901760
  %5207 = vmatmul.mubr.f32.gmra.mrb[0].mxu0 %v5206
  %v5208 = vpop.f32.mrb[0].mxu0
  %v5209 = vadd.f32 %v5032, %v5208
  %v5210 = vpop.f32.mrb[0].mxu0
  %5211 = vmatprep.mubr.f32.mxu0 0.0
  %v5212 = vand.u32 %v3971, 4294901760
  %5213 = vmatmul.mubr.f32.gmra.mrb[0].mxu0 %v5212
  %v5214 = vpop.f32.mrb[0].mxu0
  %v5215 = vadd.f32 %v5038, %v5214
  %v5216 = vpop.f32.mrb[0].mxu0
  %5217 = vmatprep.mubr.f32.mxu0 0.0
  %v5218 = vand.u32 %v3972, 4294901760
  %5219 = vmatmul.mubr.f32.gmra.mrb[0].mxu0 %v5218
  %v5220 = vpop.f32.mrb[0].mxu0
  %v5221 = vadd.f32 %v5044, %v5220
  %v5222 = vpop.f32.mrb[0].mxu0
  %5223 = vmatprep.mubr.f32.mxu0 0.0
  %v5224 = vand.u32 %v3973, 4294901760
  %5225 = vmatmul.mubr.f32.gmra.mrb[0].mxu0 %v5224
  %v5226 = vpop.f32.mrb[0].mxu0
  %v5227 = vadd.f32 %v5050, %v5226
  %v5228 = vpop.f32.mrb[0].mxu0
  %5229 = vmatprep.mubr.f32.mxu0 0.0
  %v5230 = vand.u32 %v3974, 4294901760
  %5231 = vmatmul.mubr.f32.gmra.mrb[0].mxu0 %v5230
  %v5232 = vpop.f32.mrb[0].mxu0
  %v5233 = vadd.f32 %v5056, %v5232
  %v5234 = vpop.f32.mrb[0].mxu0
  %5235 = vmatprep.mubr.f32.mxu0 0.0
  %v5236 = vand.u32 %v3975, 4294901760
  %5237 = vmatmul.mubr.f32.gmra.mrb[0].mxu0 %v5236
  %v5238 = vpop.f32.mrb[0].mxu0
  %v5239 = vadd.f32 %v5062, %v5238
  %v5240 = vpop.f32.mrb[0].mxu0
  %5241 = vmatprep.mubr.f32.mxu0 0.0
  %v5242 = vand.u32 %v3976, 4294901760
  %5243 = vmatmul.mubr.f32.gmra.mrb[0].mxu0 %v5242
  %v5244 = vpop.f32.mrb[0].mxu0
  %v5245 = vadd.f32 %v5068, %v5244
  %v5246 = vpop.f32.mrb[0].mxu0
  %5247 = vmatprep.mubr.f32.mxu0 0.0
  %v5248 = vand.u32 %v3977, 4294901760
  %5249 = vmatmul.mubr.f32.gmra.mrb[0].mxu0 %v5248
  %v5250 = vpop.f32.mrb[0].mxu0
  %v5251 = vadd.f32 %v5074, %v5250
  %v5252 = vpop.f32.mrb[0].mxu0
  %5253 = vmatprep.mubr.f32.mxu0 0.0
  %v5254 = vand.u32 %v3978, 4294901760
  %5255 = vmatmul.mubr.f32.gmra.mrb[0].mxu0 %v5254
  %v5256 = vpop.f32.mrb[0].mxu0
  %v5257 = vadd.f32 %v5080, %v5256
  %v5258 = vpop.f32.mrb[0].mxu0
  %5259 = vmatprep.mubr.f32.mxu0 0.0
  %v5260 = vand.u32 %v3979, 4294901760
  %5261 = vmatmul.mubr.f32.gmra.mrb[0].mxu0 %v5260
  %v5262 = vpop.f32.mrb[0].mxu0
  %v5263 = vadd.f32 %v5086, %v5262
  %v5264 = vpop.f32.mrb[0].mxu0
  %5265 = vdwg.mxu0
  %v5266 = vsel %vm2310, 1, 0
  %v5267 = vsel %vm2311, 1, 0
  %v5268 = vsel %vm2312, 1, 0
  %v5269 = vsel %vm2313, 1, 0
  %v5270 = vsel %vm2314, 1, 0
  %v5271 = vsel %vm2315, 1, 0
  %v5272 = vsel %vm2316, 1, 0
  %v5273 = vsel %vm2317, 1, 0
  %v5274 = vsel %vm2318, 1, 0
  %v5275 = vsel %vm2319, 1, 0
  %v5276 = vsel %vm2320, 1, 0
  %v5277 = vsel %vm2321, 1, 0
  %v5278 = vsel %vm2322, 1, 0
  %v5279 = vsel %vm2323, 1, 0
  %v5280 = vsel %vm2324, 1, 0
  %v5281 = vsel %vm2325, 1, 0
  %v5282 = vcvt.s32.f32 %v5266
  %v5283 = vcvt.s32.f32 %v5267
  %v5284 = vcvt.s32.f32 %v5268
  %v5285 = vcvt.s32.f32 %v5269
  %v5286 = vcvt.s32.f32 %v5270
  %v5287 = vcvt.s32.f32 %v5271
  %v5288 = vcvt.s32.f32 %v5272
  %v5289 = vcvt.s32.f32 %v5273
  %v5290 = vcvt.s32.f32 %v5274
  %v5291 = vcvt.s32.f32 %v5275
  %v5292 = vcvt.s32.f32 %v5276
  %v5293 = vcvt.s32.f32 %v5277
  %v5294 = vcvt.s32.f32 %v5278
  %v5295 = vcvt.s32.f32 %v5279
  %v5296 = vcvt.s32.f32 %v5280
  %v5297 = vcvt.s32.f32 %v5281
  %5298 = vmatprep.subr.mxu0 0.0
  %v5299 = vand.u32 %v35, 4294901760
  %5300 = vmatpush1.msra.mxu0 %v5299
  %5301 = vmatprep.subr.mxu0 0.0
  %v5302 = vand.u32 %v36, 4294901760
  %5303 = vmatpush1.msra.mxu0 %v5302
  %5304 = vmatprep.subr.mxu0 0.0
  %v5305 = vand.u32 %v37, 4294901760
  %5306 = vmatpush1.msra.mxu0 %v5305
  %5307 = vmatprep.subr.mxu0 0.0
  %v5308 = vand.u32 %v38, 4294901760
  %5309 = vmatpush1.msra.mxu0 %v5308
  %5310 = vmatprep.subr.mxu0 0.0
  %v5311 = vand.u32 %v39, 4294901760
  %5312 = vmatpush1.msra.mxu0 %v5311
  %5313 = vmatprep.subr.mxu0 0.0
  %v5314 = vand.u32 %v40, 4294901760
  %5315 = vmatpush1.msra.mxu0 %v5314
  %5316 = vmatprep.subr.mxu0 0.0
  %v5317 = vand.u32 %v41, 4294901760
  %5318 = vmatpush1.msra.mxu0 %v5317
  %5319 = vmatprep.subr.mxu0 0.0
  %v5320 = vand.u32 %v42, 4294901760
  %5321 = vmatpush1.msra.mxu0 %v5320
  %5322 = vmatprep.subr.mxu0 0.0
  %v5323 = vand.u32 %v43, 4294901760
  %5324 = vmatpush1.msra.mxu0 %v5323
  %5325 = vmatprep.subr.mxu0 0.0
  %v5326 = vand.u32 %v44, 4294901760
  %5327 = vmatpush1.msra.mxu0 %v5326
  %5328 = vmatprep.subr.mxu0 0.0
  %v5329 = vand.u32 %v45, 4294901760
  %5330 = vmatpush1.msra.mxu0 %v5329
  %5331 = vmatprep.subr.mxu0 0.0
  %v5332 = vand.u32 %v46, 4294901760
  %5333 = vmatpush1.msra.mxu0 %v5332
  %5334 = vmatprep.subr.mxu0 0.0
  %v5335 = vand.u32 %v47, 4294901760
  %5336 = vmatpush1.msra.mxu0 %v5335
  %5337 = vmatprep.subr.mxu0 0.0
  %v5338 = vand.u32 %v48, 4294901760
  %5339 = vmatpush1.msra.mxu0 %v5338
  %5340 = vmatprep.subr.mxu0 0.0
  %v5341 = vand.u32 %v49, 4294901760
  %5342 = vmatpush1.msra.mxu0 %v5341
  %5343 = vmatprep.subr.mxu0 0.0
  %v5344 = vand.u32 %v50, 4294901760
  %5345 = vmatpush1.msra.mxu0 %v5344
  %5346 = vmatprep.subr.mxu0 0.0
  %5347 = vmatpush1.msra.mxu0 0.0
  %5348 = vmatprep.subr.mxu0 0.0
  %5349 = vmatpush1.msra.mxu0 0.0
  %5350 = vmatprep.subr.mxu0 0.0
  %5351 = vmatpush1.msra.mxu0 0.0
  %5352 = vmatprep.subr.mxu0 0.0
  %5353 = vmatpush1.msra.mxu0 0.0
  %5354 = vmatprep.subr.mxu0 0.0
  %5355 = vmatpush1.msra.mxu0 0.0
  %5356 = vmatprep.subr.mxu0 0.0
  %5357 = vmatpush1.msra.mxu0 0.0
  %5358 = vmatprep.subr.mxu0 0.0
  %5359 = vmatpush1.msra.mxu0 0.0
  %5360 = vmatprep.subr.mxu0 0.0
  %5361 = vmatpush1.msra.mxu0 0.0
  %5362 = vmatprep.subr.mxu0 0.0
  %5363 = vmatpush1.msra.mxu0 0.0
  %5364 = vmatprep.subr.mxu0 0.0
  %5365 = vmatpush1.msra.mxu0 0.0
  %5366 = vmatprep.subr.mxu0 0.0
  %5367 = vmatpush1.msra.mxu0 0.0
  %5368 = vmatprep.subr.mxu0 0.0
  %5369 = vmatpush1.msra.mxu0 0.0
  %5370 = vmatprep.subr.mxu0 0.0
  %5371 = vmatpush1.msra.mxu0 0.0
  %5372 = vmatprep.subr.mxu0 0.0
  %5373 = vmatpush1.msra.mxu0 0.0
  %5374 = vmatprep.subr.mxu0 0.0
  %5375 = vmatpush1.msra.mxu0 0.0
  %5376 = vmatprep.subr.mxu0 0.0
  %5377 = vmatpush1.msra.mxu0 0.0
  %5378 = vmatprep.mubr.f32.mxu0 0.0
  %v5379 = vand.u32 %v5282, 4294901760
  %v5380 = vsub.f32 %v5282, %v5379
  %v5381 = vand.u32 %v5380, 4294901760
  %v5382 = vsub.f32 %v5380, %v5381
  %v5383 = vand.u32 %v5382, 4294901760
  %5384 = vmatmul.mubr.f32.gmra.mrb[0].mxu0 %v5383
  %v5385 = vpop.f32.mrb[0].mxu0
  %v5386 = vadd.f32 0.0, %v5385
  %v5387 = vpop.f32.mrb[0].mxu0
  %5388 = vmatprep.mubr.f32.mxu0 0.0
  %v5389 = vand.u32 %v5283, 4294901760
  %v5390 = vsub.f32 %v5283, %v5389
  %v5391 = vand.u32 %v5390, 4294901760
  %v5392 = vsub.f32 %v5390, %v5391
  %v5393 = vand.u32 %v5392, 4294901760
  %5394 = vmatmul.mubr.f32.gmra.mrb[0].mxu0 %v5393
  %v5395 = vpop.f32.mrb[0].mxu0
  %v5396 = vadd.f32 0.0, %v5395
  %v5397 = vpop.f32.mrb[0].mxu0
  %5398 = vmatprep.mubr.f32.mxu0 0.0
  %v5399 = vand.u32 %v5284, 4294901760
  %v5400 = vsub.f32 %v5284, %v5399
  %v5401 = vand.u32 %v5400, 4294901760
  %v5402 = vsub.f32 %v5400, %v5401
  %v5403 = vand.u32 %v5402, 4294901760
  %5404 = vmatmul.mubr.f32.gmra.mrb[0].mxu0 %v5403
  %v5405 = vpop.f32.mrb[0].mxu0
  %v5406 = vadd.f32 0.0, %v5405
  %v5407 = vpop.f32.mrb[0].mxu0
  %5408 = vmatprep.mubr.f32.mxu0 0.0
  %v5409 = vand.u32 %v5285, 4294901760
  %v5410 = vsub.f32 %v5285, %v5409
  %v5411 = vand.u32 %v5410, 4294901760
  %v5412 = vsub.f32 %v5410, %v5411
  %v5413 = vand.u32 %v5412, 4294901760
  %5414 = vmatmul.mubr.f32.gmra.mrb[0].mxu0 %v5413
  %v5415 = vpop.f32.mrb[0].mxu0
  %v5416 = vadd.f32 0.0, %v5415
  %v5417 = vpop.f32.mrb[0].mxu0
  %5418 = vmatprep.mubr.f32.mxu0 0.0
  %v5419 = vand.u32 %v5286, 4294901760
  %v5420 = vsub.f32 %v5286, %v5419
  %v5421 = vand.u32 %v5420, 4294901760
  %v5422 = vsub.f32 %v5420, %v5421
  %v5423 = vand.u32 %v5422, 4294901760
  %5424 = vmatmul.mubr.f32.gmra.mrb[0].mxu0 %v5423
  %v5425 = vpop.f32.mrb[0].mxu0
  %v5426 = vadd.f32 0.0, %v5425
  %v5427 = vpop.f32.mrb[0].mxu0
  %5428 = vmatprep.mubr.f32.mxu0 0.0
  %v5429 = vand.u32 %v5287, 4294901760
  %v5430 = vsub.f32 %v5287, %v5429
  %v5431 = vand.u32 %v5430, 4294901760
  %v5432 = vsub.f32 %v5430, %v5431
  %v5433 = vand.u32 %v5432, 4294901760
  %5434 = vmatmul.mubr.f32.gmra.mrb[0].mxu0 %v5433
  %v5435 = vpop.f32.mrb[0].mxu0
  %v5436 = vadd.f32 0.0, %v5435
  %v5437 = vpop.f32.mrb[0].mxu0
  %5438 = vmatprep.mubr.f32.mxu0 0.0
  %v5439 = vand.u32 %v5288, 4294901760
  %v5440 = vsub.f32 %v5288, %v5439
  %v5441 = vand.u32 %v5440, 4294901760
  %v5442 = vsub.f32 %v5440, %v5441
  %v5443 = vand.u32 %v5442, 4294901760
  %5444 = vmatmul.mubr.f32.gmra.mrb[0].mxu0 %v5443
  %v5445 = vpop.f32.mrb[0].mxu0
  %v5446 = vadd.f32 0.0, %v5445
  %v5447 = vpop.f32.mrb[0].mxu0
  %5448 = vmatprep.mubr.f32.mxu0 0.0
  %v5449 = vand.u32 %v5289, 4294901760
  %v5450 = vsub.f32 %v5289, %v5449
  %v5451 = vand.u32 %v5450, 4294901760
  %v5452 = vsub.f32 %v5450, %v5451
  %v5453 = vand.u32 %v5452, 4294901760
  %5454 = vmatmul.mubr.f32.gmra.mrb[0].mxu0 %v5453
  %v5455 = vpop.f32.mrb[0].mxu0
  %v5456 = vadd.f32 0.0, %v5455
  %v5457 = vpop.f32.mrb[0].mxu0
  %5458 = vmatprep.mubr.f32.mxu0 0.0
  %v5459 = vand.u32 %v5290, 4294901760
  %v5460 = vsub.f32 %v5290, %v5459
  %v5461 = vand.u32 %v5460, 4294901760
  %v5462 = vsub.f32 %v5460, %v5461
  %v5463 = vand.u32 %v5462, 4294901760
  %5464 = vmatmul.mubr.f32.gmra.mrb[0].mxu0 %v5463
  %v5465 = vpop.f32.mrb[0].mxu0
  %v5466 = vadd.f32 0.0, %v5465
  %v5467 = vpop.f32.mrb[0].mxu0
  %5468 = vmatprep.mubr.f32.mxu0 0.0
  %v5469 = vand.u32 %v5291, 4294901760
  %v5470 = vsub.f32 %v5291, %v5469
  %v5471 = vand.u32 %v5470, 4294901760
  %v5472 = vsub.f32 %v5470, %v5471
  %v5473 = vand.u32 %v5472, 4294901760
  %5474 = vmatmul.mubr.f32.gmra.mrb[0].mxu0 %v5473
  %v5475 = vpop.f32.mrb[0].mxu0
  %v5476 = vadd.f32 0.0, %v5475
  %v5477 = vpop.f32.mrb[0].mxu0
  %5478 = vmatprep.mubr.f32.mxu0 0.0
  %v5479 = vand.u32 %v5292, 4294901760
  %v5480 = vsub.f32 %v5292, %v5479
  %v5481 = vand.u32 %v5480, 4294901760
  %v5482 = vsub.f32 %v5480, %v5481
  %v5483 = vand.u32 %v5482, 4294901760
  %5484 = vmatmul.mubr.f32.gmra.mrb[0].mxu0 %v5483
  %v5485 = vpop.f32.mrb[0].mxu0
  %v5486 = vadd.f32 0.0, %v5485
  %v5487 = vpop.f32.mrb[0].mxu0
  %5488 = vmatprep.mubr.f32.mxu0 0.0
  %v5489 = vand.u32 %v5293, 4294901760
  %v5490 = vsub.f32 %v5293, %v5489
  %v5491 = vand.u32 %v5490, 4294901760
  %v5492 = vsub.f32 %v5490, %v5491
  %v5493 = vand.u32 %v5492, 4294901760
  %5494 = vmatmul.mubr.f32.gmra.mrb[0].mxu0 %v5493
  %v5495 = vpop.f32.mrb[0].mxu0
  %v5496 = vadd.f32 0.0, %v5495
  %v5497 = vpop.f32.mrb[0].mxu0
  %5498 = vmatprep.mubr.f32.mxu0 0.0
  %v5499 = vand.u32 %v5294, 4294901760
  %v5500 = vsub.f32 %v5294, %v5499
  %v5501 = vand.u32 %v5500, 4294901760
  %v5502 = vsub.f32 %v5500, %v5501
  %v5503 = vand.u32 %v5502, 4294901760
  %5504 = vmatmul.mubr.f32.gmra.mrb[0].mxu0 %v5503
  %v5505 = vpop.f32.mrb[0].mxu0
  %v5506 = vadd.f32 0.0, %v5505
  %v5507 = vpop.f32.mrb[0].mxu0
  %5508 = vmatprep.mubr.f32.mxu0 0.0
  %v5509 = vand.u32 %v5295, 4294901760
  %v5510 = vsub.f32 %v5295, %v5509
  %v5511 = vand.u32 %v5510, 4294901760
  %v5512 = vsub.f32 %v5510, %v5511
  %v5513 = vand.u32 %v5512, 4294901760
  %5514 = vmatmul.mubr.f32.gmra.mrb[0].mxu0 %v5513
  %v5515 = vpop.f32.mrb[0].mxu0
  %v5516 = vadd.f32 0.0, %v5515
  %v5517 = vpop.f32.mrb[0].mxu0
  %5518 = vmatprep.mubr.f32.mxu0 0.0
  %v5519 = vand.u32 %v5296, 4294901760
  %v5520 = vsub.f32 %v5296, %v5519
  %v5521 = vand.u32 %v5520, 4294901760
  %v5522 = vsub.f32 %v5520, %v5521
  %v5523 = vand.u32 %v5522, 4294901760
  %5524 = vmatmul.mubr.f32.gmra.mrb[0].mxu0 %v5523
  %v5525 = vpop.f32.mrb[0].mxu0
  %v5526 = vadd.f32 0.0, %v5525
  %v5527 = vpop.f32.mrb[0].mxu0
  %5528 = vmatprep.mubr.f32.mxu0 0.0
  %v5529 = vand.u32 %v5297, 4294901760
  %v5530 = vsub.f32 %v5297, %v5529
  %v5531 = vand.u32 %v5530, 4294901760
  %v5532 = vsub.f32 %v5530, %v5531
  %v5533 = vand.u32 %v5532, 4294901760
  %5534 = vmatmul.mubr.f32.gmra.mrb[0].mxu0 %v5533
  %v5535 = vpop.f32.mrb[0].mxu0
  %v5536 = vadd.f32 0.0, %v5535
  %v5537 = vpop.f32.mrb[0].mxu0
  %5538 = vdwg.mxu0
  %5539 = vmatprep.subr.mxu0 0.0
  %v5540 = vand.u32 %v35, 4294901760
  %v5541 = vsub.f32 %v35, %v5540
  %v5542 = vand.u32 %v5541, 4294901760
  %v5543 = vsub.f32 %v5541, %v5542
  %v5544 = vand.u32 %v5543, 4294901760
  %5545 = vmatpush1.msra.mxu0 %v5544
  %5546 = vmatprep.subr.mxu0 0.0
  %v5547 = vand.u32 %v36, 4294901760
  %v5548 = vsub.f32 %v36, %v5547
  %v5549 = vand.u32 %v5548, 4294901760
  %v5550 = vsub.f32 %v5548, %v5549
  %v5551 = vand.u32 %v5550, 4294901760
  %5552 = vmatpush1.msra.mxu0 %v5551
  %5553 = vmatprep.subr.mxu0 0.0
  %v5554 = vand.u32 %v37, 4294901760
  %v5555 = vsub.f32 %v37, %v5554
  %v5556 = vand.u32 %v5555, 4294901760
  %v5557 = vsub.f32 %v5555, %v5556
  %v5558 = vand.u32 %v5557, 4294901760
  %5559 = vmatpush1.msra.mxu0 %v5558
  %5560 = vmatprep.subr.mxu0 0.0
  %v5561 = vand.u32 %v38, 4294901760
  %v5562 = vsub.f32 %v38, %v5561
  %v5563 = vand.u32 %v5562, 4294901760
  %v5564 = vsub.f32 %v5562, %v5563
  %v5565 = vand.u32 %v5564, 4294901760
  %5566 = vmatpush1.msra.mxu0 %v5565
  %5567 = vmatprep.subr.mxu0 0.0
  %v5568 = vand.u32 %v39, 4294901760
  %v5569 = vsub.f32 %v39, %v5568
  %v5570 = vand.u32 %v5569, 4294901760
  %v5571 = vsub.f32 %v5569, %v5570
  %v5572 = vand.u32 %v5571, 4294901760
  %5573 = vmatpush1.msra.mxu0 %v5572
  %5574 = vmatprep.subr.mxu0 0.0
  %v5575 = vand.u32 %v40, 4294901760
  %v5576 = vsub.f32 %v40, %v5575
  %v5577 = vand.u32 %v5576, 4294901760
  %v5578 = vsub.f32 %v5576, %v5577
  %v5579 = vand.u32 %v5578, 4294901760
  %5580 = vmatpush1.msra.mxu0 %v5579
  %5581 = vmatprep.subr.mxu0 0.0
  %v5582 = vand.u32 %v41, 4294901760
  %v5583 = vsub.f32 %v41, %v5582
  %v5584 = vand.u32 %v5583, 4294901760
  %v5585 = vsub.f32 %v5583, %v5584
  %v5586 = vand.u32 %v5585, 4294901760
  %5587 = vmatpush1.msra.mxu0 %v5586
  %5588 = vmatprep.subr.mxu0 0.0
  %v5589 = vand.u32 %v42, 4294901760
  %v5590 = vsub.f32 %v42, %v5589
  %v5591 = vand.u32 %v5590, 4294901760
  %v5592 = vsub.f32 %v5590, %v5591
  %v5593 = vand.u32 %v5592, 4294901760
  %5594 = vmatpush1.msra.mxu0 %v5593
  %5595 = vmatprep.subr.mxu0 0.0
  %v5596 = vand.u32 %v43, 4294901760
  %v5597 = vsub.f32 %v43, %v5596
  %v5598 = vand.u32 %v5597, 4294901760
  %v5599 = vsub.f32 %v5597, %v5598
  %v5600 = vand.u32 %v5599, 4294901760
  %5601 = vmatpush1.msra.mxu0 %v5600
  %5602 = vmatprep.subr.mxu0 0.0
  %v5603 = vand.u32 %v44, 4294901760
  %v5604 = vsub.f32 %v44, %v5603
  %v5605 = vand.u32 %v5604, 4294901760
  %v5606 = vsub.f32 %v5604, %v5605
  %v5607 = vand.u32 %v5606, 4294901760
  %5608 = vmatpush1.msra.mxu0 %v5607
  %5609 = vmatprep.subr.mxu0 0.0
  %v5610 = vand.u32 %v45, 4294901760
  %v5611 = vsub.f32 %v45, %v5610
  %v5612 = vand.u32 %v5611, 4294901760
  %v5613 = vsub.f32 %v5611, %v5612
  %v5614 = vand.u32 %v5613, 4294901760
  %5615 = vmatpush1.msra.mxu0 %v5614
  %5616 = vmatprep.subr.mxu0 0.0
  %v5617 = vand.u32 %v46, 4294901760
  %v5618 = vsub.f32 %v46, %v5617
  %v5619 = vand.u32 %v5618, 4294901760
  %v5620 = vsub.f32 %v5618, %v5619
  %v5621 = vand.u32 %v5620, 4294901760
  %5622 = vmatpush1.msra.mxu0 %v5621
  %5623 = vmatprep.subr.mxu0 0.0
  %v5624 = vand.u32 %v47, 4294901760
  %v5625 = vsub.f32 %v47, %v5624
  %v5626 = vand.u32 %v5625, 4294901760
  %v5627 = vsub.f32 %v5625, %v5626
  %v5628 = vand.u32 %v5627, 4294901760
  %5629 = vmatpush1.msra.mxu0 %v5628
  %5630 = vmatprep.subr.mxu0 0.0
  %v5631 = vand.u32 %v48, 4294901760
  %v5632 = vsub.f32 %v48, %v5631
  %v5633 = vand.u32 %v5632, 4294901760
  %v5634 = vsub.f32 %v5632, %v5633
  %v5635 = vand.u32 %v5634, 4294901760
  %5636 = vmatpush1.msra.mxu0 %v5635
  %5637 = vmatprep.subr.mxu0 0.0
  %v5638 = vand.u32 %v49, 4294901760
  %v5639 = vsub.f32 %v49, %v5638
  %v5640 = vand.u32 %v5639, 4294901760
  %v5641 = vsub.f32 %v5639, %v5640
  %v5642 = vand.u32 %v5641, 4294901760
  %5643 = vmatpush1.msra.mxu0 %v5642
  %5644 = vmatprep.subr.mxu0 0.0
  %v5645 = vand.u32 %v50, 4294901760
  %v5646 = vsub.f32 %v50, %v5645
  %v5647 = vand.u32 %v5646, 4294901760
  %v5648 = vsub.f32 %v5646, %v5647
  %v5649 = vand.u32 %v5648, 4294901760
  %5650 = vmatpush1.msra.mxu0 %v5649
  %5651 = vmatprep.subr.mxu0 0.0
  %5652 = vmatpush1.msra.mxu0 0.0
  %5653 = vmatprep.subr.mxu0 0.0
  %5654 = vmatpush1.msra.mxu0 0.0
  %5655 = vmatprep.subr.mxu0 0.0
  %5656 = vmatpush1.msra.mxu0 0.0
  %5657 = vmatprep.subr.mxu0 0.0
  %5658 = vmatpush1.msra.mxu0 0.0
  %5659 = vmatprep.subr.mxu0 0.0
  %5660 = vmatpush1.msra.mxu0 0.0
  %5661 = vmatprep.subr.mxu0 0.0
  %5662 = vmatpush1.msra.mxu0 0.0
  %5663 = vmatprep.subr.mxu0 0.0
  %5664 = vmatpush1.msra.mxu0 0.0
  %5665 = vmatprep.subr.mxu0 0.0
  %5666 = vmatpush1.msra.mxu0 0.0
  %5667 = vmatprep.subr.mxu0 0.0
  %5668 = vmatpush1.msra.mxu0 0.0
  %5669 = vmatprep.subr.mxu0 0.0
  %5670 = vmatpush1.msra.mxu0 0.0
  %5671 = vmatprep.subr.mxu0 0.0
  %5672 = vmatpush1.msra.mxu0 0.0
  %5673 = vmatprep.subr.mxu0 0.0
  %5674 = vmatpush1.msra.mxu0 0.0
  %5675 = vmatprep.subr.mxu0 0.0
  %5676 = vmatpush1.msra.mxu0 0.0
  %5677 = vmatprep.subr.mxu0 0.0
  %5678 = vmatpush1.msra.mxu0 0.0
  %5679 = vmatprep.subr.mxu0 0.0
  %5680 = vmatpush1.msra.mxu0 0.0
  %5681 = vmatprep.subr.mxu0 0.0
  %5682 = vmatpush1.msra.mxu0 0.0
  %5683 = vmatprep.mubr.f32.mxu0 0.0
  %v5684 = vand.u32 %v5282, 4294901760
  %5685 = vmatmul.mubr.f32.gmra.mrb[0].mxu0 %v5684
  %v5686 = vpop.f32.mrb[0].mxu0
  %v5687 = vadd.f32 %v5386, %v5686
  %v5688 = vpop.f32.mrb[0].mxu0
  %5689 = vmatprep.mubr.f32.mxu0 0.0
  %v5690 = vand.u32 %v5283, 4294901760
  %5691 = vmatmul.mubr.f32.gmra.mrb[0].mxu0 %v5690
  %v5692 = vpop.f32.mrb[0].mxu0
  %v5693 = vadd.f32 %v5396, %v5692
  %v5694 = vpop.f32.mrb[0].mxu0
  %5695 = vmatprep.mubr.f32.mxu0 0.0
  %v5696 = vand.u32 %v5284, 4294901760
  %5697 = vmatmul.mubr.f32.gmra.mrb[0].mxu0 %v5696
  %v5698 = vpop.f32.mrb[0].mxu0
  %v5699 = vadd.f32 %v5406, %v5698
  %v5700 = vpop.f32.mrb[0].mxu0
  %5701 = vmatprep.mubr.f32.mxu0 0.0
  %v5702 = vand.u32 %v5285, 4294901760
  %5703 = vmatmul.mubr.f32.gmra.mrb[0].mxu0 %v5702
  %v5704 = vpop.f32.mrb[0].mxu0
  %v5705 = vadd.f32 %v5416, %v5704
  %v5706 = vpop.f32.mrb[0].mxu0
  %5707 = vmatprep.mubr.f32.mxu0 0.0
  %v5708 = vand.u32 %v5286, 4294901760
  %5709 = vmatmul.mubr.f32.gmra.mrb[0].mxu0 %v5708
  %v5710 = vpop.f32.mrb[0].mxu0
  %v5711 = vadd.f32 %v5426, %v5710
  %v5712 = vpop.f32.mrb[0].mxu0
  %5713 = vmatprep.mubr.f32.mxu0 0.0
  %v5714 = vand.u32 %v5287, 4294901760
  %5715 = vmatmul.mubr.f32.gmra.mrb[0].mxu0 %v5714
  %v5716 = vpop.f32.mrb[0].mxu0
  %v5717 = vadd.f32 %v5436, %v5716
  %v5718 = vpop.f32.mrb[0].mxu0
  %5719 = vmatprep.mubr.f32.mxu0 0.0
  %v5720 = vand.u32 %v5288, 4294901760
  %5721 = vmatmul.mubr.f32.gmra.mrb[0].mxu0 %v5720
  %v5722 = vpop.f32.mrb[0].mxu0
  %v5723 = vadd.f32 %v5446, %v5722
  %v5724 = vpop.f32.mrb[0].mxu0
  %5725 = vmatprep.mubr.f32.mxu0 0.0
  %v5726 = vand.u32 %v5289, 4294901760
  %5727 = vmatmul.mubr.f32.gmra.mrb[0].mxu0 %v5726
  %v5728 = vpop.f32.mrb[0].mxu0
  %v5729 = vadd.f32 %v5456, %v5728
  %v5730 = vpop.f32.mrb[0].mxu0
  %5731 = vmatprep.mubr.f32.mxu0 0.0
  %v5732 = vand.u32 %v5290, 4294901760
  %5733 = vmatmul.mubr.f32.gmra.mrb[0].mxu0 %v5732
  %v5734 = vpop.f32.mrb[0].mxu0
  %v5735 = vadd.f32 %v5466, %v5734
  %v5736 = vpop.f32.mrb[0].mxu0
  %5737 = vmatprep.mubr.f32.mxu0 0.0
  %v5738 = vand.u32 %v5291, 4294901760
  %5739 = vmatmul.mubr.f32.gmra.mrb[0].mxu0 %v5738
  %v5740 = vpop.f32.mrb[0].mxu0
  %v5741 = vadd.f32 %v5476, %v5740
  %v5742 = vpop.f32.mrb[0].mxu0
  %5743 = vmatprep.mubr.f32.mxu0 0.0
  %v5744 = vand.u32 %v5292, 4294901760
  %5745 = vmatmul.mubr.f32.gmra.mrb[0].mxu0 %v5744
  %v5746 = vpop.f32.mrb[0].mxu0
  %v5747 = vadd.f32 %v5486, %v5746
  %v5748 = vpop.f32.mrb[0].mxu0
  %5749 = vmatprep.mubr.f32.mxu0 0.0
  %v5750 = vand.u32 %v5293, 4294901760
  %5751 = vmatmul.mubr.f32.gmra.mrb[0].mxu0 %v5750
  %v5752 = vpop.f32.mrb[0].mxu0
  %v5753 = vadd.f32 %v5496, %v5752
  %v5754 = vpop.f32.mrb[0].mxu0
  %5755 = vmatprep.mubr.f32.mxu0 0.0
  %v5756 = vand.u32 %v5294, 4294901760
  %5757 = vmatmul.mubr.f32.gmra.mrb[0].mxu0 %v5756
  %v5758 = vpop.f32.mrb[0].mxu0
  %v5759 = vadd.f32 %v5506, %v5758
  %v5760 = vpop.f32.mrb[0].mxu0
  %5761 = vmatprep.mubr.f32.mxu0 0.0
  %v5762 = vand.u32 %v5295, 4294901760
  %5763 = vmatmul.mubr.f32.gmra.mrb[0].mxu0 %v5762
  %v5764 = vpop.f32.mrb[0].mxu0
  %v5765 = vadd.f32 %v5516, %v5764
  %v5766 = vpop.f32.mrb[0].mxu0
  %5767 = vmatprep.mubr.f32.mxu0 0.0
  %v5768 = vand.u32 %v5296, 4294901760
  %5769 = vmatmul.mubr.f32.gmra.mrb[0].mxu0 %v5768
  %v5770 = vpop.f32.mrb[0].mxu0
  %v5771 = vadd.f32 %v5526, %v5770
  %v5772 = vpop.f32.mrb[0].mxu0
  %5773 = vmatprep.mubr.f32.mxu0 0.0
  %v5774 = vand.u32 %v5297, 4294901760
  %5775 = vmatmul.mubr.f32.gmra.mrb[0].mxu0 %v5774
  %v5776 = vpop.f32.mrb[0].mxu0
  %v5777 = vadd.f32 %v5536, %v5776
  %v5778 = vpop.f32.mrb[0].mxu0
  %5779 = vdwg.mxu0
  %5780 = vmatprep.subr.mxu0 0.0
  %v5781 = vand.u32 %v35, 4294901760
  %v5782 = vsub.f32 %v35, %v5781
  %5783 = vmatpush1.msra.mxu0 %v5782
  %5784 = vmatprep.subr.mxu0 0.0
  %v5785 = vand.u32 %v36, 4294901760
  %v5786 = vsub.f32 %v36, %v5785
  %5787 = vmatpush1.msra.mxu0 %v5786
  %5788 = vmatprep.subr.mxu0 0.0
  %v5789 = vand.u32 %v37, 4294901760
  %v5790 = vsub.f32 %v37, %v5789
  %5791 = vmatpush1.msra.mxu0 %v5790
  %5792 = vmatprep.subr.mxu0 0.0
  %v5793 = vand.u32 %v38, 4294901760
  %v5794 = vsub.f32 %v38, %v5793
  %5795 = vmatpush1.msra.mxu0 %v5794
  %5796 = vmatprep.subr.mxu0 0.0
  %v5797 = vand.u32 %v39, 4294901760
  %v5798 = vsub.f32 %v39, %v5797
  %5799 = vmatpush1.msra.mxu0 %v5798
  %5800 = vmatprep.subr.mxu0 0.0
  %v5801 = vand.u32 %v40, 4294901760
  %v5802 = vsub.f32 %v40, %v5801
  %5803 = vmatpush1.msra.mxu0 %v5802
  %5804 = vmatprep.subr.mxu0 0.0
  %v5805 = vand.u32 %v41, 4294901760
  %v5806 = vsub.f32 %v41, %v5805
  %5807 = vmatpush1.msra.mxu0 %v5806
  %5808 = vmatprep.subr.mxu0 0.0
  %v5809 = vand.u32 %v42, 4294901760
  %v5810 = vsub.f32 %v42, %v5809
  %5811 = vmatpush1.msra.mxu0 %v5810
  %5812 = vmatprep.subr.mxu0 0.0
  %v5813 = vand.u32 %v43, 4294901760
  %v5814 = vsub.f32 %v43, %v5813
  %5815 = vmatpush1.msra.mxu0 %v5814
  %5816 = vmatprep.subr.mxu0 0.0
  %v5817 = vand.u32 %v44, 4294901760
  %v5818 = vsub.f32 %v44, %v5817
  %5819 = vmatpush1.msra.mxu0 %v5818
  %5820 = vmatprep.subr.mxu0 0.0
  %v5821 = vand.u32 %v45, 4294901760
  %v5822 = vsub.f32 %v45, %v5821
  %5823 = vmatpush1.msra.mxu0 %v5822
  %5824 = vmatprep.subr.mxu0 0.0
  %v5825 = vand.u32 %v46, 4294901760
  %v5826 = vsub.f32 %v46, %v5825
  %5827 = vmatpush1.msra.mxu0 %v5826
  %5828 = vmatprep.subr.mxu0 0.0
  %v5829 = vand.u32 %v47, 4294901760
  %v5830 = vsub.f32 %v47, %v5829
  %5831 = vmatpush1.msra.mxu0 %v5830
  %5832 = vmatprep.subr.mxu0 0.0
  %v5833 = vand.u32 %v48, 4294901760
  %v5834 = vsub.f32 %v48, %v5833
  %5835 = vmatpush1.msra.mxu0 %v5834
  %5836 = vmatprep.subr.mxu0 0.0
  %v5837 = vand.u32 %v49, 4294901760
  %v5838 = vsub.f32 %v49, %v5837
  %5839 = vmatpush1.msra.mxu0 %v5838
  %5840 = vmatprep.subr.mxu0 0.0
  %v5841 = vand.u32 %v50, 4294901760
  %v5842 = vsub.f32 %v50, %v5841
  %5843 = vmatpush1.msra.mxu0 %v5842
  %5844 = vmatprep.subr.mxu0 0.0
  %5845 = vmatpush1.msra.mxu0 0.0
  %5846 = vmatprep.subr.mxu0 0.0
  %5847 = vmatpush1.msra.mxu0 0.0
  %5848 = vmatprep.subr.mxu0 0.0
  %5849 = vmatpush1.msra.mxu0 0.0
  %5850 = vmatprep.subr.mxu0 0.0
  %5851 = vmatpush1.msra.mxu0 0.0
  %5852 = vmatprep.subr.mxu0 0.0
  %5853 = vmatpush1.msra.mxu0 0.0
  %5854 = vmatprep.subr.mxu0 0.0
  %5855 = vmatpush1.msra.mxu0 0.0
  %5856 = vmatprep.subr.mxu0 0.0
  %5857 = vmatpush1.msra.mxu0 0.0
  %5858 = vmatprep.subr.mxu0 0.0
  %5859 = vmatpush1.msra.mxu0 0.0
  %5860 = vmatprep.subr.mxu0 0.0
  %5861 = vmatpush1.msra.mxu0 0.0
  %5862 = vmatprep.subr.mxu0 0.0
  %5863 = vmatpush1.msra.mxu0 0.0
  %5864 = vmatprep.subr.mxu0 0.0
  %5865 = vmatpush1.msra.mxu0 0.0
  %5866 = vmatprep.subr.mxu0 0.0
  %5867 = vmatpush1.msra.mxu0 0.0
  %5868 = vmatprep.subr.mxu0 0.0
  %5869 = vmatpush1.msra.mxu0 0.0
  %5870 = vmatprep.subr.mxu0 0.0
  %5871 = vmatpush1.msra.mxu0 0.0
  %5872 = vmatprep.subr.mxu0 0.0
  %5873 = vmatpush1.msra.mxu0 0.0
  %5874 = vmatprep.subr.mxu0 0.0
  %5875 = vmatpush1.msra.mxu0 0.0
  %5876 = vmatprep.mubr.f32.mxu0 0.0
  %v5877 = vand.u32 %v5282, 4294901760
  %v5878 = vsub.f32 %v5282, %v5877
  %5879 = vmatmul.mubr.f32.gmra.mrb[0].mxu0 %v5878
  %v5880 = vpop.f32.mrb[0].mxu0
  %v5881 = vadd.f32 %v5687, %v5880
  %v5882 = vpop.f32.mrb[0].mxu0
  %5883 = vmatprep.mubr.f32.mxu0 0.0
  %v5884 = vand.u32 %v5283, 4294901760
  %v5885 = vsub.f32 %v5283, %v5884
  %5886 = vmatmul.mubr.f32.gmra.mrb[0].mxu0 %v5885
  %v5887 = vpop.f32.mrb[0].mxu0
  %v5888 = vadd.f32 %v5693, %v5887
  %v5889 = vpop.f32.mrb[0].mxu0
  %5890 = vmatprep.mubr.f32.mxu0 0.0
  %v5891 = vand.u32 %v5284, 4294901760
  %v5892 = vsub.f32 %v5284, %v5891
  %5893 = vmatmul.mubr.f32.gmra.mrb[0].mxu0 %v5892
  %v5894 = vpop.f32.mrb[0].mxu0
  %v5895 = vadd.f32 %v5699, %v5894
  %v5896 = vpop.f32.mrb[0].mxu0
  %5897 = vmatprep.mubr.f32.mxu0 0.0
  %v5898 = vand.u32 %v5285, 4294901760
  %v5899 = vsub.f32 %v5285, %v5898
  %5900 = vmatmul.mubr.f32.gmra.mrb[0].mxu0 %v5899
  %v5901 = vpop.f32.mrb[0].mxu0
  %v5902 = vadd.f32 %v5705, %v5901
  %v5903 = vpop.f32.mrb[0].mxu0
  %5904 = vmatprep.mubr.f32.mxu0 0.0
  %v5905 = vand.u32 %v5286, 4294901760
  %v5906 = vsub.f32 %v5286, %v5905
  %5907 = vmatmul.mubr.f32.gmra.mrb[0].mxu0 %v5906
  %v5908 = vpop.f32.mrb[0].mxu0
  %v5909 = vadd.f32 %v5711, %v5908
  %v5910 = vpop.f32.mrb[0].mxu0
  %5911 = vmatprep.mubr.f32.mxu0 0.0
  %v5912 = vand.u32 %v5287, 4294901760
  %v5913 = vsub.f32 %v5287, %v5912
  %5914 = vmatmul.mubr.f32.gmra.mrb[0].mxu0 %v5913
  %v5915 = vpop.f32.mrb[0].mxu0
  %v5916 = vadd.f32 %v5717, %v5915
  %v5917 = vpop.f32.mrb[0].mxu0
  %5918 = vmatprep.mubr.f32.mxu0 0.0
  %v5919 = vand.u32 %v5288, 4294901760
  %v5920 = vsub.f32 %v5288, %v5919
  %5921 = vmatmul.mubr.f32.gmra.mrb[0].mxu0 %v5920
  %v5922 = vpop.f32.mrb[0].mxu0
  %v5923 = vadd.f32 %v5723, %v5922
  %v5924 = vpop.f32.mrb[0].mxu0
  %5925 = vmatprep.mubr.f32.mxu0 0.0
  %v5926 = vand.u32 %v5289, 4294901760
  %v5927 = vsub.f32 %v5289, %v5926
  %5928 = vmatmul.mubr.f32.gmra.mrb[0].mxu0 %v5927
  %v5929 = vpop.f32.mrb[0].mxu0
  %v5930 = vadd.f32 %v5729, %v5929
  %v5931 = vpop.f32.mrb[0].mxu0
  %5932 = vmatprep.mubr.f32.mxu0 0.0
  %v5933 = vand.u32 %v5290, 4294901760
  %v5934 = vsub.f32 %v5290, %v5933
  %5935 = vmatmul.mubr.f32.gmra.mrb[0].mxu0 %v5934
  %v5936 = vpop.f32.mrb[0].mxu0
  %v5937 = vadd.f32 %v5735, %v5936
  %v5938 = vpop.f32.mrb[0].mxu0
  %5939 = vmatprep.mubr.f32.mxu0 0.0
  %v5940 = vand.u32 %v5291, 4294901760
  %v5941 = vsub.f32 %v5291, %v5940
  %5942 = vmatmul.mubr.f32.gmra.mrb[0].mxu0 %v5941
  %v5943 = vpop.f32.mrb[0].mxu0
  %v5944 = vadd.f32 %v5741, %v5943
  %v5945 = vpop.f32.mrb[0].mxu0
  %5946 = vmatprep.mubr.f32.mxu0 0.0
  %v5947 = vand.u32 %v5292, 4294901760
  %v5948 = vsub.f32 %v5292, %v5947
  %5949 = vmatmul.mubr.f32.gmra.mrb[0].mxu0 %v5948
  %v5950 = vpop.f32.mrb[0].mxu0
  %v5951 = vadd.f32 %v5747, %v5950
  %v5952 = vpop.f32.mrb[0].mxu0
  %5953 = vmatprep.mubr.f32.mxu0 0.0
  %v5954 = vand.u32 %v5293, 4294901760
  %v5955 = vsub.f32 %v5293, %v5954
  %5956 = vmatmul.mubr.f32.gmra.mrb[0].mxu0 %v5955
  %v5957 = vpop.f32.mrb[0].mxu0
  %v5958 = vadd.f32 %v5753, %v5957
  %v5959 = vpop.f32.mrb[0].mxu0
  %5960 = vmatprep.mubr.f32.mxu0 0.0
  %v5961 = vand.u32 %v5294, 4294901760
  %v5962 = vsub.f32 %v5294, %v5961
  %5963 = vmatmul.mubr.f32.gmra.mrb[0].mxu0 %v5962
  %v5964 = vpop.f32.mrb[0].mxu0
  %v5965 = vadd.f32 %v5759, %v5964
  %v5966 = vpop.f32.mrb[0].mxu0
  %5967 = vmatprep.mubr.f32.mxu0 0.0
  %v5968 = vand.u32 %v5295, 4294901760
  %v5969 = vsub.f32 %v5295, %v5968
  %5970 = vmatmul.mubr.f32.gmra.mrb[0].mxu0 %v5969
  %v5971 = vpop.f32.mrb[0].mxu0
  %v5972 = vadd.f32 %v5765, %v5971
  %v5973 = vpop.f32.mrb[0].mxu0
  %5974 = vmatprep.mubr.f32.mxu0 0.0
  %v5975 = vand.u32 %v5296, 4294901760
  %v5976 = vsub.f32 %v5296, %v5975
  %5977 = vmatmul.mubr.f32.gmra.mrb[0].mxu0 %v5976
  %v5978 = vpop.f32.mrb[0].mxu0
  %v5979 = vadd.f32 %v5771, %v5978
  %v5980 = vpop.f32.mrb[0].mxu0
  %5981 = vmatprep.mubr.f32.mxu0 0.0
  %v5982 = vand.u32 %v5297, 4294901760
  %v5983 = vsub.f32 %v5297, %v5982
  %5984 = vmatmul.mubr.f32.gmra.mrb[0].mxu0 %v5983
  %v5985 = vpop.f32.mrb[0].mxu0
  %v5986 = vadd.f32 %v5777, %v5985
  %v5987 = vpop.f32.mrb[0].mxu0
  %5988 = vdwg.mxu0
  %5989 = vmatprep.subr.mxu0 0.0
  %v5990 = vand.u32 %v35, 4294901760
  %5991 = vmatpush1.msra.mxu0 %v5990
  %5992 = vmatprep.subr.mxu0 0.0
  %v5993 = vand.u32 %v36, 4294901760
  %5994 = vmatpush1.msra.mxu0 %v5993
  %5995 = vmatprep.subr.mxu0 0.0
  %v5996 = vand.u32 %v37, 4294901760
  %5997 = vmatpush1.msra.mxu0 %v5996
  %5998 = vmatprep.subr.mxu0 0.0
  %v5999 = vand.u32 %v38, 4294901760
  %6000 = vmatpush1.msra.mxu0 %v5999
  %6001 = vmatprep.subr.mxu0 0.0
  %v6002 = vand.u32 %v39, 4294901760
  %6003 = vmatpush1.msra.mxu0 %v6002
  %6004 = vmatprep.subr.mxu0 0.0
  %v6005 = vand.u32 %v40, 4294901760
  %6006 = vmatpush1.msra.mxu0 %v6005
  %6007 = vmatprep.subr.mxu0 0.0
  %v6008 = vand.u32 %v41, 4294901760
  %6009 = vmatpush1.msra.mxu0 %v6008
  %6010 = vmatprep.subr.mxu0 0.0
  %v6011 = vand.u32 %v42, 4294901760
  %6012 = vmatpush1.msra.mxu0 %v6011
  %6013 = vmatprep.subr.mxu0 0.0
  %v6014 = vand.u32 %v43, 4294901760
  %6015 = vmatpush1.msra.mxu0 %v6014
  %6016 = vmatprep.subr.mxu0 0.0
  %v6017 = vand.u32 %v44, 4294901760
  %6018 = vmatpush1.msra.mxu0 %v6017
  %6019 = vmatprep.subr.mxu0 0.0
  %v6020 = vand.u32 %v45, 4294901760
  %6021 = vmatpush1.msra.mxu0 %v6020
  %6022 = vmatprep.subr.mxu0 0.0
  %v6023 = vand.u32 %v46, 4294901760
  %6024 = vmatpush1.msra.mxu0 %v6023
  %6025 = vmatprep.subr.mxu0 0.0
  %v6026 = vand.u32 %v47, 4294901760
  %6027 = vmatpush1.msra.mxu0 %v6026
  %6028 = vmatprep.subr.mxu0 0.0
  %v6029 = vand.u32 %v48, 4294901760
  %6030 = vmatpush1.msra.mxu0 %v6029
  %6031 = vmatprep.subr.mxu0 0.0
  %v6032 = vand.u32 %v49, 4294901760
  %6033 = vmatpush1.msra.mxu0 %v6032
  %6034 = vmatprep.subr.mxu0 0.0
  %v6035 = vand.u32 %v50, 4294901760
  %6036 = vmatpush1.msra.mxu0 %v6035
  %6037 = vmatprep.subr.mxu0 0.0
  %6038 = vmatpush1.msra.mxu0 0.0
  %6039 = vmatprep.subr.mxu0 0.0
  %6040 = vmatpush1.msra.mxu0 0.0
  %6041 = vmatprep.subr.mxu0 0.0
  %6042 = vmatpush1.msra.mxu0 0.0
  %6043 = vmatprep.subr.mxu0 0.0
  %6044 = vmatpush1.msra.mxu0 0.0
  %6045 = vmatprep.subr.mxu0 0.0
  %6046 = vmatpush1.msra.mxu0 0.0
  %6047 = vmatprep.subr.mxu0 0.0
  %6048 = vmatpush1.msra.mxu0 0.0
  %6049 = vmatprep.subr.mxu0 0.0
  %6050 = vmatpush1.msra.mxu0 0.0
  %6051 = vmatprep.subr.mxu0 0.0
  %6052 = vmatpush1.msra.mxu0 0.0
  %6053 = vmatprep.subr.mxu0 0.0
  %6054 = vmatpush1.msra.mxu0 0.0
  %6055 = vmatprep.subr.mxu0 0.0
  %6056 = vmatpush1.msra.mxu0 0.0
  %6057 = vmatprep.subr.mxu0 0.0
  %6058 = vmatpush1.msra.mxu0 0.0
  %6059 = vmatprep.subr.mxu0 0.0
  %6060 = vmatpush1.msra.mxu0 0.0
  %6061 = vmatprep.subr.mxu0 0.0
  %6062 = vmatpush1.msra.mxu0 0.0
  %6063 = vmatprep.subr.mxu0 0.0
  %6064 = vmatpush1.msra.mxu0 0.0
  %6065 = vmatprep.subr.mxu0 0.0
  %6066 = vmatpush1.msra.mxu0 0.0
  %6067 = vmatprep.subr.mxu0 0.0
  %6068 = vmatpush1.msra.mxu0 0.0
  %6069 = vmatprep.mubr.f32.mxu0 0.0
  %v6070 = vand.u32 %v5282, 4294901760
  %v6071 = vsub.f32 %v5282, %v6070
  %v6072 = vand.u32 %v6071, 4294901760
  %6073 = vmatmul.mubr.f32.gmra.mrb[0].mxu0 %v6072
  %v6074 = vpop.f32.mrb[0].mxu0
  %v6075 = vadd.f32 %v5881, %v6074
  %v6076 = vpop.f32.mrb[0].mxu0
  %6077 = vmatprep.mubr.f32.mxu0 0.0
  %v6078 = vand.u32 %v5283, 4294901760
  %v6079 = vsub.f32 %v5283, %v6078
  %v6080 = vand.u32 %v6079, 4294901760
  %6081 = vmatmul.mubr.f32.gmra.mrb[0].mxu0 %v6080
  %v6082 = vpop.f32.mrb[0].mxu0
  %v6083 = vadd.f32 %v5888, %v6082
  %v6084 = vpop.f32.mrb[0].mxu0
  %6085 = vmatprep.mubr.f32.mxu0 0.0
  %v6086 = vand.u32 %v5284, 4294901760
  %v6087 = vsub.f32 %v5284, %v6086
  %v6088 = vand.u32 %v6087, 4294901760
  %6089 = vmatmul.mubr.f32.gmra.mrb[0].mxu0 %v6088
  %v6090 = vpop.f32.mrb[0].mxu0
  %v6091 = vadd.f32 %v5895, %v6090
  %v6092 = vpop.f32.mrb[0].mxu0
  %6093 = vmatprep.mubr.f32.mxu0 0.0
  %v6094 = vand.u32 %v5285, 4294901760
  %v6095 = vsub.f32 %v5285, %v6094
  %v6096 = vand.u32 %v6095, 4294901760
  %6097 = vmatmul.mubr.f32.gmra.mrb[0].mxu0 %v6096
  %v6098 = vpop.f32.mrb[0].mxu0
  %v6099 = vadd.f32 %v5902, %v6098
  %v6100 = vpop.f32.mrb[0].mxu0
  %6101 = vmatprep.mubr.f32.mxu0 0.0
  %v6102 = vand.u32 %v5286, 4294901760
  %v6103 = vsub.f32 %v5286, %v6102
  %v6104 = vand.u32 %v6103, 4294901760
  %6105 = vmatmul.mubr.f32.gmra.mrb[0].mxu0 %v6104
  %v6106 = vpop.f32.mrb[0].mxu0
  %v6107 = vadd.f32 %v5909, %v6106
  %v6108 = vpop.f32.mrb[0].mxu0
  %6109 = vmatprep.mubr.f32.mxu0 0.0
  %v6110 = vand.u32 %v5287, 4294901760
  %v6111 = vsub.f32 %v5287, %v6110
  %v6112 = vand.u32 %v6111, 4294901760
  %6113 = vmatmul.mubr.f32.gmra.mrb[0].mxu0 %v6112
  %v6114 = vpop.f32.mrb[0].mxu0
  %v6115 = vadd.f32 %v5916, %v6114
  %v6116 = vpop.f32.mrb[0].mxu0
  %6117 = vmatprep.mubr.f32.mxu0 0.0
  %v6118 = vand.u32 %v5288, 4294901760
  %v6119 = vsub.f32 %v5288, %v6118
  %v6120 = vand.u32 %v6119, 4294901760
  %6121 = vmatmul.mubr.f32.gmra.mrb[0].mxu0 %v6120
  %v6122 = vpop.f32.mrb[0].mxu0
  %v6123 = vadd.f32 %v5923, %v6122
  %v6124 = vpop.f32.mrb[0].mxu0
  %6125 = vmatprep.mubr.f32.mxu0 0.0
  %v6126 = vand.u32 %v5289, 4294901760
  %v6127 = vsub.f32 %v5289, %v6126
  %v6128 = vand.u32 %v6127, 4294901760
  %6129 = vmatmul.mubr.f32.gmra.mrb[0].mxu0 %v6128
  %v6130 = vpop.f32.mrb[0].mxu0
  %v6131 = vadd.f32 %v5930, %v6130
  %v6132 = vpop.f32.mrb[0].mxu0
  %6133 = vmatprep.mubr.f32.mxu0 0.0
  %v6134 = vand.u32 %v5290, 4294901760
  %v6135 = vsub.f32 %v5290, %v6134
  %v6136 = vand.u32 %v6135, 4294901760
  %6137 = vmatmul.mubr.f32.gmra.mrb[0].mxu0 %v6136
  %v6138 = vpop.f32.mrb[0].mxu0
  %v6139 = vadd.f32 %v5937, %v6138
  %v6140 = vpop.f32.mrb[0].mxu0
  %6141 = vmatprep.mubr.f32.mxu0 0.0
  %v6142 = vand.u32 %v5291, 4294901760
  %v6143 = vsub.f32 %v5291, %v6142
  %v6144 = vand.u32 %v6143, 4294901760
  %6145 = vmatmul.mubr.f32.gmra.mrb[0].mxu0 %v6144
  %v6146 = vpop.f32.mrb[0].mxu0
  %v6147 = vadd.f32 %v5944, %v6146
  %v6148 = vpop.f32.mrb[0].mxu0
  %6149 = vmatprep.mubr.f32.mxu0 0.0
  %v6150 = vand.u32 %v5292, 4294901760
  %v6151 = vsub.f32 %v5292, %v6150
  %v6152 = vand.u32 %v6151, 4294901760
  %6153 = vmatmul.mubr.f32.gmra.mrb[0].mxu0 %v6152
  %v6154 = vpop.f32.mrb[0].mxu0
  %v6155 = vadd.f32 %v5951, %v6154
  %v6156 = vpop.f32.mrb[0].mxu0
  %6157 = vmatprep.mubr.f32.mxu0 0.0
  %v6158 = vand.u32 %v5293, 4294901760
  %v6159 = vsub.f32 %v5293, %v6158
  %v6160 = vand.u32 %v6159, 4294901760
  %6161 = vmatmul.mubr.f32.gmra.mrb[0].mxu0 %v6160
  %v6162 = vpop.f32.mrb[0].mxu0
  %v6163 = vadd.f32 %v5958, %v6162
  %v6164 = vpop.f32.mrb[0].mxu0
  %6165 = vmatprep.mubr.f32.mxu0 0.0
  %v6166 = vand.u32 %v5294, 4294901760
  %v6167 = vsub.f32 %v5294, %v6166
  %v6168 = vand.u32 %v6167, 4294901760
  %6169 = vmatmul.mubr.f32.gmra.mrb[0].mxu0 %v6168
  %v6170 = vpop.f32.mrb[0].mxu0
  %v6171 = vadd.f32 %v5965, %v6170
  %v6172 = vpop.f32.mrb[0].mxu0
  %6173 = vmatprep.mubr.f32.mxu0 0.0
  %v6174 = vand.u32 %v5295, 4294901760
  %v6175 = vsub.f32 %v5295, %v6174
  %v6176 = vand.u32 %v6175, 4294901760
  %6177 = vmatmul.mubr.f32.gmra.mrb[0].mxu0 %v6176
  %v6178 = vpop.f32.mrb[0].mxu0
  %v6179 = vadd.f32 %v5972, %v6178
  %v6180 = vpop.f32.mrb[0].mxu0
  %6181 = vmatprep.mubr.f32.mxu0 0.0
  %v6182 = vand.u32 %v5296, 4294901760
  %v6183 = vsub.f32 %v5296, %v6182
  %v6184 = vand.u32 %v6183, 4294901760
  %6185 = vmatmul.mubr.f32.gmra.mrb[0].mxu0 %v6184
  %v6186 = vpop.f32.mrb[0].mxu0
  %v6187 = vadd.f32 %v5979, %v6186
  %v6188 = vpop.f32.mrb[0].mxu0
  %6189 = vmatprep.mubr.f32.mxu0 0.0
  %v6190 = vand.u32 %v5297, 4294901760
  %v6191 = vsub.f32 %v5297, %v6190
  %v6192 = vand.u32 %v6191, 4294901760
  %6193 = vmatmul.mubr.f32.gmra.mrb[0].mxu0 %v6192
  %v6194 = vpop.f32.mrb[0].mxu0
  %v6195 = vadd.f32 %v5986, %v6194
  %v6196 = vpop.f32.mrb[0].mxu0
  %6197 = vdwg.mxu0
  %6198 = vmatprep.subr.mxu0 0.0
  %v6199 = vand.u32 %v35, 4294901760
  %v6200 = vsub.f32 %v35, %v6199
  %v6201 = vand.u32 %v6200, 4294901760
  %6202 = vmatpush1.msra.mxu0 %v6201
  %6203 = vmatprep.subr.mxu0 0.0
  %v6204 = vand.u32 %v36, 4294901760
  %v6205 = vsub.f32 %v36, %v6204
  %v6206 = vand.u32 %v6205, 4294901760
  %6207 = vmatpush1.msra.mxu0 %v6206
  %6208 = vmatprep.subr.mxu0 0.0
  %v6209 = vand.u32 %v37, 4294901760
  %v6210 = vsub.f32 %v37, %v6209
  %v6211 = vand.u32 %v6210, 4294901760
  %6212 = vmatpush1.msra.mxu0 %v6211
  %6213 = vmatprep.subr.mxu0 0.0
  %v6214 = vand.u32 %v38, 4294901760
  %v6215 = vsub.f32 %v38, %v6214
  %v6216 = vand.u32 %v6215, 4294901760
  %6217 = vmatpush1.msra.mxu0 %v6216
  %6218 = vmatprep.subr.mxu0 0.0
  %v6219 = vand.u32 %v39, 4294901760
  %v6220 = vsub.f32 %v39, %v6219
  %v6221 = vand.u32 %v6220, 4294901760
  %6222 = vmatpush1.msra.mxu0 %v6221
  %6223 = vmatprep.subr.mxu0 0.0
  %v6224 = vand.u32 %v40, 4294901760
  %v6225 = vsub.f32 %v40, %v6224
  %v6226 = vand.u32 %v6225, 4294901760
  %6227 = vmatpush1.msra.mxu0 %v6226
  %6228 = vmatprep.subr.mxu0 0.0
  %v6229 = vand.u32 %v41, 4294901760
  %v6230 = vsub.f32 %v41, %v6229
  %v6231 = vand.u32 %v6230, 4294901760
  %6232 = vmatpush1.msra.mxu0 %v6231
  %6233 = vmatprep.subr.mxu0 0.0
  %v6234 = vand.u32 %v42, 4294901760
  %v6235 = vsub.f32 %v42, %v6234
  %v6236 = vand.u32 %v6235, 4294901760
  %6237 = vmatpush1.msra.mxu0 %v6236
  %6238 = vmatprep.subr.mxu0 0.0
  %v6239 = vand.u32 %v43, 4294901760
  %v6240 = vsub.f32 %v43, %v6239
  %v6241 = vand.u32 %v6240, 4294901760
  %6242 = vmatpush1.msra.mxu0 %v6241
  %6243 = vmatprep.subr.mxu0 0.0
  %v6244 = vand.u32 %v44, 4294901760
  %v6245 = vsub.f32 %v44, %v6244
  %v6246 = vand.u32 %v6245, 4294901760
  %6247 = vmatpush1.msra.mxu0 %v6246
  %6248 = vmatprep.subr.mxu0 0.0
  %v6249 = vand.u32 %v45, 4294901760
  %v6250 = vsub.f32 %v45, %v6249
  %v6251 = vand.u32 %v6250, 4294901760
  %6252 = vmatpush1.msra.mxu0 %v6251
  %6253 = vmatprep.subr.mxu0 0.0
  %v6254 = vand.u32 %v46, 4294901760
  %v6255 = vsub.f32 %v46, %v6254
  %v6256 = vand.u32 %v6255, 4294901760
  %6257 = vmatpush1.msra.mxu0 %v6256
  %6258 = vmatprep.subr.mxu0 0.0
  %v6259 = vand.u32 %v47, 4294901760
  %v6260 = vsub.f32 %v47, %v6259
  %v6261 = vand.u32 %v6260, 4294901760
  %6262 = vmatpush1.msra.mxu0 %v6261
  %6263 = vmatprep.subr.mxu0 0.0
  %v6264 = vand.u32 %v48, 4294901760
  %v6265 = vsub.f32 %v48, %v6264
  %v6266 = vand.u32 %v6265, 4294901760
  %6267 = vmatpush1.msra.mxu0 %v6266
  %6268 = vmatprep.subr.mxu0 0.0
  %v6269 = vand.u32 %v49, 4294901760
  %v6270 = vsub.f32 %v49, %v6269
  %v6271 = vand.u32 %v6270, 4294901760
  %6272 = vmatpush1.msra.mxu0 %v6271
  %6273 = vmatprep.subr.mxu0 0.0
  %v6274 = vand.u32 %v50, 4294901760
  %v6275 = vsub.f32 %v50, %v6274
  %v6276 = vand.u32 %v6275, 4294901760
  %6277 = vmatpush1.msra.mxu0 %v6276
  %6278 = vmatprep.subr.mxu0 0.0
  %6279 = vmatpush1.msra.mxu0 0.0
  %6280 = vmatprep.subr.mxu0 0.0
  %6281 = vmatpush1.msra.mxu0 0.0
  %6282 = vmatprep.subr.mxu0 0.0
  %6283 = vmatpush1.msra.mxu0 0.0
  %6284 = vmatprep.subr.mxu0 0.0
  %6285 = vmatpush1.msra.mxu0 0.0
  %6286 = vmatprep.subr.mxu0 0.0
  %6287 = vmatpush1.msra.mxu0 0.0
  %6288 = vmatprep.subr.mxu0 0.0
  %6289 = vmatpush1.msra.mxu0 0.0
  %6290 = vmatprep.subr.mxu0 0.0
  %6291 = vmatpush1.msra.mxu0 0.0
  %6292 = vmatprep.subr.mxu0 0.0
  %6293 = vmatpush1.msra.mxu0 0.0
  %6294 = vmatprep.subr.mxu0 0.0
  %6295 = vmatpush1.msra.mxu0 0.0
  %6296 = vmatprep.subr.mxu0 0.0
  %6297 = vmatpush1.msra.mxu0 0.0
  %6298 = vmatprep.subr.mxu0 0.0
  %6299 = vmatpush1.msra.mxu0 0.0
  %6300 = vmatprep.subr.mxu0 0.0
  %6301 = vmatpush1.msra.mxu0 0.0
  %6302 = vmatprep.subr.mxu0 0.0
  %6303 = vmatpush1.msra.mxu0 0.0
  %6304 = vmatprep.subr.mxu0 0.0
  %6305 = vmatpush1.msra.mxu0 0.0
  %6306 = vmatprep.subr.mxu0 0.0
  %6307 = vmatpush1.msra.mxu0 0.0
  %6308 = vmatprep.subr.mxu0 0.0
  %6309 = vmatpush1.msra.mxu0 0.0
  %6310 = vmatprep.mubr.f32.mxu0 0.0
  %v6311 = vand.u32 %v5282, 4294901760
  %6312 = vmatmul.mubr.f32.gmra.mrb[0].mxu0 %v6311
  %v6313 = vpop.f32.mrb[0].mxu0
  %v6314 = vadd.f32 %v6075, %v6313
  %v6315 = vpop.f32.mrb[0].mxu0
  %6316 = vmatprep.mubr.f32.mxu0 0.0
  %v6317 = vand.u32 %v5283, 4294901760
  %6318 = vmatmul.mubr.f32.gmra.mrb[0].mxu0 %v6317
  %v6319 = vpop.f32.mrb[0].mxu0
  %v6320 = vadd.f32 %v6083, %v6319
  %v6321 = vpop.f32.mrb[0].mxu0
  %6322 = vmatprep.mubr.f32.mxu0 0.0
  %v6323 = vand.u32 %v5284, 4294901760
  %6324 = vmatmul.mubr.f32.gmra.mrb[0].mxu0 %v6323
  %v6325 = vpop.f32.mrb[0].mxu0
  %v6326 = vadd.f32 %v6091, %v6325
  %v6327 = vpop.f32.mrb[0].mxu0
  %6328 = vmatprep.mubr.f32.mxu0 0.0
  %v6329 = vand.u32 %v5285, 4294901760
  %6330 = vmatmul.mubr.f32.gmra.mrb[0].mxu0 %v6329
  %v6331 = vpop.f32.mrb[0].mxu0
  %v6332 = vadd.f32 %v6099, %v6331
  %v6333 = vpop.f32.mrb[0].mxu0
  %6334 = vmatprep.mubr.f32.mxu0 0.0
  %v6335 = vand.u32 %v5286, 4294901760
  %6336 = vmatmul.mubr.f32.gmra.mrb[0].mxu0 %v6335
  %v6337 = vpop.f32.mrb[0].mxu0
  %v6338 = vadd.f32 %v6107, %v6337
  %v6339 = vpop.f32.mrb[0].mxu0
  %6340 = vmatprep.mubr.f32.mxu0 0.0
  %v6341 = vand.u32 %v5287, 4294901760
  %6342 = vmatmul.mubr.f32.gmra.mrb[0].mxu0 %v6341
  %v6343 = vpop.f32.mrb[0].mxu0
  %v6344 = vadd.f32 %v6115, %v6343
  %v6345 = vpop.f32.mrb[0].mxu0
  %6346 = vmatprep.mubr.f32.mxu0 0.0
  %v6347 = vand.u32 %v5288, 4294901760
  %6348 = vmatmul.mubr.f32.gmra.mrb[0].mxu0 %v6347
  %v6349 = vpop.f32.mrb[0].mxu0
  %v6350 = vadd.f32 %v6123, %v6349
  %v6351 = vpop.f32.mrb[0].mxu0
  %6352 = vmatprep.mubr.f32.mxu0 0.0
  %v6353 = vand.u32 %v5289, 4294901760
  %6354 = vmatmul.mubr.f32.gmra.mrb[0].mxu0 %v6353
  %v6355 = vpop.f32.mrb[0].mxu0
  %v6356 = vadd.f32 %v6131, %v6355
  %v6357 = vpop.f32.mrb[0].mxu0
  %6358 = vmatprep.mubr.f32.mxu0 0.0
  %v6359 = vand.u32 %v5290, 4294901760
  %6360 = vmatmul.mubr.f32.gmra.mrb[0].mxu0 %v6359
  %v6361 = vpop.f32.mrb[0].mxu0
  %v6362 = vadd.f32 %v6139, %v6361
  %v6363 = vpop.f32.mrb[0].mxu0
  %6364 = vmatprep.mubr.f32.mxu0 0.0
  %v6365 = vand.u32 %v5291, 4294901760
  %6366 = vmatmul.mubr.f32.gmra.mrb[0].mxu0 %v6365
  %v6367 = vpop.f32.mrb[0].mxu0
  %v6368 = vadd.f32 %v6147, %v6367
  %v6369 = vpop.f32.mrb[0].mxu0
  %6370 = vmatprep.mubr.f32.mxu0 0.0
  %v6371 = vand.u32 %v5292, 4294901760
  %6372 = vmatmul.mubr.f32.gmra.mrb[0].mxu0 %v6371
  %v6373 = vpop.f32.mrb[0].mxu0
  %v6374 = vadd.f32 %v6155, %v6373
  %v6375 = vpop.f32.mrb[0].mxu0
  %6376 = vmatprep.mubr.f32.mxu0 0.0
  %v6377 = vand.u32 %v5293, 4294901760
  %6378 = vmatmul.mubr.f32.gmra.mrb[0].mxu0 %v6377
  %v6379 = vpop.f32.mrb[0].mxu0
  %v6380 = vadd.f32 %v6163, %v6379
  %v6381 = vpop.f32.mrb[0].mxu0
  %6382 = vmatprep.mubr.f32.mxu0 0.0
  %v6383 = vand.u32 %v5294, 4294901760
  %6384 = vmatmul.mubr.f32.gmra.mrb[0].mxu0 %v6383
  %v6385 = vpop.f32.mrb[0].mxu0
  %v6386 = vadd.f32 %v6171, %v6385
  %v6387 = vpop.f32.mrb[0].mxu0
  %6388 = vmatprep.mubr.f32.mxu0 0.0
  %v6389 = vand.u32 %v5295, 4294901760
  %6390 = vmatmul.mubr.f32.gmra.mrb[0].mxu0 %v6389
  %v6391 = vpop.f32.mrb[0].mxu0
  %v6392 = vadd.f32 %v6179, %v6391
  %v6393 = vpop.f32.mrb[0].mxu0
  %6394 = vmatprep.mubr.f32.mxu0 0.0
  %v6395 = vand.u32 %v5296, 4294901760
  %6396 = vmatmul.mubr.f32.gmra.mrb[0].mxu0 %v6395
  %v6397 = vpop.f32.mrb[0].mxu0
  %v6398 = vadd.f32 %v6187, %v6397
  %v6399 = vpop.f32.mrb[0].mxu0
  %6400 = vmatprep.mubr.f32.mxu0 0.0
  %v6401 = vand.u32 %v5297, 4294901760
  %6402 = vmatmul.mubr.f32.gmra.mrb[0].mxu0 %v6401
  %v6403 = vpop.f32.mrb[0].mxu0
  %v6404 = vadd.f32 %v6195, %v6403
  %v6405 = vpop.f32.mrb[0].mxu0
  %6406 = vdwg.mxu0
  %6407 = vmatprep.subr.mxu0 0.0
  %v6408 = vand.u32 %v35, 4294901760
  %6409 = vmatpush1.msra.mxu0 %v6408
  %6410 = vmatprep.subr.mxu0 0.0
  %v6411 = vand.u32 %v36, 4294901760
  %6412 = vmatpush1.msra.mxu0 %v6411
  %6413 = vmatprep.subr.mxu0 0.0
  %v6414 = vand.u32 %v37, 4294901760
  %6415 = vmatpush1.msra.mxu0 %v6414
  %6416 = vmatprep.subr.mxu0 0.0
  %v6417 = vand.u32 %v38, 4294901760
  %6418 = vmatpush1.msra.mxu0 %v6417
  %6419 = vmatprep.subr.mxu0 0.0
  %v6420 = vand.u32 %v39, 4294901760
  %6421 = vmatpush1.msra.mxu0 %v6420
  %6422 = vmatprep.subr.mxu0 0.0
  %v6423 = vand.u32 %v40, 4294901760
  %6424 = vmatpush1.msra.mxu0 %v6423
  %6425 = vmatprep.subr.mxu0 0.0
  %v6426 = vand.u32 %v41, 4294901760
  %6427 = vmatpush1.msra.mxu0 %v6426
  %6428 = vmatprep.subr.mxu0 0.0
  %v6429 = vand.u32 %v42, 4294901760
  %6430 = vmatpush1.msra.mxu0 %v6429
  %6431 = vmatprep.subr.mxu0 0.0
  %v6432 = vand.u32 %v43, 4294901760
  %6433 = vmatpush1.msra.mxu0 %v6432
  %6434 = vmatprep.subr.mxu0 0.0
  %v6435 = vand.u32 %v44, 4294901760
  %6436 = vmatpush1.msra.mxu0 %v6435
  %6437 = vmatprep.subr.mxu0 0.0
  %v6438 = vand.u32 %v45, 4294901760
  %6439 = vmatpush1.msra.mxu0 %v6438
  %6440 = vmatprep.subr.mxu0 0.0
  %v6441 = vand.u32 %v46, 4294901760
  %6442 = vmatpush1.msra.mxu0 %v6441
  %6443 = vmatprep.subr.mxu0 0.0
  %v6444 = vand.u32 %v47, 4294901760
  %6445 = vmatpush1.msra.mxu0 %v6444
  %6446 = vmatprep.subr.mxu0 0.0
  %v6447 = vand.u32 %v48, 4294901760
  %6448 = vmatpush1.msra.mxu0 %v6447
  %6449 = vmatprep.subr.mxu0 0.0
  %v6450 = vand.u32 %v49, 4294901760
  %6451 = vmatpush1.msra.mxu0 %v6450
  %6452 = vmatprep.subr.mxu0 0.0
  %v6453 = vand.u32 %v50, 4294901760
  %6454 = vmatpush1.msra.mxu0 %v6453
  %6455 = vmatprep.subr.mxu0 0.0
  %6456 = vmatpush1.msra.mxu0 0.0
  %6457 = vmatprep.subr.mxu0 0.0
  %6458 = vmatpush1.msra.mxu0 0.0
  %6459 = vmatprep.subr.mxu0 0.0
  %6460 = vmatpush1.msra.mxu0 0.0
  %6461 = vmatprep.subr.mxu0 0.0
  %6462 = vmatpush1.msra.mxu0 0.0
  %6463 = vmatprep.subr.mxu0 0.0
  %6464 = vmatpush1.msra.mxu0 0.0
  %6465 = vmatprep.subr.mxu0 0.0
  %6466 = vmatpush1.msra.mxu0 0.0
  %6467 = vmatprep.subr.mxu0 0.0
  %6468 = vmatpush1.msra.mxu0 0.0
  %6469 = vmatprep.subr.mxu0 0.0
  %6470 = vmatpush1.msra.mxu0 0.0
  %6471 = vmatprep.subr.mxu0 0.0
  %6472 = vmatpush1.msra.mxu0 0.0
  %6473 = vmatprep.subr.mxu0 0.0
  %6474 = vmatpush1.msra.mxu0 0.0
  %6475 = vmatprep.subr.mxu0 0.0
  %6476 = vmatpush1.msra.mxu0 0.0
  %6477 = vmatprep.subr.mxu0 0.0
  %6478 = vmatpush1.msra.mxu0 0.0
  %6479 = vmatprep.subr.mxu0 0.0
  %6480 = vmatpush1.msra.mxu0 0.0
  %6481 = vmatprep.subr.mxu0 0.0
  %6482 = vmatpush1.msra.mxu0 0.0
  %6483 = vmatprep.subr.mxu0 0.0
  %6484 = vmatpush1.msra.mxu0 0.0
  %6485 = vmatprep.subr.mxu0 0.0
  %6486 = vmatpush1.msra.mxu0 0.0
  %6487 = vmatprep.mubr.f32.mxu0 0.0
  %v6488 = vand.u32 %v5282, 4294901760
  %6489 = vmatmul.mubr.f32.gmra.mrb[0].mxu0 %v6488
  %v6490 = vpop.f32.mrb[0].mxu0
  %v6491 = vadd.f32 %v6314, %v6490
  %v6492 = vpop.f32.mrb[0].mxu0
  %6493 = vmatprep.mubr.f32.mxu0 0.0
  %v6494 = vand.u32 %v5283, 4294901760
  %6495 = vmatmul.mubr.f32.gmra.mrb[0].mxu0 %v6494
  %v6496 = vpop.f32.mrb[0].mxu0
  %v6497 = vadd.f32 %v6320, %v6496
  %v6498 = vpop.f32.mrb[0].mxu0
  %6499 = vmatprep.mubr.f32.mxu0 0.0
  %v6500 = vand.u32 %v5284, 4294901760
  %6501 = vmatmul.mubr.f32.gmra.mrb[0].mxu0 %v6500
  %v6502 = vpop.f32.mrb[0].mxu0
  %v6503 = vadd.f32 %v6326, %v6502
  %v6504 = vpop.f32.mrb[0].mxu0
  %6505 = vmatprep.mubr.f32.mxu0 0.0
  %v6506 = vand.u32 %v5285, 4294901760
  %6507 = vmatmul.mubr.f32.gmra.mrb[0].mxu0 %v6506
  %v6508 = vpop.f32.mrb[0].mxu0
  %v6509 = vadd.f32 %v6332, %v6508
  %v6510 = vpop.f32.mrb[0].mxu0
  %6511 = vmatprep.mubr.f32.mxu0 0.0
  %v6512 = vand.u32 %v5286, 4294901760
  %6513 = vmatmul.mubr.f32.gmra.mrb[0].mxu0 %v6512
  %v6514 = vpop.f32.mrb[0].mxu0
  %v6515 = vadd.f32 %v6338, %v6514
  %v6516 = vpop.f32.mrb[0].mxu0
  %6517 = vmatprep.mubr.f32.mxu0 0.0
  %v6518 = vand.u32 %v5287, 4294901760
  %6519 = vmatmul.mubr.f32.gmra.mrb[0].mxu0 %v6518
  %v6520 = vpop.f32.mrb[0].mxu0
  %v6521 = vadd.f32 %v6344, %v6520
  %v6522 = vpop.f32.mrb[0].mxu0
  %6523 = vmatprep.mubr.f32.mxu0 0.0
  %v6524 = vand.u32 %v5288, 4294901760
  %6525 = vmatmul.mubr.f32.gmra.mrb[0].mxu0 %v6524
  %v6526 = vpop.f32.mrb[0].mxu0
  %v6527 = vadd.f32 %v6350, %v6526
  %v6528 = vpop.f32.mrb[0].mxu0
  %6529 = vmatprep.mubr.f32.mxu0 0.0
  %v6530 = vand.u32 %v5289, 4294901760
  %6531 = vmatmul.mubr.f32.gmra.mrb[0].mxu0 %v6530
  %v6532 = vpop.f32.mrb[0].mxu0
  %v6533 = vadd.f32 %v6356, %v6532
  %v6534 = vpop.f32.mrb[0].mxu0
  %6535 = vmatprep.mubr.f32.mxu0 0.0
  %v6536 = vand.u32 %v5290, 4294901760
  %6537 = vmatmul.mubr.f32.gmra.mrb[0].mxu0 %v6536
  %v6538 = vpop.f32.mrb[0].mxu0
  %v6539 = vadd.f32 %v6362, %v6538
  %v6540 = vpop.f32.mrb[0].mxu0
  %6541 = vmatprep.mubr.f32.mxu0 0.0
  %v6542 = vand.u32 %v5291, 4294901760
  %6543 = vmatmul.mubr.f32.gmra.mrb[0].mxu0 %v6542
  %v6544 = vpop.f32.mrb[0].mxu0
  %v6545 = vadd.f32 %v6368, %v6544
  %v6546 = vpop.f32.mrb[0].mxu0
  %6547 = vmatprep.mubr.f32.mxu0 0.0
  %v6548 = vand.u32 %v5292, 4294901760
  %6549 = vmatmul.mubr.f32.gmra.mrb[0].mxu0 %v6548
  %v6550 = vpop.f32.mrb[0].mxu0
  %v6551 = vadd.f32 %v6374, %v6550
  %v6552 = vpop.f32.mrb[0].mxu0
  %6553 = vmatprep.mubr.f32.mxu0 0.0
  %v6554 = vand.u32 %v5293, 4294901760
  %6555 = vmatmul.mubr.f32.gmra.mrb[0].mxu0 %v6554
  %v6556 = vpop.f32.mrb[0].mxu0
  %v6557 = vadd.f32 %v6380, %v6556
  %v6558 = vpop.f32.mrb[0].mxu0
  %6559 = vmatprep.mubr.f32.mxu0 0.0
  %v6560 = vand.u32 %v5294, 4294901760
  %6561 = vmatmul.mubr.f32.gmra.mrb[0].mxu0 %v6560
  %v6562 = vpop.f32.mrb[0].mxu0
  %v6563 = vadd.f32 %v6386, %v6562
  %v6564 = vpop.f32.mrb[0].mxu0
  %6565 = vmatprep.mubr.f32.mxu0 0.0
  %v6566 = vand.u32 %v5295, 4294901760
  %6567 = vmatmul.mubr.f32.gmra.mrb[0].mxu0 %v6566
  %v6568 = vpop.f32.mrb[0].mxu0
  %v6569 = vadd.f32 %v6392, %v6568
  %v6570 = vpop.f32.mrb[0].mxu0
  %6571 = vmatprep.mubr.f32.mxu0 0.0
  %v6572 = vand.u32 %v5296, 4294901760
  %6573 = vmatmul.mubr.f32.gmra.mrb[0].mxu0 %v6572
  %v6574 = vpop.f32.mrb[0].mxu0
  %v6575 = vadd.f32 %v6398, %v6574
  %v6576 = vpop.f32.mrb[0].mxu0
  %6577 = vmatprep.mubr.f32.mxu0 0.0
  %v6578 = vand.u32 %v5297, 4294901760
  %6579 = vmatmul.mubr.f32.gmra.mrb[0].mxu0 %v6578
  %v6580 = vpop.f32.mrb[0].mxu0
  %v6581 = vadd.f32 %v6404, %v6580
  %v6582 = vpop.f32.mrb[0].mxu0
  %6583 = vdwg.mxu0
  %vm6584 = vcmp.eq.s32.totalorder %v1349, %v2419
  %vm6585 = vcmp.eq.s32.totalorder %v1349, %v2433
  %vm6586 = vcmp.eq.s32.totalorder %v1349, %v2447
  %vm6587 = vcmp.eq.s32.totalorder %v1349, %v2461
  %vm6588 = vcmp.eq.s32.totalorder %v1349, %v2475
  %vm6589 = vcmp.eq.s32.totalorder %v1349, %v2489
  %vm6590 = vcmp.eq.s32.totalorder %v1349, %v2503
  %vm6591 = vcmp.eq.s32.totalorder %v1349, %v2517
  %vm6592 = vcmp.eq.s32.totalorder %v1349, %v2531
  %vm6593 = vcmp.eq.s32.totalorder %v1349, %v2545
  %vm6594 = vcmp.eq.s32.totalorder %v1349, %v2559
  %vm6595 = vcmp.eq.s32.totalorder %v1349, %v2573
  %vm6596 = vcmp.eq.s32.totalorder %v1349, %v2587
  %vm6597 = vcmp.eq.s32.totalorder %v1349, %v2601
  %vm6598 = vcmp.eq.s32.totalorder %v1349, %v2615
  %vm6599 = vcmp.eq.s32.totalorder %v1349, %v2629
  %v6600 = vsel %vm6584, 1, 0
  %v6601 = vsel %vm6585, 1, 0
  %v6602 = vsel %vm6586, 1, 0
  %v6603 = vsel %vm6587, 1, 0
  %v6604 = vsel %vm6588, 1, 0
  %v6605 = vsel %vm6589, 1, 0
  %v6606 = vsel %vm6590, 1, 0
  %v6607 = vsel %vm6591, 1, 0
  %v6608 = vsel %vm6592, 1, 0
  %v6609 = vsel %vm6593, 1, 0
  %v6610 = vsel %vm6594, 1, 0
  %v6611 = vsel %vm6595, 1, 0
  %v6612 = vsel %vm6596, 1, 0
  %v6613 = vsel %vm6597, 1, 0
  %v6614 = vsel %vm6598, 1, 0
  %v6615 = vsel %vm6599, 1, 0
  %v6616 = vcvt.s32.f32 %v6600
  %v6617 = vcvt.s32.f32 %v6601
  %v6618 = vcvt.s32.f32 %v6602
  %v6619 = vcvt.s32.f32 %v6603
  %v6620 = vcvt.s32.f32 %v6604
  %v6621 = vcvt.s32.f32 %v6605
  %v6622 = vcvt.s32.f32 %v6606
  %v6623 = vcvt.s32.f32 %v6607
  %v6624 = vcvt.s32.f32 %v6608
  %v6625 = vcvt.s32.f32 %v6609
  %v6626 = vcvt.s32.f32 %v6610
  %v6627 = vcvt.s32.f32 %v6611
  %v6628 = vcvt.s32.f32 %v6612
  %v6629 = vcvt.s32.f32 %v6613
  %v6630 = vcvt.s32.f32 %v6614
  %v6631 = vcvt.s32.f32 %v6615
  %6632 = vmatprep.subr.mxu0 0.0
  %v6633 = vand.u32 %v35, 4294901760
  %6634 = vmatpush1.msra.mxu0 %v6633
  %6635 = vmatprep.subr.mxu0 0.0
  %v6636 = vand.u32 %v36, 4294901760
  %6637 = vmatpush1.msra.mxu0 %v6636
  %6638 = vmatprep.subr.mxu0 0.0
  %v6639 = vand.u32 %v37, 4294901760
  %6640 = vmatpush1.msra.mxu0 %v6639
  %6641 = vmatprep.subr.mxu0 0.0
  %v6642 = vand.u32 %v38, 4294901760
  %6643 = vmatpush1.msra.mxu0 %v6642
  %6644 = vmatprep.subr.mxu0 0.0
  %v6645 = vand.u32 %v39, 4294901760
  %6646 = vmatpush1.msra.mxu0 %v6645
  %6647 = vmatprep.subr.mxu0 0.0
  %v6648 = vand.u32 %v40, 4294901760
  %6649 = vmatpush1.msra.mxu0 %v6648
  %6650 = vmatprep.subr.mxu0 0.0
  %v6651 = vand.u32 %v41, 4294901760
  %6652 = vmatpush1.msra.mxu0 %v6651
  %6653 = vmatprep.subr.mxu0 0.0
  %v6654 = vand.u32 %v42, 4294901760
  %6655 = vmatpush1.msra.mxu0 %v6654
  %6656 = vmatprep.subr.mxu0 0.0
  %v6657 = vand.u32 %v43, 4294901760
  %6658 = vmatpush1.msra.mxu0 %v6657
  %6659 = vmatprep.subr.mxu0 0.0
  %v6660 = vand.u32 %v44, 4294901760
  %6661 = vmatpush1.msra.mxu0 %v6660
  %6662 = vmatprep.subr.mxu0 0.0
  %v6663 = vand.u32 %v45, 4294901760
  %6664 = vmatpush1.msra.mxu0 %v6663
  %6665 = vmatprep.subr.mxu0 0.0
  %v6666 = vand.u32 %v46, 4294901760
  %6667 = vmatpush1.msra.mxu0 %v6666
  %6668 = vmatprep.subr.mxu0 0.0
  %v6669 = vand.u32 %v47, 4294901760
  %6670 = vmatpush1.msra.mxu0 %v6669
  %6671 = vmatprep.subr.mxu0 0.0
  %v6672 = vand.u32 %v48, 4294901760
  %6673 = vmatpush1.msra.mxu0 %v6672
  %6674 = vmatprep.subr.mxu0 0.0
  %v6675 = vand.u32 %v49, 4294901760
  %6676 = vmatpush1.msra.mxu0 %v6675
  %6677 = vmatprep.subr.mxu0 0.0
  %v6678 = vand.u32 %v50, 4294901760
  %6679 = vmatpush1.msra.mxu0 %v6678
  %6680 = vmatprep.subr.mxu0 0.0
  %6681 = vmatpush1.msra.mxu0 0.0
  %6682 = vmatprep.subr.mxu0 0.0
  %6683 = vmatpush1.msra.mxu0 0.0
  %6684 = vmatprep.subr.mxu0 0.0
  %6685 = vmatpush1.msra.mxu0 0.0
  %6686 = vmatprep.subr.mxu0 0.0
  %6687 = vmatpush1.msra.mxu0 0.0
  %6688 = vmatprep.subr.mxu0 0.0
  %6689 = vmatpush1.msra.mxu0 0.0
  %6690 = vmatprep.subr.mxu0 0.0
  %6691 = vmatpush1.msra.mxu0 0.0
  %6692 = vmatprep.subr.mxu0 0.0
  %6693 = vmatpush1.msra.mxu0 0.0
  %6694 = vmatprep.subr.mxu0 0.0
  %6695 = vmatpush1.msra.mxu0 0.0
  %6696 = vmatprep.subr.mxu0 0.0
  %6697 = vmatpush1.msra.mxu0 0.0
  %6698 = vmatprep.subr.mxu0 0.0
  %6699 = vmatpush1.msra.mxu0 0.0
  %6700 = vmatprep.subr.mxu0 0.0
  %6701 = vmatpush1.msra.mxu0 0.0
  %6702 = vmatprep.subr.mxu0 0.0
  %6703 = vmatpush1.msra.mxu0 0.0
  %6704 = vmatprep.subr.mxu0 0.0
  %6705 = vmatpush1.msra.mxu0 0.0
  %6706 = vmatprep.subr.mxu0 0.0
  %6707 = vmatpush1.msra.mxu0 0.0
  %6708 = vmatprep.subr.mxu0 0.0
  %6709 = vmatpush1.msra.mxu0 0.0
  %6710 = vmatprep.subr.mxu0 0.0
  %6711 = vmatpush1.msra.mxu0 0.0
  %6712 = vmatprep.mubr.f32.mxu0 0.0
  %v6713 = vand.u32 %v6616, 4294901760
  %v6714 = vsub.f32 %v6616, %v6713
  %v6715 = vand.u32 %v6714, 4294901760
  %v6716 = vsub.f32 %v6714, %v6715
  %v6717 = vand.u32 %v6716, 4294901760
  %6718 = vmatmul.mubr.f32.gmra.mrb[0].mxu0 %v6717
  %v6719 = vpop.f32.mrb[0].mxu0
  %v6720 = vadd.f32 0.0, %v6719
  %v6721 = vpop.f32.mrb[0].mxu0
  %6722 = vmatprep.mubr.f32.mxu0 0.0
  %v6723 = vand.u32 %v6617, 4294901760
  %v6724 = vsub.f32 %v6617, %v6723
  %v6725 = vand.u32 %v6724, 4294901760
  %v6726 = vsub.f32 %v6724, %v6725
  %v6727 = vand.u32 %v6726, 4294901760
  %6728 = vmatmul.mubr.f32.gmra.mrb[0].mxu0 %v6727
  %v6729 = vpop.f32.mrb[0].mxu0
  %v6730 = vadd.f32 0.0, %v6729
  %v6731 = vpop.f32.mrb[0].mxu0
  %6732 = vmatprep.mubr.f32.mxu0 0.0
  %v6733 = vand.u32 %v6618, 4294901760
  %v6734 = vsub.f32 %v6618, %v6733
  %v6735 = vand.u32 %v6734, 4294901760
  %v6736 = vsub.f32 %v6734, %v6735
  %v6737 = vand.u32 %v6736, 4294901760
  %6738 = vmatmul.mubr.f32.gmra.mrb[0].mxu0 %v6737
  %v6739 = vpop.f32.mrb[0].mxu0
  %v6740 = vadd.f32 0.0, %v6739
  %v6741 = vpop.f32.mrb[0].mxu0
  %6742 = vmatprep.mubr.f32.mxu0 0.0
  %v6743 = vand.u32 %v6619, 4294901760
  %v6744 = vsub.f32 %v6619, %v6743
  %v6745 = vand.u32 %v6744, 4294901760
  %v6746 = vsub.f32 %v6744, %v6745
  %v6747 = vand.u32 %v6746, 4294901760
  %6748 = vmatmul.mubr.f32.gmra.mrb[0].mxu0 %v6747
  %v6749 = vpop.f32.mrb[0].mxu0
  %v6750 = vadd.f32 0.0, %v6749
  %v6751 = vpop.f32.mrb[0].mxu0
  %6752 = vmatprep.mubr.f32.mxu0 0.0
  %v6753 = vand.u32 %v6620, 4294901760
  %v6754 = vsub.f32 %v6620, %v6753
  %v6755 = vand.u32 %v6754, 4294901760
  %v6756 = vsub.f32 %v6754, %v6755
  %v6757 = vand.u32 %v6756, 4294901760
  %6758 = vmatmul.mubr.f32.gmra.mrb[0].mxu0 %v6757
  %v6759 = vpop.f32.mrb[0].mxu0
  %v6760 = vadd.f32 0.0, %v6759
  %v6761 = vpop.f32.mrb[0].mxu0
  %6762 = vmatprep.mubr.f32.mxu0 0.0
  %v6763 = vand.u32 %v6621, 4294901760
  %v6764 = vsub.f32 %v6621, %v6763
  %v6765 = vand.u32 %v6764, 4294901760
  %v6766 = vsub.f32 %v6764, %v6765
  %v6767 = vand.u32 %v6766, 4294901760
  %6768 = vmatmul.mubr.f32.gmra.mrb[0].mxu0 %v6767
  %v6769 = vpop.f32.mrb[0].mxu0
  %v6770 = vadd.f32 0.0, %v6769
  %v6771 = vpop.f32.mrb[0].mxu0
  %6772 = vmatprep.mubr.f32.mxu0 0.0
  %v6773 = vand.u32 %v6622, 4294901760
  %v6774 = vsub.f32 %v6622, %v6773
  %v6775 = vand.u32 %v6774, 4294901760
  %v6776 = vsub.f32 %v6774, %v6775
  %v6777 = vand.u32 %v6776, 4294901760
  %6778 = vmatmul.mubr.f32.gmra.mrb[0].mxu0 %v6777
  %v6779 = vpop.f32.mrb[0].mxu0
  %v6780 = vadd.f32 0.0, %v6779
  %v6781 = vpop.f32.mrb[0].mxu0
  %6782 = vmatprep.mubr.f32.mxu0 0.0
  %v6783 = vand.u32 %v6623, 4294901760
  %v6784 = vsub.f32 %v6623, %v6783
  %v6785 = vand.u32 %v6784, 4294901760
  %v6786 = vsub.f32 %v6784, %v6785
  %v6787 = vand.u32 %v6786, 4294901760
  %6788 = vmatmul.mubr.f32.gmra.mrb[0].mxu0 %v6787
  %v6789 = vpop.f32.mrb[0].mxu0
  %v6790 = vadd.f32 0.0, %v6789
  %v6791 = vpop.f32.mrb[0].mxu0
  %6792 = vmatprep.mubr.f32.mxu0 0.0
  %v6793 = vand.u32 %v6624, 4294901760
  %v6794 = vsub.f32 %v6624, %v6793
  %v6795 = vand.u32 %v6794, 4294901760
  %v6796 = vsub.f32 %v6794, %v6795
  %v6797 = vand.u32 %v6796, 4294901760
  %6798 = vmatmul.mubr.f32.gmra.mrb[0].mxu0 %v6797
  %v6799 = vpop.f32.mrb[0].mxu0
  %v6800 = vadd.f32 0.0, %v6799
  %v6801 = vpop.f32.mrb[0].mxu0
  %6802 = vmatprep.mubr.f32.mxu0 0.0
  %v6803 = vand.u32 %v6625, 4294901760
  %v6804 = vsub.f32 %v6625, %v6803
  %v6805 = vand.u32 %v6804, 4294901760
  %v6806 = vsub.f32 %v6804, %v6805
  %v6807 = vand.u32 %v6806, 4294901760
  %6808 = vmatmul.mubr.f32.gmra.mrb[0].mxu0 %v6807
  %v6809 = vpop.f32.mrb[0].mxu0
  %v6810 = vadd.f32 0.0, %v6809
  %v6811 = vpop.f32.mrb[0].mxu0
  %6812 = vmatprep.mubr.f32.mxu0 0.0
  %v6813 = vand.u32 %v6626, 4294901760
  %v6814 = vsub.f32 %v6626, %v6813
  %v6815 = vand.u32 %v6814, 4294901760
  %v6816 = vsub.f32 %v6814, %v6815
  %v6817 = vand.u32 %v6816, 4294901760
  %6818 = vmatmul.mubr.f32.gmra.mrb[0].mxu0 %v6817
  %v6819 = vpop.f32.mrb[0].mxu0
  %v6820 = vadd.f32 0.0, %v6819
  %v6821 = vpop.f32.mrb[0].mxu0
  %6822 = vmatprep.mubr.f32.mxu0 0.0
  %v6823 = vand.u32 %v6627, 4294901760
  %v6824 = vsub.f32 %v6627, %v6823
  %v6825 = vand.u32 %v6824, 4294901760
  %v6826 = vsub.f32 %v6824, %v6825
  %v6827 = vand.u32 %v6826, 4294901760
  %6828 = vmatmul.mubr.f32.gmra.mrb[0].mxu0 %v6827
  %v6829 = vpop.f32.mrb[0].mxu0
  %v6830 = vadd.f32 0.0, %v6829
  %v6831 = vpop.f32.mrb[0].mxu0
  %6832 = vmatprep.mubr.f32.mxu0 0.0
  %v6833 = vand.u32 %v6628, 4294901760
  %v6834 = vsub.f32 %v6628, %v6833
  %v6835 = vand.u32 %v6834, 4294901760
  %v6836 = vsub.f32 %v6834, %v6835
  %v6837 = vand.u32 %v6836, 4294901760
  %6838 = vmatmul.mubr.f32.gmra.mrb[0].mxu0 %v6837
  %v6839 = vpop.f32.mrb[0].mxu0
  %v6840 = vadd.f32 0.0, %v6839
  %v6841 = vpop.f32.mrb[0].mxu0
  %6842 = vmatprep.mubr.f32.mxu0 0.0
  %v6843 = vand.u32 %v6629, 4294901760
  %v6844 = vsub.f32 %v6629, %v6843
  %v6845 = vand.u32 %v6844, 4294901760
  %v6846 = vsub.f32 %v6844, %v6845
  %v6847 = vand.u32 %v6846, 4294901760
  %6848 = vmatmul.mubr.f32.gmra.mrb[0].mxu0 %v6847
  %v6849 = vpop.f32.mrb[0].mxu0
  %v6850 = vadd.f32 0.0, %v6849
  %v6851 = vpop.f32.mrb[0].mxu0
  %6852 = vmatprep.mubr.f32.mxu0 0.0
  %v6853 = vand.u32 %v6630, 4294901760
  %v6854 = vsub.f32 %v6630, %v6853
  %v6855 = vand.u32 %v6854, 4294901760
  %v6856 = vsub.f32 %v6854, %v6855
  %v6857 = vand.u32 %v6856, 4294901760
  %6858 = vmatmul.mubr.f32.gmra.mrb[0].mxu0 %v6857
  %v6859 = vpop.f32.mrb[0].mxu0
  %v6860 = vadd.f32 0.0, %v6859
  %v6861 = vpop.f32.mrb[0].mxu0
  %6862 = vmatprep.mubr.f32.mxu0 0.0
  %v6863 = vand.u32 %v6631, 4294901760
  %v6864 = vsub.f32 %v6631, %v6863
  %v6865 = vand.u32 %v6864, 4294901760
  %v6866 = vsub.f32 %v6864, %v6865
  %v6867 = vand.u32 %v6866, 4294901760
  %6868 = vmatmul.mubr.f32.gmra.mrb[0].mxu0 %v6867
  %v6869 = vpop.f32.mrb[0].mxu0
  %v6870 = vadd.f32 0.0, %v6869
  %v6871 = vpop.f32.mrb[0].mxu0
  %6872 = vdwg.mxu0
  %6873 = vmatprep.subr.mxu0 0.0
  %v6874 = vand.u32 %v35, 4294901760
  %v6875 = vsub.f32 %v35, %v6874
  %v6876 = vand.u32 %v6875, 4294901760
  %v6877 = vsub.f32 %v6875, %v6876
  %v6878 = vand.u32 %v6877, 4294901760
  %6879 = vmatpush1.msra.mxu0 %v6878
  %6880 = vmatprep.subr.mxu0 0.0
  %v6881 = vand.u32 %v36, 4294901760
  %v6882 = vsub.f32 %v36, %v6881
  %v6883 = vand.u32 %v6882, 4294901760
  %v6884 = vsub.f32 %v6882, %v6883
  %v6885 = vand.u32 %v6884, 4294901760
  %6886 = vmatpush1.msra.mxu0 %v6885
  %6887 = vmatprep.subr.mxu0 0.0
  %v6888 = vand.u32 %v37, 4294901760
  %v6889 = vsub.f32 %v37, %v6888
  %v6890 = vand.u32 %v6889, 4294901760
  %v6891 = vsub.f32 %v6889, %v6890
  %v6892 = vand.u32 %v6891, 4294901760
  %6893 = vmatpush1.msra.mxu0 %v6892
  %6894 = vmatprep.subr.mxu0 0.0
  %v6895 = vand.u32 %v38, 4294901760
  %v6896 = vsub.f32 %v38, %v6895
  %v6897 = vand.u32 %v6896, 4294901760
  %v6898 = vsub.f32 %v6896, %v6897
  %v6899 = vand.u32 %v6898, 4294901760
  %6900 = vmatpush1.msra.mxu0 %v6899
  %6901 = vmatprep.subr.mxu0 0.0
  %v6902 = vand.u32 %v39, 4294901760
  %v6903 = vsub.f32 %v39, %v6902
  %v6904 = vand.u32 %v6903, 4294901760
  %v6905 = vsub.f32 %v6903, %v6904
  %v6906 = vand.u32 %v6905, 4294901760
  %6907 = vmatpush1.msra.mxu0 %v6906
  %6908 = vmatprep.subr.mxu0 0.0
  %v6909 = vand.u32 %v40, 4294901760
  %v6910 = vsub.f32 %v40, %v6909
  %v6911 = vand.u32 %v6910, 4294901760
  %v6912 = vsub.f32 %v6910, %v6911
  %v6913 = vand.u32 %v6912, 4294901760
  %6914 = vmatpush1.msra.mxu0 %v6913
  %6915 = vmatprep.subr.mxu0 0.0
  %v6916 = vand.u32 %v41, 4294901760
  %v6917 = vsub.f32 %v41, %v6916
  %v6918 = vand.u32 %v6917, 4294901760
  %v6919 = vsub.f32 %v6917, %v6918
  %v6920 = vand.u32 %v6919, 4294901760
  %6921 = vmatpush1.msra.mxu0 %v6920
  %6922 = vmatprep.subr.mxu0 0.0
  %v6923 = vand.u32 %v42, 4294901760
  %v6924 = vsub.f32 %v42, %v6923
  %v6925 = vand.u32 %v6924, 4294901760
  %v6926 = vsub.f32 %v6924, %v6925
  %v6927 = vand.u32 %v6926, 4294901760
  %6928 = vmatpush1.msra.mxu0 %v6927
  %6929 = vmatprep.subr.mxu0 0.0
  %v6930 = vand.u32 %v43, 4294901760
  %v6931 = vsub.f32 %v43, %v6930
  %v6932 = vand.u32 %v6931, 4294901760
  %v6933 = vsub.f32 %v6931, %v6932
  %v6934 = vand.u32 %v6933, 4294901760
  %6935 = vmatpush1.msra.mxu0 %v6934
  %6936 = vmatprep.subr.mxu0 0.0
  %v6937 = vand.u32 %v44, 4294901760
  %v6938 = vsub.f32 %v44, %v6937
  %v6939 = vand.u32 %v6938, 4294901760
  %v6940 = vsub.f32 %v6938, %v6939
  %v6941 = vand.u32 %v6940, 4294901760
  %6942 = vmatpush1.msra.mxu0 %v6941
  %6943 = vmatprep.subr.mxu0 0.0
  %v6944 = vand.u32 %v45, 4294901760
  %v6945 = vsub.f32 %v45, %v6944
  %v6946 = vand.u32 %v6945, 4294901760
  %v6947 = vsub.f32 %v6945, %v6946
  %v6948 = vand.u32 %v6947, 4294901760
  %6949 = vmatpush1.msra.mxu0 %v6948
  %6950 = vmatprep.subr.mxu0 0.0
  %v6951 = vand.u32 %v46, 4294901760
  %v6952 = vsub.f32 %v46, %v6951
  %v6953 = vand.u32 %v6952, 4294901760
  %v6954 = vsub.f32 %v6952, %v6953
  %v6955 = vand.u32 %v6954, 4294901760
  %6956 = vmatpush1.msra.mxu0 %v6955
  %6957 = vmatprep.subr.mxu0 0.0
  %v6958 = vand.u32 %v47, 4294901760
  %v6959 = vsub.f32 %v47, %v6958
  %v6960 = vand.u32 %v6959, 4294901760
  %v6961 = vsub.f32 %v6959, %v6960
  %v6962 = vand.u32 %v6961, 4294901760
  %6963 = vmatpush1.msra.mxu0 %v6962
  %6964 = vmatprep.subr.mxu0 0.0
  %v6965 = vand.u32 %v48, 4294901760
  %v6966 = vsub.f32 %v48, %v6965
  %v6967 = vand.u32 %v6966, 4294901760
  %v6968 = vsub.f32 %v6966, %v6967
  %v6969 = vand.u32 %v6968, 4294901760
  %6970 = vmatpush1.msra.mxu0 %v6969
  %6971 = vmatprep.subr.mxu0 0.0
  %v6972 = vand.u32 %v49, 4294901760
  %v6973 = vsub.f32 %v49, %v6972
  %v6974 = vand.u32 %v6973, 4294901760
  %v6975 = vsub.f32 %v6973, %v6974
  %v6976 = vand.u32 %v6975, 4294901760
  %6977 = vmatpush1.msra.mxu0 %v6976
  %6978 = vmatprep.subr.mxu0 0.0
  %v6979 = vand.u32 %v50, 4294901760
  %v6980 = vsub.f32 %v50, %v6979
  %v6981 = vand.u32 %v6980, 4294901760
  %v6982 = vsub.f32 %v6980, %v6981
  %v6983 = vand.u32 %v6982, 4294901760
  %6984 = vmatpush1.msra.mxu0 %v6983
  %6985 = vmatprep.subr.mxu0 0.0
  %6986 = vmatpush1.msra.mxu0 0.0
  %6987 = vmatprep.subr.mxu0 0.0
  %6988 = vmatpush1.msra.mxu0 0.0
  %6989 = vmatprep.subr.mxu0 0.0
  %6990 = vmatpush1.msra.mxu0 0.0
  %6991 = vmatprep.subr.mxu0 0.0
  %6992 = vmatpush1.msra.mxu0 0.0
  %6993 = vmatprep.subr.mxu0 0.0
  %6994 = vmatpush1.msra.mxu0 0.0
  %6995 = vmatprep.subr.mxu0 0.0
  %6996 = vmatpush1.msra.mxu0 0.0
  %6997 = vmatprep.subr.mxu0 0.0
  %6998 = vmatpush1.msra.mxu0 0.0
  %6999 = vmatprep.subr.mxu0 0.0
  %7000 = vmatpush1.msra.mxu0 0.0
  %7001 = vmatprep.subr.mxu0 0.0
  %7002 = vmatpush1.msra.mxu0 0.0
  %7003 = vmatprep.subr.mxu0 0.0
  %7004 = vmatpush1.msra.mxu0 0.0
  %7005 = vmatprep.subr.mxu0 0.0
  %7006 = vmatpush1.msra.mxu0 0.0
  %7007 = vmatprep.subr.mxu0 0.0
  %7008 = vmatpush1.msra.mxu0 0.0
  %7009 = vmatprep.subr.mxu0 0.0
  %7010 = vmatpush1.msra.mxu0 0.0
  %7011 = vmatprep.subr.mxu0 0.0
  %7012 = vmatpush1.msra.mxu0 0.0
  %7013 = vmatprep.subr.mxu0 0.0
  %7014 = vmatpush1.msra.mxu0 0.0
  %7015 = vmatprep.subr.mxu0 0.0
  %7016 = vmatpush1.msra.mxu0 0.0
  %7017 = vmatprep.mubr.f32.mxu0 0.0
  %v7018 = vand.u32 %v6616, 4294901760
  %7019 = vmatmul.mubr.f32.gmra.mrb[0].mxu0 %v7018
  %v7020 = vpop.f32.mrb[0].mxu0
  %v7021 = vadd.f32 %v6720, %v7020
  %v7022 = vpop.f32.mrb[0].mxu0
  %7023 = vmatprep.mubr.f32.mxu0 0.0
  %v7024 = vand.u32 %v6617, 4294901760
  %7025 = vmatmul.mubr.f32.gmra.mrb[0].mxu0 %v7024
  %v7026 = vpop.f32.mrb[0].mxu0
  %v7027 = vadd.f32 %v6730, %v7026
  %v7028 = vpop.f32.mrb[0].mxu0
  %7029 = vmatprep.mubr.f32.mxu0 0.0
  %v7030 = vand.u32 %v6618, 4294901760
  %7031 = vmatmul.mubr.f32.gmra.mrb[0].mxu0 %v7030
  %v7032 = vpop.f32.mrb[0].mxu0
  %v7033 = vadd.f32 %v6740, %v7032
  %v7034 = vpop.f32.mrb[0].mxu0
  %7035 = vmatprep.mubr.f32.mxu0 0.0
  %v7036 = vand.u32 %v6619, 4294901760
  %7037 = vmatmul.mubr.f32.gmra.mrb[0].mxu0 %v7036
  %v7038 = vpop.f32.mrb[0].mxu0
  %v7039 = vadd.f32 %v6750, %v7038
  %v7040 = vpop.f32.mrb[0].mxu0
  %7041 = vmatprep.mubr.f32.mxu0 0.0
  %v7042 = vand.u32 %v6620, 4294901760
  %7043 = vmatmul.mubr.f32.gmra.mrb[0].mxu0 %v7042
  %v7044 = vpop.f32.mrb[0].mxu0
  %v7045 = vadd.f32 %v6760, %v7044
  %v7046 = vpop.f32.mrb[0].mxu0
  %7047 = vmatprep.mubr.f32.mxu0 0.0
  %v7048 = vand.u32 %v6621, 4294901760
  %7049 = vmatmul.mubr.f32.gmra.mrb[0].mxu0 %v7048
  %v7050 = vpop.f32.mrb[0].mxu0
  %v7051 = vadd.f32 %v6770, %v7050
  %v7052 = vpop.f32.mrb[0].mxu0
  %7053 = vmatprep.mubr.f32.mxu0 0.0
  %v7054 = vand.u32 %v6622, 4294901760
  %7055 = vmatmul.mubr.f32.gmra.mrb[0].mxu0 %v7054
  %v7056 = vpop.f32.mrb[0].mxu0
  %v7057 = vadd.f32 %v6780, %v7056
  %v7058 = vpop.f32.mrb[0].mxu0
  %7059 = vmatprep.mubr.f32.mxu0 0.0
  %v7060 = vand.u32 %v6623, 4294901760
  %7061 = vmatmul.mubr.f32.gmra.mrb[0].mxu0 %v7060
  %v7062 = vpop.f32.mrb[0].mxu0
  %v7063 = vadd.f32 %v6790, %v7062
  %v7064 = vpop.f32.mrb[0].mxu0
  %7065 = vmatprep.mubr.f32.mxu0 0.0
  %v7066 = vand.u32 %v6624, 4294901760
  %7067 = vmatmul.mubr.f32.gmra.mrb[0].mxu0 %v7066
  %v7068 = vpop.f32.mrb[0].mxu0
  %v7069 = vadd.f32 %v6800, %v7068
  %v7070 = vpop.f32.mrb[0].mxu0
  %7071 = vmatprep.mubr.f32.mxu0 0.0
  %v7072 = vand.u32 %v6625, 4294901760
  %7073 = vmatmul.mubr.f32.gmra.mrb[0].mxu0 %v7072
  %v7074 = vpop.f32.mrb[0].mxu0
  %v7075 = vadd.f32 %v6810, %v7074
  %v7076 = vpop.f32.mrb[0].mxu0
  %7077 = vmatprep.mubr.f32.mxu0 0.0
  %v7078 = vand.u32 %v6626, 4294901760
  %7079 = vmatmul.mubr.f32.gmra.mrb[0].mxu0 %v7078
  %v7080 = vpop.f32.mrb[0].mxu0
  %v7081 = vadd.f32 %v6820, %v7080
  %v7082 = vpop.f32.mrb[0].mxu0
  %7083 = vmatprep.mubr.f32.mxu0 0.0
  %v7084 = vand.u32 %v6627, 4294901760
  %7085 = vmatmul.mubr.f32.gmra.mrb[0].mxu0 %v7084
  %v7086 = vpop.f32.mrb[0].mxu0
  %v7087 = vadd.f32 %v6830, %v7086
  %v7088 = vpop.f32.mrb[0].mxu0
  %7089 = vmatprep.mubr.f32.mxu0 0.0
  %v7090 = vand.u32 %v6628, 4294901760
  %7091 = vmatmul.mubr.f32.gmra.mrb[0].mxu0 %v7090
  %v7092 = vpop.f32.mrb[0].mxu0
  %v7093 = vadd.f32 %v6840, %v7092
  %v7094 = vpop.f32.mrb[0].mxu0
  %7095 = vmatprep.mubr.f32.mxu0 0.0
  %v7096 = vand.u32 %v6629, 4294901760
  %7097 = vmatmul.mubr.f32.gmra.mrb[0].mxu0 %v7096
  %v7098 = vpop.f32.mrb[0].mxu0
  %v7099 = vadd.f32 %v6850, %v7098
  %v7100 = vpop.f32.mrb[0].mxu0
  %7101 = vmatprep.mubr.f32.mxu0 0.0
  %v7102 = vand.u32 %v6630, 4294901760
  %7103 = vmatmul.mubr.f32.gmra.mrb[0].mxu0 %v7102
  %v7104 = vpop.f32.mrb[0].mxu0
  %v7105 = vadd.f32 %v6860, %v7104
  %v7106 = vpop.f32.mrb[0].mxu0
  %7107 = vmatprep.mubr.f32.mxu0 0.0
  %v7108 = vand.u32 %v6631, 4294901760
  %7109 = vmatmul.mubr.f32.gmra.mrb[0].mxu0 %v7108
  %v7110 = vpop.f32.mrb[0].mxu0
  %v7111 = vadd.f32 %v6870, %v7110
  %v7112 = vpop.f32.mrb[0].mxu0
  %7113 = vdwg.mxu0
  %7114 = vmatprep.subr.mxu0 0.0
  %v7115 = vand.u32 %v35, 4294901760
  %v7116 = vsub.f32 %v35, %v7115
  %7117 = vmatpush1.msra.mxu0 %v7116
  %7118 = vmatprep.subr.mxu0 0.0
  %v7119 = vand.u32 %v36, 4294901760
  %v7120 = vsub.f32 %v36, %v7119
  %7121 = vmatpush1.msra.mxu0 %v7120
  %7122 = vmatprep.subr.mxu0 0.0
  %v7123 = vand.u32 %v37, 4294901760
  %v7124 = vsub.f32 %v37, %v7123
  %7125 = vmatpush1.msra.mxu0 %v7124
  %7126 = vmatprep.subr.mxu0 0.0
  %v7127 = vand.u32 %v38, 4294901760
  %v7128 = vsub.f32 %v38, %v7127
  %7129 = vmatpush1.msra.mxu0 %v7128
  %7130 = vmatprep.subr.mxu0 0.0
  %v7131 = vand.u32 %v39, 4294901760
  %v7132 = vsub.f32 %v39, %v7131
  %7133 = vmatpush1.msra.mxu0 %v7132
  %7134 = vmatprep.subr.mxu0 0.0
  %v7135 = vand.u32 %v40, 4294901760
  %v7136 = vsub.f32 %v40, %v7135
  %7137 = vmatpush1.msra.mxu0 %v7136
  %7138 = vmatprep.subr.mxu0 0.0
  %v7139 = vand.u32 %v41, 4294901760
  %v7140 = vsub.f32 %v41, %v7139
  %7141 = vmatpush1.msra.mxu0 %v7140
  %7142 = vmatprep.subr.mxu0 0.0
  %v7143 = vand.u32 %v42, 4294901760
  %v7144 = vsub.f32 %v42, %v7143
  %7145 = vmatpush1.msra.mxu0 %v7144
  %7146 = vmatprep.subr.mxu0 0.0
  %v7147 = vand.u32 %v43, 4294901760
  %v7148 = vsub.f32 %v43, %v7147
  %7149 = vmatpush1.msra.mxu0 %v7148
  %7150 = vmatprep.subr.mxu0 0.0
  %v7151 = vand.u32 %v44, 4294901760
  %v7152 = vsub.f32 %v44, %v7151
  %7153 = vmatpush1.msra.mxu0 %v7152
  %7154 = vmatprep.subr.mxu0 0.0
  %v7155 = vand.u32 %v45, 4294901760
  %v7156 = vsub.f32 %v45, %v7155
  %7157 = vmatpush1.msra.mxu0 %v7156
  %7158 = vmatprep.subr.mxu0 0.0
  %v7159 = vand.u32 %v46, 4294901760
  %v7160 = vsub.f32 %v46, %v7159
  %7161 = vmatpush1.msra.mxu0 %v7160
  %7162 = vmatprep.subr.mxu0 0.0
  %v7163 = vand.u32 %v47, 4294901760
  %v7164 = vsub.f32 %v47, %v7163
  %7165 = vmatpush1.msra.mxu0 %v7164
  %7166 = vmatprep.subr.mxu0 0.0
  %v7167 = vand.u32 %v48, 4294901760
  %v7168 = vsub.f32 %v48, %v7167
  %7169 = vmatpush1.msra.mxu0 %v7168
  %7170 = vmatprep.subr.mxu0 0.0
  %v7171 = vand.u32 %v49, 4294901760
  %v7172 = vsub.f32 %v49, %v7171
  %7173 = vmatpush1.msra.mxu0 %v7172
  %7174 = vmatprep.subr.mxu0 0.0
  %v7175 = vand.u32 %v50, 4294901760
  %v7176 = vsub.f32 %v50, %v7175
  %7177 = vmatpush1.msra.mxu0 %v7176
  %7178 = vmatprep.subr.mxu0 0.0
  %7179 = vmatpush1.msra.mxu0 0.0
  %7180 = vmatprep.subr.mxu0 0.0
  %7181 = vmatpush1.msra.mxu0 0.0
  %7182 = vmatprep.subr.mxu0 0.0
  %7183 = vmatpush1.msra.mxu0 0.0
  %7184 = vmatprep.subr.mxu0 0.0
  %7185 = vmatpush1.msra.mxu0 0.0
  %7186 = vmatprep.subr.mxu0 0.0
  %7187 = vmatpush1.msra.mxu0 0.0
  %7188 = vmatprep.subr.mxu0 0.0
  %7189 = vmatpush1.msra.mxu0 0.0
  %7190 = vmatprep.subr.mxu0 0.0
  %7191 = vmatpush1.msra.mxu0 0.0
  %7192 = vmatprep.subr.mxu0 0.0
  %7193 = vmatpush1.msra.mxu0 0.0
  %7194 = vmatprep.subr.mxu0 0.0
  %7195 = vmatpush1.msra.mxu0 0.0
  %7196 = vmatprep.subr.mxu0 0.0
  %7197 = vmatpush1.msra.mxu0 0.0
  %7198 = vmatprep.subr.mxu0 0.0
  %7199 = vmatpush1.msra.mxu0 0.0
  %7200 = vmatprep.subr.mxu0 0.0
  %7201 = vmatpush1.msra.mxu0 0.0
  %7202 = vmatprep.subr.mxu0 0.0
  %7203 = vmatpush1.msra.mxu0 0.0
  %7204 = vmatprep.subr.mxu0 0.0
  %7205 = vmatpush1.msra.mxu0 0.0
  %7206 = vmatprep.subr.mxu0 0.0
  %7207 = vmatpush1.msra.mxu0 0.0
  %7208 = vmatprep.subr.mxu0 0.0
  %7209 = vmatpush1.msra.mxu0 0.0
  %7210 = vmatprep.mubr.f32.mxu0 0.0
  %v7211 = vand.u32 %v6616, 4294901760
  %v7212 = vsub.f32 %v6616, %v7211
  %7213 = vmatmul.mubr.f32.gmra.mrb[0].mxu0 %v7212
  %v7214 = vpop.f32.mrb[0].mxu0
  %v7215 = vadd.f32 %v7021, %v7214
  %v7216 = vpop.f32.mrb[0].mxu0
  %7217 = vmatprep.mubr.f32.mxu0 0.0
  %v7218 = vand.u32 %v6617, 4294901760
  %v7219 = vsub.f32 %v6617, %v7218
  %7220 = vmatmul.mubr.f32.gmra.mrb[0].mxu0 %v7219
  %v7221 = vpop.f32.mrb[0].mxu0
  %v7222 = vadd.f32 %v7027, %v7221
  %v7223 = vpop.f32.mrb[0].mxu0
  %7224 = vmatprep.mubr.f32.mxu0 0.0
  %v7225 = vand.u32 %v6618, 4294901760
  %v7226 = vsub.f32 %v6618, %v7225
  %7227 = vmatmul.mubr.f32.gmra.mrb[0].mxu0 %v7226
  %v7228 = vpop.f32.mrb[0].mxu0
  %v7229 = vadd.f32 %v7033, %v7228
  %v7230 = vpop.f32.mrb[0].mxu0
  %7231 = vmatprep.mubr.f32.mxu0 0.0
  %v7232 = vand.u32 %v6619, 4294901760
  %v7233 = vsub.f32 %v6619, %v7232
  %7234 = vmatmul.mubr.f32.gmra.mrb[0].mxu0 %v7233
  %v7235 = vpop.f32.mrb[0].mxu0
  %v7236 = vadd.f32 %v7039, %v7235
  %v7237 = vpop.f32.mrb[0].mxu0
  %7238 = vmatprep.mubr.f32.mxu0 0.0
  %v7239 = vand.u32 %v6620, 4294901760
  %v7240 = vsub.f32 %v6620, %v7239
  %7241 = vmatmul.mubr.f32.gmra.mrb[0].mxu0 %v7240
  %v7242 = vpop.f32.mrb[0].mxu0
  %v7243 = vadd.f32 %v7045, %v7242
  %v7244 = vpop.f32.mrb[0].mxu0
  %7245 = vmatprep.mubr.f32.mxu0 0.0
  %v7246 = vand.u32 %v6621, 4294901760
  %v7247 = vsub.f32 %v6621, %v7246
  %7248 = vmatmul.mubr.f32.gmra.mrb[0].mxu0 %v7247
  %v7249 = vpop.f32.mrb[0].mxu0
  %v7250 = vadd.f32 %v7051, %v7249
  %v7251 = vpop.f32.mrb[0].mxu0
  %7252 = vmatprep.mubr.f32.mxu0 0.0
  %v7253 = vand.u32 %v6622, 4294901760
  %v7254 = vsub.f32 %v6622, %v7253
  %7255 = vmatmul.mubr.f32.gmra.mrb[0].mxu0 %v7254
  %v7256 = vpop.f32.mrb[0].mxu0
  %v7257 = vadd.f32 %v7057, %v7256
  %v7258 = vpop.f32.mrb[0].mxu0
  %7259 = vmatprep.mubr.f32.mxu0 0.0
  %v7260 = vand.u32 %v6623, 4294901760
  %v7261 = vsub.f32 %v6623, %v7260
  %7262 = vmatmul.mubr.f32.gmra.mrb[0].mxu0 %v7261
  %v7263 = vpop.f32.mrb[0].mxu0
  %v7264 = vadd.f32 %v7063, %v7263
  %v7265 = vpop.f32.mrb[0].mxu0
  %7266 = vmatprep.mubr.f32.mxu0 0.0
  %v7267 = vand.u32 %v6624, 4294901760
  %v7268 = vsub.f32 %v6624, %v7267
  %7269 = vmatmul.mubr.f32.gmra.mrb[0].mxu0 %v7268
  %v7270 = vpop.f32.mrb[0].mxu0
  %v7271 = vadd.f32 %v7069, %v7270
  %v7272 = vpop.f32.mrb[0].mxu0
  %7273 = vmatprep.mubr.f32.mxu0 0.0
  %v7274 = vand.u32 %v6625, 4294901760
  %v7275 = vsub.f32 %v6625, %v7274
  %7276 = vmatmul.mubr.f32.gmra.mrb[0].mxu0 %v7275
  %v7277 = vpop.f32.mrb[0].mxu0
  %v7278 = vadd.f32 %v7075, %v7277
  %v7279 = vpop.f32.mrb[0].mxu0
  %7280 = vmatprep.mubr.f32.mxu0 0.0
  %v7281 = vand.u32 %v6626, 4294901760
  %v7282 = vsub.f32 %v6626, %v7281
  %7283 = vmatmul.mubr.f32.gmra.mrb[0].mxu0 %v7282
  %v7284 = vpop.f32.mrb[0].mxu0
  %v7285 = vadd.f32 %v7081, %v7284
  %v7286 = vpop.f32.mrb[0].mxu0
  %7287 = vmatprep.mubr.f32.mxu0 0.0
  %v7288 = vand.u32 %v6627, 4294901760
  %v7289 = vsub.f32 %v6627, %v7288
  %7290 = vmatmul.mubr.f32.gmra.mrb[0].mxu0 %v7289
  %v7291 = vpop.f32.mrb[0].mxu0
  %v7292 = vadd.f32 %v7087, %v7291
  %v7293 = vpop.f32.mrb[0].mxu0
  %7294 = vmatprep.mubr.f32.mxu0 0.0
  %v7295 = vand.u32 %v6628, 4294901760
  %v7296 = vsub.f32 %v6628, %v7295
  %7297 = vmatmul.mubr.f32.gmra.mrb[0].mxu0 %v7296
  %v7298 = vpop.f32.mrb[0].mxu0
  %v7299 = vadd.f32 %v7093, %v7298
  %v7300 = vpop.f32.mrb[0].mxu0
  %7301 = vmatprep.mubr.f32.mxu0 0.0
  %v7302 = vand.u32 %v6629, 4294901760
  %v7303 = vsub.f32 %v6629, %v7302
  %7304 = vmatmul.mubr.f32.gmra.mrb[0].mxu0 %v7303
  %v7305 = vpop.f32.mrb[0].mxu0
  %v7306 = vadd.f32 %v7099, %v7305
  %v7307 = vpop.f32.mrb[0].mxu0
  %7308 = vmatprep.mubr.f32.mxu0 0.0
  %v7309 = vand.u32 %v6630, 4294901760
  %v7310 = vsub.f32 %v6630, %v7309
  %7311 = vmatmul.mubr.f32.gmra.mrb[0].mxu0 %v7310
  %v7312 = vpop.f32.mrb[0].mxu0
  %v7313 = vadd.f32 %v7105, %v7312
  %v7314 = vpop.f32.mrb[0].mxu0
  %7315 = vmatprep.mubr.f32.mxu0 0.0
  %v7316 = vand.u32 %v6631, 4294901760
  %v7317 = vsub.f32 %v6631, %v7316
  %7318 = vmatmul.mubr.f32.gmra.mrb[0].mxu0 %v7317
  %v7319 = vpop.f32.mrb[0].mxu0
  %v7320 = vadd.f32 %v7111, %v7319
  %v7321 = vpop.f32.mrb[0].mxu0
  %7322 = vdwg.mxu0
  %7323 = vmatprep.subr.mxu0 0.0
  %v7324 = vand.u32 %v35, 4294901760
  %7325 = vmatpush1.msra.mxu0 %v7324
  %7326 = vmatprep.subr.mxu0 0.0
  %v7327 = vand.u32 %v36, 4294901760
  %7328 = vmatpush1.msra.mxu0 %v7327
  %7329 = vmatprep.subr.mxu0 0.0
  %v7330 = vand.u32 %v37, 4294901760
  %7331 = vmatpush1.msra.mxu0 %v7330
  %7332 = vmatprep.subr.mxu0 0.0
  %v7333 = vand.u32 %v38, 4294901760
  %7334 = vmatpush1.msra.mxu0 %v7333
  %7335 = vmatprep.subr.mxu0 0.0
  %v7336 = vand.u32 %v39, 4294901760
  %7337 = vmatpush1.msra.mxu0 %v7336
  %7338 = vmatprep.subr.mxu0 0.0
  %v7339 = vand.u32 %v40, 4294901760
  %7340 = vmatpush1.msra.mxu0 %v7339
  %7341 = vmatprep.subr.mxu0 0.0
  %v7342 = vand.u32 %v41, 4294901760
  %7343 = vmatpush1.msra.mxu0 %v7342
  %7344 = vmatprep.subr.mxu0 0.0
  %v7345 = vand.u32 %v42, 4294901760
  %7346 = vmatpush1.msra.mxu0 %v7345
  %7347 = vmatprep.subr.mxu0 0.0
  %v7348 = vand.u32 %v43, 4294901760
  %7349 = vmatpush1.msra.mxu0 %v7348
  %7350 = vmatprep.subr.mxu0 0.0
  %v7351 = vand.u32 %v44, 4294901760
  %7352 = vmatpush1.msra.mxu0 %v7351
  %7353 = vmatprep.subr.mxu0 0.0
  %v7354 = vand.u32 %v45, 4294901760
  %7355 = vmatpush1.msra.mxu0 %v7354
  %7356 = vmatprep.subr.mxu0 0.0
  %v7357 = vand.u32 %v46, 4294901760
  %7358 = vmatpush1.msra.mxu0 %v7357
  %7359 = vmatprep.subr.mxu0 0.0
  %v7360 = vand.u32 %v47, 4294901760
  %7361 = vmatpush1.msra.mxu0 %v7360
  %7362 = vmatprep.subr.mxu0 0.0
  %v7363 = vand.u32 %v48, 4294901760
  %7364 = vmatpush1.msra.mxu0 %v7363
  %7365 = vmatprep.subr.mxu0 0.0
  %v7366 = vand.u32 %v49, 4294901760
  %7367 = vmatpush1.msra.mxu0 %v7366
  %7368 = vmatprep.subr.mxu0 0.0
  %v7369 = vand.u32 %v50, 4294901760
  %7370 = vmatpush1.msra.mxu0 %v7369
  %7371 = vmatprep.subr.mxu0 0.0
  %7372 = vmatpush1.msra.mxu0 0.0
  %7373 = vmatprep.subr.mxu0 0.0
  %7374 = vmatpush1.msra.mxu0 0.0
  %7375 = vmatprep.subr.mxu0 0.0
  %7376 = vmatpush1.msra.mxu0 0.0
  %7377 = vmatprep.subr.mxu0 0.0
  %7378 = vmatpush1.msra.mxu0 0.0
  %7379 = vmatprep.subr.mxu0 0.0
  %7380 = vmatpush1.msra.mxu0 0.0
  %7381 = vmatprep.subr.mxu0 0.0
  %7382 = vmatpush1.msra.mxu0 0.0
  %7383 = vmatprep.subr.mxu0 0.0
  %7384 = vmatpush1.msra.mxu0 0.0
  %7385 = vmatprep.subr.mxu0 0.0
  %7386 = vmatpush1.msra.mxu0 0.0
  %7387 = vmatprep.subr.mxu0 0.0
  %7388 = vmatpush1.msra.mxu0 0.0
  %7389 = vmatprep.subr.mxu0 0.0
  %7390 = vmatpush1.msra.mxu0 0.0
  %7391 = vmatprep.subr.mxu0 0.0
  %7392 = vmatpush1.msra.mxu0 0.0
  %7393 = vmatprep.subr.mxu0 0.0
  %7394 = vmatpush1.msra.mxu0 0.0
  %7395 = vmatprep.subr.mxu0 0.0
  %7396 = vmatpush1.msra.mxu0 0.0
  %7397 = vmatprep.subr.mxu0 0.0
  %7398 = vmatpush1.msra.mxu0 0.0
  %7399 = vmatprep.subr.mxu0 0.0
  %7400 = vmatpush1.msra.mxu0 0.0
  %7401 = vmatprep.subr.mxu0 0.0
  %7402 = vmatpush1.msra.mxu0 0.0
  %7403 = vmatprep.mubr.f32.mxu0 0.0
  %v7404 = vand.u32 %v6616, 4294901760
  %v7405 = vsub.f32 %v6616, %v7404
  %v7406 = vand.u32 %v7405, 4294901760
  %7407 = vmatmul.mubr.f32.gmra.mrb[0].mxu0 %v7406
  %v7408 = vpop.f32.mrb[0].mxu0
  %v7409 = vadd.f32 %v7215, %v7408
  %v7410 = vpop.f32.mrb[0].mxu0
  %7411 = vmatprep.mubr.f32.mxu0 0.0
  %v7412 = vand.u32 %v6617, 4294901760
  %v7413 = vsub.f32 %v6617, %v7412
  %v7414 = vand.u32 %v7413, 4294901760
  %7415 = vmatmul.mubr.f32.gmra.mrb[0].mxu0 %v7414
  %v7416 = vpop.f32.mrb[0].mxu0
  %v7417 = vadd.f32 %v7222, %v7416
  %v7418 = vpop.f32.mrb[0].mxu0
  %7419 = vmatprep.mubr.f32.mxu0 0.0
  %v7420 = vand.u32 %v6618, 4294901760
  %v7421 = vsub.f32 %v6618, %v7420
  %v7422 = vand.u32 %v7421, 4294901760
  %7423 = vmatmul.mubr.f32.gmra.mrb[0].mxu0 %v7422
  %v7424 = vpop.f32.mrb[0].mxu0
  %v7425 = vadd.f32 %v7229, %v7424
  %v7426 = vpop.f32.mrb[0].mxu0
  %7427 = vmatprep.mubr.f32.mxu0 0.0
  %v7428 = vand.u32 %v6619, 4294901760
  %v7429 = vsub.f32 %v6619, %v7428
  %v7430 = vand.u32 %v7429, 4294901760
  %7431 = vmatmul.mubr.f32.gmra.mrb[0].mxu0 %v7430
  %v7432 = vpop.f32.mrb[0].mxu0
  %v7433 = vadd.f32 %v7236, %v7432
  %v7434 = vpop.f32.mrb[0].mxu0
  %7435 = vmatprep.mubr.f32.mxu0 0.0
  %v7436 = vand.u32 %v6620, 4294901760
  %v7437 = vsub.f32 %v6620, %v7436
  %v7438 = vand.u32 %v7437, 4294901760
  %7439 = vmatmul.mubr.f32.gmra.mrb[0].mxu0 %v7438
  %v7440 = vpop.f32.mrb[0].mxu0
  %v7441 = vadd.f32 %v7243, %v7440
  %v7442 = vpop.f32.mrb[0].mxu0
  %7443 = vmatprep.mubr.f32.mxu0 0.0
  %v7444 = vand.u32 %v6621, 4294901760
  %v7445 = vsub.f32 %v6621, %v7444
  %v7446 = vand.u32 %v7445, 4294901760
  %7447 = vmatmul.mubr.f32.gmra.mrb[0].mxu0 %v7446
  %v7448 = vpop.f32.mrb[0].mxu0
  %v7449 = vadd.f32 %v7250, %v7448
  %v7450 = vpop.f32.mrb[0].mxu0
  %7451 = vmatprep.mubr.f32.mxu0 0.0
  %v7452 = vand.u32 %v6622, 4294901760
  %v7453 = vsub.f32 %v6622, %v7452
  %v7454 = vand.u32 %v7453, 4294901760
  %7455 = vmatmul.mubr.f32.gmra.mrb[0].mxu0 %v7454
  %v7456 = vpop.f32.mrb[0].mxu0
  %v7457 = vadd.f32 %v7257, %v7456
  %v7458 = vpop.f32.mrb[0].mxu0
  %7459 = vmatprep.mubr.f32.mxu0 0.0
  %v7460 = vand.u32 %v6623, 4294901760
  %v7461 = vsub.f32 %v6623, %v7460
  %v7462 = vand.u32 %v7461, 4294901760
  %7463 = vmatmul.mubr.f32.gmra.mrb[0].mxu0 %v7462
  %v7464 = vpop.f32.mrb[0].mxu0
  %v7465 = vadd.f32 %v7264, %v7464
  %v7466 = vpop.f32.mrb[0].mxu0
  %7467 = vmatprep.mubr.f32.mxu0 0.0
  %v7468 = vand.u32 %v6624, 4294901760
  %v7469 = vsub.f32 %v6624, %v7468
  %v7470 = vand.u32 %v7469, 4294901760
  %7471 = vmatmul.mubr.f32.gmra.mrb[0].mxu0 %v7470
  %v7472 = vpop.f32.mrb[0].mxu0
  %v7473 = vadd.f32 %v7271, %v7472
  %v7474 = vpop.f32.mrb[0].mxu0
  %7475 = vmatprep.mubr.f32.mxu0 0.0
  %v7476 = vand.u32 %v6625, 4294901760
  %v7477 = vsub.f32 %v6625, %v7476
  %v7478 = vand.u32 %v7477, 4294901760
  %7479 = vmatmul.mubr.f32.gmra.mrb[0].mxu0 %v7478
  %v7480 = vpop.f32.mrb[0].mxu0
  %v7481 = vadd.f32 %v7278, %v7480
  %v7482 = vpop.f32.mrb[0].mxu0
  %7483 = vmatprep.mubr.f32.mxu0 0.0
  %v7484 = vand.u32 %v6626, 4294901760
  %v7485 = vsub.f32 %v6626, %v7484
  %v7486 = vand.u32 %v7485, 4294901760
  %7487 = vmatmul.mubr.f32.gmra.mrb[0].mxu0 %v7486
  %v7488 = vpop.f32.mrb[0].mxu0
  %v7489 = vadd.f32 %v7285, %v7488
  %v7490 = vpop.f32.mrb[0].mxu0
  %7491 = vmatprep.mubr.f32.mxu0 0.0
  %v7492 = vand.u32 %v6627, 4294901760
  %v7493 = vsub.f32 %v6627, %v7492
  %v7494 = vand.u32 %v7493, 4294901760
  %7495 = vmatmul.mubr.f32.gmra.mrb[0].mxu0 %v7494
  %v7496 = vpop.f32.mrb[0].mxu0
  %v7497 = vadd.f32 %v7292, %v7496
  %v7498 = vpop.f32.mrb[0].mxu0
  %7499 = vmatprep.mubr.f32.mxu0 0.0
  %v7500 = vand.u32 %v6628, 4294901760
  %v7501 = vsub.f32 %v6628, %v7500
  %v7502 = vand.u32 %v7501, 4294901760
  %7503 = vmatmul.mubr.f32.gmra.mrb[0].mxu0 %v7502
  %v7504 = vpop.f32.mrb[0].mxu0
  %v7505 = vadd.f32 %v7299, %v7504
  %v7506 = vpop.f32.mrb[0].mxu0
  %7507 = vmatprep.mubr.f32.mxu0 0.0
  %v7508 = vand.u32 %v6629, 4294901760
  %v7509 = vsub.f32 %v6629, %v7508
  %v7510 = vand.u32 %v7509, 4294901760
  %7511 = vmatmul.mubr.f32.gmra.mrb[0].mxu0 %v7510
  %v7512 = vpop.f32.mrb[0].mxu0
  %v7513 = vadd.f32 %v7306, %v7512
  %v7514 = vpop.f32.mrb[0].mxu0
  %7515 = vmatprep.mubr.f32.mxu0 0.0
  %v7516 = vand.u32 %v6630, 4294901760
  %v7517 = vsub.f32 %v6630, %v7516
  %v7518 = vand.u32 %v7517, 4294901760
  %7519 = vmatmul.mubr.f32.gmra.mrb[0].mxu0 %v7518
  %v7520 = vpop.f32.mrb[0].mxu0
  %v7521 = vadd.f32 %v7313, %v7520
  %v7522 = vpop.f32.mrb[0].mxu0
  %7523 = vmatprep.mubr.f32.mxu0 0.0
  %v7524 = vand.u32 %v6631, 4294901760
  %v7525 = vsub.f32 %v6631, %v7524
  %v7526 = vand.u32 %v7525, 4294901760
  %7527 = vmatmul.mubr.f32.gmra.mrb[0].mxu0 %v7526
  %v7528 = vpop.f32.mrb[0].mxu0
  %v7529 = vadd.f32 %v7320, %v7528
  %v7530 = vpop.f32.mrb[0].mxu0
  %7531 = vdwg.mxu0
  %7532 = vmatprep.subr.mxu0 0.0
  %v7533 = vand.u32 %v35, 4294901760
  %v7534 = vsub.f32 %v35, %v7533
  %v7535 = vand.u32 %v7534, 4294901760
  %7536 = vmatpush1.msra.mxu0 %v7535
  %7537 = vmatprep.subr.mxu0 0.0
  %v7538 = vand.u32 %v36, 4294901760
  %v7539 = vsub.f32 %v36, %v7538
  %v7540 = vand.u32 %v7539, 4294901760
  %7541 = vmatpush1.msra.mxu0 %v7540
  %7542 = vmatprep.subr.mxu0 0.0
  %v7543 = vand.u32 %v37, 4294901760
  %v7544 = vsub.f32 %v37, %v7543
  %v7545 = vand.u32 %v7544, 4294901760
  %7546 = vmatpush1.msra.mxu0 %v7545
  %7547 = vmatprep.subr.mxu0 0.0
  %v7548 = vand.u32 %v38, 4294901760
  %v7549 = vsub.f32 %v38, %v7548
  %v7550 = vand.u32 %v7549, 4294901760
  %7551 = vmatpush1.msra.mxu0 %v7550
  %7552 = vmatprep.subr.mxu0 0.0
  %v7553 = vand.u32 %v39, 4294901760
  %v7554 = vsub.f32 %v39, %v7553
  %v7555 = vand.u32 %v7554, 4294901760
  %7556 = vmatpush1.msra.mxu0 %v7555
  %7557 = vmatprep.subr.mxu0 0.0
  %v7558 = vand.u32 %v40, 4294901760
  %v7559 = vsub.f32 %v40, %v7558
  %v7560 = vand.u32 %v7559, 4294901760
  %7561 = vmatpush1.msra.mxu0 %v7560
  %7562 = vmatprep.subr.mxu0 0.0
  %v7563 = vand.u32 %v41, 4294901760
  %v7564 = vsub.f32 %v41, %v7563
  %v7565 = vand.u32 %v7564, 4294901760
  %7566 = vmatpush1.msra.mxu0 %v7565
  %7567 = vmatprep.subr.mxu0 0.0
  %v7568 = vand.u32 %v42, 4294901760
  %v7569 = vsub.f32 %v42, %v7568
  %v7570 = vand.u32 %v7569, 4294901760
  %7571 = vmatpush1.msra.mxu0 %v7570
  %7572 = vmatprep.subr.mxu0 0.0
  %v7573 = vand.u32 %v43, 4294901760
  %v7574 = vsub.f32 %v43, %v7573
  %v7575 = vand.u32 %v7574, 4294901760
  %7576 = vmatpush1.msra.mxu0 %v7575
  %7577 = vmatprep.subr.mxu0 0.0
  %v7578 = vand.u32 %v44, 4294901760
  %v7579 = vsub.f32 %v44, %v7578
  %v7580 = vand.u32 %v7579, 4294901760
  %7581 = vmatpush1.msra.mxu0 %v7580
  %7582 = vmatprep.subr.mxu0 0.0
  %v7583 = vand.u32 %v45, 4294901760
  %v7584 = vsub.f32 %v45, %v7583
  %v7585 = vand.u32 %v7584, 4294901760
  %7586 = vmatpush1.msra.mxu0 %v7585
  %7587 = vmatprep.subr.mxu0 0.0
  %v7588 = vand.u32 %v46, 4294901760
  %v7589 = vsub.f32 %v46, %v7588
  %v7590 = vand.u32 %v7589, 4294901760
  %7591 = vmatpush1.msra.mxu0 %v7590
  %7592 = vmatprep.subr.mxu0 0.0
  %v7593 = vand.u32 %v47, 4294901760
  %v7594 = vsub.f32 %v47, %v7593
  %v7595 = vand.u32 %v7594, 4294901760
  %7596 = vmatpush1.msra.mxu0 %v7595
  %7597 = vmatprep.subr.mxu0 0.0
  %v7598 = vand.u32 %v48, 4294901760
  %v7599 = vsub.f32 %v48, %v7598
  %v7600 = vand.u32 %v7599, 4294901760
  %7601 = vmatpush1.msra.mxu0 %v7600
  %7602 = vmatprep.subr.mxu0 0.0
  %v7603 = vand.u32 %v49, 4294901760
  %v7604 = vsub.f32 %v49, %v7603
  %v7605 = vand.u32 %v7604, 4294901760
  %7606 = vmatpush1.msra.mxu0 %v7605
  %7607 = vmatprep.subr.mxu0 0.0
  %v7608 = vand.u32 %v50, 4294901760
  %v7609 = vsub.f32 %v50, %v7608
  %v7610 = vand.u32 %v7609, 4294901760
  %7611 = vmatpush1.msra.mxu0 %v7610
  %7612 = vmatprep.subr.mxu0 0.0
  %7613 = vmatpush1.msra.mxu0 0.0
  %7614 = vmatprep.subr.mxu0 0.0
  %7615 = vmatpush1.msra.mxu0 0.0
  %7616 = vmatprep.subr.mxu0 0.0
  %7617 = vmatpush1.msra.mxu0 0.0
  %7618 = vmatprep.subr.mxu0 0.0
  %7619 = vmatpush1.msra.mxu0 0.0
  %7620 = vmatprep.subr.mxu0 0.0
  %7621 = vmatpush1.msra.mxu0 0.0
  %7622 = vmatprep.subr.mxu0 0.0
  %7623 = vmatpush1.msra.mxu0 0.0
  %7624 = vmatprep.subr.mxu0 0.0
  %7625 = vmatpush1.msra.mxu0 0.0
  %7626 = vmatprep.subr.mxu0 0.0
  %7627 = vmatpush1.msra.mxu0 0.0
  %7628 = vmatprep.subr.mxu0 0.0
  %7629 = vmatpush1.msra.mxu0 0.0
  %7630 = vmatprep.subr.mxu0 0.0
  %7631 = vmatpush1.msra.mxu0 0.0
  %7632 = vmatprep.subr.mxu0 0.0
  %7633 = vmatpush1.msra.mxu0 0.0
  %7634 = vmatprep.subr.mxu0 0.0
  %7635 = vmatpush1.msra.mxu0 0.0
  %7636 = vmatprep.subr.mxu0 0.0
  %7637 = vmatpush1.msra.mxu0 0.0
  %7638 = vmatprep.subr.mxu0 0.0
  %7639 = vmatpush1.msra.mxu0 0.0
  %7640 = vmatprep.subr.mxu0 0.0
  %7641 = vmatpush1.msra.mxu0 0.0
  %7642 = vmatprep.subr.mxu0 0.0
  %7643 = vmatpush1.msra.mxu0 0.0
  %7644 = vmatprep.mubr.f32.mxu0 0.0
  %v7645 = vand.u32 %v6616, 4294901760
  %7646 = vmatmul.mubr.f32.gmra.mrb[0].mxu0 %v7645
  %v7647 = vpop.f32.mrb[0].mxu0
  %v7648 = vadd.f32 %v7409, %v7647
  %v7649 = vpop.f32.mrb[0].mxu0
  %7650 = vmatprep.mubr.f32.mxu0 0.0
  %v7651 = vand.u32 %v6617, 4294901760
  %7652 = vmatmul.mubr.f32.gmra.mrb[0].mxu0 %v7651
  %v7653 = vpop.f32.mrb[0].mxu0
  %v7654 = vadd.f32 %v7417, %v7653
  %v7655 = vpop.f32.mrb[0].mxu0
  %7656 = vmatprep.mubr.f32.mxu0 0.0
  %v7657 = vand.u32 %v6618, 4294901760
  %7658 = vmatmul.mubr.f32.gmra.mrb[0].mxu0 %v7657
  %v7659 = vpop.f32.mrb[0].mxu0
  %v7660 = vadd.f32 %v7425, %v7659
  %v7661 = vpop.f32.mrb[0].mxu0
  %7662 = vmatprep.mubr.f32.mxu0 0.0
  %v7663 = vand.u32 %v6619, 4294901760
  %7664 = vmatmul.mubr.f32.gmra.mrb[0].mxu0 %v7663
  %v7665 = vpop.f32.mrb[0].mxu0
  %v7666 = vadd.f32 %v7433, %v7665
  %v7667 = vpop.f32.mrb[0].mxu0
  %7668 = vmatprep.mubr.f32.mxu0 0.0
  %v7669 = vand.u32 %v6620, 4294901760
  %7670 = vmatmul.mubr.f32.gmra.mrb[0].mxu0 %v7669
  %v7671 = vpop.f32.mrb[0].mxu0
  %v7672 = vadd.f32 %v7441, %v7671
  %v7673 = vpop.f32.mrb[0].mxu0
  %7674 = vmatprep.mubr.f32.mxu0 0.0
  %v7675 = vand.u32 %v6621, 4294901760
  %7676 = vmatmul.mubr.f32.gmra.mrb[0].mxu0 %v7675
  %v7677 = vpop.f32.mrb[0].mxu0
  %v7678 = vadd.f32 %v7449, %v7677
  %v7679 = vpop.f32.mrb[0].mxu0
  %7680 = vmatprep.mubr.f32.mxu0 0.0
  %v7681 = vand.u32 %v6622, 4294901760
  %7682 = vmatmul.mubr.f32.gmra.mrb[0].mxu0 %v7681
  %v7683 = vpop.f32.mrb[0].mxu0
  %v7684 = vadd.f32 %v7457, %v7683
  %v7685 = vpop.f32.mrb[0].mxu0
  %7686 = vmatprep.mubr.f32.mxu0 0.0
  %v7687 = vand.u32 %v6623, 4294901760
  %7688 = vmatmul.mubr.f32.gmra.mrb[0].mxu0 %v7687
  %v7689 = vpop.f32.mrb[0].mxu0
  %v7690 = vadd.f32 %v7465, %v7689
  %v7691 = vpop.f32.mrb[0].mxu0
  %7692 = vmatprep.mubr.f32.mxu0 0.0
  %v7693 = vand.u32 %v6624, 4294901760
  %7694 = vmatmul.mubr.f32.gmra.mrb[0].mxu0 %v7693
  %v7695 = vpop.f32.mrb[0].mxu0
  %v7696 = vadd.f32 %v7473, %v7695
  %v7697 = vpop.f32.mrb[0].mxu0
  %7698 = vmatprep.mubr.f32.mxu0 0.0
  %v7699 = vand.u32 %v6625, 4294901760
  %7700 = vmatmul.mubr.f32.gmra.mrb[0].mxu0 %v7699
  %v7701 = vpop.f32.mrb[0].mxu0
  %v7702 = vadd.f32 %v7481, %v7701
  %v7703 = vpop.f32.mrb[0].mxu0
  %7704 = vmatprep.mubr.f32.mxu0 0.0
  %v7705 = vand.u32 %v6626, 4294901760
  %7706 = vmatmul.mubr.f32.gmra.mrb[0].mxu0 %v7705
  %v7707 = vpop.f32.mrb[0].mxu0
  %v7708 = vadd.f32 %v7489, %v7707
  %v7709 = vpop.f32.mrb[0].mxu0
  %7710 = vmatprep.mubr.f32.mxu0 0.0
  %v7711 = vand.u32 %v6627, 4294901760
  %7712 = vmatmul.mubr.f32.gmra.mrb[0].mxu0 %v7711
  %v7713 = vpop.f32.mrb[0].mxu0
  %v7714 = vadd.f32 %v7497, %v7713
  %v7715 = vpop.f32.mrb[0].mxu0
  %7716 = vmatprep.mubr.f32.mxu0 0.0
  %v7717 = vand.u32 %v6628, 4294901760
  %7718 = vmatmul.mubr.f32.gmra.mrb[0].mxu0 %v7717
  %v7719 = vpop.f32.mrb[0].mxu0
  %v7720 = vadd.f32 %v7505, %v7719
  %v7721 = vpop.f32.mrb[0].mxu0
  %7722 = vmatprep.mubr.f32.mxu0 0.0
  %v7723 = vand.u32 %v6629, 4294901760
  %7724 = vmatmul.mubr.f32.gmra.mrb[0].mxu0 %v7723
  %v7725 = vpop.f32.mrb[0].mxu0
  %v7726 = vadd.f32 %v7513, %v7725
  %v7727 = vpop.f32.mrb[0].mxu0
  %7728 = vmatprep.mubr.f32.mxu0 0.0
  %v7729 = vand.u32 %v6630, 4294901760
  %7730 = vmatmul.mubr.f32.gmra.mrb[0].mxu0 %v7729
  %v7731 = vpop.f32.mrb[0].mxu0
  %v7732 = vadd.f32 %v7521, %v7731
  %v7733 = vpop.f32.mrb[0].mxu0
  %7734 = vmatprep.mubr.f32.mxu0 0.0
  %v7735 = vand.u32 %v6631, 4294901760
  %7736 = vmatmul.mubr.f32.gmra.mrb[0].mxu0 %v7735
  %v7737 = vpop.f32.mrb[0].mxu0
  %v7738 = vadd.f32 %v7529, %v7737
  %v7739 = vpop.f32.mrb[0].mxu0
  %7740 = vdwg.mxu0
  %7741 = vmatprep.subr.mxu0 0.0
  %v7742 = vand.u32 %v35, 4294901760
  %7743 = vmatpush1.msra.mxu0 %v7742
  %7744 = vmatprep.subr.mxu0 0.0
  %v7745 = vand.u32 %v36, 4294901760
  %7746 = vmatpush1.msra.mxu0 %v7745
  %7747 = vmatprep.subr.mxu0 0.0
  %v7748 = vand.u32 %v37, 4294901760
  %7749 = vmatpush1.msra.mxu0 %v7748
  %7750 = vmatprep.subr.mxu0 0.0
  %v7751 = vand.u32 %v38, 4294901760
  %7752 = vmatpush1.msra.mxu0 %v7751
  %7753 = vmatprep.subr.mxu0 0.0
  %v7754 = vand.u32 %v39, 4294901760
  %7755 = vmatpush1.msra.mxu0 %v7754
  %7756 = vmatprep.subr.mxu0 0.0
  %v7757 = vand.u32 %v40, 4294901760
  %7758 = vmatpush1.msra.mxu0 %v7757
  %7759 = vmatprep.subr.mxu0 0.0
  %v7760 = vand.u32 %v41, 4294901760
  %7761 = vmatpush1.msra.mxu0 %v7760
  %7762 = vmatprep.subr.mxu0 0.0
  %v7763 = vand.u32 %v42, 4294901760
  %7764 = vmatpush1.msra.mxu0 %v7763
  %7765 = vmatprep.subr.mxu0 0.0
  %v7766 = vand.u32 %v43, 4294901760
  %7767 = vmatpush1.msra.mxu0 %v7766
  %7768 = vmatprep.subr.mxu0 0.0
  %v7769 = vand.u32 %v44, 4294901760
  %7770 = vmatpush1.msra.mxu0 %v7769
  %7771 = vmatprep.subr.mxu0 0.0
  %v7772 = vand.u32 %v45, 4294901760
  %7773 = vmatpush1.msra.mxu0 %v7772
  %7774 = vmatprep.subr.mxu0 0.0
  %v7775 = vand.u32 %v46, 4294901760
  %7776 = vmatpush1.msra.mxu0 %v7775
  %7777 = vmatprep.subr.mxu0 0.0
  %v7778 = vand.u32 %v47, 4294901760
  %7779 = vmatpush1.msra.mxu0 %v7778
  %7780 = vmatprep.subr.mxu0 0.0
  %v7781 = vand.u32 %v48, 4294901760
  %7782 = vmatpush1.msra.mxu0 %v7781
  %7783 = vmatprep.subr.mxu0 0.0
  %v7784 = vand.u32 %v49, 4294901760
  %7785 = vmatpush1.msra.mxu0 %v7784
  %7786 = vmatprep.subr.mxu0 0.0
  %v7787 = vand.u32 %v50, 4294901760
  %7788 = vmatpush1.msra.mxu0 %v7787
  %7789 = vmatprep.subr.mxu0 0.0
  %7790 = vmatpush1.msra.mxu0 0.0
  %7791 = vmatprep.subr.mxu0 0.0
  %7792 = vmatpush1.msra.mxu0 0.0
  %7793 = vmatprep.subr.mxu0 0.0
  %7794 = vmatpush1.msra.mxu0 0.0
  %7795 = vmatprep.subr.mxu0 0.0
  %7796 = vmatpush1.msra.mxu0 0.0
  %7797 = vmatprep.subr.mxu0 0.0
  %7798 = vmatpush1.msra.mxu0 0.0
  %7799 = vmatprep.subr.mxu0 0.0
  %7800 = vmatpush1.msra.mxu0 0.0
  %7801 = vmatprep.subr.mxu0 0.0
  %7802 = vmatpush1.msra.mxu0 0.0
  %7803 = vmatprep.subr.mxu0 0.0
  %7804 = vmatpush1.msra.mxu0 0.0
  %7805 = vmatprep.subr.mxu0 0.0
  %7806 = vmatpush1.msra.mxu0 0.0
  %7807 = vmatprep.subr.mxu0 0.0
  %7808 = vmatpush1.msra.mxu0 0.0
  %7809 = vmatprep.subr.mxu0 0.0
  %7810 = vmatpush1.msra.mxu0 0.0
  %7811 = vmatprep.subr.mxu0 0.0
  %7812 = vmatpush1.msra.mxu0 0.0
  %7813 = vmatprep.subr.mxu0 0.0
  %7814 = vmatpush1.msra.mxu0 0.0
  %7815 = vmatprep.subr.mxu0 0.0
  %7816 = vmatpush1.msra.mxu0 0.0
  %7817 = vmatprep.subr.mxu0 0.0
  %7818 = vmatpush1.msra.mxu0 0.0
  %7819 = vmatprep.subr.mxu0 0.0
  %7820 = vmatpush1.msra.mxu0 0.0
  %7821 = vmatprep.mubr.f32.mxu0 0.0
  %v7822 = vand.u32 %v6616, 4294901760
  %7823 = vmatmul.mubr.f32.gmra.mrb[0].mxu0 %v7822
  %v7824 = vpop.f32.mrb[0].mxu0
  %v7825 = vadd.f32 %v7648, %v7824
  %v7826 = vpop.f32.mrb[0].mxu0
  %7827 = vmatprep.mubr.f32.mxu0 0.0
  %v7828 = vand.u32 %v6617, 4294901760
  %7829 = vmatmul.mubr.f32.gmra.mrb[0].mxu0 %v7828
  %v7830 = vpop.f32.mrb[0].mxu0
  %v7831 = vadd.f32 %v7654, %v7830
  %v7832 = vpop.f32.mrb[0].mxu0
  %7833 = vmatprep.mubr.f32.mxu0 0.0
  %v7834 = vand.u32 %v6618, 4294901760
  %7835 = vmatmul.mubr.f32.gmra.mrb[0].mxu0 %v7834
  %v7836 = vpop.f32.mrb[0].mxu0
  %v7837 = vadd.f32 %v7660, %v7836
  %v7838 = vpop.f32.mrb[0].mxu0
  %7839 = vmatprep.mubr.f32.mxu0 0.0
  %v7840 = vand.u32 %v6619, 4294901760
  %7841 = vmatmul.mubr.f32.gmra.mrb[0].mxu0 %v7840
  %v7842 = vpop.f32.mrb[0].mxu0
  %v7843 = vadd.f32 %v7666, %v7842
  %v7844 = vpop.f32.mrb[0].mxu0
  %7845 = vmatprep.mubr.f32.mxu0 0.0
  %v7846 = vand.u32 %v6620, 4294901760
  %7847 = vmatmul.mubr.f32.gmra.mrb[0].mxu0 %v7846
  %v7848 = vpop.f32.mrb[0].mxu0
  %v7849 = vadd.f32 %v7672, %v7848
  %v7850 = vpop.f32.mrb[0].mxu0
  %7851 = vmatprep.mubr.f32.mxu0 0.0
  %v7852 = vand.u32 %v6621, 4294901760
  %7853 = vmatmul.mubr.f32.gmra.mrb[0].mxu0 %v7852
  %v7854 = vpop.f32.mrb[0].mxu0
  %v7855 = vadd.f32 %v7678, %v7854
  %v7856 = vpop.f32.mrb[0].mxu0
  %7857 = vmatprep.mubr.f32.mxu0 0.0
  %v7858 = vand.u32 %v6622, 4294901760
  %7859 = vmatmul.mubr.f32.gmra.mrb[0].mxu0 %v7858
  %v7860 = vpop.f32.mrb[0].mxu0
  %v7861 = vadd.f32 %v7684, %v7860
  %v7862 = vpop.f32.mrb[0].mxu0
  %7863 = vmatprep.mubr.f32.mxu0 0.0
  %v7864 = vand.u32 %v6623, 4294901760
  %7865 = vmatmul.mubr.f32.gmra.mrb[0].mxu0 %v7864
  %v7866 = vpop.f32.mrb[0].mxu0
  %v7867 = vadd.f32 %v7690, %v7866
  %v7868 = vpop.f32.mrb[0].mxu0
  %7869 = vmatprep.mubr.f32.mxu0 0.0
  %v7870 = vand.u32 %v6624, 4294901760
  %7871 = vmatmul.mubr.f32.gmra.mrb[0].mxu0 %v7870
  %v7872 = vpop.f32.mrb[0].mxu0
  %v7873 = vadd.f32 %v7696, %v7872
  %v7874 = vpop.f32.mrb[0].mxu0
  %7875 = vmatprep.mubr.f32.mxu0 0.0
  %v7876 = vand.u32 %v6625, 4294901760
  %7877 = vmatmul.mubr.f32.gmra.mrb[0].mxu0 %v7876
  %v7878 = vpop.f32.mrb[0].mxu0
  %v7879 = vadd.f32 %v7702, %v7878
  %v7880 = vpop.f32.mrb[0].mxu0
  %7881 = vmatprep.mubr.f32.mxu0 0.0
  %v7882 = vand.u32 %v6626, 4294901760
  %7883 = vmatmul.mubr.f32.gmra.mrb[0].mxu0 %v7882
  %v7884 = vpop.f32.mrb[0].mxu0
  %v7885 = vadd.f32 %v7708, %v7884
  %v7886 = vpop.f32.mrb[0].mxu0
  %7887 = vmatprep.mubr.f32.mxu0 0.0
  %v7888 = vand.u32 %v6627, 4294901760
  %7889 = vmatmul.mubr.f32.gmra.mrb[0].mxu0 %v7888
  %v7890 = vpop.f32.mrb[0].mxu0
  %v7891 = vadd.f32 %v7714, %v7890
  %v7892 = vpop.f32.mrb[0].mxu0
  %7893 = vmatprep.mubr.f32.mxu0 0.0
  %v7894 = vand.u32 %v6628, 4294901760
  %7895 = vmatmul.mubr.f32.gmra.mrb[0].mxu0 %v7894
  %v7896 = vpop.f32.mrb[0].mxu0
  %v7897 = vadd.f32 %v7720, %v7896
  %v7898 = vpop.f32.mrb[0].mxu0
  %7899 = vmatprep.mubr.f32.mxu0 0.0
  %v7900 = vand.u32 %v6629, 4294901760
  %7901 = vmatmul.mubr.f32.gmra.mrb[0].mxu0 %v7900
  %v7902 = vpop.f32.mrb[0].mxu0
  %v7903 = vadd.f32 %v7726, %v7902
  %v7904 = vpop.f32.mrb[0].mxu0
  %7905 = vmatprep.mubr.f32.mxu0 0.0
  %v7906 = vand.u32 %v6630, 4294901760
  %7907 = vmatmul.mubr.f32.gmra.mrb[0].mxu0 %v7906
  %v7908 = vpop.f32.mrb[0].mxu0
  %v7909 = vadd.f32 %v7732, %v7908
  %v7910 = vpop.f32.mrb[0].mxu0
  %7911 = vmatprep.mubr.f32.mxu0 0.0
  %v7912 = vand.u32 %v6631, 4294901760
  %7913 = vmatmul.mubr.f32.gmra.mrb[0].mxu0 %v7912
  %v7914 = vpop.f32.mrb[0].mxu0
  %v7915 = vadd.f32 %v7738, %v7914
  %v7916 = vpop.f32.mrb[0].mxu0
  %7917 = vdwg.mxu0
  %7934 = vrot.lane.b32.xlu0 %v5173, 8
  %v7935 = vpop.permute.xlu0 %7934
  %7936 = vrot.lane.b32.xlu0 %v5179, 8
  %v7937 = vpop.permute.xlu0 %7936
  %7938 = vrot.lane.b32.xlu0 %v5185, 8
  %v7939 = vpop.permute.xlu0 %7938
  %7940 = vrot.lane.b32.xlu0 %v5191, 8
  %v7941 = vpop.permute.xlu0 %7940
  %7942 = vrot.lane.b32.xlu0 %v5197, 8
  %v7943 = vpop.permute.xlu0 %7942
  %7944 = vrot.lane.b32.xlu0 %v5203, 8
  %v7945 = vpop.permute.xlu0 %7944
  %7946 = vrot.lane.b32.xlu0 %v5209, 8
  %v7947 = vpop.permute.xlu0 %7946
  %7948 = vrot.lane.b32.xlu0 %v5215, 8
  %v7949 = vpop.permute.xlu0 %7948
  %7950 = vrot.lane.b32.xlu0 %v5221, 8
  %v7951 = vpop.permute.xlu0 %7950
  %7952 = vrot.lane.b32.xlu0 %v5227, 8
  %v7953 = vpop.permute.xlu0 %7952
  %7954 = vrot.lane.b32.xlu0 %v5233, 8
  %v7955 = vpop.permute.xlu0 %7954
  %7956 = vrot.lane.b32.xlu0 %v5239, 8
  %v7957 = vpop.permute.xlu0 %7956
  %7958 = vrot.lane.b32.xlu0 %v5245, 8
  %v7959 = vpop.permute.xlu0 %7958
  %7960 = vrot.lane.b32.xlu0 %v5251, 8
  %v7961 = vpop.permute.xlu0 %7960
  %7962 = vrot.lane.b32.xlu0 %v5257, 8
  %v7963 = vpop.permute.xlu0 %7962
  %7964 = vrot.lane.b32.xlu0 %v5263, 8
  %v7965 = vpop.permute.xlu0 %7964
  %7998 = vrot.lane.b32.xlu0 %v6491, 16
  %v7999 = vpop.permute.xlu0 %7998
  %8000 = vrot.lane.b32.xlu0 %v6497, 16
  %v8001 = vpop.permute.xlu0 %8000
  %8002 = vrot.lane.b32.xlu0 %v6503, 16
  %v8003 = vpop.permute.xlu0 %8002
  %8004 = vrot.lane.b32.xlu0 %v6509, 16
  %v8005 = vpop.permute.xlu0 %8004
  %8006 = vrot.lane.b32.xlu0 %v6515, 16
  %v8007 = vpop.permute.xlu0 %8006
  %8008 = vrot.lane.b32.xlu0 %v6521, 16
  %v8009 = vpop.permute.xlu0 %8008
  %8010 = vrot.lane.b32.xlu0 %v6527, 16
  %v8011 = vpop.permute.xlu0 %8010
  %8012 = vrot.lane.b32.xlu0 %v6533, 16
  %v8013 = vpop.permute.xlu0 %8012
  %8014 = vrot.lane.b32.xlu0 %v6539, 16
  %v8015 = vpop.permute.xlu0 %8014
  %8016 = vrot.lane.b32.xlu0 %v6545, 16
  %v8017 = vpop.permute.xlu0 %8016
  %8018 = vrot.lane.b32.xlu0 %v6551, 16
  %v8019 = vpop.permute.xlu0 %8018
  %8020 = vrot.lane.b32.xlu0 %v6557, 16
  %v8021 = vpop.permute.xlu0 %8020
  %8022 = vrot.lane.b32.xlu0 %v6563, 16
  %v8023 = vpop.permute.xlu0 %8022
  %8024 = vrot.lane.b32.xlu0 %v6569, 16
  %v8025 = vpop.permute.xlu0 %8024
  %8026 = vrot.lane.b32.xlu0 %v6575, 16
  %v8027 = vpop.permute.xlu0 %8026
  %8028 = vrot.lane.b32.xlu0 %v6581, 16
  %v8029 = vpop.permute.xlu0 %8028
  %8062 = vrot.lane.b32.xlu0 %v7825, 24
  %v8063 = vpop.permute.xlu0 %8062
  %8064 = vrot.lane.b32.xlu0 %v7831, 24
  %v8065 = vpop.permute.xlu0 %8064
  %8066 = vrot.lane.b32.xlu0 %v7837, 24
  %v8067 = vpop.permute.xlu0 %8066
  %8068 = vrot.lane.b32.xlu0 %v7843, 24
  %v8069 = vpop.permute.xlu0 %8068
  %8070 = vrot.lane.b32.xlu0 %v7849, 24
  %v8071 = vpop.permute.xlu0 %8070
  %8072 = vrot.lane.b32.xlu0 %v7855, 24
  %v8073 = vpop.permute.xlu0 %8072
  %8074 = vrot.lane.b32.xlu0 %v7861, 24
  %v8075 = vpop.permute.xlu0 %8074
  %8076 = vrot.lane.b32.xlu0 %v7867, 24
  %v8077 = vpop.permute.xlu0 %8076
  %8078 = vrot.lane.b32.xlu0 %v7873, 24
  %v8079 = vpop.permute.xlu0 %8078
  %8080 = vrot.lane.b32.xlu0 %v7879, 24
  %v8081 = vpop.permute.xlu0 %8080
  %8082 = vrot.lane.b32.xlu0 %v7885, 24
  %v8083 = vpop.permute.xlu0 %8082
  %8084 = vrot.lane.b32.xlu0 %v7891, 24
  %v8085 = vpop.permute.xlu0 %8084
  %8086 = vrot.lane.b32.xlu0 %v7897, 24
  %v8087 = vpop.permute.xlu0 %8086
  %8088 = vrot.lane.b32.xlu0 %v7903, 24
  %v8089 = vpop.permute.xlu0 %8088
  %8090 = vrot.lane.b32.xlu0 %v7909, 24
  %v8091 = vpop.permute.xlu0 %8090
  %8092 = vrot.lane.b32.xlu0 %v7915, 24
  %v8093 = vpop.permute.xlu0 %8092
  %vm8110 = vcmask 64512
  %v8111 = vsel %vm8110, %v3855, %v7935
  %v8112 = vsel %vm8110, %v3861, %v7937
  %v8113 = vsel %vm8110, %v3867, %v7939
  %v8114 = vsel %vm8110, %v3873, %v7941
  %v8115 = vsel %vm8110, %v3879, %v7943
  %v8116 = vsel %vm8110, %v3885, %v7945
  %v8117 = vsel %vm8110, %v3891, %v7947
  %v8118 = vsel %vm8110, %v3897, %v7949
  %v8119 = vsel %vm8110, %v3903, %v7951
  %v8120 = vsel %vm8110, %v3909, %v7953
  %v8121 = vsel %vm8110, %v3915, %v7955
  %v8122 = vsel %vm8110, %v3921, %v7957
  %v8123 = vsel %vm8110, %v3927, %v7959
  %v8124 = vsel %vm8110, %v3933, %v7961
  %v8125 = vsel %vm8110, %v3939, %v7963
  %v8126 = vsel %vm8110, %v3945, %v7965
  %vm8127 = vcmask 130048
  %v8128 = vsel %vm8127, %v8111, %v7999
  %v8129 = vsel %vm8127, %v8112, %v8001
  %v8130 = vsel %vm8127, %v8113, %v8003
  %v8131 = vsel %vm8127, %v8114, %v8005
  %v8132 = vsel %vm8127, %v8115, %v8007
  %v8133 = vsel %vm8127, %v8116, %v8009
  %v8134 = vsel %vm8127, %v8117, %v8011
  %v8135 = vsel %vm8127, %v8118, %v8013
  %v8136 = vsel %vm8127, %v8119, %v8015
  %v8137 = vsel %vm8127, %v8120, %v8017
  %v8138 = vsel %vm8127, %v8121, %v8019
  %v8139 = vsel %vm8127, %v8122, %v8021
  %v8140 = vsel %vm8127, %v8123, %v8023
  %v8141 = vsel %vm8127, %v8124, %v8025
  %v8142 = vsel %vm8127, %v8125, %v8027
  %v8143 = vsel %vm8127, %v8126, %v8029
  %vm8144 = vcmask 195584
  %v8145 = vsel %vm8144, %v8128, %v8063
  %v8146 = vsel %vm8144, %v8129, %v8065
  %v8147 = vsel %vm8144, %v8130, %v8067
  %v8148 = vsel %vm8144, %v8131, %v8069
  %v8149 = vsel %vm8144, %v8132, %v8071
  %v8150 = vsel %vm8144, %v8133, %v8073
  %v8151 = vsel %vm8144, %v8134, %v8075
  %v8152 = vsel %vm8144, %v8135, %v8077
  %v8153 = vsel %vm8144, %v8136, %v8079
  %v8154 = vsel %vm8144, %v8137, %v8081
  %v8155 = vsel %vm8144, %v8138, %v8083
  %v8156 = vsel %vm8144, %v8139, %v8085
  %v8157 = vsel %vm8144, %v8140, %v8087
  %v8158 = vsel %vm8144, %v8141, %v8089
  %v8159 = vsel %vm8144, %v8142, %v8091
  %v8160 = vsel %vm8144, %v8143, %v8093
  %vm8161 = vcmask 261120
  %8162 = vst.msk [vmem:[%s4] sm:$0xff] %vm8161, %v8145
  %8163 = vst.msk [vmem:[%s4 + $0x8] sm:$0xff] %vm8161, %v8146
  %8164 = vst.msk [vmem:[%s4 + $0x10] sm:$0xff] %vm8161, %v8147
  %8165 = vst.msk [vmem:[%s4 + $0x18] sm:$0xff] %vm8161, %v8148
  %8166 = vst.msk [vmem:[%s4 + $0x20] sm:$0xff] %vm8161, %v8149
  %8167 = vst.msk [vmem:[%s4 + $0x28] sm:$0xff] %vm8161, %v8150
  %8168 = vst.msk [vmem:[%s4 + $0x30] sm:$0xff] %vm8161, %v8151
  %8169 = vst.msk [vmem:[%s4 + $0x38] sm:$0xff] %vm8161, %v8152
  %8170 = vst.msk [vmem:[%s4 + $0x40] sm:$0xff] %vm8161, %v8153
  %8171 = vst.msk [vmem:[%s4 + $0x48] sm:$0xff] %vm8161, %v8154
  %8172 = vst.msk [vmem:[%s4 + $0x50] sm:$0xff] %vm8161, %v8155
  %8173 = vst.msk [vmem:[%s4 + $0x58] sm:$0xff] %vm8161, %v8156
  %8174 = vst.msk [vmem:[%s4 + $0x60] sm:$0xff] %vm8161, %v8157
  %8175 = vst.msk [vmem:[%s4 + $0x68] sm:$0xff] %vm8161, %v8158
  %8176 = vst.msk [vmem:[%s4 + $0x70] sm:$0xff] %vm8161, %v8159
  %8177 = vst.msk [vmem:[%s4 + $0x78] sm:$0xff] %vm8161, %v8160
  // Predicated region
  $region18: #{tpu_custom_call.1} parent=0 // pred_check
    _
  $region19: #{tpu_custom_call.1} parent=0 // pred_check_branch
    %8179 = sbr.rel (0) target = $region21
  $region20: #{tpu_custom_call.1} parent=0 // pred_region
    _
  $region21: #{tpu_custom_call.1} parent=0 // pred_fallthru
    _
  // Predicated region
  $region22: #{tpu_custom_call.1} parent=0 // pred_check
    _
  $region23: #{tpu_custom_call.1} parent=0 // pred_check_branch
    %8181 = sbr.rel (0) target = $region25
  $region24: #{tpu_custom_call.1} parent=0 // pred_region
    _
  $region25: #{tpu_custom_call.1} parent=0 // pred_fallthru
    _

</llo_original>
